<compile_context>
chip_gen: v7x
topology: tpu7x:2x2x1
jax: 0.10.0
libtpu: 0.0.40
codegen_flags: <defaults>
</compile_context>

<pallas_src>
import numpy as np
import jax
import jax.numpy as jnp
from jax.experimental import pallas as pl
from jax.experimental.pallas import tpu as pltpu

CP = 128           # lane-dense channel width carried end-to-end
NCP = 8            # sublane-padded class-head width

_PAR1 = pltpu.CompilerParams(
    dimension_semantics=("parallel",),
    vmem_limit_bytes=48 * 1024 * 1024,
)

# ----------------------------- Pallas kernels ------------------------------

def _conv3x3_relu_kernel(x_ref, w_ref, b_ref, o_ref):
    # x_ref: (H+2, W+2, CP) bf16 spatially padded image (one batch element)
    # w_ref: (9*CP, CP) bf16 tap-major weight (resident), b_ref: (1, CP) f32
    # o_ref: (H, W, CP) bf16
    hout, wout, _ = o_ref.shape

    @pl.loop(0, hout)
    def _(h):
        taps = []
        for dy in range(3):
            row = x_ref[h + dy]                      # (W+2, CP) bf16
            for dx in range(3):
                taps.append(row[dx:dx + wout, :])    # sublane shift, lanes dense
        slab = jnp.concatenate(taps, axis=-1)        # (W, 9*CP) bf16
        acc = jnp.dot(slab, w_ref[...],              # single K=9*CP MXU matmul
                      preferred_element_type=jnp.float32)
        o_ref[h] = jnp.maximum(acc + b_ref[...], 0.0).astype(o_ref.dtype)


def _maxpool2x2_kernel(x_ref, o_ref):
    # x_ref: (2*Ho, Wo, 2*CP) -- column pairs pre-merged into the lane axis by a
    # free reshape in glue.  o_ref: (Ho, Wo, CP).
    ho, wo, c = o_ref.shape
    v = x_ref[...].reshape(ho, 2, wo, 2 * c)
    v = jnp.maximum(v[:, 0], v[:, 1])                # vertical 2-tap max
    o_ref[...] = jnp.maximum(v[..., :c], v[..., c:]) # horizontal 2-tap max


def _head_upsample_kernel(x32_ref, x16_ref, w32_ref, b32_ref, w16_ref, b16_ref,
                          ah32_ref, awt32_ref, ah16_ref, awt16_ref, o_ref):
    # Fused: class heads (1x1 convs) + x2 upsample + skip add + x16 upsample,
    # via composed separable bilinear matrices.  One batch element per step.
    # x32_ref: (h32, CP, w32) bf16 channels-first rows of the stride-32 features
    # x16_ref: (h16, CP, w16) bf16 (stride-16 features)
    # w*_ref: (NCP, CP) bf16, b*_ref: (NCP, 1) f32
    # ah32: (Hout, h32), awt32: (w32, Wout), ah16: (Hout, h16), awt16: (w16, Wout)
    # o_ref: (n_class, Hout, Wout) f32
    nc = o_ref.shape[0]

    def row_maps(x_ref, w_ref, b_ref, awt_ref, hin):
        rows = []
        for i in range(hin):                                    # unrolled (<=4)
            cls = jnp.dot(w_ref[...], x_ref[i],                 # (NCP, win) f32
                          preferred_element_type=jnp.float32) + b_ref[...]
            rows.append(jnp.dot(cls, awt_ref[...],              # (NCP, Wout) f32
                                preferred_element_type=jnp.float32))
        return rows

    t32 = row_maps(x32_ref, w32_ref, b32_ref, awt32_ref, x32_ref.shape[0])
    t16 = row_maps(x16_ref, w16_ref, b16_ref, awt16_ref, x16_ref.shape[0])
    ah32 = ah32_ref[...]
    ah16 = ah16_ref[...]
    for c in range(nc):                                         # unrolled (4)
        tc32 = jnp.concatenate([t[c:c + 1, :] for t in t32], axis=0)  # (h32, Wout)
        tc16 = jnp.concatenate([t[c:c + 1, :] for t in t16], axis=0)  # (h16, Wout)
        o_ref[c] = (jnp.dot(ah32, tc32, preferred_element_type=jnp.float32)
                    + jnp.dot(ah16, tc16, preferred_element_type=jnp.float32))

# --------------------------- op wrappers (glue) -----------------------------

def conv3x3_relu(x, w, b):
    """PyTorch Conv2d(k=3, pad=1, bias=True) + ReLU on 128-channel-padded NHWC."""
    N, H, W, _ = x.shape
    cin, cout = w.shape[2], w.shape[3]
    wk = jnp.pad(w, ((0, 0), (0, 0), (0, CP - cin), (0, CP - cout)))
    wk = wk.reshape(9 * CP, CP).astype(jnp.bfloat16)             # tap-major rows
    bb = jnp.pad(b, (0, CP - cout)).reshape(1, CP).astype(jnp.float32)
    xp = jnp.pad(x, ((0, 0), (1, 1), (1, 1), (0, 0)))            # spatial halo
    return pl.pallas_call(
        _conv3x3_relu_kernel,
        out_shape=jax.ShapeDtypeStruct((N, H, W, CP), jnp.bfloat16),
        grid=(N,),
        in_specs=[pl.BlockSpec((None, H + 2, W + 2, CP), lambda n: (n, 0, 0, 0)),
                  pl.BlockSpec((9 * CP, CP), lambda n: (0, 0)),   # resident weight
                  pl.BlockSpec((1, CP), lambda n: (0, 0))],       # resident bias
        out_specs=pl.BlockSpec((None, H, W, CP), lambda n: (n, 0, 0, 0)),
        compiler_params=_PAR1,
    )(xp, wk, bb)


def maxpool2x2(x):
    """MaxPool2d(2, 2, 0, 1, ceil_mode=True); spatial sizes here are even, so
    ceil_mode is equivalent to floor mode."""
    N, H, W, C = x.shape
    Ho, Wo = H // 2, W // 2
    xg = x.reshape(N, H, Wo, 2 * C)                  # free reshape (no transpose)
    return pl.pallas_call(
        _maxpool2x2_kernel,
        out_shape=jax.ShapeDtypeStruct((N, Ho, Wo, C), x.dtype),
        grid=(N,),
        in_specs=[pl.BlockSpec((None, H, Wo, 2 * C), lambda n: (n, 0, 0, 0))],
        out_specs=pl.BlockSpec((None, Ho, Wo, C), lambda n: (n, 0, 0, 0)),
        compiler_params=_PAR1,
    )(xg)


def _bilinear_1d_matrix(in_size, scale):
    """1-D interpolation matrix matching F.interpolate(mode='bilinear',
    align_corners=False) with an integer scale_factor."""
    out_size = in_size * scale
    i = np.arange(out_size, dtype=np.float64)
    src = np.maximum((i + 0.5) / scale - 0.5, 0.0)
    i0 = np.minimum(np.floor(src).astype(np.int64), in_size - 1)
    i1 = np.minimum(i0 + 1, in_size - 1)
    frac = src - i0
    A = np.zeros((out_size, in_size), np.float64)
    A[np.arange(out_size), i0] += 1.0 - frac
    A[np.arange(out_size), i1] += frac
    return A


def head_and_upsample(out32, out16, w32, b32, w16, b16, n_class):
    """Fused class heads + (x2 upsample + skip add + x16 upsample)."""
    N, h32, w32s, _ = out32.shape
    _, h16, w16s, _ = out16.shape
    Hout, Wout = h16 * 16, w16s * 16

    def pad_wt(w, b):
        wp = jnp.pad(w, ((0, CP - w.shape[0]), (0, NCP - w.shape[1])))
        bp = jnp.pad(b, (0, NCP - b.shape[0]))
        return wp.T.astype(jnp.bfloat16), bp.reshape(NCP, 1).astype(jnp.float32)

    w32t, b32c = pad_wt(w32, b32)
    w16t, b16c = pad_wt(w16, b16)

    # composed 1-D bilinear matrices (trace-time constants, f32 throughout)
    a2h, a2w = _bilinear_1d_matrix(h32, 2), _bilinear_1d_matrix(w32s, 2)
    a16h, a16w = _bilinear_1d_matrix(h16, 16), _bilinear_1d_matrix(w16s, 16)
    ah32 = jnp.asarray(a16h @ a2h, jnp.float32)          # (Hout, h32)
    awt32 = jnp.asarray((a16w @ a2w).T, jnp.float32)     # (w32s, Wout)
    ah16 = jnp.asarray(a16h, jnp.float32)                # (Hout, h16)
    awt16 = jnp.asarray(a16w.T, jnp.float32)             # (w16s, Wout)

    # channels-first per spatial row (tiny trace-time transposes)
    x32cf = jnp.transpose(out32, (0, 1, 3, 2))           # (N, h32, CP, w32s)
    x16cf = jnp.transpose(out16, (0, 1, 3, 2))           # (N, h16, CP, w16s)

    return pl.pallas_call(
        _head_upsample_kernel,
        out_shape=jax.ShapeDtypeStruct((N, n_class, Hout, Wout), jnp.float32),
        grid=(N,),
        in_specs=[pl.BlockSpec((None, h32, CP, w32s), lambda n: (n, 0, 0, 0)),
                  pl.BlockSpec((None, h16, CP, w16s), lambda n: (n, 0, 0, 0)),
                  pl.BlockSpec((NCP, CP), lambda n: (0, 0)),
                  pl.BlockSpec((NCP, 1), lambda n: (0, 0)),
                  pl.BlockSpec((NCP, CP), lambda n: (0, 0)),
                  pl.BlockSpec((NCP, 1), lambda n: (0, 0)),
                  pl.BlockSpec((Hout, h32), lambda n: (0, 0)),
                  pl.BlockSpec((w32s, Wout), lambda n: (0, 0)),
                  pl.BlockSpec((Hout, h16), lambda n: (0, 0)),
                  pl.BlockSpec((w16s, Wout), lambda n: (0, 0))],
        out_specs=pl.BlockSpec((None, n_class, Hout, Wout), lambda n: (n, 0, 0, 0)),
        compiler_params=_PAR1,
    )(x32cf, x16cf, w32t, b32c, w16t, b16c, ah32, awt32, ah16, awt16)

# ----------------------------- model definition -----------------------------

WIDTHS = [3, 8, 16, 32, 64, 64]    # scaled-down VGG16 widths [3,64,128,256,512,512]
NCONVS = [2, 2, 3, 3, 3]           # convs per VGG block
FC6 = 128                          # scaled-down 4096
N_CLASS = 4


def init_params(key):
    params = {}

    def nrm(k, shape, scale):
        return jax.random.normal(k, shape, jnp.float32) * scale

    for s in range(5):
        cout = WIDTHS[s + 1]
        for j in range(NCONVS[s]):
            cin = WIDTHS[s] if j == 0 else cout
            key, kw, kb = jax.random.split(key, 3)
            params[f"c{s+1}_{j+1}_w"] = nrm(kw, (3, 3, cin, cout),
                                            float(np.sqrt(2.0 / (9 * cin))))
            params[f"c{s+1}_{j+1}_b"] = nrm(kb, (cout,), 0.01)
    key, k1, k2, k3, k4, k5, k6 = jax.random.split(key, 7)
    params["fc6_w"] = nrm(k1, (WIDTHS[5], FC6), float(np.sqrt(1.0 / WIDTHS[5])))
    params["fc6_b"] = nrm(k2, (FC6,), 0.01)
    params["fc7_w"] = nrm(k3, (FC6, N_CLASS), float(np.sqrt(1.0 / FC6)))
    params["fc7_b"] = nrm(k4, (N_CLASS,), 0.01)
    params["fc7_16_w"] = nrm(k5, (WIDTHS[4], N_CLASS), float(np.sqrt(1.0 / WIDTHS[4])))
    params["fc7_16_b"] = nrm(k6, (N_CLASS,), 0.01)
    return params


def fcn16_forward(params, x_nchw):
    # NCHW -> NHWC, pad channels to 128 lanes once and carry padded end-to-end
    x = jnp.transpose(x_nchw, (0, 2, 3, 1))
    x = jnp.pad(x, ((0, 0), (0, 0), (0, 0), (0, CP - x.shape[-1])))
    h = x.astype(jnp.bfloat16)

    out16 = None
    for s in range(5):                 # conv1..conv5: convs+ReLU then maxpool
        for j in range(NCONVS[s]):
            h = conv3x3_relu(h, params[f"c{s+1}_{j+1}_w"], params[f"c{s+1}_{j+1}_b"])
        h = maxpool2x2(h)
        if s == 3:
            out16 = h                  # conv4 block output (stride 16)
    out32 = h                          # conv5 block output (stride 32)

    # fc6 -> fc7: two bias-only 1x1 convs with NO nonlinearity in the reference
    # module, so they fold exactly into one 1x1 conv (trace-time weight algebra).
    w_comb = params["fc6_w"] @ params["fc7_w"]                    # (C, n_class)
    b_comb = params["fc6_b"] @ params["fc7_w"] + params["fc7_b"]

    # fused class heads + x2 upsample + skip add + x16 upsample -> NCHW f32
    return head_and_upsample(out32, out16, w_comb, b_comb,
                             params["fc7_16_w"], params["fc7_16_b"], N_CLASS)


if __name__ == "__main__":
    key = jax.random.PRNGKey(0)
    pkey, xkey = jax.random.split(key)
    params = init_params(pkey)
    x = jax.random.normal(xkey, (2, 3, 64, 64), jnp.float32)      # NCHW input
    fwd = jax.jit(fcn16_forward)
    out = fwd(params, x)
    jax.block_until_ready(out)
    assert out.shape == (2, N_CLASS, 64, 64), out.shape
    assert out.dtype == jnp.float32
    assert bool(jnp.isfinite(out).all())
    print("KERNEL_OK")
</pallas_src>

<mosaic_0001>
module attributes {stable_mosaic.version = 11 : i64} {
  func.func @_conv3x3_relu_kernel(%arg0: i32, %arg1: memref<1x66x66x128xbf16, #tpu.memory_space<vmem>>, %arg2: memref<1152x128xbf16, #tpu.memory_space<vmem>>, %arg3: memref<1x128xf32, #tpu.memory_space<vmem>>, %arg4: memref<1x64x64x128xbf16, #tpu.memory_space<vmem>>) attributes {dimension_semantics = [#tpu.dimension_semantics<parallel>], iteration_bounds = array<i64: 2>, scalar_prefetch = 0 : i64, scratch_operands = 0 : i64, tpu.core_type = #tpu.core_type<tc>, window_params = [{transform_indices = @transform_0, window_bounds = array<i64: 1, 66, 66, 128>}, {pipeline_mode = #tpu.pipeline_mode<synchronous>, transform_indices = @transform_1, window_bounds = array<i64: 1152, 128>}, {pipeline_mode = #tpu.pipeline_mode<synchronous>, transform_indices = @transform_2, window_bounds = array<i64: 1, 128>}, {transform_indices = @transform_3, window_bounds = array<i64: 1, 64, 64, 128>}]} {
    %c0_i32 = arith.constant 0 : i32
    %c64_i32 = arith.constant 64 : i32
    %0 = arith.addi %c0_i32, %c64_i32 : i32
    %c1_i32 = arith.constant 1 : i32
    scf.for %arg5 = %c0_i32 to %0 step %c1_i32  : i32 {
      %c1_i32_1 = arith.constant 1 : i32
      %1 = arith.muli %arg5, %c1_i32_1 : i32
      %c0_i32_2 = arith.constant 0 : i32
      %2 = arith.addi %c0_i32_2, %1 : i32
      %c0_i32_3 = arith.constant 0 : i32
      %3 = arith.addi %2, %c0_i32_3 : i32
      %c0 = arith.constant 0 : index
      %4 = arith.index_cast %3 : i32 to index
      %c0_4 = arith.constant 0 : index
      %c0_5 = arith.constant 0 : index
      %5 = vector.load %arg1[%c0, %4, %c0_4, %c0_5] : memref<1x66x66x128xbf16, #tpu.memory_space<vmem>>, vector<1x1x66x128xbf16>
      %6 = vector.shape_cast %5 : vector<1x1x66x128xbf16> to vector<66x128xbf16>
      %7 = vector.extract_strided_slice %6 {offsets = [0, 0], sizes = [64, 128], strides = [1, 1]} : vector<66x128xbf16> to vector<64x128xbf16>
      %8 = vector.extract_strided_slice %6 {offsets = [1, 0], sizes = [64, 128], strides = [1, 1]} : vector<66x128xbf16> to vector<64x128xbf16>
      %9 = vector.extract_strided_slice %6 {offsets = [2, 0], sizes = [64, 128], strides = [1, 1]} : vector<66x128xbf16> to vector<64x128xbf16>
      %c1_i32_6 = arith.constant 1 : i32
      %10 = arith.addi %2, %c1_i32_6 : i32
      %c0_7 = arith.constant 0 : index
      %11 = arith.index_cast %10 : i32 to index
      %c0_8 = arith.constant 0 : index
      %c0_9 = arith.constant 0 : index
      %12 = vector.load %arg1[%c0_7, %11, %c0_8, %c0_9] : memref<1x66x66x128xbf16, #tpu.memory_space<vmem>>, vector<1x1x66x128xbf16>
      %13 = vector.shape_cast %12 : vector<1x1x66x128xbf16> to vector<66x128xbf16>
      %14 = vector.extract_strided_slice %13 {offsets = [0, 0], sizes = [64, 128], strides = [1, 1]} : vector<66x128xbf16> to vector<64x128xbf16>
      %15 = vector.extract_strided_slice %13 {offsets = [1, 0], sizes = [64, 128], strides = [1, 1]} : vector<66x128xbf16> to vector<64x128xbf16>
      %16 = vector.extract_strided_slice %13 {offsets = [2, 0], sizes = [64, 128], strides = [1, 1]} : vector<66x128xbf16> to vector<64x128xbf16>
      %c2_i32 = arith.constant 2 : i32
      %17 = arith.addi %2, %c2_i32 : i32
      %c0_10 = arith.constant 0 : index
      %18 = arith.index_cast %17 : i32 to index
      %c0_11 = arith.constant 0 : index
      %c0_12 = arith.constant 0 : index
      %19 = vector.load %arg1[%c0_10, %18, %c0_11, %c0_12] : memref<1x66x66x128xbf16, #tpu.memory_space<vmem>>, vector<1x1x66x128xbf16>
      %20 = vector.shape_cast %19 : vector<1x1x66x128xbf16> to vector<66x128xbf16>
      %21 = vector.extract_strided_slice %20 {offsets = [0, 0], sizes = [64, 128], strides = [1, 1]} : vector<66x128xbf16> to vector<64x128xbf16>
      %22 = vector.extract_strided_slice %20 {offsets = [1, 0], sizes = [64, 128], strides = [1, 1]} : vector<66x128xbf16> to vector<64x128xbf16>
      %23 = vector.extract_strided_slice %20 {offsets = [2, 0], sizes = [64, 128], strides = [1, 1]} : vector<66x128xbf16> to vector<64x128xbf16>
      %24 = tpu.concatenate %7, %8, %9, %14, %15, %16, %21, %22, %23 in 1 : vector<64x128xbf16>, vector<64x128xbf16>, vector<64x128xbf16>, vector<64x128xbf16>, vector<64x128xbf16>, vector<64x128xbf16>, vector<64x128xbf16>, vector<64x128xbf16>, vector<64x128xbf16> -> vector<64x1152xbf16>
      %c0_13 = arith.constant 0 : index
      %c0_14 = arith.constant 0 : index
      %25 = vector.load %arg2[%c0_13, %c0_14] : memref<1152x128xbf16, #tpu.memory_space<vmem>>, vector<1152x128xbf16>
      %cst = arith.constant dense<0.000000e+00> : vector<64x128xf32>
      %26 = tpu.matmul %24, %25, %cst {dimension_numbers = #tpu.dot_dimension_numbers<[1], [0], [0], [1], [0, 0, 1, 1], [], []>} : vector<64x1152xbf16>, vector<1152x128xbf16>, vector<64x128xf32> -> vector<64x128xf32>
      %c0_15 = arith.constant 0 : index
      %c0_16 = arith.constant 0 : index
      %27 = vector.load %arg3[%c0_15, %c0_16] : memref<1x128xf32, #tpu.memory_space<vmem>>, vector<1x128xf32>
      %28 = vector.broadcast %27 : vector<1x128xf32> to vector<64x128xf32>
      %29 = arith.addf %26, %28 : vector<64x128xf32>
      %cst_17 = arith.constant 0.000000e+00 : f32
      %30 = vector.broadcast %cst_17 : f32 to vector<64x128xf32>
      %31 = arith.maximumf %29, %30 : vector<64x128xf32>
      %32 = arith.truncf %31 : vector<64x128xf32> to vector<64x128xbf16>
      %c0_18 = arith.constant 0 : index
      %33 = arith.index_cast %2 : i32 to index
      %c0_19 = arith.constant 0 : index
      %c0_20 = arith.constant 0 : index
      %34 = vector.load %arg4[%c0_18, %33, %c0_19, %c0_20] : memref<1x64x64x128xbf16, #tpu.memory_space<vmem>>, vector<1x1x64x128xbf16>
      %35 = vector.shape_cast %34 : vector<1x1x64x128xbf16> to vector<64x128xbf16>
      %36 = vector.shape_cast %32 : vector<64x128xbf16> to vector<1x1x64x128xbf16>
      tpu.vector_store %arg4[%c0_18, %33, %c0_19, %c0_20], %36 {strides = array<i32>} : memref<1x64x64x128xbf16, #tpu.memory_space<vmem>>, vector<1x1x64x128xbf16>,
    }
    %c64_i32_0 = arith.constant 64 : i32
    return
  }
  func.func @transform_0(%arg0: i32) -> (i32, i32, i32, i32) {
    %c0_i32 = arith.constant 0 : i32
    %c0_i32_0 = arith.constant 0 : i32
    %c0_i32_1 = arith.constant 0 : i32
    %c0_i32_2 = arith.constant 0 : i32
    return %arg0, %c0_i32, %c0_i32_0, %c0_i32_1 : i32, i32, i32, i32
  }
  func.func @transform_1(%arg0: i32) -> (i32, i32) {
    %c0_i32 = arith.constant 0 : i32
    %c0_i32_0 = arith.constant 0 : i32
    %c0_i32_1 = arith.constant 0 : i32
    return %c0_i32, %c0_i32_0 : i32, i32
  }
  func.func @transform_2(%arg0: i32) -> (i32, i32) {
    %c0_i32 = arith.constant 0 : i32
    %c0_i32_0 = arith.constant 0 : i32
    %c0_i32_1 = arith.constant 0 : i32
    return %c0_i32, %c0_i32_0 : i32, i32
  }
  func.func @transform_3(%arg0: i32) -> (i32, i32, i32, i32) {
    %c0_i32 = arith.constant 0 : i32
    %c0_i32_0 = arith.constant 0 : i32
    %c0_i32_1 = arith.constant 0 : i32
    %c0_i32_2 = arith.constant 0 : i32
    return %arg0, %c0_i32, %c0_i32_0, %c0_i32_1 : i32, i32, i32, i32
  }
}

module attributes {stable_mosaic.version = 11 : i64} {
  func.func @_maxpool2x2_kernel(%arg0: i32, %arg1: memref<1x64x32x256xbf16, #tpu.memory_space<vmem>>, %arg2: memref<1x32x32x128xbf16, #tpu.memory_space<vmem>>) attributes {dimension_semantics = [#tpu.dimension_semantics<parallel>], iteration_bounds = array<i64: 2>, scalar_prefetch = 0 : i64, scratch_operands = 0 : i64, tpu.core_type = #tpu.core_type<tc>, window_params = [{transform_indices = @transform_0, window_bounds = array<i64: 1, 64, 32, 256>}, {transform_indices = @transform_1, window_bounds = array<i64: 1, 32, 32, 128>}]} {
    %c0 = arith.constant 0 : index
    %c0_0 = arith.constant 0 : index
    %c0_1 = arith.constant 0 : index
    %c0_2 = arith.constant 0 : index
    %0 = vector.load %arg1[%c0, %c0_0, %c0_1, %c0_2] : memref<1x64x32x256xbf16, #tpu.memory_space<vmem>>, vector<1x64x32x256xbf16>
    %1 = vector.shape_cast %0 : vector<1x64x32x256xbf16> to vector<64x32x256xbf16>
    %2 = vector.shape_cast %1 : vector<64x32x256xbf16> to vector<32x2x32x256xbf16>
    %3 = vector.extract_strided_slice %2 {offsets = [0, 0, 0, 0], sizes = [32, 1, 32, 256], strides = [1, 1, 1, 1]} : vector<32x2x32x256xbf16> to vector<32x1x32x256xbf16>
    %4 = vector.shape_cast %3 : vector<32x1x32x256xbf16> to vector<32x32x256xbf16>
    %5 = vector.extract_strided_slice %2 {offsets = [0, 1, 0, 0], sizes = [32, 1, 32, 256], strides = [1, 1, 1, 1]} : vector<32x2x32x256xbf16> to vector<32x1x32x256xbf16>
    %6 = vector.shape_cast %5 : vector<32x1x32x256xbf16> to vector<32x32x256xbf16>
    %7 = arith.maximumf %4, %6 : vector<32x32x256xbf16>
    %8 = vector.extract_strided_slice %7 {offsets = [0, 0, 0], sizes = [32, 32, 128], strides = [1, 1, 1]} : vector<32x32x256xbf16> to vector<32x32x128xbf16>
    %9 = vector.extract_strided_slice %7 {offsets = [0, 0, 128], sizes = [32, 32, 128], strides = [1, 1, 1]} : vector<32x32x256xbf16> to vector<32x32x128xbf16>
    %10 = arith.maximumf %8, %9 : vector<32x32x128xbf16>
    %c0_3 = arith.constant 0 : index
    %c0_4 = arith.constant 0 : index
    %c0_5 = arith.constant 0 : index
    %c0_6 = arith.constant 0 : index
    %11 = vector.load %arg2[%c0_3, %c0_4, %c0_5, %c0_6] : memref<1x32x32x128xbf16, #tpu.memory_space<vmem>>, vector<1x32x32x128xbf16>
    %12 = vector.shape_cast %11 : vector<1x32x32x128xbf16> to vector<32x32x128xbf16>
    %13 = vector.shape_cast %10 : vector<32x32x128xbf16> to vector<1x32x32x128xbf16>
    tpu.vector_store %arg2[%c0_3, %c0_4, %c0_5, %c0_6], %13 {strides = array<i32>} : memref<1x32x32x128xbf16, #tpu.memory_space<vmem>>, vector<1x32x32x128xbf16>,
    return
  }
  func.func @transform_0(%arg0: i32) -> (i32, i32, i32, i32) {
    %c0_i32 = arith.constant 0 : i32
    %c0_i32_0 = arith.constant 0 : i32
    %c0_i32_1 = arith.constant 0 : i32
    %c0_i32_2 = arith.constant 0 : i32
    return %arg0, %c0_i32, %c0_i32_0, %c0_i32_1 : i32, i32, i32, i32
  }
  func.func @transform_1(%arg0: i32) -> (i32, i32, i32, i32) {
    %c0_i32 = arith.constant 0 : i32
    %c0_i32_0 = arith.constant 0 : i32
    %c0_i32_1 = arith.constant 0 : i32
    %c0_i32_2 = arith.constant 0 : i32
    return %arg0, %c0_i32, %c0_i32_0, %c0_i32_1 : i32, i32, i32, i32
  }
}

module attributes {stable_mosaic.version = 11 : i64} {
  func.func @_conv3x3_relu_kernel(%arg0: i32, %arg1: memref<1x34x34x128xbf16, #tpu.memory_space<vmem>>, %arg2: memref<1152x128xbf16, #tpu.memory_space<vmem>>, %arg3: memref<1x128xf32, #tpu.memory_space<vmem>>, %arg4: memref<1x32x32x128xbf16, #tpu.memory_space<vmem>>) attributes {dimension_semantics = [#tpu.dimension_semantics<parallel>], iteration_bounds = array<i64: 2>, scalar_prefetch = 0 : i64, scratch_operands = 0 : i64, tpu.core_type = #tpu.core_type<tc>, window_params = [{transform_indices = @transform_0, window_bounds = array<i64: 1, 34, 34, 128>}, {pipeline_mode = #tpu.pipeline_mode<synchronous>, transform_indices = @transform_1, window_bounds = array<i64: 1152, 128>}, {pipeline_mode = #tpu.pipeline_mode<synchronous>, transform_indices = @transform_2, window_bounds = array<i64: 1, 128>}, {transform_indices = @transform_3, window_bounds = array<i64: 1, 32, 32, 128>}]} {
    %c0_i32 = arith.constant 0 : i32
    %c32_i32 = arith.constant 32 : i32
    %0 = arith.addi %c0_i32, %c32_i32 : i32
    %c1_i32 = arith.constant 1 : i32
    scf.for %arg5 = %c0_i32 to %0 step %c1_i32  : i32 {
      %c1_i32_1 = arith.constant 1 : i32
      %1 = arith.muli %arg5, %c1_i32_1 : i32
      %c0_i32_2 = arith.constant 0 : i32
      %2 = arith.addi %c0_i32_2, %1 : i32
      %c0_i32_3 = arith.constant 0 : i32
      %3 = arith.addi %2, %c0_i32_3 : i32
      %c0 = arith.constant 0 : index
      %4 = arith.index_cast %3 : i32 to index
      %c0_4 = arith.constant 0 : index
      %c0_5 = arith.constant 0 : index
      %5 = vector.load %arg1[%c0, %4, %c0_4, %c0_5] : memref<1x34x34x128xbf16, #tpu.memory_space<vmem>>, vector<1x1x34x128xbf16>
      %6 = vector.shape_cast %5 : vector<1x1x34x128xbf16> to vector<34x128xbf16>
      %7 = vector.extract_strided_slice %6 {offsets = [0, 0], sizes = [32, 128], strides = [1, 1]} : vector<34x128xbf16> to vector<32x128xbf16>
      %8 = vector.extract_strided_slice %6 {offsets = [1, 0], sizes = [32, 128], strides = [1, 1]} : vector<34x128xbf16> to vector<32x128xbf16>
      %9 = vector.extract_strided_slice %6 {offsets = [2, 0], sizes = [32, 128], strides = [1, 1]} : vector<34x128xbf16> to vector<32x128xbf16>
      %c1_i32_6 = arith.constant 1 : i32
      %10 = arith.addi %2, %c1_i32_6 : i32
      %c0_7 = arith.constant 0 : index
      %11 = arith.index_cast %10 : i32 to index
      %c0_8 = arith.constant 0 : index
      %c0_9 = arith.constant 0 : index
      %12 = vector.load %arg1[%c0_7, %11, %c0_8, %c0_9] : memref<1x34x34x128xbf16, #tpu.memory_space<vmem>>, vector<1x1x34x128xbf16>
      %13 = vector.shape_cast %12 : vector<1x1x34x128xbf16> to vector<34x128xbf16>
      %14 = vector.extract_strided_slice %13 {offsets = [0, 0], sizes = [32, 128], strides = [1, 1]} : vector<34x128xbf16> to vector<32x128xbf16>
      %15 = vector.extract_strided_slice %13 {offsets = [1, 0], sizes = [32, 128], strides = [1, 1]} : vector<34x128xbf16> to vector<32x128xbf16>
      %16 = vector.extract_strided_slice %13 {offsets = [2, 0], sizes = [32, 128], strides = [1, 1]} : vector<34x128xbf16> to vector<32x128xbf16>
      %c2_i32 = arith.constant 2 : i32
      %17 = arith.addi %2, %c2_i32 : i32
      %c0_10 = arith.constant 0 : index
      %18 = arith.index_cast %17 : i32 to index
      %c0_11 = arith.constant 0 : index
      %c0_12 = arith.constant 0 : index
      %19 = vector.load %arg1[%c0_10, %18, %c0_11, %c0_12] : memref<1x34x34x128xbf16, #tpu.memory_space<vmem>>, vector<1x1x34x128xbf16>
      %20 = vector.shape_cast %19 : vector<1x1x34x128xbf16> to vector<34x128xbf16>
      %21 = vector.extract_strided_slice %20 {offsets = [0, 0], sizes = [32, 128], strides = [1, 1]} : vector<34x128xbf16> to vector<32x128xbf16>
      %22 = vector.extract_strided_slice %20 {offsets = [1, 0], sizes = [32, 128], strides = [1, 1]} : vector<34x128xbf16> to vector<32x128xbf16>
      %23 = vector.extract_strided_slice %20 {offsets = [2, 0], sizes = [32, 128], strides = [1, 1]} : vector<34x128xbf16> to vector<32x128xbf16>
      %24 = tpu.concatenate %7, %8, %9, %14, %15, %16, %21, %22, %23 in 1 : vector<32x128xbf16>, vector<32x128xbf16>, vector<32x128xbf16>, vector<32x128xbf16>, vector<32x128xbf16>, vector<32x128xbf16>, vector<32x128xbf16>, vector<32x128xbf16>, vector<32x128xbf16> -> vector<32x1152xbf16>
      %c0_13 = arith.constant 0 : index
      %c0_14 = arith.constant 0 : index
      %25 = vector.load %arg2[%c0_13, %c0_14] : memref<1152x128xbf16, #tpu.memory_space<vmem>>, vector<1152x128xbf16>
      %cst = arith.constant dense<0.000000e+00> : vector<32x128xf32>
      %26 = tpu.matmul %24, %25, %cst {dimension_numbers = #tpu.dot_dimension_numbers<[1], [0], [0], [1], [0, 0, 1, 1], [], []>} : vector<32x1152xbf16>, vector<1152x128xbf16>, vector<32x128xf32> -> vector<32x128xf32>
      %c0_15 = arith.constant 0 : index
      %c0_16 = arith.constant 0 : index
      %27 = vector.load %arg3[%c0_15, %c0_16] : memref<1x128xf32, #tpu.memory_space<vmem>>, vector<1x128xf32>
      %28 = vector.broadcast %27 : vector<1x128xf32> to vector<32x128xf32>
      %29 = arith.addf %26, %28 : vector<32x128xf32>
      %cst_17 = arith.constant 0.000000e+00 : f32
      %30 = vector.broadcast %cst_17 : f32 to vector<32x128xf32>
      %31 = arith.maximumf %29, %30 : vector<32x128xf32>
      %32 = arith.truncf %31 : vector<32x128xf32> to vector<32x128xbf16>
      %c0_18 = arith.constant 0 : index
      %33 = arith.index_cast %2 : i32 to index
      %c0_19 = arith.constant 0 : index
      %c0_20 = arith.constant 0 : index
      %34 = vector.load %arg4[%c0_18, %33, %c0_19, %c0_20] : memref<1x32x32x128xbf16, #tpu.memory_space<vmem>>, vector<1x1x32x128xbf16>
      %35 = vector.shape_cast %34 : vector<1x1x32x128xbf16> to vector<32x128xbf16>
      %36 = vector.shape_cast %32 : vector<32x128xbf16> to vector<1x1x32x128xbf16>
      tpu.vector_store %arg4[%c0_18, %33, %c0_19, %c0_20], %36 {strides = array<i32>} : memref<1x32x32x128xbf16, #tpu.memory_space<vmem>>, vector<1x1x32x128xbf16>,
    }
    %c32_i32_0 = arith.constant 32 : i32
    return
  }
  func.func @transform_0(%arg0: i32) -> (i32, i32, i32, i32) {
    %c0_i32 = arith.constant 0 : i32
    %c0_i32_0 = arith.constant 0 : i32
    %c0_i32_1 = arith.constant 0 : i32
    %c0_i32_2 = arith.constant 0 : i32
    return %arg0, %c0_i32, %c0_i32_0, %c0_i32_1 : i32, i32, i32, i32
  }
  func.func @transform_1(%arg0: i32) -> (i32, i32) {
    %c0_i32 = arith.constant 0 : i32
    %c0_i32_0 = arith.constant 0 : i32
    %c0_i32_1 = arith.constant 0 : i32
    return %c0_i32, %c0_i32_0 : i32, i32
  }
  func.func @transform_2(%arg0: i32) -> (i32, i32) {
    %c0_i32 = arith.constant 0 : i32
    %c0_i32_0 = arith.constant 0 : i32
    %c0_i32_1 = arith.constant 0 : i32
    return %c0_i32, %c0_i32_0 : i32, i32
  }
  func.func @transform_3(%arg0: i32) -> (i32, i32, i32, i32) {
    %c0_i32 = arith.constant 0 : i32
    %c0_i32_0 = arith.constant 0 : i32
    %c0_i32_1 = arith.constant 0 : i32
    %c0_i32_2 = arith.constant 0 : i32
    return %arg0, %c0_i32, %c0_i32_0, %c0_i32_1 : i32, i32, i32, i32
  }
}

module attributes {stable_mosaic.version = 11 : i64} {
  func.func @_maxpool2x2_kernel(%arg0: i32, %arg1: memref<1x32x16x256xbf16, #tpu.memory_space<vmem>>, %arg2: memref<1x16x16x128xbf16, #tpu.memory_space<vmem>>) attributes {dimension_semantics = [#tpu.dimension_semantics<parallel>], iteration_bounds = array<i64: 2>, scalar_prefetch = 0 : i64, scratch_operands = 0 : i64, tpu.core_type = #tpu.core_type<tc>, window_params = [{transform_indices = @transform_0, window_bounds = array<i64: 1, 32, 16, 256>}, {transform_indices = @transform_1, window_bounds = array<i64: 1, 16, 16, 128>}]} {
    %c0 = arith.constant 0 : index
    %c0_0 = arith.constant 0 : index
    %c0_1 = arith.constant 0 : index
    %c0_2 = arith.constant 0 : index
    %0 = vector.load %arg1[%c0, %c0_0, %c0_1, %c0_2] : memref<1x32x16x256xbf16, #tpu.memory_space<vmem>>, vector<1x32x16x256xbf16>
    %1 = vector.shape_cast %0 : vector<1x32x16x256xbf16> to vector<32x16x256xbf16>
    %2 = vector.shape_cast %1 : vector<32x16x256xbf16> to vector<16x2x16x256xbf16>
    %3 = vector.extract_strided_slice %2 {offsets = [0, 0, 0, 0], sizes = [16, 1, 16, 256], strides = [1, 1, 1, 1]} : vector<16x2x16x256xbf16> to vector<16x1x16x256xbf16>
    %4 = vector.shape_cast %3 : vector<16x1x16x256xbf16> to vector<16x16x256xbf16>
    %5 = vector.extract_strided_slice %2 {offsets = [0, 1, 0, 0], sizes = [16, 1, 16, 256], strides = [1, 1, 1, 1]} : vector<16x2x16x256xbf16> to vector<16x1x16x256xbf16>
    %6 = vector.shape_cast %5 : vector<16x1x16x256xbf16> to vector<16x16x256xbf16>
    %7 = arith.maximumf %4, %6 : vector<16x16x256xbf16>
    %8 = vector.extract_strided_slice %7 {offsets = [0, 0, 0], sizes = [16, 16, 128], strides = [1, 1, 1]} : vector<16x16x256xbf16> to vector<16x16x128xbf16>
    %9 = vector.extract_strided_slice %7 {offsets = [0, 0, 128], sizes = [16, 16, 128], strides = [1, 1, 1]} : vector<16x16x256xbf16> to vector<16x16x128xbf16>
    %10 = arith.maximumf %8, %9 : vector<16x16x128xbf16>
    %c0_3 = arith.constant 0 : index
    %c0_4 = arith.constant 0 : index
    %c0_5 = arith.constant 0 : index
    %c0_6 = arith.constant 0 : index
    %11 = vector.load %arg2[%c0_3, %c0_4, %c0_5, %c0_6] : memref<1x16x16x128xbf16, #tpu.memory_space<vmem>>, vector<1x16x16x128xbf16>
    %12 = vector.shape_cast %11 : vector<1x16x16x128xbf16> to vector<16x16x128xbf16>
    %13 = vector.shape_cast %10 : vector<16x16x128xbf16> to vector<1x16x16x128xbf16>
    tpu.vector_store %arg2[%c0_3, %c0_4, %c0_5, %c0_6], %13 {strides = array<i32>} : memref<1x16x16x128xbf16, #tpu.memory_space<vmem>>, vector<1x16x16x128xbf16>,
    return
  }
  func.func @transform_0(%arg0: i32) -> (i32, i32, i32, i32) {
    %c0_i32 = arith.constant 0 : i32
    %c0_i32_0 = arith.constant 0 : i32
    %c0_i32_1 = arith.constant 0 : i32
    %c0_i32_2 = arith.constant 0 : i32
    return %arg0, %c0_i32, %c0_i32_0, %c0_i32_1 : i32, i32, i32, i32
  }
  func.func @transform_1(%arg0: i32) -> (i32, i32, i32, i32) {
    %c0_i32 = arith.constant 0 : i32
    %c0_i32_0 = arith.constant 0 : i32
    %c0_i32_1 = arith.constant 0 : i32
    %c0_i32_2 = arith.constant 0 : i32
    return %arg0, %c0_i32, %c0_i32_0, %c0_i32_1 : i32, i32, i32, i32
  }
}

module attributes {stable_mosaic.version = 11 : i64} {
  func.func @_conv3x3_relu_kernel(%arg0: i32, %arg1: memref<1x18x18x128xbf16, #tpu.memory_space<vmem>>, %arg2: memref<1152x128xbf16, #tpu.memory_space<vmem>>, %arg3: memref<1x128xf32, #tpu.memory_space<vmem>>, %arg4: memref<1x16x16x128xbf16, #tpu.memory_space<vmem>>) attributes {dimension_semantics = [#tpu.dimension_semantics<parallel>], iteration_bounds = array<i64: 2>, scalar_prefetch = 0 : i64, scratch_operands = 0 : i64, tpu.core_type = #tpu.core_type<tc>, window_params = [{transform_indices = @transform_0, window_bounds = array<i64: 1, 18, 18, 128>}, {pipeline_mode = #tpu.pipeline_mode<synchronous>, transform_indices = @transform_1, window_bounds = array<i64: 1152, 128>}, {pipeline_mode = #tpu.pipeline_mode<synchronous>, transform_indices = @transform_2, window_bounds = array<i64: 1, 128>}, {transform_indices = @transform_3, window_bounds = array<i64: 1, 16, 16, 128>}]} {
    %c0_i32 = arith.constant 0 : i32
    %c16_i32 = arith.constant 16 : i32
    %0 = arith.addi %c0_i32, %c16_i32 : i32
    %c1_i32 = arith.constant 1 : i32
    scf.for %arg5 = %c0_i32 to %0 step %c1_i32  : i32 {
      %c1_i32_1 = arith.constant 1 : i32
      %1 = arith.muli %arg5, %c1_i32_1 : i32
      %c0_i32_2 = arith.constant 0 : i32
      %2 = arith.addi %c0_i32_2, %1 : i32
      %c0_i32_3 = arith.constant 0 : i32
      %3 = arith.addi %2, %c0_i32_3 : i32
      %c0 = arith.constant 0 : index
      %4 = arith.index_cast %3 : i32 to index
      %c0_4 = arith.constant 0 : index
      %c0_5 = arith.constant 0 : index
      %5 = vector.load %arg1[%c0, %4, %c0_4, %c0_5] : memref<1x18x18x128xbf16, #tpu.memory_space<vmem>>, vector<1x1x18x128xbf16>
      %6 = vector.shape_cast %5 : vector<1x1x18x128xbf16> to vector<18x128xbf16>
      %7 = vector.extract_strided_slice %6 {offsets = [0, 0], sizes = [16, 128], strides = [1, 1]} : vector<18x128xbf16> to vector<16x128xbf16>
      %8 = vector.extract_strided_slice %6 {offsets = [1, 0], sizes = [16, 128], strides = [1, 1]} : vector<18x128xbf16> to vector<16x128xbf16>
      %9 = vector.extract_strided_slice %6 {offsets = [2, 0], sizes = [16, 128], strides = [1, 1]} : vector<18x128xbf16> to vector<16x128xbf16>
      %c1_i32_6 = arith.constant 1 : i32
      %10 = arith.addi %2, %c1_i32_6 : i32
      %c0_7 = arith.constant 0 : index
      %11 = arith.index_cast %10 : i32 to index
      %c0_8 = arith.constant 0 : index
      %c0_9 = arith.constant 0 : index
      %12 = vector.load %arg1[%c0_7, %11, %c0_8, %c0_9] : memref<1x18x18x128xbf16, #tpu.memory_space<vmem>>, vector<1x1x18x128xbf16>
      %13 = vector.shape_cast %12 : vector<1x1x18x128xbf16> to vector<18x128xbf16>
      %14 = vector.extract_strided_slice %13 {offsets = [0, 0], sizes = [16, 128], strides = [1, 1]} : vector<18x128xbf16> to vector<16x128xbf16>
      %15 = vector.extract_strided_slice %13 {offsets = [1, 0], sizes = [16, 128], strides = [1, 1]} : vector<18x128xbf16> to vector<16x128xbf16>
      %16 = vector.extract_strided_slice %13 {offsets = [2, 0], sizes = [16, 128], strides = [1, 1]} : vector<18x128xbf16> to vector<16x128xbf16>
      %c2_i32 = arith.constant 2 : i32
      %17 = arith.addi %2, %c2_i32 : i32
      %c0_10 = arith.constant 0 : index
      %18 = arith.index_cast %17 : i32 to index
      %c0_11 = arith.constant 0 : index
      %c0_12 = arith.constant 0 : index
      %19 = vector.load %arg1[%c0_10, %18, %c0_11, %c0_12] : memref<1x18x18x128xbf16, #tpu.memory_space<vmem>>, vector<1x1x18x128xbf16>
      %20 = vector.shape_cast %19 : vector<1x1x18x128xbf16> to vector<18x128xbf16>
      %21 = vector.extract_strided_slice %20 {offsets = [0, 0], sizes = [16, 128], strides = [1, 1]} : vector<18x128xbf16> to vector<16x128xbf16>
      %22 = vector.extract_strided_slice %20 {offsets = [1, 0], sizes = [16, 128], strides = [1, 1]} : vector<18x128xbf16> to vector<16x128xbf16>
      %23 = vector.extract_strided_slice %20 {offsets = [2, 0], sizes = [16, 128], strides = [1, 1]} : vector<18x128xbf16> to vector<16x128xbf16>
      %24 = tpu.concatenate %7, %8, %9, %14, %15, %16, %21, %22, %23 in 1 : vector<16x128xbf16>, vector<16x128xbf16>, vector<16x128xbf16>, vector<16x128xbf16>, vector<16x128xbf16>, vector<16x128xbf16>, vector<16x128xbf16>, vector<16x128xbf16>, vector<16x128xbf16> -> vector<16x1152xbf16>
      %c0_13 = arith.constant 0 : index
      %c0_14 = arith.constant 0 : index
      %25 = vector.load %arg2[%c0_13, %c0_14] : memref<1152x128xbf16, #tpu.memory_space<vmem>>, vector<1152x128xbf16>
      %cst = arith.constant dense<0.000000e+00> : vector<16x128xf32>
      %26 = tpu.matmul %24, %25, %cst {dimension_numbers = #tpu.dot_dimension_numbers<[1], [0], [0], [1], [0, 0, 1, 1], [], []>} : vector<16x1152xbf16>, vector<1152x128xbf16>, vector<16x128xf32> -> vector<16x128xf32>
      %c0_15 = arith.constant 0 : index
      %c0_16 = arith.constant 0 : index
      %27 = vector.load %arg3[%c0_15, %c0_16] : memref<1x128xf32, #tpu.memory_space<vmem>>, vector<1x128xf32>
      %28 = vector.broadcast %27 : vector<1x128xf32> to vector<16x128xf32>
      %29 = arith.addf %26, %28 : vector<16x128xf32>
      %cst_17 = arith.constant 0.000000e+00 : f32
      %30 = vector.broadcast %cst_17 : f32 to vector<16x128xf32>
      %31 = arith.maximumf %29, %30 : vector<16x128xf32>
      %32 = arith.truncf %31 : vector<16x128xf32> to vector<16x128xbf16>
      %c0_18 = arith.constant 0 : index
      %33 = arith.index_cast %2 : i32 to index
      %c0_19 = arith.constant 0 : index
      %c0_20 = arith.constant 0 : index
      %34 = vector.load %arg4[%c0_18, %33, %c0_19, %c0_20] : memref<1x16x16x128xbf16, #tpu.memory_space<vmem>>, vector<1x1x16x128xbf16>
      %35 = vector.shape_cast %34 : vector<1x1x16x128xbf16> to vector<16x128xbf16>
      %36 = vector.shape_cast %32 : vector<16x128xbf16> to vector<1x1x16x128xbf16>
      tpu.vector_store %arg4[%c0_18, %33, %c0_19, %c0_20], %36 {strides = array<i32>} : memref<1x16x16x128xbf16, #tpu.memory_space<vmem>>, vector<1x1x16x128xbf16>,
    }
    %c16_i32_0 = arith.constant 16 : i32
    return
  }
  func.func @transform_0(%arg0: i32) -> (i32, i32, i32, i32) {
    %c0_i32 = arith.constant 0 : i32
    %c0_i32_0 = arith.constant 0 : i32
    %c0_i32_1 = arith.constant 0 : i32
    %c0_i32_2 = arith.constant 0 : i32
    return %arg0, %c0_i32, %c0_i32_0, %c0_i32_1 : i32, i32, i32, i32
  }
  func.func @transform_1(%arg0: i32) -> (i32, i32) {
    %c0_i32 = arith.constant 0 : i32
    %c0_i32_0 = arith.constant 0 : i32
    %c0_i32_1 = arith.constant 0 : i32
    return %c0_i32, %c0_i32_0 : i32, i32
  }
  func.func @transform_2(%arg0: i32) -> (i32, i32) {
    %c0_i32 = arith.constant 0 : i32
    %c0_i32_0 = arith.constant 0 : i32
    %c0_i32_1 = arith.constant 0 : i32
    return %c0_i32, %c0_i32_0 : i32, i32
  }
  func.func @transform_3(%arg0: i32) -> (i32, i32, i32, i32) {
    %c0_i32 = arith.constant 0 : i32
    %c0_i32_0 = arith.constant 0 : i32
    %c0_i32_1 = arith.constant 0 : i32
    %c0_i32_2 = arith.constant 0 : i32
    return %arg0, %c0_i32, %c0_i32_0, %c0_i32_1 : i32, i32, i32, i32
  }
}

module attributes {stable_mosaic.version = 11 : i64} {
  func.func @_maxpool2x2_kernel(%arg0: i32, %arg1: memref<1x16x8x256xbf16, #tpu.memory_space<vmem>>, %arg2: memref<1x8x8x128xbf16, #tpu.memory_space<vmem>>) attributes {dimension_semantics = [#tpu.dimension_semantics<parallel>], iteration_bounds = array<i64: 2>, scalar_prefetch = 0 : i64, scratch_operands = 0 : i64, tpu.core_type = #tpu.core_type<tc>, window_params = [{transform_indices = @transform_0, window_bounds = array<i64: 1, 16, 8, 256>}, {transform_indices = @transform_1, window_bounds = array<i64: 1, 8, 8, 128>}]} {
    %c0 = arith.constant 0 : index
    %c0_0 = arith.constant 0 : index
    %c0_1 = arith.constant 0 : index
    %c0_2 = arith.constant 0 : index
    %0 = vector.load %arg1[%c0, %c0_0, %c0_1, %c0_2] : memref<1x16x8x256xbf16, #tpu.memory_space<vmem>>, vector<1x16x8x256xbf16>
    %1 = vector.shape_cast %0 : vector<1x16x8x256xbf16> to vector<16x8x256xbf16>
    %2 = vector.shape_cast %1 : vector<16x8x256xbf16> to vector<8x2x8x256xbf16>
    %3 = vector.extract_strided_slice %2 {offsets = [0, 0, 0, 0], sizes = [8, 1, 8, 256], strides = [1, 1, 1, 1]} : vector<8x2x8x256xbf16> to vector<8x1x8x256xbf16>
    %4 = vector.shape_cast %3 : vector<8x1x8x256xbf16> to vector<8x8x256xbf16>
    %5 = vector.extract_strided_slice %2 {offsets = [0, 1, 0, 0], sizes = [8, 1, 8, 256], strides = [1, 1, 1, 1]} : vector<8x2x8x256xbf16> to vector<8x1x8x256xbf16>
    %6 = vector.shape_cast %5 : vector<8x1x8x256xbf16> to vector<8x8x256xbf16>
    %7 = arith.maximumf %4, %6 : vector<8x8x256xbf16>
    %8 = vector.extract_strided_slice %7 {offsets = [0, 0, 0], sizes = [8, 8, 128], strides = [1, 1, 1]} : vector<8x8x256xbf16> to vector<8x8x128xbf16>
    %9 = vector.extract_strided_slice %7 {offsets = [0, 0, 128], sizes = [8, 8, 128], strides = [1, 1, 1]} : vector<8x8x256xbf16> to vector<8x8x128xbf16>
    %10 = arith.maximumf %8, %9 : vector<8x8x128xbf16>
    %c0_3 = arith.constant 0 : index
    %c0_4 = arith.constant 0 : index
    %c0_5 = arith.constant 0 : index
    %c0_6 = arith.constant 0 : index
    %11 = vector.load %arg2[%c0_3, %c0_4, %c0_5, %c0_6] : memref<1x8x8x128xbf16, #tpu.memory_space<vmem>>, vector<1x8x8x128xbf16>
    %12 = vector.shape_cast %11 : vector<1x8x8x128xbf16> to vector<8x8x128xbf16>
    %13 = vector.shape_cast %10 : vector<8x8x128xbf16> to vector<1x8x8x128xbf16>
    tpu.vector_store %arg2[%c0_3, %c0_4, %c0_5, %c0_6], %13 {strides = array<i32>} : memref<1x8x8x128xbf16, #tpu.memory_space<vmem>>, vector<1x8x8x128xbf16>,
    return
  }
  func.func @transform_0(%arg0: i32) -> (i32, i32, i32, i32) {
    %c0_i32 = arith.constant 0 : i32
    %c0_i32_0 = arith.constant 0 : i32
    %c0_i32_1 = arith.constant 0 : i32
    %c0_i32_2 = arith.constant 0 : i32
    return %arg0, %c0_i32, %c0_i32_0, %c0_i32_1 : i32, i32, i32, i32
  }
  func.func @transform_1(%arg0: i32) -> (i32, i32, i32, i32) {
    %c0_i32 = arith.constant 0 : i32
    %c0_i32_0 = arith.constant 0 : i32
    %c0_i32_1 = arith.constant 0 : i32
    %c0_i32_2 = arith.constant 0 : i32
    return %arg0, %c0_i32, %c0_i32_0, %c0_i32_1 : i32, i32, i32, i32
  }
}

module attributes {stable_mosaic.version = 11 : i64} {
  func.func @_conv3x3_relu_kernel(%arg0: i32, %arg1: memref<1x10x10x128xbf16, #tpu.memory_space<vmem>>, %arg2: memref<1152x128xbf16, #tpu.memory_space<vmem>>, %arg3: memref<1x128xf32, #tpu.memory_space<vmem>>, %arg4: memref<1x8x8x128xbf16, #tpu.memory_space<vmem>>) attributes {dimension_semantics = [#tpu.dimension_semantics<parallel>], iteration_bounds = array<i64: 2>, scalar_prefetch = 0 : i64, scratch_operands = 0 : i64, tpu.core_type = #tpu.core_type<tc>, window_params = [{transform_indices = @transform_0, window_bounds = array<i64: 1, 10, 10, 128>}, {pipeline_mode = #tpu.pipeline_mode<synchronous>, transform_indices = @transform_1, window_bounds = array<i64: 1152, 128>}, {pipeline_mode = #tpu.pipeline_mode<synchronous>, transform_indices = @transform_2, window_bounds = array<i64: 1, 128>}, {transform_indices = @transform_3, window_bounds = array<i64: 1, 8, 8, 128>}]} {
    %c0_i32 = arith.constant 0 : i32
    %c8_i32 = arith.constant 8 : i32
    %0 = arith.addi %c0_i32, %c8_i32 : i32
    %c1_i32 = arith.constant 1 : i32
    scf.for %arg5 = %c0_i32 to %0 step %c1_i32  : i32 {
      %c1_i32_1 = arith.constant 1 : i32
      %1 = arith.muli %arg5, %c1_i32_1 : i32
      %c0_i32_2 = arith.constant 0 : i32
      %2 = arith.addi %c0_i32_2, %1 : i32
      %c0_i32_3 = arith.constant 0 : i32
      %3 = arith.addi %2, %c0_i32_3 : i32
      %c0 = arith.constant 0 : index
      %4 = arith.index_cast %3 : i32 to index
      %c0_4 = arith.constant 0 : index
      %c0_5 = arith.constant 0 : index
      %5 = vector.load %arg1[%c0, %4, %c0_4, %c0_5] : memref<1x10x10x128xbf16, #tpu.memory_space<vmem>>, vector<1x1x10x128xbf16>
      %6 = vector.shape_cast %5 : vector<1x1x10x128xbf16> to vector<10x128xbf16>
      %7 = vector.extract_strided_slice %6 {offsets = [0, 0], sizes = [8, 128], strides = [1, 1]} : vector<10x128xbf16> to vector<8x128xbf16>
      %8 = vector.extract_strided_slice %6 {offsets = [1, 0], sizes = [8, 128], strides = [1, 1]} : vector<10x128xbf16> to vector<8x128xbf16>
      %9 = vector.extract_strided_slice %6 {offsets = [2, 0], sizes = [8, 128], strides = [1, 1]} : vector<10x128xbf16> to vector<8x128xbf16>
      %c1_i32_6 = arith.constant 1 : i32
      %10 = arith.addi %2, %c1_i32_6 : i32
      %c0_7 = arith.constant 0 : index
      %11 = arith.index_cast %10 : i32 to index
      %c0_8 = arith.constant 0 : index
      %c0_9 = arith.constant 0 : index
      %12 = vector.load %arg1[%c0_7, %11, %c0_8, %c0_9] : memref<1x10x10x128xbf16, #tpu.memory_space<vmem>>, vector<1x1x10x128xbf16>
      %13 = vector.shape_cast %12 : vector<1x1x10x128xbf16> to vector<10x128xbf16>
      %14 = vector.extract_strided_slice %13 {offsets = [0, 0], sizes = [8, 128], strides = [1, 1]} : vector<10x128xbf16> to vector<8x128xbf16>
      %15 = vector.extract_strided_slice %13 {offsets = [1, 0], sizes = [8, 128], strides = [1, 1]} : vector<10x128xbf16> to vector<8x128xbf16>
      %16 = vector.extract_strided_slice %13 {offsets = [2, 0], sizes = [8, 128], strides = [1, 1]} : vector<10x128xbf16> to vector<8x128xbf16>
      %c2_i32 = arith.constant 2 : i32
      %17 = arith.addi %2, %c2_i32 : i32
      %c0_10 = arith.constant 0 : index
      %18 = arith.index_cast %17 : i32 to index
      %c0_11 = arith.constant 0 : index
      %c0_12 = arith.constant 0 : index
      %19 = vector.load %arg1[%c0_10, %18, %c0_11, %c0_12] : memref<1x10x10x128xbf16, #tpu.memory_space<vmem>>, vector<1x1x10x128xbf16>
      %20 = vector.shape_cast %19 : vector<1x1x10x128xbf16> to vector<10x128xbf16>
      %21 = vector.extract_strided_slice %20 {offsets = [0, 0], sizes = [8, 128], strides = [1, 1]} : vector<10x128xbf16> to vector<8x128xbf16>
      %22 = vector.extract_strided_slice %20 {offsets = [1, 0], sizes = [8, 128], strides = [1, 1]} : vector<10x128xbf16> to vector<8x128xbf16>
      %23 = vector.extract_strided_slice %20 {offsets = [2, 0], sizes = [8, 128], strides = [1, 1]} : vector<10x128xbf16> to vector<8x128xbf16>
      %24 = tpu.concatenate %7, %8, %9, %14, %15, %16, %21, %22, %23 in 1 : vector<8x128xbf16>, vector<8x128xbf16>, vector<8x128xbf16>, vector<8x128xbf16>, vector<8x128xbf16>, vector<8x128xbf16>, vector<8x128xbf16>, vector<8x128xbf16>, vector<8x128xbf16> -> vector<8x1152xbf16>
      %c0_13 = arith.constant 0 : index
      %c0_14 = arith.constant 0 : index
      %25 = vector.load %arg2[%c0_13, %c0_14] : memref<1152x128xbf16, #tpu.memory_space<vmem>>, vector<1152x128xbf16>
      %cst = arith.constant dense<0.000000e+00> : vector<8x128xf32>
      %26 = tpu.matmul %24, %25, %cst {dimension_numbers = #tpu.dot_dimension_numbers<[1], [0], [0], [1], [0, 0, 1, 1], [], []>} : vector<8x1152xbf16>, vector<1152x128xbf16>, vector<8x128xf32> -> vector<8x128xf32>
      %c0_15 = arith.constant 0 : index
      %c0_16 = arith.constant 0 : index
      %27 = vector.load %arg3[%c0_15, %c0_16] : memref<1x128xf32, #tpu.memory_space<vmem>>, vector<1x128xf32>
      %28 = vector.broadcast %27 : vector<1x128xf32> to vector<8x128xf32>
      %29 = arith.addf %26, %28 : vector<8x128xf32>
      %cst_17 = arith.constant 0.000000e+00 : f32
      %30 = vector.broadcast %cst_17 : f32 to vector<8x128xf32>
      %31 = arith.maximumf %29, %30 : vector<8x128xf32>
      %32 = arith.truncf %31 : vector<8x128xf32> to vector<8x128xbf16>
      %c0_18 = arith.constant 0 : index
      %33 = arith.index_cast %2 : i32 to index
      %c0_19 = arith.constant 0 : index
      %c0_20 = arith.constant 0 : index
      %34 = vector.load %arg4[%c0_18, %33, %c0_19, %c0_20] : memref<1x8x8x128xbf16, #tpu.memory_space<vmem>>, vector<1x1x8x128xbf16>
      %35 = vector.shape_cast %34 : vector<1x1x8x128xbf16> to vector<8x128xbf16>
      %36 = vector.shape_cast %32 : vector<8x128xbf16> to vector<1x1x8x128xbf16>
      tpu.vector_store %arg4[%c0_18, %33, %c0_19, %c0_20], %36 {strides = array<i32>} : memref<1x8x8x128xbf16, #tpu.memory_space<vmem>>, vector<1x1x8x128xbf16>,
    }
    %c8_i32_0 = arith.constant 8 : i32
    return
  }
  func.func @transform_0(%arg0: i32) -> (i32, i32, i32, i32) {
    %c0_i32 = arith.constant 0 : i32
    %c0_i32_0 = arith.constant 0 : i32
    %c0_i32_1 = arith.constant 0 : i32
    %c0_i32_2 = arith.constant 0 : i32
    return %arg0, %c0_i32, %c0_i32_0, %c0_i32_1 : i32, i32, i32, i32
  }
  func.func @transform_1(%arg0: i32) -> (i32, i32) {
    %c0_i32 = arith.constant 0 : i32
    %c0_i32_0 = arith.constant 0 : i32
    %c0_i32_1 = arith.constant 0 : i32
    return %c0_i32, %c0_i32_0 : i32, i32
  }
  func.func @transform_2(%arg0: i32) -> (i32, i32) {
    %c0_i32 = arith.constant 0 : i32
    %c0_i32_0 = arith.constant 0 : i32
    %c0_i32_1 = arith.constant 0 : i32
    return %c0_i32, %c0_i32_0 : i32, i32
  }
  func.func @transform_3(%arg0: i32) -> (i32, i32, i32, i32) {
    %c0_i32 = arith.constant 0 : i32
    %c0_i32_0 = arith.constant 0 : i32
    %c0_i32_1 = arith.constant 0 : i32
    %c0_i32_2 = arith.constant 0 : i32
    return %arg0, %c0_i32, %c0_i32_0, %c0_i32_1 : i32, i32, i32, i32
  }
}

module attributes {stable_mosaic.version = 11 : i64} {
  func.func @_maxpool2x2_kernel(%arg0: i32, %arg1: memref<1x8x4x256xbf16, #tpu.memory_space<vmem>>, %arg2: memref<1x4x4x128xbf16, #tpu.memory_space<vmem>>) attributes {dimension_semantics = [#tpu.dimension_semantics<parallel>], iteration_bounds = array<i64: 2>, scalar_prefetch = 0 : i64, scratch_operands = 0 : i64, tpu.core_type = #tpu.core_type<tc>, window_params = [{transform_indices = @transform_0, window_bounds = array<i64: 1, 8, 4, 256>}, {transform_indices = @transform_1, window_bounds = array<i64: 1, 4, 4, 128>}]} {
    %c0 = arith.constant 0 : index
    %c0_0 = arith.constant 0 : index
    %c0_1 = arith.constant 0 : index
    %c0_2 = arith.constant 0 : index
    %0 = vector.load %arg1[%c0, %c0_0, %c0_1, %c0_2] : memref<1x8x4x256xbf16, #tpu.memory_space<vmem>>, vector<1x8x4x256xbf16>
    %1 = vector.shape_cast %0 : vector<1x8x4x256xbf16> to vector<8x4x256xbf16>
    %2 = vector.shape_cast %1 : vector<8x4x256xbf16> to vector<4x2x4x256xbf16>
    %3 = vector.extract_strided_slice %2 {offsets = [0, 0, 0, 0], sizes = [4, 1, 4, 256], strides = [1, 1, 1, 1]} : vector<4x2x4x256xbf16> to vector<4x1x4x256xbf16>
    %4 = vector.shape_cast %3 : vector<4x1x4x256xbf16> to vector<4x4x256xbf16>
    %5 = vector.extract_strided_slice %2 {offsets = [0, 1, 0, 0], sizes = [4, 1, 4, 256], strides = [1, 1, 1, 1]} : vector<4x2x4x256xbf16> to vector<4x1x4x256xbf16>
    %6 = vector.shape_cast %5 : vector<4x1x4x256xbf16> to vector<4x4x256xbf16>
    %7 = arith.maximumf %4, %6 : vector<4x4x256xbf16>
    %8 = vector.extract_strided_slice %7 {offsets = [0, 0, 0], sizes = [4, 4, 128], strides = [1, 1, 1]} : vector<4x4x256xbf16> to vector<4x4x128xbf16>
    %9 = vector.extract_strided_slice %7 {offsets = [0, 0, 128], sizes = [4, 4, 128], strides = [1, 1, 1]} : vector<4x4x256xbf16> to vector<4x4x128xbf16>
    %10 = arith.maximumf %8, %9 : vector<4x4x128xbf16>
    %c0_3 = arith.constant 0 : index
    %c0_4 = arith.constant 0 : index
    %c0_5 = arith.constant 0 : index
    %c0_6 = arith.constant 0 : index
    %11 = vector.load %arg2[%c0_3, %c0_4, %c0_5, %c0_6] : memref<1x4x4x128xbf16, #tpu.memory_space<vmem>>, vector<1x4x4x128xbf16>
    %12 = vector.shape_cast %11 : vector<1x4x4x128xbf16> to vector<4x4x128xbf16>
    %13 = vector.shape_cast %10 : vector<4x4x128xbf16> to vector<1x4x4x128xbf16>
    tpu.vector_store %arg2[%c0_3, %c0_4, %c0_5, %c0_6], %13 {strides = array<i32>} : memref<1x4x4x128xbf16, #tpu.memory_space<vmem>>, vector<1x4x4x128xbf16>,
    return
  }
  func.func @transform_0(%arg0: i32) -> (i32, i32, i32, i32) {
    %c0_i32 = arith.constant 0 : i32
    %c0_i32_0 = arith.constant 0 : i32
    %c0_i32_1 = arith.constant 0 : i32
    %c0_i32_2 = arith.constant 0 : i32
    return %arg0, %c0_i32, %c0_i32_0, %c0_i32_1 : i32, i32, i32, i32
  }
  func.func @transform_1(%arg0: i32) -> (i32, i32, i32, i32) {
    %c0_i32 = arith.constant 0 : i32
    %c0_i32_0 = arith.constant 0 : i32
    %c0_i32_1 = arith.constant 0 : i32
    %c0_i32_2 = arith.constant 0 : i32
    return %arg0, %c0_i32, %c0_i32_0, %c0_i32_1 : i32, i32, i32, i32
  }
}

module attributes {stable_mosaic.version = 11 : i64} {
  func.func @_maxpool2x2_kernel(%arg0: i32, %arg1: memref<1x4x2x256xbf16, #tpu.memory_space<vmem>>, %arg2: memref<1x2x2x128xbf16, #tpu.memory_space<vmem>>) attributes {dimension_semantics = [#tpu.dimension_semantics<parallel>], iteration_bounds = array<i64: 2>, scalar_prefetch = 0 : i64, scratch_operands = 0 : i64, tpu.core_type = #tpu.core_type<tc>, window_params = [{transform_indices = @transform_0, window_bounds = array<i64: 1, 4, 2, 256>}, {transform_indices = @transform_1, window_bounds = array<i64: 1, 2, 2, 128>}]} {
    %c0 = arith.constant 0 : index
    %c0_0 = arith.constant 0 : index
    %c0_1 = arith.constant 0 : index
    %c0_2 = arith.constant 0 : index
    %0 = vector.load %arg1[%c0, %c0_0, %c0_1, %c0_2] : memref<1x4x2x256xbf16, #tpu.memory_space<vmem>>, vector<1x4x2x256xbf16>
    %1 = vector.shape_cast %0 : vector<1x4x2x256xbf16> to vector<4x2x256xbf16>
    %2 = vector.shape_cast %1 : vector<4x2x256xbf16> to vector<2x2x2x256xbf16>
    %3 = vector.extract_strided_slice %2 {offsets = [0, 0, 0, 0], sizes = [2, 1, 2, 256], strides = [1, 1, 1, 1]} : vector<2x2x2x256xbf16> to vector<2x1x2x256xbf16>
    %4 = vector.shape_cast %3 : vector<2x1x2x256xbf16> to vector<2x2x256xbf16>
    %5 = vector.extract_strided_slice %2 {offsets = [0, 1, 0, 0], sizes = [2, 1, 2, 256], strides = [1, 1, 1, 1]} : vector<2x2x2x256xbf16> to vector<2x1x2x256xbf16>
    %6 = vector.shape_cast %5 : vector<2x1x2x256xbf16> to vector<2x2x256xbf16>
    %7 = arith.maximumf %4, %6 : vector<2x2x256xbf16>
    %8 = vector.extract_strided_slice %7 {offsets = [0, 0, 0], sizes = [2, 2, 128], strides = [1, 1, 1]} : vector<2x2x256xbf16> to vector<2x2x128xbf16>
    %9 = vector.extract_strided_slice %7 {offsets = [0, 0, 128], sizes = [2, 2, 128], strides = [1, 1, 1]} : vector<2x2x256xbf16> to vector<2x2x128xbf16>
    %10 = arith.maximumf %8, %9 : vector<2x2x128xbf16>
    %c0_3 = arith.constant 0 : index
    %c0_4 = arith.constant 0 : index
    %c0_5 = arith.constant 0 : index
    %c0_6 = arith.constant 0 : index
    %11 = vector.load %arg2[%c0_3, %c0_4, %c0_5, %c0_6] : memref<1x2x2x128xbf16, #tpu.memory_space<vmem>>, vector<1x2x2x128xbf16>
    %12 = vector.shape_cast %11 : vector<1x2x2x128xbf16> to vector<2x2x128xbf16>
    %13 = vector.shape_cast %10 : vector<2x2x128xbf16> to vector<1x2x2x128xbf16>
    tpu.vector_store %arg2[%c0_3, %c0_4, %c0_5, %c0_6], %13 {strides = array<i32>} : memref<1x2x2x128xbf16, #tpu.memory_space<vmem>>, vector<1x2x2x128xbf16>,
    return
  }
  func.func @transform_0(%arg0: i32) -> (i32, i32, i32, i32) {
    %c0_i32 = arith.constant 0 : i32
    %c0_i32_0 = arith.constant 0 : i32
    %c0_i32_1 = arith.constant 0 : i32
    %c0_i32_2 = arith.constant 0 : i32
    return %arg0, %c0_i32, %c0_i32_0, %c0_i32_1 : i32, i32, i32, i32
  }
  func.func @transform_1(%arg0: i32) -> (i32, i32, i32, i32) {
    %c0_i32 = arith.constant 0 : i32
    %c0_i32_0 = arith.constant 0 : i32
    %c0_i32_1 = arith.constant 0 : i32
    %c0_i32_2 = arith.constant 0 : i32
    return %arg0, %c0_i32, %c0_i32_0, %c0_i32_1 : i32, i32, i32, i32
  }
}

module attributes {stable_mosaic.version = 11 : i64} {
  func.func @_conv3x3_relu_kernel(%arg0: i32, %arg1: memref<1x6x6x128xbf16, #tpu.memory_space<vmem>>, %arg2: memref<1152x128xbf16, #tpu.memory_space<vmem>>, %arg3: memref<1x128xf32, #tpu.memory_space<vmem>>, %arg4: memref<1x4x4x128xbf16, #tpu.memory_space<vmem>>) attributes {dimension_semantics = [#tpu.dimension_semantics<parallel>], iteration_bounds = array<i64: 2>, scalar_prefetch = 0 : i64, scratch_operands = 0 : i64, tpu.core_type = #tpu.core_type<tc>, window_params = [{transform_indices = @transform_0, window_bounds = array<i64: 1, 6, 6, 128>}, {pipeline_mode = #tpu.pipeline_mode<synchronous>, transform_indices = @transform_1, window_bounds = array<i64: 1152, 128>}, {pipeline_mode = #tpu.pipeline_mode<synchronous>, transform_indices = @transform_2, window_bounds = array<i64: 1, 128>}, {transform_indices = @transform_3, window_bounds = array<i64: 1, 4, 4, 128>}]} {
    %c0_i32 = arith.constant 0 : i32
    %c4_i32 = arith.constant 4 : i32
    %0 = arith.addi %c0_i32, %c4_i32 : i32
    %c1_i32 = arith.constant 1 : i32
    scf.for %arg5 = %c0_i32 to %0 step %c1_i32  : i32 {
      %c1_i32_1 = arith.constant 1 : i32
      %1 = arith.muli %arg5, %c1_i32_1 : i32
      %c0_i32_2 = arith.constant 0 : i32
      %2 = arith.addi %c0_i32_2, %1 : i32
      %c0_i32_3 = arith.constant 0 : i32
      %3 = arith.addi %2, %c0_i32_3 : i32
      %c0 = arith.constant 0 : index
      %4 = arith.index_cast %3 : i32 to index
      %c0_4 = arith.constant 0 : index
      %c0_5 = arith.constant 0 : index
      %5 = vector.load %arg1[%c0, %4, %c0_4, %c0_5] : memref<1x6x6x128xbf16, #tpu.memory_space<vmem>>, vector<1x1x6x128xbf16>
      %6 = vector.shape_cast %5 : vector<1x1x6x128xbf16> to vector<6x128xbf16>
      %7 = vector.extract_strided_slice %6 {offsets = [0, 0], sizes = [4, 128], strides = [1, 1]} : vector<6x128xbf16> to vector<4x128xbf16>
      %8 = vector.extract_strided_slice %6 {offsets = [1, 0], sizes = [4, 128], strides = [1, 1]} : vector<6x128xbf16> to vector<4x128xbf16>
      %9 = vector.extract_strided_slice %6 {offsets = [2, 0], sizes = [4, 128], strides = [1, 1]} : vector<6x128xbf16> to vector<4x128xbf16>
      %c1_i32_6 = arith.constant 1 : i32
      %10 = arith.addi %2, %c1_i32_6 : i32
      %c0_7 = arith.constant 0 : index
      %11 = arith.index_cast %10 : i32 to index
      %c0_8 = arith.constant 0 : index
      %c0_9 = arith.constant 0 : index
      %12 = vector.load %arg1[%c0_7, %11, %c0_8, %c0_9] : memref<1x6x6x128xbf16, #tpu.memory_space<vmem>>, vector<1x1x6x128xbf16>
      %13 = vector.shape_cast %12 : vector<1x1x6x128xbf16> to vector<6x128xbf16>
      %14 = vector.extract_strided_slice %13 {offsets = [0, 0], sizes = [4, 128], strides = [1, 1]} : vector<6x128xbf16> to vector<4x128xbf16>
      %15 = vector.extract_strided_slice %13 {offsets = [1, 0], sizes = [4, 128], strides = [1, 1]} : vector<6x128xbf16> to vector<4x128xbf16>
      %16 = vector.extract_strided_slice %13 {offsets = [2, 0], sizes = [4, 128], strides = [1, 1]} : vector<6x128xbf16> to vector<4x128xbf16>
      %c2_i32 = arith.constant 2 : i32
      %17 = arith.addi %2, %c2_i32 : i32
      %c0_10 = arith.constant 0 : index
      %18 = arith.index_cast %17 : i32 to index
      %c0_11 = arith.constant 0 : index
      %c0_12 = arith.constant 0 : index
      %19 = vector.load %arg1[%c0_10, %18, %c0_11, %c0_12] : memref<1x6x6x128xbf16, #tpu.memory_space<vmem>>, vector<1x1x6x128xbf16>
      %20 = vector.shape_cast %19 : vector<1x1x6x128xbf16> to vector<6x128xbf16>
      %21 = vector.extract_strided_slice %20 {offsets = [0, 0], sizes = [4, 128], strides = [1, 1]} : vector<6x128xbf16> to vector<4x128xbf16>
      %22 = vector.extract_strided_slice %20 {offsets = [1, 0], sizes = [4, 128], strides = [1, 1]} : vector<6x128xbf16> to vector<4x128xbf16>
      %23 = vector.extract_strided_slice %20 {offsets = [2, 0], sizes = [4, 128], strides = [1, 1]} : vector<6x128xbf16> to vector<4x128xbf16>
      %24 = tpu.concatenate %7, %8, %9, %14, %15, %16, %21, %22, %23 in 1 : vector<4x128xbf16>, vector<4x128xbf16>, vector<4x128xbf16>, vector<4x128xbf16>, vector<4x128xbf16>, vector<4x128xbf16>, vector<4x128xbf16>, vector<4x128xbf16>, vector<4x128xbf16> -> vector<4x1152xbf16>
      %c0_13 = arith.constant 0 : index
      %c0_14 = arith.constant 0 : index
      %25 = vector.load %arg2[%c0_13, %c0_14] : memref<1152x128xbf16, #tpu.memory_space<vmem>>, vector<1152x128xbf16>
      %cst = arith.constant dense<0.000000e+00> : vector<4x128xf32>
      %26 = tpu.matmul %24, %25, %cst {dimension_numbers = #tpu.dot_dimension_numbers<[1], [0], [0], [1], [0, 0, 1, 1], [], []>} : vector<4x1152xbf16>, vector<1152x128xbf16>, vector<4x128xf32> -> vector<4x128xf32>
      %c0_15 = arith.constant 0 : index
      %c0_16 = arith.constant 0 : index
      %27 = vector.load %arg3[%c0_15, %c0_16] : memref<1x128xf32, #tpu.memory_space<vmem>>, vector<1x128xf32>
      %28 = vector.broadcast %27 : vector<1x128xf32> to vector<4x128xf32>
      %29 = arith.addf %26, %28 : vector<4x128xf32>
      %cst_17 = arith.constant 0.000000e+00 : f32
      %30 = vector.broadcast %cst_17 : f32 to vector<4x128xf32>
      %31 = arith.maximumf %29, %30 : vector<4x128xf32>
      %32 = arith.truncf %31 : vector<4x128xf32> to vector<4x128xbf16>
      %c0_18 = arith.constant 0 : index
      %33 = arith.index_cast %2 : i32 to index
      %c0_19 = arith.constant 0 : index
      %c0_20 = arith.constant 0 : index
      %34 = vector.load %arg4[%c0_18, %33, %c0_19, %c0_20] : memref<1x4x4x128xbf16, #tpu.memory_space<vmem>>, vector<1x1x4x128xbf16>
      %35 = vector.shape_cast %34 : vector<1x1x4x128xbf16> to vector<4x128xbf16>
      %36 = vector.shape_cast %32 : vector<4x128xbf16> to vector<1x1x4x128xbf16>
      tpu.vector_store %arg4[%c0_18, %33, %c0_19, %c0_20], %36 {strides = array<i32>} : memref<1x4x4x128xbf16, #tpu.memory_space<vmem>>, vector<1x1x4x128xbf16>,
    }
    %c4_i32_0 = arith.constant 4 : i32
    return
  }
  func.func @transform_0(%arg0: i32) -> (i32, i32, i32, i32) {
    %c0_i32 = arith.constant 0 : i32
    %c0_i32_0 = arith.constant 0 : i32
    %c0_i32_1 = arith.constant 0 : i32
    %c0_i32_2 = arith.constant 0 : i32
    return %arg0, %c0_i32, %c0_i32_0, %c0_i32_1 : i32, i32, i32, i32
  }
  func.func @transform_1(%arg0: i32) -> (i32, i32) {
    %c0_i32 = arith.constant 0 : i32
    %c0_i32_0 = arith.constant 0 : i32
    %c0_i32_1 = arith.constant 0 : i32
    return %c0_i32, %c0_i32_0 : i32, i32
  }
  func.func @transform_2(%arg0: i32) -> (i32, i32) {
    %c0_i32 = arith.constant 0 : i32
    %c0_i32_0 = arith.constant 0 : i32
    %c0_i32_1 = arith.constant 0 : i32
    return %c0_i32, %c0_i32_0 : i32, i32
  }
  func.func @transform_3(%arg0: i32) -> (i32, i32, i32, i32) {
    %c0_i32 = arith.constant 0 : i32
    %c0_i32_0 = arith.constant 0 : i32
    %c0_i32_1 = arith.constant 0 : i32
    %c0_i32_2 = arith.constant 0 : i32
    return %arg0, %c0_i32, %c0_i32_0, %c0_i32_1 : i32, i32, i32, i32
  }
}

module attributes {stable_mosaic.version = 11 : i64} {
  func.func @_head_upsample_kernel(%arg0: i32, %arg1: memref<1x2x128x2xbf16, #tpu.memory_space<vmem>>, %arg2: memref<1x4x128x4xbf16, #tpu.memory_space<vmem>>, %arg3: memref<8x128xbf16, #tpu.memory_space<vmem>>, %arg4: memref<8x1xf32, #tpu.memory_space<vmem>>, %arg5: memref<8x128xbf16, #tpu.memory_space<vmem>>, %arg6: memref<8x1xf32, #tpu.memory_space<vmem>>, %arg7: memref<64x2xf32, #tpu.memory_space<vmem>>, %arg8: memref<2x64xf32, #tpu.memory_space<vmem>>, %arg9: memref<64x4xf32, #tpu.memory_space<vmem>>, %arg10: memref<4x64xf32, #tpu.memory_space<vmem>>, %arg11: memref<1x4x64x64xf32, #tpu.memory_space<vmem>>) attributes {dimension_semantics = [#tpu.dimension_semantics<parallel>], iteration_bounds = array<i64: 2>, scalar_prefetch = 0 : i64, scratch_operands = 0 : i64, tpu.core_type = #tpu.core_type<tc>, window_params = [{transform_indices = @transform_0, window_bounds = array<i64: 1, 2, 128, 2>}, {transform_indices = @transform_1, window_bounds = array<i64: 1, 4, 128, 4>}, {pipeline_mode = #tpu.pipeline_mode<synchronous>, transform_indices = @transform_2, window_bounds = array<i64: 8, 128>}, {pipeline_mode = #tpu.pipeline_mode<synchronous>, transform_indices = @transform_3, window_bounds = array<i64: 8, 1>}, {pipeline_mode = #tpu.pipeline_mode<synchronous>, transform_indices = @transform_4, window_bounds = array<i64: 8, 128>}, {pipeline_mode = #tpu.pipeline_mode<synchronous>, transform_indices = @transform_5, window_bounds = array<i64: 8, 1>}, {pipeline_mode = #tpu.pipeline_mode<synchronous>, transform_indices = @transform_6, window_bounds = array<i64: 64, 2>}, {pipeline_mode = #tpu.pipeline_mode<synchronous>, transform_indices = @transform_7, window_bounds = array<i64: 2, 64>}, {pipeline_mode = #tpu.pipeline_mode<synchronous>, transform_indices = @transform_8, window_bounds = array<i64: 64, 4>}, {pipeline_mode = #tpu.pipeline_mode<synchronous>, transform_indices = @transform_9, window_bounds = array<i64: 4, 64>}, {transform_indices = @transform_10, window_bounds = array<i64: 1, 4, 64, 64>}]} {
    %c0 = arith.constant 0 : index
    %c0_0 = arith.constant 0 : index
    %0 = vector.load %arg3[%c0, %c0_0] : memref<8x128xbf16, #tpu.memory_space<vmem>>, vector<8x128xbf16>
    %c0_1 = arith.constant 0 : index
    %c0_2 = arith.constant 0 : index
    %c0_3 = arith.constant 0 : index
    %c0_4 = arith.constant 0 : index
    %1 = vector.load %arg1[%c0_1, %c0_2, %c0_3, %c0_4] : memref<1x2x128x2xbf16, #tpu.memory_space<vmem>>, vector<1x1x128x2xbf16>
    %2 = vector.shape_cast %1 : vector<1x1x128x2xbf16> to vector<128x2xbf16>
    %cst = arith.constant dense<0.000000e+00> : vector<8x2xf32>
    %3 = tpu.matmul %0, %2, %cst {dimension_numbers = #tpu.dot_dimension_numbers<[1], [0], [0], [1], [0, 0, 1, 1], [], []>} : vector<8x128xbf16>, vector<128x2xbf16>, vector<8x2xf32> -> vector<8x2xf32>
    %c0_5 = arith.constant 0 : index
    %c0_6 = arith.constant 0 : index
    %4 = vector.load %arg4[%c0_5, %c0_6] : memref<8x1xf32, #tpu.memory_space<vmem>>, vector<8x1xf32>
    %5 = vector.broadcast %4 : vector<8x1xf32> to vector<8x2xf32>
    %6 = arith.addf %3, %5 : vector<8x2xf32>
    %c0_7 = arith.constant 0 : index
    %c0_8 = arith.constant 0 : index
    %7 = vector.load %arg8[%c0_7, %c0_8] : memref<2x64xf32, #tpu.memory_space<vmem>>, vector<2x64xf32>
    %cst_9 = arith.constant dense<0.000000e+00> : vector<8x64xf32>
    %8 = tpu.matmul %6, %7, %cst_9 {dimension_numbers = #tpu.dot_dimension_numbers<[1], [0], [0], [1], [0, 0, 1, 1], [], []>} : vector<8x2xf32>, vector<2x64xf32>, vector<8x64xf32> -> vector<8x64xf32>
    %c0_10 = arith.constant 0 : index
    %c0_11 = arith.constant 0 : index
    %9 = vector.load %arg3[%c0_10, %c0_11] : memref<8x128xbf16, #tpu.memory_space<vmem>>, vector<8x128xbf16>
    %c0_12 = arith.constant 0 : index
    %c1 = arith.constant 1 : index
    %c0_13 = arith.constant 0 : index
    %c0_14 = arith.constant 0 : index
    %10 = vector.load %arg1[%c0_12, %c1, %c0_13, %c0_14] : memref<1x2x128x2xbf16, #tpu.memory_space<vmem>>, vector<1x1x128x2xbf16>
    %11 = vector.shape_cast %10 : vector<1x1x128x2xbf16> to vector<128x2xbf16>
    %cst_15 = arith.constant dense<0.000000e+00> : vector<8x2xf32>
    %12 = tpu.matmul %9, %11, %cst_15 {dimension_numbers = #tpu.dot_dimension_numbers<[1], [0], [0], [1], [0, 0, 1, 1], [], []>} : vector<8x128xbf16>, vector<128x2xbf16>, vector<8x2xf32> -> vector<8x2xf32>
    %c0_16 = arith.constant 0 : index
    %c0_17 = arith.constant 0 : index
    %13 = vector.load %arg4[%c0_16, %c0_17] : memref<8x1xf32, #tpu.memory_space<vmem>>, vector<8x1xf32>
    %14 = vector.broadcast %13 : vector<8x1xf32> to vector<8x2xf32>
    %15 = arith.addf %12, %14 : vector<8x2xf32>
    %c0_18 = arith.constant 0 : index
    %c0_19 = arith.constant 0 : index
    %16 = vector.load %arg8[%c0_18, %c0_19] : memref<2x64xf32, #tpu.memory_space<vmem>>, vector<2x64xf32>
    %cst_20 = arith.constant dense<0.000000e+00> : vector<8x64xf32>
    %17 = tpu.matmul %15, %16, %cst_20 {dimension_numbers = #tpu.dot_dimension_numbers<[1], [0], [0], [1], [0, 0, 1, 1], [], []>} : vector<8x2xf32>, vector<2x64xf32>, vector<8x64xf32> -> vector<8x64xf32>
    %c0_21 = arith.constant 0 : index
    %c0_22 = arith.constant 0 : index
    %18 = vector.load %arg5[%c0_21, %c0_22] : memref<8x128xbf16, #tpu.memory_space<vmem>>, vector<8x128xbf16>
    %c0_23 = arith.constant 0 : index
    %c0_24 = arith.constant 0 : index
    %c0_25 = arith.constant 0 : index
    %c0_26 = arith.constant 0 : index
    %19 = vector.load %arg2[%c0_23, %c0_24, %c0_25, %c0_26] : memref<1x4x128x4xbf16, #tpu.memory_space<vmem>>, vector<1x1x128x4xbf16>
    %20 = vector.shape_cast %19 : vector<1x1x128x4xbf16> to vector<128x4xbf16>
    %cst_27 = arith.constant dense<0.000000e+00> : vector<8x4xf32>
    %21 = tpu.matmul %18, %20, %cst_27 {dimension_numbers = #tpu.dot_dimension_numbers<[1], [0], [0], [1], [0, 0, 1, 1], [], []>} : vector<8x128xbf16>, vector<128x4xbf16>, vector<8x4xf32> -> vector<8x4xf32>
    %c0_28 = arith.constant 0 : index
    %c0_29 = arith.constant 0 : index
    %22 = vector.load %arg6[%c0_28, %c0_29] : memref<8x1xf32, #tpu.memory_space<vmem>>, vector<8x1xf32>
    %23 = vector.broadcast %22 : vector<8x1xf32> to vector<8x4xf32>
    %24 = arith.addf %21, %23 : vector<8x4xf32>
    %c0_30 = arith.constant 0 : index
    %c0_31 = arith.constant 0 : index
    %25 = vector.load %arg10[%c0_30, %c0_31] : memref<4x64xf32, #tpu.memory_space<vmem>>, vector<4x64xf32>
    %cst_32 = arith.constant dense<0.000000e+00> : vector<8x64xf32>
    %26 = tpu.matmul %24, %25, %cst_32 {dimension_numbers = #tpu.dot_dimension_numbers<[1], [0], [0], [1], [0, 0, 1, 1], [], []>} : vector<8x4xf32>, vector<4x64xf32>, vector<8x64xf32> -> vector<8x64xf32>
    %c0_33 = arith.constant 0 : index
    %c0_34 = arith.constant 0 : index
    %27 = vector.load %arg5[%c0_33, %c0_34] : memref<8x128xbf16, #tpu.memory_space<vmem>>, vector<8x128xbf16>
    %c0_35 = arith.constant 0 : index
    %c1_36 = arith.constant 1 : index
    %c0_37 = arith.constant 0 : index
    %c0_38 = arith.constant 0 : index
    %28 = vector.load %arg2[%c0_35, %c1_36, %c0_37, %c0_38] : memref<1x4x128x4xbf16, #tpu.memory_space<vmem>>, vector<1x1x128x4xbf16>
    %29 = vector.shape_cast %28 : vector<1x1x128x4xbf16> to vector<128x4xbf16>
    %cst_39 = arith.constant dense<0.000000e+00> : vector<8x4xf32>
    %30 = tpu.matmul %27, %29, %cst_39 {dimension_numbers = #tpu.dot_dimension_numbers<[1], [0], [0], [1], [0, 0, 1, 1], [], []>} : vector<8x128xbf16>, vector<128x4xbf16>, vector<8x4xf32> -> vector<8x4xf32>
    %c0_40 = arith.constant 0 : index
    %c0_41 = arith.constant 0 : index
    %31 = vector.load %arg6[%c0_40, %c0_41] : memref<8x1xf32, #tpu.memory_space<vmem>>, vector<8x1xf32>
    %32 = vector.broadcast %31 : vector<8x1xf32> to vector<8x4xf32>
    %33 = arith.addf %30, %32 : vector<8x4xf32>
    %c0_42 = arith.constant 0 : index
    %c0_43 = arith.constant 0 : index
    %34 = vector.load %arg10[%c0_42, %c0_43] : memref<4x64xf32, #tpu.memory_space<vmem>>, vector<4x64xf32>
    %cst_44 = arith.constant dense<0.000000e+00> : vector<8x64xf32>
    %35 = tpu.matmul %33, %34, %cst_44 {dimension_numbers = #tpu.dot_dimension_numbers<[1], [0], [0], [1], [0, 0, 1, 1], [], []>} : vector<8x4xf32>, vector<4x64xf32>, vector<8x64xf32> -> vector<8x64xf32>
    %c0_45 = arith.constant 0 : index
    %c0_46 = arith.constant 0 : index
    %36 = vector.load %arg5[%c0_45, %c0_46] : memref<8x128xbf16, #tpu.memory_space<vmem>>, vector<8x128xbf16>
    %c0_47 = arith.constant 0 : index
    %c2 = arith.constant 2 : index
    %c0_48 = arith.constant 0 : index
    %c0_49 = arith.constant 0 : index
    %37 = vector.load %arg2[%c0_47, %c2, %c0_48, %c0_49] : memref<1x4x128x4xbf16, #tpu.memory_space<vmem>>, vector<1x1x128x4xbf16>
    %38 = vector.shape_cast %37 : vector<1x1x128x4xbf16> to vector<128x4xbf16>
    %cst_50 = arith.constant dense<0.000000e+00> : vector<8x4xf32>
    %39 = tpu.matmul %36, %38, %cst_50 {dimension_numbers = #tpu.dot_dimension_numbers<[1], [0], [0], [1], [0, 0, 1, 1], [], []>} : vector<8x128xbf16>, vector<128x4xbf16>, vector<8x4xf32> -> vector<8x4xf32>
    %c0_51 = arith.constant 0 : index
    %c0_52 = arith.constant 0 : index
    %40 = vector.load %arg6[%c0_51, %c0_52] : memref<8x1xf32, #tpu.memory_space<vmem>>, vector<8x1xf32>
    %41 = vector.broadcast %40 : vector<8x1xf32> to vector<8x4xf32>
    %42 = arith.addf %39, %41 : vector<8x4xf32>
    %c0_53 = arith.constant 0 : index
    %c0_54 = arith.constant 0 : index
    %43 = vector.load %arg10[%c0_53, %c0_54] : memref<4x64xf32, #tpu.memory_space<vmem>>, vector<4x64xf32>
    %cst_55 = arith.constant dense<0.000000e+00> : vector<8x64xf32>
    %44 = tpu.matmul %42, %43, %cst_55 {dimension_numbers = #tpu.dot_dimension_numbers<[1], [0], [0], [1], [0, 0, 1, 1], [], []>} : vector<8x4xf32>, vector<4x64xf32>, vector<8x64xf32> -> vector<8x64xf32>
    %c0_56 = arith.constant 0 : index
    %c0_57 = arith.constant 0 : index
    %45 = vector.load %arg5[%c0_56, %c0_57] : memref<8x128xbf16, #tpu.memory_space<vmem>>, vector<8x128xbf16>
    %c0_58 = arith.constant 0 : index
    %c3 = arith.constant 3 : index
    %c0_59 = arith.constant 0 : index
    %c0_60 = arith.constant 0 : index
    %46 = vector.load %arg2[%c0_58, %c3, %c0_59, %c0_60] : memref<1x4x128x4xbf16, #tpu.memory_space<vmem>>, vector<1x1x128x4xbf16>
    %47 = vector.shape_cast %46 : vector<1x1x128x4xbf16> to vector<128x4xbf16>
    %cst_61 = arith.constant dense<0.000000e+00> : vector<8x4xf32>
    %48 = tpu.matmul %45, %47, %cst_61 {dimension_numbers = #tpu.dot_dimension_numbers<[1], [0], [0], [1], [0, 0, 1, 1], [], []>} : vector<8x128xbf16>, vector<128x4xbf16>, vector<8x4xf32> -> vector<8x4xf32>
    %c0_62 = arith.constant 0 : index
    %c0_63 = arith.constant 0 : index
    %49 = vector.load %arg6[%c0_62, %c0_63] : memref<8x1xf32, #tpu.memory_space<vmem>>, vector<8x1xf32>
    %50 = vector.broadcast %49 : vector<8x1xf32> to vector<8x4xf32>
    %51 = arith.addf %48, %50 : vector<8x4xf32>
    %c0_64 = arith.constant 0 : index
    %c0_65 = arith.constant 0 : index
    %52 = vector.load %arg10[%c0_64, %c0_65] : memref<4x64xf32, #tpu.memory_space<vmem>>, vector<4x64xf32>
    %cst_66 = arith.constant dense<0.000000e+00> : vector<8x64xf32>
    %53 = tpu.matmul %51, %52, %cst_66 {dimension_numbers = #tpu.dot_dimension_numbers<[1], [0], [0], [1], [0, 0, 1, 1], [], []>} : vector<8x4xf32>, vector<4x64xf32>, vector<8x64xf32> -> vector<8x64xf32>
    %c0_67 = arith.constant 0 : index
    %c0_68 = arith.constant 0 : index
    %54 = vector.load %arg7[%c0_67, %c0_68] : memref<64x2xf32, #tpu.memory_space<vmem>>, vector<64x2xf32>
    %c0_69 = arith.constant 0 : index
    %c0_70 = arith.constant 0 : index
    %55 = vector.load %arg9[%c0_69, %c0_70] : memref<64x4xf32, #tpu.memory_space<vmem>>, vector<64x4xf32>
    %56 = vector.extract_strided_slice %8 {offsets = [0, 0], sizes = [1, 64], strides = [1, 1]} : vector<8x64xf32> to vector<1x64xf32>
    %57 = vector.extract_strided_slice %17 {offsets = [0, 0], sizes = [1, 64], strides = [1, 1]} : vector<8x64xf32> to vector<1x64xf32>
    %58 = tpu.concatenate %56, %57 in 0 : vector<1x64xf32>, vector<1x64xf32> -> vector<2x64xf32>
    %59 = vector.extract_strided_slice %26 {offsets = [0, 0], sizes = [1, 64], strides = [1, 1]} : vector<8x64xf32> to vector<1x64xf32>
    %60 = vector.extract_strided_slice %35 {offsets = [0, 0], sizes = [1, 64], strides = [1, 1]} : vector<8x64xf32> to vector<1x64xf32>
    %61 = vector.extract_strided_slice %44 {offsets = [0, 0], sizes = [1, 64], strides = [1, 1]} : vector<8x64xf32> to vector<1x64xf32>
    %62 = vector.extract_strided_slice %53 {offsets = [0, 0], sizes = [1, 64], strides = [1, 1]} : vector<8x64xf32> to vector<1x64xf32>
    %63 = tpu.concatenate %59, %60, %61, %62 in 0 : vector<1x64xf32>, vector<1x64xf32>, vector<1x64xf32>, vector<1x64xf32> -> vector<4x64xf32>
    %cst_71 = arith.constant dense<0.000000e+00> : vector<64x64xf32>
    %64 = tpu.matmul %54, %58, %cst_71 {dimension_numbers = #tpu.dot_dimension_numbers<[1], [0], [0], [1], [0, 0, 1, 1], [], []>} : vector<64x2xf32>, vector<2x64xf32>, vector<64x64xf32> -> vector<64x64xf32>
    %cst_72 = arith.constant dense<0.000000e+00> : vector<64x64xf32>
    %65 = tpu.matmul %55, %63, %cst_72 {dimension_numbers = #tpu.dot_dimension_numbers<[1], [0], [0], [1], [0, 0, 1, 1], [], []>} : vector<64x4xf32>, vector<4x64xf32>, vector<64x64xf32> -> vector<64x64xf32>
    %66 = arith.addf %64, %65 : vector<64x64xf32>
    %c0_73 = arith.constant 0 : index
    %c0_74 = arith.constant 0 : index
    %c0_75 = arith.constant 0 : index
    %c0_76 = arith.constant 0 : index
    %67 = vector.load %arg11[%c0_73, %c0_74, %c0_75, %c0_76] : memref<1x4x64x64xf32, #tpu.memory_space<vmem>>, vector<1x1x64x64xf32>
    %68 = vector.shape_cast %67 : vector<1x1x64x64xf32> to vector<64x64xf32>
    %69 = vector.shape_cast %66 : vector<64x64xf32> to vector<1x1x64x64xf32>
    tpu.vector_store %arg11[%c0_73, %c0_74, %c0_75, %c0_76], %69 {strides = array<i32>} : memref<1x4x64x64xf32, #tpu.memory_space<vmem>>, vector<1x1x64x64xf32>,
    %70 = vector.extract_strided_slice %8 {offsets = [1, 0], sizes = [1, 64], strides = [1, 1]} : vector<8x64xf32> to vector<1x64xf32>
    %71 = vector.extract_strided_slice %17 {offsets = [1, 0], sizes = [1, 64], strides = [1, 1]} : vector<8x64xf32> to vector<1x64xf32>
    %72 = tpu.concatenate %70, %71 in 0 : vector<1x64xf32>, vector<1x64xf32> -> vector<2x64xf32>
    %73 = vector.extract_strided_slice %26 {offsets = [1, 0], sizes = [1, 64], strides = [1, 1]} : vector<8x64xf32> to vector<1x64xf32>
    %74 = vector.extract_strided_slice %35 {offsets = [1, 0], sizes = [1, 64], strides = [1, 1]} : vector<8x64xf32> to vector<1x64xf32>
    %75 = vector.extract_strided_slice %44 {offsets = [1, 0], sizes = [1, 64], strides = [1, 1]} : vector<8x64xf32> to vector<1x64xf32>
    %76 = vector.extract_strided_slice %53 {offsets = [1, 0], sizes = [1, 64], strides = [1, 1]} : vector<8x64xf32> to vector<1x64xf32>
    %77 = tpu.concatenate %73, %74, %75, %76 in 0 : vector<1x64xf32>, vector<1x64xf32>, vector<1x64xf32>, vector<1x64xf32> -> vector<4x64xf32>
    %cst_77 = arith.constant dense<0.000000e+00> : vector<64x64xf32>
    %78 = tpu.matmul %54, %72, %cst_77 {dimension_numbers = #tpu.dot_dimension_numbers<[1], [0], [0], [1], [0, 0, 1, 1], [], []>} : vector<64x2xf32>, vector<2x64xf32>, vector<64x64xf32> -> vector<64x64xf32>
    %cst_78 = arith.constant dense<0.000000e+00> : vector<64x64xf32>
    %79 = tpu.matmul %55, %77, %cst_78 {dimension_numbers = #tpu.dot_dimension_numbers<[1], [0], [0], [1], [0, 0, 1, 1], [], []>} : vector<64x4xf32>, vector<4x64xf32>, vector<64x64xf32> -> vector<64x64xf32>
    %80 = arith.addf %78, %79 : vector<64x64xf32>
    %c0_79 = arith.constant 0 : index
    %c1_80 = arith.constant 1 : index
    %c0_81 = arith.constant 0 : index
    %c0_82 = arith.constant 0 : index
    %81 = vector.load %arg11[%c0_79, %c1_80, %c0_81, %c0_82] : memref<1x4x64x64xf32, #tpu.memory_space<vmem>>, vector<1x1x64x64xf32>
    %82 = vector.shape_cast %81 : vector<1x1x64x64xf32> to vector<64x64xf32>
    %83 = vector.shape_cast %80 : vector<64x64xf32> to vector<1x1x64x64xf32>
    tpu.vector_store %arg11[%c0_79, %c1_80, %c0_81, %c0_82], %83 {strides = array<i32>} : memref<1x4x64x64xf32, #tpu.memory_space<vmem>>, vector<1x1x64x64xf32>,
    %84 = vector.extract_strided_slice %8 {offsets = [2, 0], sizes = [1, 64], strides = [1, 1]} : vector<8x64xf32> to vector<1x64xf32>
    %85 = vector.extract_strided_slice %17 {offsets = [2, 0], sizes = [1, 64], strides = [1, 1]} : vector<8x64xf32> to vector<1x64xf32>
    %86 = tpu.concatenate %84, %85 in 0 : vector<1x64xf32>, vector<1x64xf32> -> vector<2x64xf32>
    %87 = vector.extract_strided_slice %26 {offsets = [2, 0], sizes = [1, 64], strides = [1, 1]} : vector<8x64xf32> to vector<1x64xf32>
    %88 = vector.extract_strided_slice %35 {offsets = [2, 0], sizes = [1, 64], strides = [1, 1]} : vector<8x64xf32> to vector<1x64xf32>
    %89 = vector.extract_strided_slice %44 {offsets = [2, 0], sizes = [1, 64], strides = [1, 1]} : vector<8x64xf32> to vector<1x64xf32>
    %90 = vector.extract_strided_slice %53 {offsets = [2, 0], sizes = [1, 64], strides = [1, 1]} : vector<8x64xf32> to vector<1x64xf32>
    %91 = tpu.concatenate %87, %88, %89, %90 in 0 : vector<1x64xf32>, vector<1x64xf32>, vector<1x64xf32>, vector<1x64xf32> -> vector<4x64xf32>
    %cst_83 = arith.constant dense<0.000000e+00> : vector<64x64xf32>
    %92 = tpu.matmul %54, %86, %cst_83 {dimension_numbers = #tpu.dot_dimension_numbers<[1], [0], [0], [1], [0, 0, 1, 1], [], []>} : vector<64x2xf32>, vector<2x64xf32>, vector<64x64xf32> -> vector<64x64xf32>
    %cst_84 = arith.constant dense<0.000000e+00> : vector<64x64xf32>
    %93 = tpu.matmul %55, %91, %cst_84 {dimension_numbers = #tpu.dot_dimension_numbers<[1], [0], [0], [1], [0, 0, 1, 1], [], []>} : vector<64x4xf32>, vector<4x64xf32>, vector<64x64xf32> -> vector<64x64xf32>
    %94 = arith.addf %92, %93 : vector<64x64xf32>
    %c0_85 = arith.constant 0 : index
    %c2_86 = arith.constant 2 : index
    %c0_87 = arith.constant 0 : index
    %c0_88 = arith.constant 0 : index
    %95 = vector.load %arg11[%c0_85, %c2_86, %c0_87, %c0_88] : memref<1x4x64x64xf32, #tpu.memory_space<vmem>>, vector<1x1x64x64xf32>
    %96 = vector.shape_cast %95 : vector<1x1x64x64xf32> to vector<64x64xf32>
    %97 = vector.shape_cast %94 : vector<64x64xf32> to vector<1x1x64x64xf32>
    tpu.vector_store %arg11[%c0_85, %c2_86, %c0_87, %c0_88], %97 {strides = array<i32>} : memref<1x4x64x64xf32, #tpu.memory_space<vmem>>, vector<1x1x64x64xf32>,
    %98 = vector.extract_strided_slice %8 {offsets = [3, 0], sizes = [1, 64], strides = [1, 1]} : vector<8x64xf32> to vector<1x64xf32>
    %99 = vector.extract_strided_slice %17 {offsets = [3, 0], sizes = [1, 64], strides = [1, 1]} : vector<8x64xf32> to vector<1x64xf32>
    %100 = tpu.concatenate %98, %99 in 0 : vector<1x64xf32>, vector<1x64xf32> -> vector<2x64xf32>
    %101 = vector.extract_strided_slice %26 {offsets = [3, 0], sizes = [1, 64], strides = [1, 1]} : vector<8x64xf32> to vector<1x64xf32>
    %102 = vector.extract_strided_slice %35 {offsets = [3, 0], sizes = [1, 64], strides = [1, 1]} : vector<8x64xf32> to vector<1x64xf32>
    %103 = vector.extract_strided_slice %44 {offsets = [3, 0], sizes = [1, 64], strides = [1, 1]} : vector<8x64xf32> to vector<1x64xf32>
    %104 = vector.extract_strided_slice %53 {offsets = [3, 0], sizes = [1, 64], strides = [1, 1]} : vector<8x64xf32> to vector<1x64xf32>
    %105 = tpu.concatenate %101, %102, %103, %104 in 0 : vector<1x64xf32>, vector<1x64xf32>, vector<1x64xf32>, vector<1x64xf32> -> vector<4x64xf32>
    %cst_89 = arith.constant dense<0.000000e+00> : vector<64x64xf32>
    %106 = tpu.matmul %54, %100, %cst_89 {dimension_numbers = #tpu.dot_dimension_numbers<[1], [0], [0], [1], [0, 0, 1, 1], [], []>} : vector<64x2xf32>, vector<2x64xf32>, vector<64x64xf32> -> vector<64x64xf32>
    %cst_90 = arith.constant dense<0.000000e+00> : vector<64x64xf32>
    %107 = tpu.matmul %55, %105, %cst_90 {dimension_numbers = #tpu.dot_dimension_numbers<[1], [0], [0], [1], [0, 0, 1, 1], [], []>} : vector<64x4xf32>, vector<4x64xf32>, vector<64x64xf32> -> vector<64x64xf32>
    %108 = arith.addf %106, %107 : vector<64x64xf32>
    %c0_91 = arith.constant 0 : index
    %c3_92 = arith.constant 3 : index
    %c0_93 = arith.constant 0 : index
    %c0_94 = arith.constant 0 : index
    %109 = vector.load %arg11[%c0_91, %c3_92, %c0_93, %c0_94] : memref<1x4x64x64xf32, #tpu.memory_space<vmem>>, vector<1x1x64x64xf32>
    %110 = vector.shape_cast %109 : vector<1x1x64x64xf32> to vector<64x64xf32>
    %111 = vector.shape_cast %108 : vector<64x64xf32> to vector<1x1x64x64xf32>
    tpu.vector_store %arg11[%c0_91, %c3_92, %c0_93, %c0_94], %111 {strides = array<i32>} : memref<1x4x64x64xf32, #tpu.memory_space<vmem>>, vector<1x1x64x64xf32>,
    return
  }
  func.func @transform_0(%arg0: i32) -> (i32, i32, i32, i32) {
    %c0_i32 = arith.constant 0 : i32
    %c0_i32_0 = arith.constant 0 : i32
    %c0_i32_1 = arith.constant 0 : i32
    %c0_i32_2 = arith.constant 0 : i32
    return %arg0, %c0_i32, %c0_i32_0, %c0_i32_1 : i32, i32, i32, i32
  }
  func.func @transform_1(%arg0: i32) -> (i32, i32, i32, i32) {
    %c0_i32 = arith.constant 0 : i32
    %c0_i32_0 = arith.constant 0 : i32
    %c0_i32_1 = arith.constant 0 : i32
    %c0_i32_2 = arith.constant 0 : i32
    return %arg0, %c0_i32, %c0_i32_0, %c0_i32_1 : i32, i32, i32, i32
  }
  func.func @transform_2(%arg0: i32) -> (i32, i32) {
    %c0_i32 = arith.constant 0 : i32
    %c0_i32_0 = arith.constant 0 : i32
    %c0_i32_1 = arith.constant 0 : i32
    return %c0_i32, %c0_i32_0 : i32, i32
  }
  func.func @transform_3(%arg0: i32) -> (i32, i32) {
    %c0_i32 = arith.constant 0 : i32
    %c0_i32_0 = arith.constant 0 : i32
    %c0_i32_1 = arith.constant 0 : i32
    return %c0_i32, %c0_i32_0 : i32, i32
  }
  func.func @transform_4(%arg0: i32) -> (i32, i32) {
    %c0_i32 = arith.constant 0 : i32
    %c0_i32_0 = arith.constant 0 : i32
    %c0_i32_1 = arith.constant 0 : i32
    return %c0_i32, %c0_i32_0 : i32, i32
  }
  func.func @transform_5(%arg0: i32) -> (i32, i32) {
    %c0_i32 = arith.constant 0 : i32
    %c0_i32_0 = arith.constant 0 : i32
    %c0_i32_1 = arith.constant 0 : i32
    return %c0_i32, %c0_i32_0 : i32, i32
  }
  func.func @transform_6(%arg0: i32) -> (i32, i32) {
    %c0_i32 = arith.constant 0 : i32
    %c0_i32_0 = arith.constant 0 : i32
    %c0_i32_1 = arith.constant 0 : i32
    return %c0_i32, %c0_i32_0 : i32, i32
  }
  func.func @transform_7(%arg0: i32) -> (i32, i32) {
    %c0_i32 = arith.constant 0 : i32
    %c0_i32_0 = arith.constant 0 : i32
    %c0_i32_1 = arith.constant 0 : i32
    return %c0_i32, %c0_i32_0 : i32, i32
  }
  func.func @transform_8(%arg0: i32) -> (i32, i32) {
    %c0_i32 = arith.constant 0 : i32
    %c0_i32_0 = arith.constant 0 : i32
    %c0_i32_1 = arith.constant 0 : i32
    return %c0_i32, %c0_i32_0 : i32, i32
  }
  func.func @transform_9(%arg0: i32) -> (i32, i32) {
    %c0_i32 = arith.constant 0 : i32
    %c0_i32_0 = arith.constant 0 : i32
    %c0_i32_1 = arith.constant 0 : i32
    return %c0_i32, %c0_i32_0 : i32, i32
  }
  func.func @transform_10(%arg0: i32) -> (i32, i32, i32, i32) {
    %c0_i32 = arith.constant 0 : i32
    %c0_i32_0 = arith.constant 0 : i32
    %c0_i32_1 = arith.constant 0 : i32
    %c0_i32_2 = arith.constant 0 : i32
    return %arg0, %c0_i32, %c0_i32_0, %c0_i32_1 : i32, i32, i32, i32
  }
}

</mosaic_0001>

<llo_original>
// kernel: fcn16_forward.19
$region0: #{fcn16_forward.19}
  #allocation0 [shape = 'u32[]', space=smem, size = 0x4, offset = 0x4, fixed_abs, tag = 'smem constant byte address 0x4 - core index']
  #allocation1 [shape = 'u32[144,128]{1,0:T(1,128)}', space=vmem, size = 0x12000, scoped, tag = 'internal scratch']
  %s0 = inlined_call_operand.vmem [shape: bf16[2,66,66,128], index: 0, kind: input, shape index: {}]
  %s1 = inlined_call_operand.vmem [shape: bf16[1152,128], index: 1, kind: input, shape index: {}]
  %s2 = inlined_call_operand.vmem [shape: f32[1,128], index: 2, kind: input, shape index: {}]
  %s3 = inlined_call_operand.vmem [shape: bf16[2,64,64,128], index: 3, kind: output, shape index: {}]
  %s4 = sld [smem:[#allocation0]]
  $region52: #{fcn16_forward.19} parent=0
    _
  %s6 = ssub.s32 1, %s4
  %s7 = scalar_select 0, %s6, %s4
  loop: start=0, step=1, limit=4
  $region2: #{fcn16_forward.19} parent=0 // loop_pre_header
    _
  $region3: #{fcn16_forward.19} parent=0 // loop_header
    %s9 = sphi 0, %s13
    %p10 = scmp.ge.s32.totalorder %s9, 4
    %s19 = sphi 0, %s21
    %s22 = sphi 0, %s19
    %s23 = sphi 0, %s22
    %s39 = sphi 0, %s23
    %s43 = sphi 0, %s43
    %s45 = sphi 0, %s43
    %s46 = sphi 0, %s45
    %s60 = sphi 0, %s46
    %s64 = sphi 0, %s64
    %s66 = sphi 0, %s64
    %s67 = sphi 0, %s66
    %s81 = sphi 0, %s67
    %s87 = sphi 0, %s89
    %s90 = sphi 0, %s87
    %s91 = sphi 0, %s90
    %s107 = sphi 0, %s91
  $region4: #{fcn16_forward.19} parent=0 // loop_header_branch
    %12 = sbr.rel (%p10) target = $region8
  $region5: #{fcn16_forward.19} parent=0 // loop_body
    %s14 = ssub.s32 %s9, 1
    %s15 = ssub.s32 %s9, 2
    %s16 = sadd.s32 %s9, 1
    %s17 = ssub.s32 %s9, %s16
    %p18 = scmp.eq.s32.totalorder %s17, 0
    %s20 = sadd.s32 %s19, 1
    %s21 = scalar_select %p18, %s19, %s20
    %p24 = pneg %p18
    %p25 = scmp.eq.s32.totalorder %s9, 1
    %p26 = por %p24, %p25
    %p27 = scmp.ne.s32.totalorder %s19, %s22
    %p28 = scmp.eq.s32.totalorder %s9, 0
    %p29 = por %p27, %p28
    %p30 = scmp.ne.s32.totalorder %s19, %s22
    %p31 = scmp.eq.s32.totalorder %s14, 1
    %p32 = por %p30, %p31
    %p33 = scmp.ne.s32.totalorder %s22, %s23
    %p34 = scmp.eq.s32.totalorder %s14, 0
    %p35 = por %p33, %p34
    %p36 = scmp.ne.s32.totalorder %s22, %s23
    %p37 = scmp.eq.s32.totalorder %s15, 1
    %p38 = por %p36, %p37
    %p40 = scmp.ne.s32.totalorder %s23, %s39
    %p41 = scmp.eq.s32.totalorder %s15, 0
    %p42 = por %p40, %p41
    %s44 = sadd.s32 %s43, 1
    %p47 = scmp.eq.s32.totalorder %s9, 1
    %p48 = scmp.ne.s32.totalorder %s43, %s45
    %p49 = scmp.eq.s32.totalorder %s9, 0
    %p50 = por %p48, %p49
    %p51 = scmp.ne.s32.totalorder %s43, %s45
    %p52 = scmp.eq.s32.totalorder %s14, 1
    %p53 = por %p51, %p52
    %p54 = scmp.ne.s32.totalorder %s45, %s46
    %p55 = scmp.eq.s32.totalorder %s14, 0
    %p56 = por %p54, %p55
    %p57 = scmp.ne.s32.totalorder %s45, %s46
    %p58 = scmp.eq.s32.totalorder %s15, 1
    %p59 = por %p57, %p58
    %p61 = scmp.ne.s32.totalorder %s46, %s60
    %p62 = scmp.eq.s32.totalorder %s15, 0
    %p63 = por %p61, %p62
    %s65 = sadd.s32 %s64, 1
    %p68 = scmp.eq.s32.totalorder %s9, 1
    %p69 = scmp.ne.s32.totalorder %s64, %s66
    %p70 = scmp.eq.s32.totalorder %s9, 0
    %p71 = por %p69, %p70
    %p72 = scmp.ne.s32.totalorder %s64, %s66
    %p73 = scmp.eq.s32.totalorder %s14, 1
    %p74 = por %p72, %p73
    %p75 = scmp.ne.s32.totalorder %s66, %s67
    %p76 = scmp.eq.s32.totalorder %s14, 0
    %p77 = por %p75, %p76
    %p78 = scmp.ne.s32.totalorder %s66, %s67
    %p79 = scmp.eq.s32.totalorder %s15, 1
    %p80 = por %p78, %p79
    %p82 = scmp.ne.s32.totalorder %s67, %s81
    %p83 = scmp.eq.s32.totalorder %s15, 0
    %p84 = por %p82, %p83
    %s85 = ssub.s32 %s9, %s16
    %p86 = scmp.eq.s32.totalorder %s85, 0
    %s88 = sadd.s32 %s87, 1
    %s89 = scalar_select %p86, %s87, %s88
    %p92 = pneg %p86
    %p93 = scmp.eq.s32.totalorder %s9, 1
    %p94 = por %p92, %p93
    %p95 = scmp.ne.s32.totalorder %s87, %s90
    %p96 = scmp.eq.s32.totalorder %s9, 0
    %p97 = por %p95, %p96
    %p98 = scmp.ne.s32.totalorder %s87, %s90
    %p99 = scmp.eq.s32.totalorder %s14, 1
    %p100 = por %p98, %p99
    %p101 = scmp.ne.s32.totalorder %s90, %s91
    %p102 = scmp.eq.s32.totalorder %s14, 0
    %p103 = por %p101, %p102
    %p104 = scmp.ne.s32.totalorder %s90, %s91
    %p105 = scmp.eq.s32.totalorder %s15, 1
    %p106 = por %p104, %p105
    %p108 = scmp.ne.s32.totalorder %s91, %s107
    %p109 = scmp.eq.s32.totalorder %s15, 0
    %p110 = por %p108, %p109
    %p111 = scmp.le.s32.totalorder 1, %s9
    %p112 = scmp.lt.s32.totalorder %s9, 3
    %p113 = pnand %p111, %p112
    %p114 = pneg %p113
    // Predicated region
    $region9: #{fcn16_forward.19} parent=5 // pred_check
      _
    $region10: #{fcn16_forward.19} parent=5 // pred_check_branch
      %116 = sbr.rel (%p113) target = $region12
    $region11: #{fcn16_forward.19} parent=5 // pred_region
      %s117 = ssub.s32 %s9, 1
      // Predicated region
      $region13: #{fcn16_forward.19} parent=11 // pred_check
        %p118 = pneg %p56
      $region14: #{fcn16_forward.19} parent=11 // pred_check_branch
        %120 = sbr.rel (%p118) target = $region16
      $region15: #{fcn16_forward.19} parent=11 // pred_region
        _
      $region16: #{fcn16_forward.19} parent=11 // pred_fallthru
        _
      // Predicated region
      $region17: #{fcn16_forward.19} parent=11 // pred_check
        %p121 = pneg %p77
      $region18: #{fcn16_forward.19} parent=11 // pred_check_branch
        %123 = sbr.rel (%p121) target = $region20
      $region19: #{fcn16_forward.19} parent=11 // pred_region
        _
      $region20: #{fcn16_forward.19} parent=11 // pred_fallthru
        _
    $region12: #{fcn16_forward.19} parent=5 // pred_fallthru
      _
    %p124 = scmp.lt.s32.totalorder %s9, 2
    // Predicated region
    $region21: #{fcn16_forward.19} parent=5 // pred_check
      %p125 = pneg %p124
    $region22: #{fcn16_forward.19} parent=5 // pred_check_branch
      %127 = sbr.rel (%p125) target = $region24
    $region23: #{fcn16_forward.19} parent=5 // pred_region
      // Predicated region
      $region25: #{fcn16_forward.19} parent=23 // pred_check
        %p128 = pneg %p29
      $region26: #{fcn16_forward.19} parent=23 // pred_check_branch
        %130 = sbr.rel (%p128) target = $region28
      $region27: #{fcn16_forward.19} parent=23 // pred_region
        %p131 = scmp.lt.s32.totalorder %s9, 1
        %s132 = scalar_select %p131, %s9, 1
        %s133 = smul.addr %s132, 594
        %s134 = smul.addr %s133, 4
        %s135 = scalar_lea.vmem %s0, %s134
      $region28: #{fcn16_forward.19} parent=23 // pred_fallthru
        _
    $region24: #{fcn16_forward.19} parent=5 // pred_fallthru
      _
    %p136 = scmp.le.s32.totalorder 1, %s9
    %p137 = scmp.lt.s32.totalorder %s9, 3
    %p138 = pnand %p136, %p137
    %p139 = pneg %p138
    // Predicated region
    $region29: #{fcn16_forward.19} parent=5 // pred_check
      _
    $region30: #{fcn16_forward.19} parent=5 // pred_check_branch
      %141 = sbr.rel (%p138) target = $region32
    $region31: #{fcn16_forward.19} parent=5 // pred_region
      %s142 = ssub.s32 %s9, 1
      %p143 = scmp.lt.s32.totalorder %s14, 1
      %s144 = scalar_select %p143, %s14, 1
      %s145 = smul.addr %s144, 594
      %s146 = smul.addr %s145, 4
      %s147 = scalar_lea.vmem %s0, %s146
      %p148 = pneg %p35
      %p149 = pneg %p32
      %p150 = pneg %p56
      %p151 = pneg %p53
      %p152 = pneg %p77
      %p153 = pneg %p74
      %p154 = pneg %p103
      %p155 = pneg %p100
      %p156 = scmp.lt.s32.totalorder %s14, 1
      %s157 = scalar_select %p156, %s14, 1
      %s158 = smul.addr %s157, 512
      %s159 = smul.addr %s158, 4
      %s160 = scalar_lea.vmem %s3, %s159
      %p161 = scmp.lt.s32.totalorder %s14, 1
      %s162 = scalar_select %p161, %s14, 1
      %s163 = smul.addr %s162, 594
      %s164 = smul.addr %s163, 4
      %s165 = scalar_lea.vmem %s0, %s164
      %p166 = scmp.lt.s32.totalorder %s14, 1
      %s167 = scalar_select %p166, %s14, 1
      %s168 = smul.addr %s167, 512
      %s169 = smul.addr %s168, 4
      %s170 = scalar_lea.vmem %s3, %s169
      loop: start=0, step=1, limit=64
      $region33: #{fcn16_forward.19} parent=31 // loop_pre_header
        _
      $region34: #{fcn16_forward.19} parent=31 // loop_header
        %s173 = sphi 0, %s177
        %p174 = scmp.ge.s32.totalorder %s173, 64
      $region35: #{fcn16_forward.19} parent=31 // loop_header_branch
        %176 = sbr.rel (%p174) target = $region39
      $region36: #{fcn16_forward.19} parent=31 // loop_body
        %s178 = smul.u32 %s173, 9
        %s179 = smul.addr %s178, 4
        %s180 = scalar_lea.vmem %s165, %s179
        %v181 = vld [vmem:[%s180] sm:$0xf]
        %v182 = vld [vmem:[%s180 + $0x4] sm:$0xf]
        %v183 = vld [vmem:[%s180 + $0x8] sm:$0xf]
        %v184 = vld [vmem:[%s180 + $0xc] sm:$0xf]
        %v185 = vld [vmem:[%s180 + $0x10] sm:$0xf]
        %v186 = vld [vmem:[%s180 + $0x14] sm:$0xf]
        %v187 = vld [vmem:[%s180 + $0x18] sm:$0xf]
        %v188 = vld [vmem:[%s180 + $0x1c] sm:$0xf]
        %v189 = vld [vmem:[%s180 + $0x20] sm:$0x1]
        %s190 = sadd.s32 %s173, 1
        %s191 = smul.u32 %s190, 9
        %s192 = smul.addr %s191, 4
        %s193 = scalar_lea.vmem %s165, %s192
        %v194 = vld [vmem:[%s193] sm:$0xf]
        %v195 = vld [vmem:[%s193 + $0x4] sm:$0xf]
        %v196 = vld [vmem:[%s193 + $0x8] sm:$0xf]
        %v197 = vld [vmem:[%s193 + $0xc] sm:$0xf]
        %v198 = vld [vmem:[%s193 + $0x10] sm:$0xf]
        %v199 = vld [vmem:[%s193 + $0x14] sm:$0xf]
        %v200 = vld [vmem:[%s193 + $0x18] sm:$0xf]
        %v201 = vld [vmem:[%s193 + $0x1c] sm:$0xf]
        %v202 = vld [vmem:[%s193 + $0x20] sm:$0x1]
        %s203 = sadd.s32 %s173, 2
        %s204 = smul.u32 %s203, 9
        %s205 = smul.addr %s204, 4
        %s206 = scalar_lea.vmem %s165, %s205
        %v207 = vld [vmem:[%s206] sm:$0xf]
        %v208 = vld [vmem:[%s206 + $0x4] sm:$0xf]
        %v209 = vld [vmem:[%s206 + $0x8] sm:$0xf]
        %v210 = vld [vmem:[%s206 + $0xc] sm:$0xf]
        %v211 = vld [vmem:[%s206 + $0x10] sm:$0xf]
        %v212 = vld [vmem:[%s206 + $0x14] sm:$0xf]
        %v213 = vld [vmem:[%s206 + $0x18] sm:$0xf]
        %v214 = vld [vmem:[%s206 + $0x1c] sm:$0xf]
        %v215 = vld [vmem:[%s206 + $0x20] sm:$0x1]
        %v224 = vunpack.c.l.b16 %v181
        %v225 = vunpack.c.l.b16 %v182
        %v226 = vunpack.c.l.b16 %v183
        %v227 = vunpack.c.l.b16 %v184
        %v228 = vunpack.c.l.b16 %v185
        %v229 = vunpack.c.l.b16 %v186
        %v230 = vunpack.c.l.b16 %v187
        %v231 = vunpack.c.l.b16 %v188
        %v232 = vpack.c.b16 %v225, %v224
        %v233 = vpack.c.b16 %v227, %v226
        %v234 = vpack.c.b16 %v229, %v228
        %v235 = vpack.c.b16 %v231, %v230
        %v241 = vunpack.c.l.b16 %v189
        %v242 = vpack.c.b16 %v241, %v241
        %vm243 = vsmask.f32 7424
        %v245 = vshrl.u32 %v232, 16
        %v247 = vshll.u32 %v232, 16
        %v249 = vrot.slane %v247, 1
        %v250 = vor.u32 %v245, %v249
        %v252 = vshll.u32 %v233, 16
        %v254 = vrot.slane %v252, 1
        %v255 = vsel %vm243, %v250, %v254
        %v256 = vshrl.u32 %v233, 16
        %v258 = vor.u32 %v256, %v254
        %v260 = vshll.u32 %v234, 16
        %v262 = vrot.slane %v260, 1
        %v263 = vsel %vm243, %v258, %v262
        %v264 = vshrl.u32 %v234, 16
        %v266 = vor.u32 %v264, %v262
        %v268 = vshll.u32 %v235, 16
        %v270 = vrot.slane %v268, 1
        %v271 = vsel %vm243, %v266, %v270
        %v272 = vshrl.u32 %v235, 16
        %v274 = vor.u32 %v272, %v270
        %v276 = vshll.u32 %v242, 16
        %v278 = vrot.slane %v276, 1
        %v279 = vsel %vm243, %v274, %v278
        %vm284 = vcmask 1046528
        %v285 = vrot.slane %v232, 1
        %v286 = vrot.slane %v233, 1
        %v287 = vsel %vm284, %v285, %v286
        %v288 = vrot.slane %v234, 1
        %v289 = vsel %vm284, %v286, %v288
        %v290 = vrot.slane %v235, 1
        %v291 = vsel %vm284, %v288, %v290
        %v292 = vrot.slane %v242, 1
        %v293 = vsel %vm284, %v290, %v292
        %v306 = vunpack.c.l.b16 %v194
        %v307 = vunpack.c.l.b16 %v195
        %v308 = vunpack.c.l.b16 %v196
        %v309 = vunpack.c.l.b16 %v197
        %v310 = vunpack.c.l.b16 %v198
        %v311 = vunpack.c.l.b16 %v199
        %v312 = vunpack.c.l.b16 %v200
        %v313 = vunpack.c.l.b16 %v201
        %v314 = vpack.c.b16 %v307, %v306
        %v315 = vpack.c.b16 %v309, %v308
        %v316 = vpack.c.b16 %v311, %v310
        %v317 = vpack.c.b16 %v313, %v312
        %v323 = vunpack.c.l.b16 %v202
        %v324 = vpack.c.b16 %v323, %v323
        %v326 = vshrl.u32 %v314, 16
        %v328 = vshll.u32 %v314, 16
        %v330 = vrot.slane %v328, 1
        %v331 = vor.u32 %v326, %v330
        %v333 = vshll.u32 %v315, 16
        %v335 = vrot.slane %v333, 1
        %v336 = vsel %vm243, %v331, %v335
        %v337 = vshrl.u32 %v315, 16
        %v339 = vor.u32 %v337, %v335
        %v341 = vshll.u32 %v316, 16
        %v343 = vrot.slane %v341, 1
        %v344 = vsel %vm243, %v339, %v343
        %v345 = vshrl.u32 %v316, 16
        %v347 = vor.u32 %v345, %v343
        %v349 = vshll.u32 %v317, 16
        %v351 = vrot.slane %v349, 1
        %v352 = vsel %vm243, %v347, %v351
        %v353 = vshrl.u32 %v317, 16
        %v355 = vor.u32 %v353, %v351
        %v357 = vshll.u32 %v324, 16
        %v359 = vrot.slane %v357, 1
        %v360 = vsel %vm243, %v355, %v359
        %v365 = vrot.slane %v314, 1
        %v366 = vrot.slane %v315, 1
        %v367 = vsel %vm284, %v365, %v366
        %v368 = vrot.slane %v316, 1
        %v369 = vsel %vm284, %v366, %v368
        %v370 = vrot.slane %v317, 1
        %v371 = vsel %vm284, %v368, %v370
        %v372 = vrot.slane %v324, 1
        %v373 = vsel %vm284, %v370, %v372
        %v386 = vunpack.c.l.b16 %v207
        %v387 = vunpack.c.l.b16 %v208
        %v388 = vunpack.c.l.b16 %v209
        %v389 = vunpack.c.l.b16 %v210
        %v390 = vunpack.c.l.b16 %v211
        %v391 = vunpack.c.l.b16 %v212
        %v392 = vunpack.c.l.b16 %v213
        %v393 = vunpack.c.l.b16 %v214
        %v394 = vpack.c.b16 %v387, %v386
        %v395 = vpack.c.b16 %v389, %v388
        %v396 = vpack.c.b16 %v391, %v390
        %v397 = vpack.c.b16 %v393, %v392
        %v403 = vunpack.c.l.b16 %v215
        %v404 = vpack.c.b16 %v403, %v403
        %v406 = vshrl.u32 %v394, 16
        %v408 = vshll.u32 %v394, 16
        %v410 = vrot.slane %v408, 1
        %v411 = vor.u32 %v406, %v410
        %v413 = vshll.u32 %v395, 16
        %v415 = vrot.slane %v413, 1
        %v416 = vsel %vm243, %v411, %v415
        %v417 = vshrl.u32 %v395, 16
        %v419 = vor.u32 %v417, %v415
        %v421 = vshll.u32 %v396, 16
        %v423 = vrot.slane %v421, 1
        %v424 = vsel %vm243, %v419, %v423
        %v425 = vshrl.u32 %v396, 16
        %v427 = vor.u32 %v425, %v423
        %v429 = vshll.u32 %v397, 16
        %v431 = vrot.slane %v429, 1
        %v432 = vsel %vm243, %v427, %v431
        %v433 = vshrl.u32 %v397, 16
        %v435 = vor.u32 %v433, %v431
        %v437 = vshll.u32 %v404, 16
        %v439 = vrot.slane %v437, 1
        %v440 = vsel %vm243, %v435, %v439
        %v445 = vrot.slane %v394, 1
        %v446 = vrot.slane %v395, 1
        %v447 = vsel %vm284, %v445, %v446
        %v448 = vrot.slane %v396, 1
        %v449 = vsel %vm284, %v446, %v448
        %v450 = vrot.slane %v397, 1
        %v451 = vsel %vm284, %v448, %v450
        %v452 = vrot.slane %v404, 1
        %v453 = vsel %vm284, %v450, %v452
        %v458 = vld [vmem:[%s1] sm:$0xf]
        %v459 = vld [vmem:[%s1 + $0x4] sm:$0xf]
        %v460 = vld [vmem:[%s1 + $0x8] sm:$0xf]
        %v461 = vld [vmem:[%s1 + $0xc] sm:$0xf]
        %v462 = vld [vmem:[%s1 + $0x10] sm:$0xf]
        %v463 = vld [vmem:[%s1 + $0x14] sm:$0xf]
        %v464 = vld [vmem:[%s1 + $0x18] sm:$0xf]
        %v465 = vld [vmem:[%s1 + $0x1c] sm:$0xf]
        %v466 = vld [vmem:[%s1 + $0x20] sm:$0xf]
        %v467 = vld [vmem:[%s1 + $0x24] sm:$0xf]
        %v468 = vld [vmem:[%s1 + $0x28] sm:$0xf]
        %v469 = vld [vmem:[%s1 + $0x2c] sm:$0xf]
        %v470 = vld [vmem:[%s1 + $0x30] sm:$0xf]
        %v471 = vld [vmem:[%s1 + $0x34] sm:$0xf]
        %v472 = vld [vmem:[%s1 + $0x38] sm:$0xf]
        %v473 = vld [vmem:[%s1 + $0x3c] sm:$0xf]
        %v474 = vld [vmem:[%s1 + $0x40] sm:$0xf]
        %v475 = vld [vmem:[%s1 + $0x44] sm:$0xf]
        %v476 = vld [vmem:[%s1 + $0x48] sm:$0xf]
        %v477 = vld [vmem:[%s1 + $0x4c] sm:$0xf]
        %v478 = vld [vmem:[%s1 + $0x50] sm:$0xf]
        %v479 = vld [vmem:[%s1 + $0x54] sm:$0xf]
        %v480 = vld [vmem:[%s1 + $0x58] sm:$0xf]
        %v481 = vld [vmem:[%s1 + $0x5c] sm:$0xf]
        %v482 = vld [vmem:[%s1 + $0x60] sm:$0xf]
        %v483 = vld [vmem:[%s1 + $0x64] sm:$0xf]
        %v484 = vld [vmem:[%s1 + $0x68] sm:$0xf]
        %v485 = vld [vmem:[%s1 + $0x6c] sm:$0xf]
        %v486 = vld [vmem:[%s1 + $0x70] sm:$0xf]
        %v487 = vld [vmem:[%s1 + $0x74] sm:$0xf]
        %v488 = vld [vmem:[%s1 + $0x78] sm:$0xf]
        %v489 = vld [vmem:[%s1 + $0x7c] sm:$0xf]
        %v490 = vld [vmem:[%s1 + $0x80] sm:$0xf]
        %v491 = vld [vmem:[%s1 + $0x84] sm:$0xf]
        %v492 = vld [vmem:[%s1 + $0x88] sm:$0xf]
        %v493 = vld [vmem:[%s1 + $0x8c] sm:$0xf]
        %v494 = vld [vmem:[%s1 + $0x90] sm:$0xf]
        %v495 = vld [vmem:[%s1 + $0x94] sm:$0xf]
        %v496 = vld [vmem:[%s1 + $0x98] sm:$0xf]
        %v497 = vld [vmem:[%s1 + $0x9c] sm:$0xf]
        %v498 = vld [vmem:[%s1 + $0xa0] sm:$0xf]
        %v499 = vld [vmem:[%s1 + $0xa4] sm:$0xf]
        %v500 = vld [vmem:[%s1 + $0xa8] sm:$0xf]
        %v501 = vld [vmem:[%s1 + $0xac] sm:$0xf]
        %v502 = vld [vmem:[%s1 + $0xb0] sm:$0xf]
        %v503 = vld [vmem:[%s1 + $0xb4] sm:$0xf]
        %v504 = vld [vmem:[%s1 + $0xb8] sm:$0xf]
        %v505 = vld [vmem:[%s1 + $0xbc] sm:$0xf]
        %v506 = vld [vmem:[%s1 + $0xc0] sm:$0xf]
        %v507 = vld [vmem:[%s1 + $0xc4] sm:$0xf]
        %v508 = vld [vmem:[%s1 + $0xc8] sm:$0xf]
        %v509 = vld [vmem:[%s1 + $0xcc] sm:$0xf]
        %v510 = vld [vmem:[%s1 + $0xd0] sm:$0xf]
        %v511 = vld [vmem:[%s1 + $0xd4] sm:$0xf]
        %v512 = vld [vmem:[%s1 + $0xd8] sm:$0xf]
        %v513 = vld [vmem:[%s1 + $0xdc] sm:$0xf]
        %v514 = vld [vmem:[%s1 + $0xe0] sm:$0xf]
        %v515 = vld [vmem:[%s1 + $0xe4] sm:$0xf]
        %v516 = vld [vmem:[%s1 + $0xe8] sm:$0xf]
        %v517 = vld [vmem:[%s1 + $0xec] sm:$0xf]
        %v518 = vld [vmem:[%s1 + $0xf0] sm:$0xf]
        %v519 = vld [vmem:[%s1 + $0xf4] sm:$0xf]
        %v520 = vld [vmem:[%s1 + $0xf8] sm:$0xf]
        %v521 = vld [vmem:[%s1 + $0xfc] sm:$0xf]
        %v522 = vld [vmem:[%s1 + $0x100] sm:$0xf]
        %v523 = vld [vmem:[%s1 + $0x104] sm:$0xf]
        %v524 = vld [vmem:[%s1 + $0x108] sm:$0xf]
        %v525 = vld [vmem:[%s1 + $0x10c] sm:$0xf]
        %v526 = vld [vmem:[%s1 + $0x110] sm:$0xf]
        %v527 = vld [vmem:[%s1 + $0x114] sm:$0xf]
        %v528 = vld [vmem:[%s1 + $0x118] sm:$0xf]
        %v529 = vld [vmem:[%s1 + $0x11c] sm:$0xf]
        %v530 = vld [vmem:[%s1 + $0x120] sm:$0xf]
        %v531 = vld [vmem:[%s1 + $0x124] sm:$0xf]
        %v532 = vld [vmem:[%s1 + $0x128] sm:$0xf]
        %v533 = vld [vmem:[%s1 + $0x12c] sm:$0xf]
        %v534 = vld [vmem:[%s1 + $0x130] sm:$0xf]
        %v535 = vld [vmem:[%s1 + $0x134] sm:$0xf]
        %v536 = vld [vmem:[%s1 + $0x138] sm:$0xf]
        %v537 = vld [vmem:[%s1 + $0x13c] sm:$0xf]
        %v538 = vld [vmem:[%s1 + $0x140] sm:$0xf]
        %v539 = vld [vmem:[%s1 + $0x144] sm:$0xf]
        %v540 = vld [vmem:[%s1 + $0x148] sm:$0xf]
        %v541 = vld [vmem:[%s1 + $0x14c] sm:$0xf]
        %v542 = vld [vmem:[%s1 + $0x150] sm:$0xf]
        %v543 = vld [vmem:[%s1 + $0x154] sm:$0xf]
        %v544 = vld [vmem:[%s1 + $0x158] sm:$0xf]
        %v545 = vld [vmem:[%s1 + $0x15c] sm:$0xf]
        %v546 = vld [vmem:[%s1 + $0x160] sm:$0xf]
        %v547 = vld [vmem:[%s1 + $0x164] sm:$0xf]
        %v548 = vld [vmem:[%s1 + $0x168] sm:$0xf]
        %v549 = vld [vmem:[%s1 + $0x16c] sm:$0xf]
        %v550 = vld [vmem:[%s1 + $0x170] sm:$0xf]
        %v551 = vld [vmem:[%s1 + $0x174] sm:$0xf]
        %v552 = vld [vmem:[%s1 + $0x178] sm:$0xf]
        %v553 = vld [vmem:[%s1 + $0x17c] sm:$0xf]
        %v554 = vld [vmem:[%s1 + $0x180] sm:$0xf]
        %v555 = vld [vmem:[%s1 + $0x184] sm:$0xf]
        %v556 = vld [vmem:[%s1 + $0x188] sm:$0xf]
        %v557 = vld [vmem:[%s1 + $0x18c] sm:$0xf]
        %v558 = vld [vmem:[%s1 + $0x190] sm:$0xf]
        %v559 = vld [vmem:[%s1 + $0x194] sm:$0xf]
        %v560 = vld [vmem:[%s1 + $0x198] sm:$0xf]
        %v561 = vld [vmem:[%s1 + $0x19c] sm:$0xf]
        %v562 = vld [vmem:[%s1 + $0x1a0] sm:$0xf]
        %v563 = vld [vmem:[%s1 + $0x1a4] sm:$0xf]
        %v564 = vld [vmem:[%s1 + $0x1a8] sm:$0xf]
        %v565 = vld [vmem:[%s1 + $0x1ac] sm:$0xf]
        %v566 = vld [vmem:[%s1 + $0x1b0] sm:$0xf]
        %v567 = vld [vmem:[%s1 + $0x1b4] sm:$0xf]
        %v568 = vld [vmem:[%s1 + $0x1b8] sm:$0xf]
        %v569 = vld [vmem:[%s1 + $0x1bc] sm:$0xf]
        %v570 = vld [vmem:[%s1 + $0x1c0] sm:$0xf]
        %v571 = vld [vmem:[%s1 + $0x1c4] sm:$0xf]
        %v572 = vld [vmem:[%s1 + $0x1c8] sm:$0xf]
        %v573 = vld [vmem:[%s1 + $0x1cc] sm:$0xf]
        %v574 = vld [vmem:[%s1 + $0x1d0] sm:$0xf]
        %v575 = vld [vmem:[%s1 + $0x1d4] sm:$0xf]
        %v576 = vld [vmem:[%s1 + $0x1d8] sm:$0xf]
        %v577 = vld [vmem:[%s1 + $0x1dc] sm:$0xf]
        %v578 = vld [vmem:[%s1 + $0x1e0] sm:$0xf]
        %v579 = vld [vmem:[%s1 + $0x1e4] sm:$0xf]
        %v580 = vld [vmem:[%s1 + $0x1e8] sm:$0xf]
        %v581 = vld [vmem:[%s1 + $0x1ec] sm:$0xf]
        %v582 = vld [vmem:[%s1 + $0x1f0] sm:$0xf]
        %v583 = vld [vmem:[%s1 + $0x1f4] sm:$0xf]
        %v584 = vld [vmem:[%s1 + $0x1f8] sm:$0xf]
        %v585 = vld [vmem:[%s1 + $0x1fc] sm:$0xf]
        %v586 = vld [vmem:[%s1 + $0x200] sm:$0xf]
        %v587 = vld [vmem:[%s1 + $0x204] sm:$0xf]
        %v588 = vld [vmem:[%s1 + $0x208] sm:$0xf]
        %v589 = vld [vmem:[%s1 + $0x20c] sm:$0xf]
        %v590 = vld [vmem:[%s1 + $0x210] sm:$0xf]
        %v591 = vld [vmem:[%s1 + $0x214] sm:$0xf]
        %v592 = vld [vmem:[%s1 + $0x218] sm:$0xf]
        %v593 = vld [vmem:[%s1 + $0x21c] sm:$0xf]
        %v594 = vld [vmem:[%s1 + $0x220] sm:$0xf]
        %v595 = vld [vmem:[%s1 + $0x224] sm:$0xf]
        %v596 = vld [vmem:[%s1 + $0x228] sm:$0xf]
        %v597 = vld [vmem:[%s1 + $0x22c] sm:$0xf]
        %v598 = vld [vmem:[%s1 + $0x230] sm:$0xf]
        %v599 = vld [vmem:[%s1 + $0x234] sm:$0xf]
        %v600 = vld [vmem:[%s1 + $0x238] sm:$0xf]
        %v601 = vld [vmem:[%s1 + $0x23c] sm:$0xf]
        %v602 = vld [vmem:[%s2] sm:$0x1]
        %v604 = vlaneseq
        %v605 = vshrl.u32 %v604, 7
        %v606 = vsub.s32 0, %v605
        %v607 = vrot.slane %v602, %v606
        %v753 = vunpack.c.l.b16 %v458
        %v754 = vunpack.c.l.b16 %v459
        %v755 = vunpack.c.l.b16 %v460
        %v756 = vunpack.c.l.b16 %v461
        %v757 = vunpack.c.l.b16 %v462
        %v758 = vunpack.c.l.b16 %v463
        %v759 = vunpack.c.l.b16 %v464
        %v760 = vunpack.c.l.b16 %v465
        %v761 = vunpack.c.l.b16 %v466
        %v762 = vunpack.c.l.b16 %v467
        %v763 = vunpack.c.l.b16 %v468
        %v764 = vunpack.c.l.b16 %v469
        %v765 = vunpack.c.l.b16 %v470
        %v766 = vunpack.c.l.b16 %v471
        %v767 = vunpack.c.l.b16 %v472
        %v768 = vunpack.c.l.b16 %v473
        %v769 = vunpack.c.l.b16 %v474
        %v770 = vunpack.c.l.b16 %v475
        %v771 = vunpack.c.l.b16 %v476
        %v772 = vunpack.c.l.b16 %v477
        %v773 = vunpack.c.l.b16 %v478
        %v774 = vunpack.c.l.b16 %v479
        %v775 = vunpack.c.l.b16 %v480
        %v776 = vunpack.c.l.b16 %v481
        %v777 = vunpack.c.l.b16 %v482
        %v778 = vunpack.c.l.b16 %v483
        %v779 = vunpack.c.l.b16 %v484
        %v780 = vunpack.c.l.b16 %v485
        %v781 = vunpack.c.l.b16 %v486
        %v782 = vunpack.c.l.b16 %v487
        %v783 = vunpack.c.l.b16 %v488
        %v784 = vunpack.c.l.b16 %v489
        %v785 = vunpack.c.l.b16 %v490
        %v786 = vunpack.c.l.b16 %v491
        %v787 = vunpack.c.l.b16 %v492
        %v788 = vunpack.c.l.b16 %v493
        %v789 = vunpack.c.l.b16 %v494
        %v790 = vunpack.c.l.b16 %v495
        %v791 = vunpack.c.l.b16 %v496
        %v792 = vunpack.c.l.b16 %v497
        %v793 = vunpack.c.l.b16 %v498
        %v794 = vunpack.c.l.b16 %v499
        %v795 = vunpack.c.l.b16 %v500
        %v796 = vunpack.c.l.b16 %v501
        %v797 = vunpack.c.l.b16 %v502
        %v798 = vunpack.c.l.b16 %v503
        %v799 = vunpack.c.l.b16 %v504
        %v800 = vunpack.c.l.b16 %v505
        %v801 = vunpack.c.l.b16 %v506
        %v802 = vunpack.c.l.b16 %v507
        %v803 = vunpack.c.l.b16 %v508
        %v804 = vunpack.c.l.b16 %v509
        %v805 = vunpack.c.l.b16 %v510
        %v806 = vunpack.c.l.b16 %v511
        %v807 = vunpack.c.l.b16 %v512
        %v808 = vunpack.c.l.b16 %v513
        %v809 = vunpack.c.l.b16 %v514
        %v810 = vunpack.c.l.b16 %v515
        %v811 = vunpack.c.l.b16 %v516
        %v812 = vunpack.c.l.b16 %v517
        %v813 = vunpack.c.l.b16 %v518
        %v814 = vunpack.c.l.b16 %v519
        %v815 = vunpack.c.l.b16 %v520
        %v816 = vunpack.c.l.b16 %v521
        %v817 = vunpack.c.l.b16 %v522
        %v818 = vunpack.c.l.b16 %v523
        %v819 = vunpack.c.l.b16 %v524
        %v820 = vunpack.c.l.b16 %v525
        %v821 = vunpack.c.l.b16 %v526
        %v822 = vunpack.c.l.b16 %v527
        %v823 = vunpack.c.l.b16 %v528
        %v824 = vunpack.c.l.b16 %v529
        %v825 = vunpack.c.l.b16 %v530
        %v826 = vunpack.c.l.b16 %v531
        %v827 = vunpack.c.l.b16 %v532
        %v828 = vunpack.c.l.b16 %v533
        %v829 = vunpack.c.l.b16 %v534
        %v830 = vunpack.c.l.b16 %v535
        %v831 = vunpack.c.l.b16 %v536
        %v832 = vunpack.c.l.b16 %v537
        %v833 = vunpack.c.l.b16 %v538
        %v834 = vunpack.c.l.b16 %v539
        %v835 = vunpack.c.l.b16 %v540
        %v836 = vunpack.c.l.b16 %v541
        %v837 = vunpack.c.l.b16 %v542
        %v838 = vunpack.c.l.b16 %v543
        %v839 = vunpack.c.l.b16 %v544
        %v840 = vunpack.c.l.b16 %v545
        %v841 = vunpack.c.l.b16 %v546
        %v842 = vunpack.c.l.b16 %v547
        %v843 = vunpack.c.l.b16 %v548
        %v844 = vunpack.c.l.b16 %v549
        %v845 = vunpack.c.l.b16 %v550
        %v846 = vunpack.c.l.b16 %v551
        %v847 = vunpack.c.l.b16 %v552
        %v848 = vunpack.c.l.b16 %v553
        %v849 = vunpack.c.l.b16 %v554
        %v850 = vunpack.c.l.b16 %v555
        %v851 = vunpack.c.l.b16 %v556
        %v852 = vunpack.c.l.b16 %v557
        %v853 = vunpack.c.l.b16 %v558
        %v854 = vunpack.c.l.b16 %v559
        %v855 = vunpack.c.l.b16 %v560
        %v856 = vunpack.c.l.b16 %v561
        %v857 = vunpack.c.l.b16 %v562
        %v858 = vunpack.c.l.b16 %v563
        %v859 = vunpack.c.l.b16 %v564
        %v860 = vunpack.c.l.b16 %v565
        %v861 = vunpack.c.l.b16 %v566
        %v862 = vunpack.c.l.b16 %v567
        %v863 = vunpack.c.l.b16 %v568
        %v864 = vunpack.c.l.b16 %v569
        %v865 = vunpack.c.l.b16 %v570
        %v866 = vunpack.c.l.b16 %v571
        %v867 = vunpack.c.l.b16 %v572
        %v868 = vunpack.c.l.b16 %v573
        %v869 = vunpack.c.l.b16 %v574
        %v870 = vunpack.c.l.b16 %v575
        %v871 = vunpack.c.l.b16 %v576
        %v872 = vunpack.c.l.b16 %v577
        %v873 = vunpack.c.l.b16 %v578
        %v874 = vunpack.c.l.b16 %v579
        %v875 = vunpack.c.l.b16 %v580
        %v876 = vunpack.c.l.b16 %v581
        %v877 = vunpack.c.l.b16 %v582
        %v878 = vunpack.c.l.b16 %v583
        %v879 = vunpack.c.l.b16 %v584
        %v880 = vunpack.c.l.b16 %v585
        %v881 = vunpack.c.l.b16 %v586
        %v882 = vunpack.c.l.b16 %v587
        %v883 = vunpack.c.l.b16 %v588
        %v884 = vunpack.c.l.b16 %v589
        %v885 = vunpack.c.l.b16 %v590
        %v886 = vunpack.c.l.b16 %v591
        %v887 = vunpack.c.l.b16 %v592
        %v888 = vunpack.c.l.b16 %v593
        %v889 = vunpack.c.l.b16 %v594
        %v890 = vunpack.c.l.b16 %v595
        %v891 = vunpack.c.l.b16 %v596
        %v892 = vunpack.c.l.b16 %v597
        %v893 = vunpack.c.l.b16 %v598
        %v894 = vunpack.c.l.b16 %v599
        %v895 = vunpack.c.l.b16 %v600
        %v896 = vunpack.c.l.b16 %v601
        %v897 = vpack.c.b16 %v754, %v753
        %v898 = vpack.c.b16 %v756, %v755
        %v899 = vpack.c.b16 %v758, %v757
        %v900 = vpack.c.b16 %v760, %v759
        %v901 = vpack.c.b16 %v762, %v761
        %v902 = vpack.c.b16 %v764, %v763
        %v903 = vpack.c.b16 %v766, %v765
        %v904 = vpack.c.b16 %v768, %v767
        %v905 = vpack.c.b16 %v770, %v769
        %v906 = vpack.c.b16 %v772, %v771
        %v907 = vpack.c.b16 %v774, %v773
        %v908 = vpack.c.b16 %v776, %v775
        %v909 = vpack.c.b16 %v778, %v777
        %v910 = vpack.c.b16 %v780, %v779
        %v911 = vpack.c.b16 %v782, %v781
        %v912 = vpack.c.b16 %v784, %v783
        %v913 = vpack.c.b16 %v786, %v785
        %v914 = vpack.c.b16 %v788, %v787
        %v915 = vpack.c.b16 %v790, %v789
        %v916 = vpack.c.b16 %v792, %v791
        %v917 = vpack.c.b16 %v794, %v793
        %v918 = vpack.c.b16 %v796, %v795
        %v919 = vpack.c.b16 %v798, %v797
        %v920 = vpack.c.b16 %v800, %v799
        %v921 = vpack.c.b16 %v802, %v801
        %v922 = vpack.c.b16 %v804, %v803
        %v923 = vpack.c.b16 %v806, %v805
        %v924 = vpack.c.b16 %v808, %v807
        %v925 = vpack.c.b16 %v810, %v809
        %v926 = vpack.c.b16 %v812, %v811
        %v927 = vpack.c.b16 %v814, %v813
        %v928 = vpack.c.b16 %v816, %v815
        %v929 = vpack.c.b16 %v818, %v817
        %v930 = vpack.c.b16 %v820, %v819
        %v931 = vpack.c.b16 %v822, %v821
        %v932 = vpack.c.b16 %v824, %v823
        %v933 = vpack.c.b16 %v826, %v825
        %v934 = vpack.c.b16 %v828, %v827
        %v935 = vpack.c.b16 %v830, %v829
        %v936 = vpack.c.b16 %v832, %v831
        %v937 = vpack.c.b16 %v834, %v833
        %v938 = vpack.c.b16 %v836, %v835
        %v939 = vpack.c.b16 %v838, %v837
        %v940 = vpack.c.b16 %v840, %v839
        %v941 = vpack.c.b16 %v842, %v841
        %v942 = vpack.c.b16 %v844, %v843
        %v943 = vpack.c.b16 %v846, %v845
        %v944 = vpack.c.b16 %v848, %v847
        %v945 = vpack.c.b16 %v850, %v849
        %v946 = vpack.c.b16 %v852, %v851
        %v947 = vpack.c.b16 %v854, %v853
        %v948 = vpack.c.b16 %v856, %v855
        %v949 = vpack.c.b16 %v858, %v857
        %v950 = vpack.c.b16 %v860, %v859
        %v951 = vpack.c.b16 %v862, %v861
        %v952 = vpack.c.b16 %v864, %v863
        %v953 = vpack.c.b16 %v866, %v865
        %v954 = vpack.c.b16 %v868, %v867
        %v955 = vpack.c.b16 %v870, %v869
        %v956 = vpack.c.b16 %v872, %v871
        %v957 = vpack.c.b16 %v874, %v873
        %v958 = vpack.c.b16 %v876, %v875
        %v959 = vpack.c.b16 %v878, %v877
        %v960 = vpack.c.b16 %v880, %v879
        %v961 = vpack.c.b16 %v882, %v881
        %v962 = vpack.c.b16 %v884, %v883
        %v963 = vpack.c.b16 %v886, %v885
        %v964 = vpack.c.b16 %v888, %v887
        %v965 = vpack.c.b16 %v890, %v889
        %v966 = vpack.c.b16 %v892, %v891
        %v967 = vpack.c.b16 %v894, %v893
        %v968 = vpack.c.b16 %v896, %v895
        %1041 = vmatprep.subr.bf16.mxu0 0
        %1042 = vmatpush1.bf16.msra.mxu0 %v897
        %1043 = vmatprep.subr.bf16.mxu0 0
        %1044 = vmatpush1.bf16.msra.mxu0 %v898
        %1045 = vmatprep.subr.bf16.mxu0 0
        %1046 = vmatpush1.bf16.msra.mxu0 %v899
        %1047 = vmatprep.subr.bf16.mxu0 0
        %1048 = vmatpush1.bf16.msra.mxu0 %v900
        %1049 = vmatprep.subr.bf16.mxu0 0
        %1050 = vmatpush1.bf16.msra.mxu0 %v901
        %1051 = vmatprep.subr.bf16.mxu0 0
        %1052 = vmatpush1.bf16.msra.mxu0 %v902
        %1053 = vmatprep.subr.bf16.mxu0 0
        %1054 = vmatpush1.bf16.msra.mxu0 %v903
        %1055 = vmatprep.subr.bf16.mxu0 0
        %1056 = vmatpush1.bf16.msra.mxu0 %v904
        %1057 = vmatprep.subr.bf16.mxu0 0
        %1058 = vmatpush1.bf16.msra.mxu0 %v905
        %1059 = vmatprep.subr.bf16.mxu0 0
        %1060 = vmatpush1.bf16.msra.mxu0 %v906
        %1061 = vmatprep.subr.bf16.mxu0 0
        %1062 = vmatpush1.bf16.msra.mxu0 %v907
        %1063 = vmatprep.subr.bf16.mxu0 0
        %1064 = vmatpush1.bf16.msra.mxu0 %v908
        %1065 = vmatprep.subr.bf16.mxu0 0
        %1066 = vmatpush1.bf16.msra.mxu0 %v909
        %1067 = vmatprep.subr.bf16.mxu0 0
        %1068 = vmatpush1.bf16.msra.mxu0 %v910
        %1069 = vmatprep.subr.bf16.mxu0 0
        %1070 = vmatpush1.bf16.msra.mxu0 %v911
        %1071 = vmatprep.subr.bf16.mxu0 0
        %1072 = vmatpush1.bf16.msra.mxu0 %v912
        %1073 = vmatprep.mubr.bf16.mxu0 %v255
        %1074 = vmatmul.mubr.bf16.gmra.mrb[0].mxu0 %v232
        %v1075 = vpop.f32.mrb[0].mxu0
        %v1076 = vadd.f32 %v607, %v1075
        %v1077 = vpop.f32.mrb[0].mxu0
        %v1078 = vpop.f32.mrb[0].mxu0
        %v1079 = vadd.f32 %v607, %v1078
        %v1080 = vpop.f32.mrb[0].mxu0
        %1081 = vmatprep.mubr.bf16.mxu0 %v263
        %1082 = vmatmul.mubr.bf16.gmra.mrb[0].mxu0 %v233
        %v1083 = vpop.f32.mrb[0].mxu0
        %v1084 = vadd.f32 %v607, %v1083
        %v1085 = vpop.f32.mrb[0].mxu0
        %v1086 = vpop.f32.mrb[0].mxu0
        %v1087 = vadd.f32 %v607, %v1086
        %v1088 = vpop.f32.mrb[0].mxu0
        %1089 = vmatprep.mubr.bf16.mxu0 %v271
        %1090 = vmatmul.mubr.bf16.gmra.mrb[0].mxu0 %v234
        %v1091 = vpop.f32.mrb[0].mxu0
        %v1092 = vadd.f32 %v607, %v1091
        %v1093 = vpop.f32.mrb[0].mxu0
        %v1094 = vpop.f32.mrb[0].mxu0
        %v1095 = vadd.f32 %v607, %v1094
        %v1096 = vpop.f32.mrb[0].mxu0
        %1097 = vmatprep.mubr.bf16.mxu0 %v279
        %1098 = vmatmul.mubr.bf16.gmra.mrb[0].mxu0 %v235
        %v1099 = vpop.f32.mrb[0].mxu0
        %v1100 = vadd.f32 %v607, %v1099
        %v1101 = vpop.f32.mrb[0].mxu0
        %v1102 = vpop.f32.mrb[0].mxu0
        %v1103 = vadd.f32 %v607, %v1102
        %v1104 = vpop.f32.mrb[0].mxu0
        %1105 = vdwg.mxu0
        %1106 = vmatprep.subr.bf16.mxu0 0
        %1107 = vmatpush1.bf16.msra.mxu0 %v913
        %1108 = vmatprep.subr.bf16.mxu0 0
        %1109 = vmatpush1.bf16.msra.mxu0 %v914
        %1110 = vmatprep.subr.bf16.mxu0 0
        %1111 = vmatpush1.bf16.msra.mxu0 %v915
        %1112 = vmatprep.subr.bf16.mxu0 0
        %1113 = vmatpush1.bf16.msra.mxu0 %v916
        %1114 = vmatprep.subr.bf16.mxu0 0
        %1115 = vmatpush1.bf16.msra.mxu0 %v917
        %1116 = vmatprep.subr.bf16.mxu0 0
        %1117 = vmatpush1.bf16.msra.mxu0 %v918
        %1118 = vmatprep.subr.bf16.mxu0 0
        %1119 = vmatpush1.bf16.msra.mxu0 %v919
        %1120 = vmatprep.subr.bf16.mxu0 0
        %1121 = vmatpush1.bf16.msra.mxu0 %v920
        %1122 = vmatprep.subr.bf16.mxu0 0
        %1123 = vmatpush1.bf16.msra.mxu0 %v921
        %1124 = vmatprep.subr.bf16.mxu0 0
        %1125 = vmatpush1.bf16.msra.mxu0 %v922
        %1126 = vmatprep.subr.bf16.mxu0 0
        %1127 = vmatpush1.bf16.msra.mxu0 %v923
        %1128 = vmatprep.subr.bf16.mxu0 0
        %1129 = vmatpush1.bf16.msra.mxu0 %v924
        %1130 = vmatprep.subr.bf16.mxu0 0
        %1131 = vmatpush1.bf16.msra.mxu0 %v925
        %1132 = vmatprep.subr.bf16.mxu0 0
        %1133 = vmatpush1.bf16.msra.mxu0 %v926
        %1134 = vmatprep.subr.bf16.mxu0 0
        %1135 = vmatpush1.bf16.msra.mxu0 %v927
        %1136 = vmatprep.subr.bf16.mxu0 0
        %1137 = vmatpush1.bf16.msra.mxu0 %v928
        %1138 = vmatprep.mubr.bf16.mxu0 %v314
        %1139 = vmatmul.mubr.bf16.gmra.mrb[0].mxu0 %v287
        %v1140 = vpop.f32.mrb[0].mxu0
        %v1141 = vadd.f32 %v1076, %v1140
        %v1142 = vpop.f32.mrb[0].mxu0
        %v1143 = vpop.f32.mrb[0].mxu0
        %v1144 = vadd.f32 %v1079, %v1143
        %v1145 = vpop.f32.mrb[0].mxu0
        %1146 = vmatprep.mubr.bf16.mxu0 %v315
        %1147 = vmatmul.mubr.bf16.gmra.mrb[0].mxu0 %v289
        %v1148 = vpop.f32.mrb[0].mxu0
        %v1149 = vadd.f32 %v1084, %v1148
        %v1150 = vpop.f32.mrb[0].mxu0
        %v1151 = vpop.f32.mrb[0].mxu0
        %v1152 = vadd.f32 %v1087, %v1151
        %v1153 = vpop.f32.mrb[0].mxu0
        %1154 = vmatprep.mubr.bf16.mxu0 %v316
        %1155 = vmatmul.mubr.bf16.gmra.mrb[0].mxu0 %v291
        %v1156 = vpop.f32.mrb[0].mxu0
        %v1157 = vadd.f32 %v1092, %v1156
        %v1158 = vpop.f32.mrb[0].mxu0
        %v1159 = vpop.f32.mrb[0].mxu0
        %v1160 = vadd.f32 %v1095, %v1159
        %v1161 = vpop.f32.mrb[0].mxu0
        %1162 = vmatprep.mubr.bf16.mxu0 %v317
        %1163 = vmatmul.mubr.bf16.gmra.mrb[0].mxu0 %v293
        %v1164 = vpop.f32.mrb[0].mxu0
        %v1165 = vadd.f32 %v1100, %v1164
        %v1166 = vpop.f32.mrb[0].mxu0
        %v1167 = vpop.f32.mrb[0].mxu0
        %v1168 = vadd.f32 %v1103, %v1167
        %v1169 = vpop.f32.mrb[0].mxu0
        %1170 = vdwg.mxu0
        %1171 = vmatprep.subr.bf16.mxu0 0
        %1172 = vmatpush1.bf16.msra.mxu0 %v929
        %1173 = vmatprep.subr.bf16.mxu0 0
        %1174 = vmatpush1.bf16.msra.mxu0 %v930
        %1175 = vmatprep.subr.bf16.mxu0 0
        %1176 = vmatpush1.bf16.msra.mxu0 %v931
        %1177 = vmatprep.subr.bf16.mxu0 0
        %1178 = vmatpush1.bf16.msra.mxu0 %v932
        %1179 = vmatprep.subr.bf16.mxu0 0
        %1180 = vmatpush1.bf16.msra.mxu0 %v933
        %1181 = vmatprep.subr.bf16.mxu0 0
        %1182 = vmatpush1.bf16.msra.mxu0 %v934
        %1183 = vmatprep.subr.bf16.mxu0 0
        %1184 = vmatpush1.bf16.msra.mxu0 %v935
        %1185 = vmatprep.subr.bf16.mxu0 0
        %1186 = vmatpush1.bf16.msra.mxu0 %v936
        %1187 = vmatprep.subr.bf16.mxu0 0
        %1188 = vmatpush1.bf16.msra.mxu0 %v937
        %1189 = vmatprep.subr.bf16.mxu0 0
        %1190 = vmatpush1.bf16.msra.mxu0 %v938
        %1191 = vmatprep.subr.bf16.mxu0 0
        %1192 = vmatpush1.bf16.msra.mxu0 %v939
        %1193 = vmatprep.subr.bf16.mxu0 0
        %1194 = vmatpush1.bf16.msra.mxu0 %v940
        %1195 = vmatprep.subr.bf16.mxu0 0
        %1196 = vmatpush1.bf16.msra.mxu0 %v941
        %1197 = vmatprep.subr.bf16.mxu0 0
        %1198 = vmatpush1.bf16.msra.mxu0 %v942
        %1199 = vmatprep.subr.bf16.mxu0 0
        %1200 = vmatpush1.bf16.msra.mxu0 %v943
        %1201 = vmatprep.subr.bf16.mxu0 0
        %1202 = vmatpush1.bf16.msra.mxu0 %v944
        %1203 = vmatprep.mubr.bf16.mxu0 %v367
        %1204 = vmatmul.mubr.bf16.gmra.mrb[0].mxu0 %v336
        %v1205 = vpop.f32.mrb[0].mxu0
        %v1206 = vadd.f32 %v1141, %v1205
        %v1207 = vpop.f32.mrb[0].mxu0
        %v1208 = vpop.f32.mrb[0].mxu0
        %v1209 = vadd.f32 %v1144, %v1208
        %v1210 = vpop.f32.mrb[0].mxu0
        %1211 = vmatprep.mubr.bf16.mxu0 %v369
        %1212 = vmatmul.mubr.bf16.gmra.mrb[0].mxu0 %v344
        %v1213 = vpop.f32.mrb[0].mxu0
        %v1214 = vadd.f32 %v1149, %v1213
        %v1215 = vpop.f32.mrb[0].mxu0
        %v1216 = vpop.f32.mrb[0].mxu0
        %v1217 = vadd.f32 %v1152, %v1216
        %v1218 = vpop.f32.mrb[0].mxu0
        %1219 = vmatprep.mubr.bf16.mxu0 %v371
        %1220 = vmatmul.mubr.bf16.gmra.mrb[0].mxu0 %v352
        %v1221 = vpop.f32.mrb[0].mxu0
        %v1222 = vadd.f32 %v1157, %v1221
        %v1223 = vpop.f32.mrb[0].mxu0
        %v1224 = vpop.f32.mrb[0].mxu0
        %v1225 = vadd.f32 %v1160, %v1224
        %v1226 = vpop.f32.mrb[0].mxu0
        %1227 = vmatprep.mubr.bf16.mxu0 %v373
        %1228 = vmatmul.mubr.bf16.gmra.mrb[0].mxu0 %v360
        %v1229 = vpop.f32.mrb[0].mxu0
        %v1230 = vadd.f32 %v1165, %v1229
        %v1231 = vpop.f32.mrb[0].mxu0
        %v1232 = vpop.f32.mrb[0].mxu0
        %v1233 = vadd.f32 %v1168, %v1232
        %v1234 = vpop.f32.mrb[0].mxu0
        %1235 = vdwg.mxu0
        %1236 = vmatprep.subr.bf16.mxu0 0
        %1237 = vmatpush1.bf16.msra.mxu0 %v945
        %1238 = vmatprep.subr.bf16.mxu0 0
        %1239 = vmatpush1.bf16.msra.mxu0 %v946
        %1240 = vmatprep.subr.bf16.mxu0 0
        %1241 = vmatpush1.bf16.msra.mxu0 %v947
        %1242 = vmatprep.subr.bf16.mxu0 0
        %1243 = vmatpush1.bf16.msra.mxu0 %v948
        %1244 = vmatprep.subr.bf16.mxu0 0
        %1245 = vmatpush1.bf16.msra.mxu0 %v949
        %1246 = vmatprep.subr.bf16.mxu0 0
        %1247 = vmatpush1.bf16.msra.mxu0 %v950
        %1248 = vmatprep.subr.bf16.mxu0 0
        %1249 = vmatpush1.bf16.msra.mxu0 %v951
        %1250 = vmatprep.subr.bf16.mxu0 0
        %1251 = vmatpush1.bf16.msra.mxu0 %v952
        %1252 = vmatprep.subr.bf16.mxu0 0
        %1253 = vmatpush1.bf16.msra.mxu0 %v953
        %1254 = vmatprep.subr.bf16.mxu0 0
        %1255 = vmatpush1.bf16.msra.mxu0 %v954
        %1256 = vmatprep.subr.bf16.mxu0 0
        %1257 = vmatpush1.bf16.msra.mxu0 %v955
        %1258 = vmatprep.subr.bf16.mxu0 0
        %1259 = vmatpush1.bf16.msra.mxu0 %v956
        %1260 = vmatprep.subr.bf16.mxu0 0
        %1261 = vmatpush1.bf16.msra.mxu0 %v957
        %1262 = vmatprep.subr.bf16.mxu0 0
        %1263 = vmatpush1.bf16.msra.mxu0 %v958
        %1264 = vmatprep.subr.bf16.mxu0 0
        %1265 = vmatpush1.bf16.msra.mxu0 %v959
        %1266 = vmatprep.subr.bf16.mxu0 0
        %1267 = vmatpush1.bf16.msra.mxu0 %v960
        %1268 = vmatprep.mubr.bf16.mxu0 %v416
        %1269 = vmatmul.mubr.bf16.gmra.mrb[0].mxu0 %v394
        %v1270 = vpop.f32.mrb[0].mxu0
        %v1271 = vadd.f32 %v1206, %v1270
        %v1272 = vpop.f32.mrb[0].mxu0
        %v1273 = vpop.f32.mrb[0].mxu0
        %v1274 = vadd.f32 %v1209, %v1273
        %v1275 = vpop.f32.mrb[0].mxu0
        %1276 = vmatprep.mubr.bf16.mxu0 %v424
        %1277 = vmatmul.mubr.bf16.gmra.mrb[0].mxu0 %v395
        %v1278 = vpop.f32.mrb[0].mxu0
        %v1279 = vadd.f32 %v1214, %v1278
        %v1280 = vpop.f32.mrb[0].mxu0
        %v1281 = vpop.f32.mrb[0].mxu0
        %v1282 = vadd.f32 %v1217, %v1281
        %v1283 = vpop.f32.mrb[0].mxu0
        %1284 = vmatprep.mubr.bf16.mxu0 %v432
        %1285 = vmatmul.mubr.bf16.gmra.mrb[0].mxu0 %v396
        %v1286 = vpop.f32.mrb[0].mxu0
        %v1287 = vadd.f32 %v1222, %v1286
        %v1288 = vpop.f32.mrb[0].mxu0
        %v1289 = vpop.f32.mrb[0].mxu0
        %v1290 = vadd.f32 %v1225, %v1289
        %v1291 = vpop.f32.mrb[0].mxu0
        %1292 = vmatprep.mubr.bf16.mxu0 %v440
        %1293 = vmatmul.mubr.bf16.gmra.mrb[0].mxu0 %v397
        %v1294 = vpop.f32.mrb[0].mxu0
        %v1295 = vadd.f32 %v1230, %v1294
        %v1296 = vpop.f32.mrb[0].mxu0
        %v1297 = vpop.f32.mrb[0].mxu0
        %v1298 = vadd.f32 %v1233, %v1297
        %v1299 = vpop.f32.mrb[0].mxu0
        %1300 = vdwg.mxu0
        %1301 = vmatprep.subr.bf16.mxu0 0
        %1302 = vmatpush1.bf16.msra.mxu0 %v961
        %1303 = vmatprep.subr.bf16.mxu0 0
        %1304 = vmatpush1.bf16.msra.mxu0 %v962
        %1305 = vmatprep.subr.bf16.mxu0 0
        %1306 = vmatpush1.bf16.msra.mxu0 %v963
        %1307 = vmatprep.subr.bf16.mxu0 0
        %1308 = vmatpush1.bf16.msra.mxu0 %v964
        %1309 = vmatprep.subr.bf16.mxu0 0
        %1310 = vmatpush1.bf16.msra.mxu0 %v965
        %1311 = vmatprep.subr.bf16.mxu0 0
        %1312 = vmatpush1.bf16.msra.mxu0 %v966
        %1313 = vmatprep.subr.bf16.mxu0 0
        %1314 = vmatpush1.bf16.msra.mxu0 %v967
        %1315 = vmatprep.subr.bf16.mxu0 0
        %1316 = vmatpush1.bf16.msra.mxu0 %v968
        %1317 = vmatprep.subr.bf16.mxu0 0
        %1318 = vmatpush1.bf16.msra.mxu0 0
        %1319 = vmatprep.subr.bf16.mxu0 0
        %1320 = vmatpush1.bf16.msra.mxu0 0
        %1321 = vmatprep.subr.bf16.mxu0 0
        %1322 = vmatpush1.bf16.msra.mxu0 0
        %1323 = vmatprep.subr.bf16.mxu0 0
        %1324 = vmatpush1.bf16.msra.mxu0 0
        %1325 = vmatprep.subr.bf16.mxu0 0
        %1326 = vmatpush1.bf16.msra.mxu0 0
        %1327 = vmatprep.subr.bf16.mxu0 0
        %1328 = vmatpush1.bf16.msra.mxu0 0
        %1329 = vmatprep.subr.bf16.mxu0 0
        %1330 = vmatpush1.bf16.msra.mxu0 0
        %1331 = vmatprep.subr.bf16.mxu0 0
        %1332 = vmatpush1.bf16.msra.mxu0 0
        %1333 = vmatprep.mubr.bf16.mxu0 0
        %1334 = vmatmul.mubr.bf16.gmra.mrb[0].mxu0 %v447
        %v1335 = vpop.f32.mrb[0].mxu0
        %v1336 = vadd.f32 %v1271, %v1335
        %v1337 = vpop.f32.mrb[0].mxu0
        %v1338 = vpop.f32.mrb[0].mxu0
        %v1339 = vadd.f32 %v1274, %v1338
        %v1340 = vpop.f32.mrb[0].mxu0
        %1341 = vmatprep.mubr.bf16.mxu0 0
        %1342 = vmatmul.mubr.bf16.gmra.mrb[0].mxu0 %v449
        %v1343 = vpop.f32.mrb[0].mxu0
        %v1344 = vadd.f32 %v1279, %v1343
        %v1345 = vpop.f32.mrb[0].mxu0
        %v1346 = vpop.f32.mrb[0].mxu0
        %v1347 = vadd.f32 %v1282, %v1346
        %v1348 = vpop.f32.mrb[0].mxu0
        %1349 = vmatprep.mubr.bf16.mxu0 0
        %1350 = vmatmul.mubr.bf16.gmra.mrb[0].mxu0 %v451
        %v1351 = vpop.f32.mrb[0].mxu0
        %v1352 = vadd.f32 %v1287, %v1351
        %v1353 = vpop.f32.mrb[0].mxu0
        %v1354 = vpop.f32.mrb[0].mxu0
        %v1355 = vadd.f32 %v1290, %v1354
        %v1356 = vpop.f32.mrb[0].mxu0
        %1357 = vmatprep.mubr.bf16.mxu0 0
        %1358 = vmatmul.mubr.bf16.gmra.mrb[0].mxu0 %v453
        %v1359 = vpop.f32.mrb[0].mxu0
        %v1360 = vadd.f32 %v1295, %v1359
        %v1361 = vpop.f32.mrb[0].mxu0
        %v1362 = vpop.f32.mrb[0].mxu0
        %v1363 = vadd.f32 %v1298, %v1362
        %v1364 = vpop.f32.mrb[0].mxu0
        %1365 = vdwg.mxu0
        %v1366 = vmax.f32 %v1336, 0.0
        %v1367 = vmax.f32 %v1339, 0.0
        %v1368 = vmax.f32 %v1344, 0.0
        %v1369 = vmax.f32 %v1347, 0.0
        %v1370 = vmax.f32 %v1352, 0.0
        %v1371 = vmax.f32 %v1355, 0.0
        %v1372 = vmax.f32 %v1360, 0.0
        %v1373 = vmax.f32 %v1363, 0.0
        %v1374 = vpack.c.bf16 %v1367, %v1366
        %v1375 = vpack.c.bf16 %v1369, %v1368
        %v1376 = vpack.c.bf16 %v1371, %v1370
        %v1377 = vpack.c.bf16 %v1373, %v1372
        %v1382 = vunpack.c.l.b16 %v1374
        %v1383 = vunpack.c.h.b16 %v1374
        %v1384 = vunpack.c.l.b16 %v1375
        %v1385 = vunpack.c.h.b16 %v1375
        %v1386 = vunpack.c.l.b16 %v1376
        %v1387 = vunpack.c.h.b16 %v1376
        %v1388 = vunpack.c.l.b16 %v1377
        %v1389 = vunpack.c.h.b16 %v1377
        %v1390 = vpack.c.b16 %v1382, %v1382
        %v1391 = vpack.c.b16 %v1383, %v1383
        %v1392 = vpack.c.b16 %v1384, %v1384
        %v1393 = vpack.c.b16 %v1385, %v1385
        %v1394 = vpack.c.b16 %v1386, %v1386
        %v1395 = vpack.c.b16 %v1387, %v1387
        %v1396 = vpack.c.b16 %v1388, %v1388
        %v1397 = vpack.c.b16 %v1389, %v1389
        %s1406 = smul.u32 %s173, 8
        %s1407 = smul.addr %s1406, 4
        %s1408 = scalar_lea.vmem %s170, %s1407
        %1409 = vst [vmem:[%s1408] sm:$0xf] %v1390
        %1410 = vst [vmem:[%s1408 + $0x4] sm:$0xf] %v1391
        %1411 = vst [vmem:[%s1408 + $0x8] sm:$0xf] %v1392
        %1412 = vst [vmem:[%s1408 + $0xc] sm:$0xf] %v1393
        %1413 = vst [vmem:[%s1408 + $0x10] sm:$0xf] %v1394
        %1414 = vst [vmem:[%s1408 + $0x14] sm:$0xf] %v1395
        %1415 = vst [vmem:[%s1408 + $0x18] sm:$0xf] %v1396
        %1416 = vst [vmem:[%s1408 + $0x1c] sm:$0xf] %v1397
      $region37: #{fcn16_forward.19} parent=31 // loop_footer
        %s177 = sadd.s32 1, %s173
      $region38: #{fcn16_forward.19} parent=31 // loop_footer_branch
        %172 = sbr.rel target = $region34
      $region39: #{fcn16_forward.19} parent=31 // loop_exit
        _
      %p1417 = scmp.lt.s32.totalorder %s14, 1
      %s1418 = scalar_select %p1417, %s14, 1
      %s1419 = smul.addr %s1418, 512
      %s1420 = smul.addr %s1419, 4
      %s1421 = scalar_lea.vmem %s3, %s1420
      // Predicated region
      $region40: #{fcn16_forward.19} parent=31 // pred_check
        %p1422 = pneg %p100
      $region41: #{fcn16_forward.19} parent=31 // pred_check_branch
        %1424 = sbr.rel (%p1422) target = $region43
      $region42: #{fcn16_forward.19} parent=31 // pred_region
        _
      $region43: #{fcn16_forward.19} parent=31 // pred_fallthru
        _
    $region32: #{fcn16_forward.19} parent=5 // pred_fallthru
      _
    %p1425 = scmp.le.s32.totalorder 2, %s9
    // Predicated region
    $region44: #{fcn16_forward.19} parent=5 // pred_check
      %p1426 = pneg %p1425
    $region45: #{fcn16_forward.19} parent=5 // pred_check_branch
      %1428 = sbr.rel (%p1426) target = $region47
    $region46: #{fcn16_forward.19} parent=5 // pred_region
      %s1429 = ssub.s32 %s9, 2
      // Predicated region
      $region48: #{fcn16_forward.19} parent=46 // pred_check
        %p1430 = pneg %p106
      $region49: #{fcn16_forward.19} parent=46 // pred_check_branch
        %1432 = sbr.rel (%p1430) target = $region51
      $region50: #{fcn16_forward.19} parent=46 // pred_region
        %p1433 = scmp.lt.s32.totalorder %s15, 1
        %s1434 = scalar_select %p1433, %s15, 1
        %s1435 = smul.addr %s1434, 512
        %s1436 = smul.addr %s1435, 4
        %s1437 = scalar_lea.vmem %s3, %s1436
      $region51: #{fcn16_forward.19} parent=46 // pred_fallthru
        _
    $region47: #{fcn16_forward.19} parent=5 // pred_fallthru
      _
  $region6: #{fcn16_forward.19} parent=0 // loop_footer
    %s13 = sadd.s32 1, %s9
  $region7: #{fcn16_forward.19} parent=0 // loop_footer_branch
    %8 = sbr.rel target = $region3
  $region8: #{fcn16_forward.19} parent=0 // loop_exit
    _

// kernel: fcn16_forward.21
$region0: #{fcn16_forward.21}
  #allocation0 [shape = 'u32[]', space=smem, size = 0x4, offset = 0x4, fixed_abs, tag = 'smem constant byte address 0x4 - core index']
  #allocation1 [shape = 'u32[144,128]{1,0:T(1,128)}', space=vmem, size = 0x12000, scoped, tag = 'internal scratch']
  %s0 = inlined_call_operand.vmem [shape: bf16[2,64,32,256], index: 0, kind: input, shape index: {}]
  %s1 = inlined_call_operand.vmem [shape: bf16[2,32,32,128], index: 1, kind: output, shape index: {}]
  %s2 = sld [smem:[#allocation0]]
  $region37: #{fcn16_forward.21} parent=0
    _
  %s4 = ssub.s32 1, %s2
  %s5 = scalar_select 0, %s4, %s2
  loop: start=0, step=1, limit=4
  $region2: #{fcn16_forward.21} parent=0 // loop_pre_header
    _
  $region3: #{fcn16_forward.21} parent=0 // loop_header
    %s7 = sphi 0, %s11
    %p8 = scmp.ge.s32.totalorder %s7, 4
    %s17 = sphi 0, %s19
    %s20 = sphi 0, %s17
    %s21 = sphi 0, %s20
    %s37 = sphi 0, %s21
    %s43 = sphi 0, %s45
    %s46 = sphi 0, %s43
    %s47 = sphi 0, %s46
    %s63 = sphi 0, %s47
  $region4: #{fcn16_forward.21} parent=0 // loop_header_branch
    %10 = sbr.rel (%p8) target = $region8
  $region5: #{fcn16_forward.21} parent=0 // loop_body
    %s12 = ssub.s32 %s7, 1
    %s13 = ssub.s32 %s7, 2
    %s14 = sadd.s32 %s7, 1
    %s15 = ssub.s32 %s7, %s14
    %p16 = scmp.eq.s32.totalorder %s15, 0
    %s18 = sadd.s32 %s17, 1
    %s19 = scalar_select %p16, %s17, %s18
    %p22 = pneg %p16
    %p23 = scmp.eq.s32.totalorder %s7, 1
    %p24 = por %p22, %p23
    %p25 = scmp.ne.s32.totalorder %s17, %s20
    %p26 = scmp.eq.s32.totalorder %s7, 0
    %p27 = por %p25, %p26
    %p28 = scmp.ne.s32.totalorder %s17, %s20
    %p29 = scmp.eq.s32.totalorder %s12, 1
    %p30 = por %p28, %p29
    %p31 = scmp.ne.s32.totalorder %s20, %s21
    %p32 = scmp.eq.s32.totalorder %s12, 0
    %p33 = por %p31, %p32
    %p34 = scmp.ne.s32.totalorder %s20, %s21
    %p35 = scmp.eq.s32.totalorder %s13, 1
    %p36 = por %p34, %p35
    %p38 = scmp.ne.s32.totalorder %s21, %s37
    %p39 = scmp.eq.s32.totalorder %s13, 0
    %p40 = por %p38, %p39
    %s41 = ssub.s32 %s7, %s14
    %p42 = scmp.eq.s32.totalorder %s41, 0
    %s44 = sadd.s32 %s43, 1
    %s45 = scalar_select %p42, %s43, %s44
    %p48 = pneg %p42
    %p49 = scmp.eq.s32.totalorder %s7, 1
    %p50 = por %p48, %p49
    %p51 = scmp.ne.s32.totalorder %s43, %s46
    %p52 = scmp.eq.s32.totalorder %s7, 0
    %p53 = por %p51, %p52
    %p54 = scmp.ne.s32.totalorder %s43, %s46
    %p55 = scmp.eq.s32.totalorder %s12, 1
    %p56 = por %p54, %p55
    %p57 = scmp.ne.s32.totalorder %s46, %s47
    %p58 = scmp.eq.s32.totalorder %s12, 0
    %p59 = por %p57, %p58
    %p60 = scmp.ne.s32.totalorder %s46, %s47
    %p61 = scmp.eq.s32.totalorder %s13, 1
    %p62 = por %p60, %p61
    %p64 = scmp.ne.s32.totalorder %s47, %s63
    %p65 = scmp.eq.s32.totalorder %s13, 0
    %p66 = por %p64, %p65
    %p67 = scmp.le.s32.totalorder 1, %s7
    %p68 = scmp.lt.s32.totalorder %s7, 3
    %p69 = pnand %p67, %p68
    %p70 = pneg %p69
    // Predicated region
    $region9: #{fcn16_forward.21} parent=5 // pred_check
      _
    $region10: #{fcn16_forward.21} parent=5 // pred_check_branch
      %72 = sbr.rel (%p69) target = $region12
    $region11: #{fcn16_forward.21} parent=5 // pred_region
      %s73 = ssub.s32 %s7, 1
    $region12: #{fcn16_forward.21} parent=5 // pred_fallthru
      _
    %p74 = scmp.lt.s32.totalorder %s7, 2
    // Predicated region
    $region13: #{fcn16_forward.21} parent=5 // pred_check
      %p75 = pneg %p74
    $region14: #{fcn16_forward.21} parent=5 // pred_check_branch
      %77 = sbr.rel (%p75) target = $region16
    $region15: #{fcn16_forward.21} parent=5 // pred_region
      // Predicated region
      $region17: #{fcn16_forward.21} parent=15 // pred_check
        %p78 = pneg %p27
      $region18: #{fcn16_forward.21} parent=15 // pred_check_branch
        %80 = sbr.rel (%p78) target = $region20
      $region19: #{fcn16_forward.21} parent=15 // pred_region
        %p81 = scmp.lt.s32.totalorder %s7, 1
        %s82 = scalar_select %p81, %s7, 1
        %s83 = smul.addr %s82, 512
        %s84 = smul.addr %s83, 4
        %s85 = scalar_lea.vmem %s0, %s84
      $region20: #{fcn16_forward.21} parent=15 // pred_fallthru
        _
    $region16: #{fcn16_forward.21} parent=5 // pred_fallthru
      _
    %p86 = scmp.le.s32.totalorder 1, %s7
    %p87 = scmp.lt.s32.totalorder %s7, 3
    %p88 = pnand %p86, %p87
    %p89 = pneg %p88
    // Predicated region
    $region21: #{fcn16_forward.21} parent=5 // pred_check
      _
    $region22: #{fcn16_forward.21} parent=5 // pred_check_branch
      %91 = sbr.rel (%p88) target = $region24
    $region23: #{fcn16_forward.21} parent=5 // pred_region
      %s92 = ssub.s32 %s7, 1
      %p93 = scmp.lt.s32.totalorder %s12, 1
      %s94 = scalar_select %p93, %s12, 1
      %s95 = smul.addr %s94, 512
      %s96 = smul.addr %s95, 4
      %s97 = scalar_lea.vmem %s0, %s96
      %p98 = pneg %p33
      %p99 = pneg %p30
      %p100 = pneg %p59
      %p101 = pneg %p56
      %p102 = scmp.lt.s32.totalorder %s12, 1
      %s103 = scalar_select %p102, %s12, 1
      %s104 = smul.addr %s103, 128
      %s105 = smul.addr %s104, 4
      %s106 = scalar_lea.vmem %s1, %s105
      %p107 = scmp.lt.s32.totalorder %s12, 1
      %s108 = scalar_select %p107, %s12, 1
      %s109 = smul.addr %s108, 512
      %s110 = smul.addr %s109, 4
      %s111 = scalar_lea.vmem %s0, %s110
      %p112 = scmp.lt.s32.totalorder %s12, 1
      %s113 = scalar_select %p112, %s12, 1
      %s114 = smul.addr %s113, 128
      %s115 = smul.addr %s114, 4
      %s116 = scalar_lea.vmem %s1, %s115
      %v117 = vld [vmem:[%s111] sm:$0xff]
      %v118 = vld [vmem:[%s111 + $0x8] sm:$0xff]
      %v119 = vld [vmem:[%s111 + $0x10] sm:$0xff]
      %v120 = vld [vmem:[%s111 + $0x18] sm:$0xff]
      %v121 = vld [vmem:[%s111 + $0x20] sm:$0xff]
      %v122 = vld [vmem:[%s111 + $0x28] sm:$0xff]
      %v123 = vld [vmem:[%s111 + $0x30] sm:$0xff]
      %v124 = vld [vmem:[%s111 + $0x38] sm:$0xff]
      %v125 = vld [vmem:[%s111 + $0x40] sm:$0xff]
      %v126 = vld [vmem:[%s111 + $0x48] sm:$0xff]
      %v127 = vld [vmem:[%s111 + $0x50] sm:$0xff]
      %v128 = vld [vmem:[%s111 + $0x58] sm:$0xff]
      %v129 = vld [vmem:[%s111 + $0x60] sm:$0xff]
      %v130 = vld [vmem:[%s111 + $0x68] sm:$0xff]
      %v131 = vld [vmem:[%s111 + $0x70] sm:$0xff]
      %v132 = vld [vmem:[%s111 + $0x78] sm:$0xff]
      %v133 = vld [vmem:[%s111 + $0x80] sm:$0xff]
      %v134 = vld [vmem:[%s111 + $0x88] sm:$0xff]
      %v135 = vld [vmem:[%s111 + $0x90] sm:$0xff]
      %v136 = vld [vmem:[%s111 + $0x98] sm:$0xff]
      %v137 = vld [vmem:[%s111 + $0xa0] sm:$0xff]
      %v138 = vld [vmem:[%s111 + $0xa8] sm:$0xff]
      %v139 = vld [vmem:[%s111 + $0xb0] sm:$0xff]
      %v140 = vld [vmem:[%s111 + $0xb8] sm:$0xff]
      %v141 = vld [vmem:[%s111 + $0xc0] sm:$0xff]
      %v142 = vld [vmem:[%s111 + $0xc8] sm:$0xff]
      %v143 = vld [vmem:[%s111 + $0xd0] sm:$0xff]
      %v144 = vld [vmem:[%s111 + $0xd8] sm:$0xff]
      %v145 = vld [vmem:[%s111 + $0xe0] sm:$0xff]
      %v146 = vld [vmem:[%s111 + $0xe8] sm:$0xff]
      %v147 = vld [vmem:[%s111 + $0xf0] sm:$0xff]
      %v148 = vld [vmem:[%s111 + $0xf8] sm:$0xff]
      %v149 = vld [vmem:[%s111 + $0x100] sm:$0xff]
      %v150 = vld [vmem:[%s111 + $0x108] sm:$0xff]
      %v151 = vld [vmem:[%s111 + $0x110] sm:$0xff]
      %v152 = vld [vmem:[%s111 + $0x118] sm:$0xff]
      %v153 = vld [vmem:[%s111 + $0x120] sm:$0xff]
      %v154 = vld [vmem:[%s111 + $0x128] sm:$0xff]
      %v155 = vld [vmem:[%s111 + $0x130] sm:$0xff]
      %v156 = vld [vmem:[%s111 + $0x138] sm:$0xff]
      %v157 = vld [vmem:[%s111 + $0x140] sm:$0xff]
      %v158 = vld [vmem:[%s111 + $0x148] sm:$0xff]
      %v159 = vld [vmem:[%s111 + $0x150] sm:$0xff]
      %v160 = vld [vmem:[%s111 + $0x158] sm:$0xff]
      %v161 = vld [vmem:[%s111 + $0x160] sm:$0xff]
      %v162 = vld [vmem:[%s111 + $0x168] sm:$0xff]
      %v163 = vld [vmem:[%s111 + $0x170] sm:$0xff]
      %v164 = vld [vmem:[%s111 + $0x178] sm:$0xff]
      %v165 = vld [vmem:[%s111 + $0x180] sm:$0xff]
      %v166 = vld [vmem:[%s111 + $0x188] sm:$0xff]
      %v167 = vld [vmem:[%s111 + $0x190] sm:$0xff]
      %v168 = vld [vmem:[%s111 + $0x198] sm:$0xff]
      %v169 = vld [vmem:[%s111 + $0x1a0] sm:$0xff]
      %v170 = vld [vmem:[%s111 + $0x1a8] sm:$0xff]
      %v171 = vld [vmem:[%s111 + $0x1b0] sm:$0xff]
      %v172 = vld [vmem:[%s111 + $0x1b8] sm:$0xff]
      %v173 = vld [vmem:[%s111 + $0x1c0] sm:$0xff]
      %v174 = vld [vmem:[%s111 + $0x1c8] sm:$0xff]
      %v175 = vld [vmem:[%s111 + $0x1d0] sm:$0xff]
      %v176 = vld [vmem:[%s111 + $0x1d8] sm:$0xff]
      %v177 = vld [vmem:[%s111 + $0x1e0] sm:$0xff]
      %v178 = vld [vmem:[%s111 + $0x1e8] sm:$0xff]
      %v179 = vld [vmem:[%s111 + $0x1f0] sm:$0xff]
      %v180 = vld [vmem:[%s111 + $0x1f8] sm:$0xff]
      %v181 = vld [vmem:[%s111 + $0x200] sm:$0xff]
      %v182 = vld [vmem:[%s111 + $0x208] sm:$0xff]
      %v183 = vld [vmem:[%s111 + $0x210] sm:$0xff]
      %v184 = vld [vmem:[%s111 + $0x218] sm:$0xff]
      %v185 = vld [vmem:[%s111 + $0x220] sm:$0xff]
      %v186 = vld [vmem:[%s111 + $0x228] sm:$0xff]
      %v187 = vld [vmem:[%s111 + $0x230] sm:$0xff]
      %v188 = vld [vmem:[%s111 + $0x238] sm:$0xff]
      %v189 = vld [vmem:[%s111 + $0x240] sm:$0xff]
      %v190 = vld [vmem:[%s111 + $0x248] sm:$0xff]
      %v191 = vld [vmem:[%s111 + $0x250] sm:$0xff]
      %v192 = vld [vmem:[%s111 + $0x258] sm:$0xff]
      %v193 = vld [vmem:[%s111 + $0x260] sm:$0xff]
      %v194 = vld [vmem:[%s111 + $0x268] sm:$0xff]
      %v195 = vld [vmem:[%s111 + $0x270] sm:$0xff]
      %v196 = vld [vmem:[%s111 + $0x278] sm:$0xff]
      %v197 = vld [vmem:[%s111 + $0x280] sm:$0xff]
      %v198 = vld [vmem:[%s111 + $0x288] sm:$0xff]
      %v199 = vld [vmem:[%s111 + $0x290] sm:$0xff]
      %v200 = vld [vmem:[%s111 + $0x298] sm:$0xff]
      %v201 = vld [vmem:[%s111 + $0x2a0] sm:$0xff]
      %v202 = vld [vmem:[%s111 + $0x2a8] sm:$0xff]
      %v203 = vld [vmem:[%s111 + $0x2b0] sm:$0xff]
      %v204 = vld [vmem:[%s111 + $0x2b8] sm:$0xff]
      %v205 = vld [vmem:[%s111 + $0x2c0] sm:$0xff]
      %v206 = vld [vmem:[%s111 + $0x2c8] sm:$0xff]
      %v207 = vld [vmem:[%s111 + $0x2d0] sm:$0xff]
      %v208 = vld [vmem:[%s111 + $0x2d8] sm:$0xff]
      %v209 = vld [vmem:[%s111 + $0x2e0] sm:$0xff]
      %v210 = vld [vmem:[%s111 + $0x2e8] sm:$0xff]
      %v211 = vld [vmem:[%s111 + $0x2f0] sm:$0xff]
      %v212 = vld [vmem:[%s111 + $0x2f8] sm:$0xff]
      %v213 = vld [vmem:[%s111 + $0x300] sm:$0xff]
      %v214 = vld [vmem:[%s111 + $0x308] sm:$0xff]
      %v215 = vld [vmem:[%s111 + $0x310] sm:$0xff]
      %v216 = vld [vmem:[%s111 + $0x318] sm:$0xff]
      %v217 = vld [vmem:[%s111 + $0x320] sm:$0xff]
      %v218 = vld [vmem:[%s111 + $0x328] sm:$0xff]
      %v219 = vld [vmem:[%s111 + $0x330] sm:$0xff]
      %v220 = vld [vmem:[%s111 + $0x338] sm:$0xff]
      %v221 = vld [vmem:[%s111 + $0x340] sm:$0xff]
      %v222 = vld [vmem:[%s111 + $0x348] sm:$0xff]
      %v223 = vld [vmem:[%s111 + $0x350] sm:$0xff]
      %v224 = vld [vmem:[%s111 + $0x358] sm:$0xff]
      %v225 = vld [vmem:[%s111 + $0x360] sm:$0xff]
      %v226 = vld [vmem:[%s111 + $0x368] sm:$0xff]
      %v227 = vld [vmem:[%s111 + $0x370] sm:$0xff]
      %v228 = vld [vmem:[%s111 + $0x378] sm:$0xff]
      %v229 = vld [vmem:[%s111 + $0x380] sm:$0xff]
      %v230 = vld [vmem:[%s111 + $0x388] sm:$0xff]
      %v231 = vld [vmem:[%s111 + $0x390] sm:$0xff]
      %v232 = vld [vmem:[%s111 + $0x398] sm:$0xff]
      %v233 = vld [vmem:[%s111 + $0x3a0] sm:$0xff]
      %v234 = vld [vmem:[%s111 + $0x3a8] sm:$0xff]
      %v235 = vld [vmem:[%s111 + $0x3b0] sm:$0xff]
      %v236 = vld [vmem:[%s111 + $0x3b8] sm:$0xff]
      %v237 = vld [vmem:[%s111 + $0x3c0] sm:$0xff]
      %v238 = vld [vmem:[%s111 + $0x3c8] sm:$0xff]
      %v239 = vld [vmem:[%s111 + $0x3d0] sm:$0xff]
      %v240 = vld [vmem:[%s111 + $0x3d8] sm:$0xff]
      %v241 = vld [vmem:[%s111 + $0x3e0] sm:$0xff]
      %v242 = vld [vmem:[%s111 + $0x3e8] sm:$0xff]
      %v243 = vld [vmem:[%s111 + $0x3f0] sm:$0xff]
      %v244 = vld [vmem:[%s111 + $0x3f8] sm:$0xff]
      %v245 = vld [vmem:[%s111 + $0x400] sm:$0xff]
      %v246 = vld [vmem:[%s111 + $0x408] sm:$0xff]
      %v247 = vld [vmem:[%s111 + $0x410] sm:$0xff]
      %v248 = vld [vmem:[%s111 + $0x418] sm:$0xff]
      %v249 = vld [vmem:[%s111 + $0x420] sm:$0xff]
      %v250 = vld [vmem:[%s111 + $0x428] sm:$0xff]
      %v251 = vld [vmem:[%s111 + $0x430] sm:$0xff]
      %v252 = vld [vmem:[%s111 + $0x438] sm:$0xff]
      %v253 = vld [vmem:[%s111 + $0x440] sm:$0xff]
      %v254 = vld [vmem:[%s111 + $0x448] sm:$0xff]
      %v255 = vld [vmem:[%s111 + $0x450] sm:$0xff]
      %v256 = vld [vmem:[%s111 + $0x458] sm:$0xff]
      %v257 = vld [vmem:[%s111 + $0x460] sm:$0xff]
      %v258 = vld [vmem:[%s111 + $0x468] sm:$0xff]
      %v259 = vld [vmem:[%s111 + $0x470] sm:$0xff]
      %v260 = vld [vmem:[%s111 + $0x478] sm:$0xff]
      %v261 = vld [vmem:[%s111 + $0x480] sm:$0xff]
      %v262 = vld [vmem:[%s111 + $0x488] sm:$0xff]
      %v263 = vld [vmem:[%s111 + $0x490] sm:$0xff]
      %v264 = vld [vmem:[%s111 + $0x498] sm:$0xff]
      %v265 = vld [vmem:[%s111 + $0x4a0] sm:$0xff]
      %v266 = vld [vmem:[%s111 + $0x4a8] sm:$0xff]
      %v267 = vld [vmem:[%s111 + $0x4b0] sm:$0xff]
      %v268 = vld [vmem:[%s111 + $0x4b8] sm:$0xff]
      %v269 = vld [vmem:[%s111 + $0x4c0] sm:$0xff]
      %v270 = vld [vmem:[%s111 + $0x4c8] sm:$0xff]
      %v271 = vld [vmem:[%s111 + $0x4d0] sm:$0xff]
      %v272 = vld [vmem:[%s111 + $0x4d8] sm:$0xff]
      %v273 = vld [vmem:[%s111 + $0x4e0] sm:$0xff]
      %v274 = vld [vmem:[%s111 + $0x4e8] sm:$0xff]
      %v275 = vld [vmem:[%s111 + $0x4f0] sm:$0xff]
      %v276 = vld [vmem:[%s111 + $0x4f8] sm:$0xff]
      %v277 = vld [vmem:[%s111 + $0x500] sm:$0xff]
      %v278 = vld [vmem:[%s111 + $0x508] sm:$0xff]
      %v279 = vld [vmem:[%s111 + $0x510] sm:$0xff]
      %v280 = vld [vmem:[%s111 + $0x518] sm:$0xff]
      %v281 = vld [vmem:[%s111 + $0x520] sm:$0xff]
      %v282 = vld [vmem:[%s111 + $0x528] sm:$0xff]
      %v283 = vld [vmem:[%s111 + $0x530] sm:$0xff]
      %v284 = vld [vmem:[%s111 + $0x538] sm:$0xff]
      %v285 = vld [vmem:[%s111 + $0x540] sm:$0xff]
      %v286 = vld [vmem:[%s111 + $0x548] sm:$0xff]
      %v287 = vld [vmem:[%s111 + $0x550] sm:$0xff]
      %v288 = vld [vmem:[%s111 + $0x558] sm:$0xff]
      %v289 = vld [vmem:[%s111 + $0x560] sm:$0xff]
      %v290 = vld [vmem:[%s111 + $0x568] sm:$0xff]
      %v291 = vld [vmem:[%s111 + $0x570] sm:$0xff]
      %v292 = vld [vmem:[%s111 + $0x578] sm:$0xff]
      %v293 = vld [vmem:[%s111 + $0x580] sm:$0xff]
      %v294 = vld [vmem:[%s111 + $0x588] sm:$0xff]
      %v295 = vld [vmem:[%s111 + $0x590] sm:$0xff]
      %v296 = vld [vmem:[%s111 + $0x598] sm:$0xff]
      %v297 = vld [vmem:[%s111 + $0x5a0] sm:$0xff]
      %v298 = vld [vmem:[%s111 + $0x5a8] sm:$0xff]
      %v299 = vld [vmem:[%s111 + $0x5b0] sm:$0xff]
      %v300 = vld [vmem:[%s111 + $0x5b8] sm:$0xff]
      %v301 = vld [vmem:[%s111 + $0x5c0] sm:$0xff]
      %v302 = vld [vmem:[%s111 + $0x5c8] sm:$0xff]
      %v303 = vld [vmem:[%s111 + $0x5d0] sm:$0xff]
      %v304 = vld [vmem:[%s111 + $0x5d8] sm:$0xff]
      %v305 = vld [vmem:[%s111 + $0x5e0] sm:$0xff]
      %v306 = vld [vmem:[%s111 + $0x5e8] sm:$0xff]
      %v307 = vld [vmem:[%s111 + $0x5f0] sm:$0xff]
      %v308 = vld [vmem:[%s111 + $0x5f8] sm:$0xff]
      %v309 = vld [vmem:[%s111 + $0x600] sm:$0xff]
      %v310 = vld [vmem:[%s111 + $0x608] sm:$0xff]
      %v311 = vld [vmem:[%s111 + $0x610] sm:$0xff]
      %v312 = vld [vmem:[%s111 + $0x618] sm:$0xff]
      %v313 = vld [vmem:[%s111 + $0x620] sm:$0xff]
      %v314 = vld [vmem:[%s111 + $0x628] sm:$0xff]
      %v315 = vld [vmem:[%s111 + $0x630] sm:$0xff]
      %v316 = vld [vmem:[%s111 + $0x638] sm:$0xff]
      %v317 = vld [vmem:[%s111 + $0x640] sm:$0xff]
      %v318 = vld [vmem:[%s111 + $0x648] sm:$0xff]
      %v319 = vld [vmem:[%s111 + $0x650] sm:$0xff]
      %v320 = vld [vmem:[%s111 + $0x658] sm:$0xff]
      %v321 = vld [vmem:[%s111 + $0x660] sm:$0xff]
      %v322 = vld [vmem:[%s111 + $0x668] sm:$0xff]
      %v323 = vld [vmem:[%s111 + $0x670] sm:$0xff]
      %v324 = vld [vmem:[%s111 + $0x678] sm:$0xff]
      %v325 = vld [vmem:[%s111 + $0x680] sm:$0xff]
      %v326 = vld [vmem:[%s111 + $0x688] sm:$0xff]
      %v327 = vld [vmem:[%s111 + $0x690] sm:$0xff]
      %v328 = vld [vmem:[%s111 + $0x698] sm:$0xff]
      %v329 = vld [vmem:[%s111 + $0x6a0] sm:$0xff]
      %v330 = vld [vmem:[%s111 + $0x6a8] sm:$0xff]
      %v331 = vld [vmem:[%s111 + $0x6b0] sm:$0xff]
      %v332 = vld [vmem:[%s111 + $0x6b8] sm:$0xff]
      %v333 = vld [vmem:[%s111 + $0x6c0] sm:$0xff]
      %v334 = vld [vmem:[%s111 + $0x6c8] sm:$0xff]
      %v335 = vld [vmem:[%s111 + $0x6d0] sm:$0xff]
      %v336 = vld [vmem:[%s111 + $0x6d8] sm:$0xff]
      %v337 = vld [vmem:[%s111 + $0x6e0] sm:$0xff]
      %v338 = vld [vmem:[%s111 + $0x6e8] sm:$0xff]
      %v339 = vld [vmem:[%s111 + $0x6f0] sm:$0xff]
      %v340 = vld [vmem:[%s111 + $0x6f8] sm:$0xff]
      %v341 = vld [vmem:[%s111 + $0x700] sm:$0xff]
      %v342 = vld [vmem:[%s111 + $0x708] sm:$0xff]
      %v343 = vld [vmem:[%s111 + $0x710] sm:$0xff]
      %v344 = vld [vmem:[%s111 + $0x718] sm:$0xff]
      %v345 = vld [vmem:[%s111 + $0x720] sm:$0xff]
      %v346 = vld [vmem:[%s111 + $0x728] sm:$0xff]
      %v347 = vld [vmem:[%s111 + $0x730] sm:$0xff]
      %v348 = vld [vmem:[%s111 + $0x738] sm:$0xff]
      %v349 = vld [vmem:[%s111 + $0x740] sm:$0xff]
      %v350 = vld [vmem:[%s111 + $0x748] sm:$0xff]
      %v351 = vld [vmem:[%s111 + $0x750] sm:$0xff]
      %v352 = vld [vmem:[%s111 + $0x758] sm:$0xff]
      %v353 = vld [vmem:[%s111 + $0x760] sm:$0xff]
      %v354 = vld [vmem:[%s111 + $0x768] sm:$0xff]
      %v355 = vld [vmem:[%s111 + $0x770] sm:$0xff]
      %v356 = vld [vmem:[%s111 + $0x778] sm:$0xff]
      %v357 = vld [vmem:[%s111 + $0x780] sm:$0xff]
      %v358 = vld [vmem:[%s111 + $0x788] sm:$0xff]
      %v359 = vld [vmem:[%s111 + $0x790] sm:$0xff]
      %v360 = vld [vmem:[%s111 + $0x798] sm:$0xff]
      %v361 = vld [vmem:[%s111 + $0x7a0] sm:$0xff]
      %v362 = vld [vmem:[%s111 + $0x7a8] sm:$0xff]
      %v363 = vld [vmem:[%s111 + $0x7b0] sm:$0xff]
      %v364 = vld [vmem:[%s111 + $0x7b8] sm:$0xff]
      %v365 = vld [vmem:[%s111 + $0x7c0] sm:$0xff]
      %v366 = vld [vmem:[%s111 + $0x7c8] sm:$0xff]
      %v367 = vld [vmem:[%s111 + $0x7d0] sm:$0xff]
      %v368 = vld [vmem:[%s111 + $0x7d8] sm:$0xff]
      %v369 = vld [vmem:[%s111 + $0x7e0] sm:$0xff]
      %v370 = vld [vmem:[%s111 + $0x7e8] sm:$0xff]
      %v371 = vld [vmem:[%s111 + $0x7f0] sm:$0xff]
      %v372 = vld [vmem:[%s111 + $0x7f8] sm:$0xff]
      %v373 = vmax.bf16 %v117, %v121
      %v374 = vmax.bf16 %v118, %v122
      %v375 = vmax.bf16 %v119, %v123
      %v376 = vmax.bf16 %v120, %v124
      %v377 = vmax.bf16 %v125, %v129
      %v378 = vmax.bf16 %v126, %v130
      %v379 = vmax.bf16 %v127, %v131
      %v380 = vmax.bf16 %v128, %v132
      %v381 = vmax.bf16 %v133, %v137
      %v382 = vmax.bf16 %v134, %v138
      %v383 = vmax.bf16 %v135, %v139
      %v384 = vmax.bf16 %v136, %v140
      %v385 = vmax.bf16 %v141, %v145
      %v386 = vmax.bf16 %v142, %v146
      %v387 = vmax.bf16 %v143, %v147
      %v388 = vmax.bf16 %v144, %v148
      %v389 = vmax.bf16 %v149, %v153
      %v390 = vmax.bf16 %v150, %v154
      %v391 = vmax.bf16 %v151, %v155
      %v392 = vmax.bf16 %v152, %v156
      %v393 = vmax.bf16 %v157, %v161
      %v394 = vmax.bf16 %v158, %v162
      %v395 = vmax.bf16 %v159, %v163
      %v396 = vmax.bf16 %v160, %v164
      %v397 = vmax.bf16 %v165, %v169
      %v398 = vmax.bf16 %v166, %v170
      %v399 = vmax.bf16 %v167, %v171
      %v400 = vmax.bf16 %v168, %v172
      %v401 = vmax.bf16 %v173, %v177
      %v402 = vmax.bf16 %v174, %v178
      %v403 = vmax.bf16 %v175, %v179
      %v404 = vmax.bf16 %v176, %v180
      %v405 = vmax.bf16 %v181, %v185
      %v406 = vmax.bf16 %v182, %v186
      %v407 = vmax.bf16 %v183, %v187
      %v408 = vmax.bf16 %v184, %v188
      %v409 = vmax.bf16 %v189, %v193
      %v410 = vmax.bf16 %v190, %v194
      %v411 = vmax.bf16 %v191, %v195
      %v412 = vmax.bf16 %v192, %v196
      %v413 = vmax.bf16 %v197, %v201
      %v414 = vmax.bf16 %v198, %v202
      %v415 = vmax.bf16 %v199, %v203
      %v416 = vmax.bf16 %v200, %v204
      %v417 = vmax.bf16 %v205, %v209
      %v418 = vmax.bf16 %v206, %v210
      %v419 = vmax.bf16 %v207, %v211
      %v420 = vmax.bf16 %v208, %v212
      %v421 = vmax.bf16 %v213, %v217
      %v422 = vmax.bf16 %v214, %v218
      %v423 = vmax.bf16 %v215, %v219
      %v424 = vmax.bf16 %v216, %v220
      %v425 = vmax.bf16 %v221, %v225
      %v426 = vmax.bf16 %v222, %v226
      %v427 = vmax.bf16 %v223, %v227
      %v428 = vmax.bf16 %v224, %v228
      %v429 = vmax.bf16 %v229, %v233
      %v430 = vmax.bf16 %v230, %v234
      %v431 = vmax.bf16 %v231, %v235
      %v432 = vmax.bf16 %v232, %v236
      %v433 = vmax.bf16 %v237, %v241
      %v434 = vmax.bf16 %v238, %v242
      %v435 = vmax.bf16 %v239, %v243
      %v436 = vmax.bf16 %v240, %v244
      %v437 = vmax.bf16 %v245, %v249
      %v438 = vmax.bf16 %v246, %v250
      %v439 = vmax.bf16 %v247, %v251
      %v440 = vmax.bf16 %v248, %v252
      %v441 = vmax.bf16 %v253, %v257
      %v442 = vmax.bf16 %v254, %v258
      %v443 = vmax.bf16 %v255, %v259
      %v444 = vmax.bf16 %v256, %v260
      %v445 = vmax.bf16 %v261, %v265
      %v446 = vmax.bf16 %v262, %v266
      %v447 = vmax.bf16 %v263, %v267
      %v448 = vmax.bf16 %v264, %v268
      %v449 = vmax.bf16 %v269, %v273
      %v450 = vmax.bf16 %v270, %v274
      %v451 = vmax.bf16 %v271, %v275
      %v452 = vmax.bf16 %v272, %v276
      %v453 = vmax.bf16 %v277, %v281
      %v454 = vmax.bf16 %v278, %v282
      %v455 = vmax.bf16 %v279, %v283
      %v456 = vmax.bf16 %v280, %v284
      %v457 = vmax.bf16 %v285, %v289
      %v458 = vmax.bf16 %v286, %v290
      %v459 = vmax.bf16 %v287, %v291
      %v460 = vmax.bf16 %v288, %v292
      %v461 = vmax.bf16 %v293, %v297
      %v462 = vmax.bf16 %v294, %v298
      %v463 = vmax.bf16 %v295, %v299
      %v464 = vmax.bf16 %v296, %v300
      %v465 = vmax.bf16 %v301, %v305
      %v466 = vmax.bf16 %v302, %v306
      %v467 = vmax.bf16 %v303, %v307
      %v468 = vmax.bf16 %v304, %v308
      %v469 = vmax.bf16 %v309, %v313
      %v470 = vmax.bf16 %v310, %v314
      %v471 = vmax.bf16 %v311, %v315
      %v472 = vmax.bf16 %v312, %v316
      %v473 = vmax.bf16 %v317, %v321
      %v474 = vmax.bf16 %v318, %v322
      %v475 = vmax.bf16 %v319, %v323
      %v476 = vmax.bf16 %v320, %v324
      %v477 = vmax.bf16 %v325, %v329
      %v478 = vmax.bf16 %v326, %v330
      %v479 = vmax.bf16 %v327, %v331
      %v480 = vmax.bf16 %v328, %v332
      %v481 = vmax.bf16 %v333, %v337
      %v482 = vmax.bf16 %v334, %v338
      %v483 = vmax.bf16 %v335, %v339
      %v484 = vmax.bf16 %v336, %v340
      %v485 = vmax.bf16 %v341, %v345
      %v486 = vmax.bf16 %v342, %v346
      %v487 = vmax.bf16 %v343, %v347
      %v488 = vmax.bf16 %v344, %v348
      %v489 = vmax.bf16 %v349, %v353
      %v490 = vmax.bf16 %v350, %v354
      %v491 = vmax.bf16 %v351, %v355
      %v492 = vmax.bf16 %v352, %v356
      %v493 = vmax.bf16 %v357, %v361
      %v494 = vmax.bf16 %v358, %v362
      %v495 = vmax.bf16 %v359, %v363
      %v496 = vmax.bf16 %v360, %v364
      %v497 = vmax.bf16 %v365, %v369
      %v498 = vmax.bf16 %v366, %v370
      %v499 = vmax.bf16 %v367, %v371
      %v500 = vmax.bf16 %v368, %v372
      %v629 = vrot.slane %v373, 4
      %v630 = vrot.slane %v374, 4
      %v631 = vrot.slane %v375, 4
      %v632 = vrot.slane %v376, 4
      %v633 = vrot.slane %v377, 4
      %v634 = vrot.slane %v378, 4
      %v635 = vrot.slane %v379, 4
      %v636 = vrot.slane %v380, 4
      %v637 = vrot.slane %v381, 4
      %v638 = vrot.slane %v382, 4
      %v639 = vrot.slane %v383, 4
      %v640 = vrot.slane %v384, 4
      %v641 = vrot.slane %v385, 4
      %v642 = vrot.slane %v386, 4
      %v643 = vrot.slane %v387, 4
      %v644 = vrot.slane %v388, 4
      %v645 = vrot.slane %v389, 4
      %v646 = vrot.slane %v390, 4
      %v647 = vrot.slane %v391, 4
      %v648 = vrot.slane %v392, 4
      %v649 = vrot.slane %v393, 4
      %v650 = vrot.slane %v394, 4
      %v651 = vrot.slane %v395, 4
      %v652 = vrot.slane %v396, 4
      %v653 = vrot.slane %v397, 4
      %v654 = vrot.slane %v398, 4
      %v655 = vrot.slane %v399, 4
      %v656 = vrot.slane %v400, 4
      %v657 = vrot.slane %v401, 4
      %v658 = vrot.slane %v402, 4
      %v659 = vrot.slane %v403, 4
      %v660 = vrot.slane %v404, 4
      %v661 = vrot.slane %v405, 4
      %v662 = vrot.slane %v406, 4
      %v663 = vrot.slane %v407, 4
      %v664 = vrot.slane %v408, 4
      %v665 = vrot.slane %v409, 4
      %v666 = vrot.slane %v410, 4
      %v667 = vrot.slane %v411, 4
      %v668 = vrot.slane %v412, 4
      %v669 = vrot.slane %v413, 4
      %v670 = vrot.slane %v414, 4
      %v671 = vrot.slane %v415, 4
      %v672 = vrot.slane %v416, 4
      %v673 = vrot.slane %v417, 4
      %v674 = vrot.slane %v418, 4
      %v675 = vrot.slane %v419, 4
      %v676 = vrot.slane %v420, 4
      %v677 = vrot.slane %v421, 4
      %v678 = vrot.slane %v422, 4
      %v679 = vrot.slane %v423, 4
      %v680 = vrot.slane %v424, 4
      %v681 = vrot.slane %v425, 4
      %v682 = vrot.slane %v426, 4
      %v683 = vrot.slane %v427, 4
      %v684 = vrot.slane %v428, 4
      %v685 = vrot.slane %v429, 4
      %v686 = vrot.slane %v430, 4
      %v687 = vrot.slane %v431, 4
      %v688 = vrot.slane %v432, 4
      %v689 = vrot.slane %v433, 4
      %v690 = vrot.slane %v434, 4
      %v691 = vrot.slane %v435, 4
      %v692 = vrot.slane %v436, 4
      %v693 = vrot.slane %v437, 4
      %v694 = vrot.slane %v438, 4
      %v695 = vrot.slane %v439, 4
      %v696 = vrot.slane %v440, 4
      %v697 = vrot.slane %v441, 4
      %v698 = vrot.slane %v442, 4
      %v699 = vrot.slane %v443, 4
      %v700 = vrot.slane %v444, 4
      %v701 = vrot.slane %v445, 4
      %v702 = vrot.slane %v446, 4
      %v703 = vrot.slane %v447, 4
      %v704 = vrot.slane %v448, 4
      %v705 = vrot.slane %v449, 4
      %v706 = vrot.slane %v450, 4
      %v707 = vrot.slane %v451, 4
      %v708 = vrot.slane %v452, 4
      %v709 = vrot.slane %v453, 4
      %v710 = vrot.slane %v454, 4
      %v711 = vrot.slane %v455, 4
      %v712 = vrot.slane %v456, 4
      %v713 = vrot.slane %v457, 4
      %v714 = vrot.slane %v458, 4
      %v715 = vrot.slane %v459, 4
      %v716 = vrot.slane %v460, 4
      %v717 = vrot.slane %v461, 4
      %v718 = vrot.slane %v462, 4
      %v719 = vrot.slane %v463, 4
      %v720 = vrot.slane %v464, 4
      %v721 = vrot.slane %v465, 4
      %v722 = vrot.slane %v466, 4
      %v723 = vrot.slane %v467, 4
      %v724 = vrot.slane %v468, 4
      %v725 = vrot.slane %v469, 4
      %v726 = vrot.slane %v470, 4
      %v727 = vrot.slane %v471, 4
      %v728 = vrot.slane %v472, 4
      %v729 = vrot.slane %v473, 4
      %v730 = vrot.slane %v474, 4
      %v731 = vrot.slane %v475, 4
      %v732 = vrot.slane %v476, 4
      %v733 = vrot.slane %v477, 4
      %v734 = vrot.slane %v478, 4
      %v735 = vrot.slane %v479, 4
      %v736 = vrot.slane %v480, 4
      %v737 = vrot.slane %v481, 4
      %v738 = vrot.slane %v482, 4
      %v739 = vrot.slane %v483, 4
      %v740 = vrot.slane %v484, 4
      %v741 = vrot.slane %v485, 4
      %v742 = vrot.slane %v486, 4
      %v743 = vrot.slane %v487, 4
      %v744 = vrot.slane %v488, 4
      %v745 = vrot.slane %v489, 4
      %v746 = vrot.slane %v490, 4
      %v747 = vrot.slane %v491, 4
      %v748 = vrot.slane %v492, 4
      %v749 = vrot.slane %v493, 4
      %v750 = vrot.slane %v494, 4
      %v751 = vrot.slane %v495, 4
      %v752 = vrot.slane %v496, 4
      %v753 = vrot.slane %v497, 4
      %v754 = vrot.slane %v498, 4
      %v755 = vrot.slane %v499, 4
      %v756 = vrot.slane %v500, 4
      %v885 = vmax.bf16 %v373, %v629
      %v886 = vmax.bf16 %v374, %v630
      %v887 = vmax.bf16 %v375, %v631
      %v888 = vmax.bf16 %v376, %v632
      %v889 = vmax.bf16 %v377, %v633
      %v890 = vmax.bf16 %v378, %v634
      %v891 = vmax.bf16 %v379, %v635
      %v892 = vmax.bf16 %v380, %v636
      %v893 = vmax.bf16 %v381, %v637
      %v894 = vmax.bf16 %v382, %v638
      %v895 = vmax.bf16 %v383, %v639
      %v896 = vmax.bf16 %v384, %v640
      %v897 = vmax.bf16 %v385, %v641
      %v898 = vmax.bf16 %v386, %v642
      %v899 = vmax.bf16 %v387, %v643
      %v900 = vmax.bf16 %v388, %v644
      %v901 = vmax.bf16 %v389, %v645
      %v902 = vmax.bf16 %v390, %v646
      %v903 = vmax.bf16 %v391, %v647
      %v904 = vmax.bf16 %v392, %v648
      %v905 = vmax.bf16 %v393, %v649
      %v906 = vmax.bf16 %v394, %v650
      %v907 = vmax.bf16 %v395, %v651
      %v908 = vmax.bf16 %v396, %v652
      %v909 = vmax.bf16 %v397, %v653
      %v910 = vmax.bf16 %v398, %v654
      %v911 = vmax.bf16 %v399, %v655
      %v912 = vmax.bf16 %v400, %v656
      %v913 = vmax.bf16 %v401, %v657
      %v914 = vmax.bf16 %v402, %v658
      %v915 = vmax.bf16 %v403, %v659
      %v916 = vmax.bf16 %v404, %v660
      %v917 = vmax.bf16 %v405, %v661
      %v918 = vmax.bf16 %v406, %v662
      %v919 = vmax.bf16 %v407, %v663
      %v920 = vmax.bf16 %v408, %v664
      %v921 = vmax.bf16 %v409, %v665
      %v922 = vmax.bf16 %v410, %v666
      %v923 = vmax.bf16 %v411, %v667
      %v924 = vmax.bf16 %v412, %v668
      %v925 = vmax.bf16 %v413, %v669
      %v926 = vmax.bf16 %v414, %v670
      %v927 = vmax.bf16 %v415, %v671
      %v928 = vmax.bf16 %v416, %v672
      %v929 = vmax.bf16 %v417, %v673
      %v930 = vmax.bf16 %v418, %v674
      %v931 = vmax.bf16 %v419, %v675
      %v932 = vmax.bf16 %v420, %v676
      %v933 = vmax.bf16 %v421, %v677
      %v934 = vmax.bf16 %v422, %v678
      %v935 = vmax.bf16 %v423, %v679
      %v936 = vmax.bf16 %v424, %v680
      %v937 = vmax.bf16 %v425, %v681
      %v938 = vmax.bf16 %v426, %v682
      %v939 = vmax.bf16 %v427, %v683
      %v940 = vmax.bf16 %v428, %v684
      %v941 = vmax.bf16 %v429, %v685
      %v942 = vmax.bf16 %v430, %v686
      %v943 = vmax.bf16 %v431, %v687
      %v944 = vmax.bf16 %v432, %v688
      %v945 = vmax.bf16 %v433, %v689
      %v946 = vmax.bf16 %v434, %v690
      %v947 = vmax.bf16 %v435, %v691
      %v948 = vmax.bf16 %v436, %v692
      %v949 = vmax.bf16 %v437, %v693
      %v950 = vmax.bf16 %v438, %v694
      %v951 = vmax.bf16 %v439, %v695
      %v952 = vmax.bf16 %v440, %v696
      %v953 = vmax.bf16 %v441, %v697
      %v954 = vmax.bf16 %v442, %v698
      %v955 = vmax.bf16 %v443, %v699
      %v956 = vmax.bf16 %v444, %v700
      %v957 = vmax.bf16 %v445, %v701
      %v958 = vmax.bf16 %v446, %v702
      %v959 = vmax.bf16 %v447, %v703
      %v960 = vmax.bf16 %v448, %v704
      %v961 = vmax.bf16 %v449, %v705
      %v962 = vmax.bf16 %v450, %v706
      %v963 = vmax.bf16 %v451, %v707
      %v964 = vmax.bf16 %v452, %v708
      %v965 = vmax.bf16 %v453, %v709
      %v966 = vmax.bf16 %v454, %v710
      %v967 = vmax.bf16 %v455, %v711
      %v968 = vmax.bf16 %v456, %v712
      %v969 = vmax.bf16 %v457, %v713
      %v970 = vmax.bf16 %v458, %v714
      %v971 = vmax.bf16 %v459, %v715
      %v972 = vmax.bf16 %v460, %v716
      %v973 = vmax.bf16 %v461, %v717
      %v974 = vmax.bf16 %v462, %v718
      %v975 = vmax.bf16 %v463, %v719
      %v976 = vmax.bf16 %v464, %v720
      %v977 = vmax.bf16 %v465, %v721
      %v978 = vmax.bf16 %v466, %v722
      %v979 = vmax.bf16 %v467, %v723
      %v980 = vmax.bf16 %v468, %v724
      %v981 = vmax.bf16 %v469, %v725
      %v982 = vmax.bf16 %v470, %v726
      %v983 = vmax.bf16 %v471, %v727
      %v984 = vmax.bf16 %v472, %v728
      %v985 = vmax.bf16 %v473, %v729
      %v986 = vmax.bf16 %v474, %v730
      %v987 = vmax.bf16 %v475, %v731
      %v988 = vmax.bf16 %v476, %v732
      %v989 = vmax.bf16 %v477, %v733
      %v990 = vmax.bf16 %v478, %v734
      %v991 = vmax.bf16 %v479, %v735
      %v992 = vmax.bf16 %v480, %v736
      %v993 = vmax.bf16 %v481, %v737
      %v994 = vmax.bf16 %v482, %v738
      %v995 = vmax.bf16 %v483, %v739
      %v996 = vmax.bf16 %v484, %v740
      %v997 = vmax.bf16 %v485, %v741
      %v998 = vmax.bf16 %v486, %v742
      %v999 = vmax.bf16 %v487, %v743
      %v1000 = vmax.bf16 %v488, %v744
      %v1001 = vmax.bf16 %v489, %v745
      %v1002 = vmax.bf16 %v490, %v746
      %v1003 = vmax.bf16 %v491, %v747
      %v1004 = vmax.bf16 %v492, %v748
      %v1005 = vmax.bf16 %v493, %v749
      %v1006 = vmax.bf16 %v494, %v750
      %v1007 = vmax.bf16 %v495, %v751
      %v1008 = vmax.bf16 %v496, %v752
      %v1009 = vmax.bf16 %v497, %v753
      %v1010 = vmax.bf16 %v498, %v754
      %v1011 = vmax.bf16 %v499, %v755
      %v1012 = vmax.bf16 %v500, %v756
      %1013 = vst [vmem:[%s116] sm:$0xf] %v885
      %1014 = vst [vmem:[%s116 + $0x4] sm:$0xf] %v886
      %1015 = vst [vmem:[%s116 + $0x8] sm:$0xf] %v887
      %1016 = vst [vmem:[%s116 + $0xc] sm:$0xf] %v888
      %1017 = vst [vmem:[%s116 + $0x10] sm:$0xf] %v889
      %1018 = vst [vmem:[%s116 + $0x14] sm:$0xf] %v890
      %1019 = vst [vmem:[%s116 + $0x18] sm:$0xf] %v891
      %1020 = vst [vmem:[%s116 + $0x1c] sm:$0xf] %v892
      %1021 = vst [vmem:[%s116 + $0x20] sm:$0xf] %v893
      %1022 = vst [vmem:[%s116 + $0x24] sm:$0xf] %v894
      %1023 = vst [vmem:[%s116 + $0x28] sm:$0xf] %v895
      %1024 = vst [vmem:[%s116 + $0x2c] sm:$0xf] %v896
      %1025 = vst [vmem:[%s116 + $0x30] sm:$0xf] %v897
      %1026 = vst [vmem:[%s116 + $0x34] sm:$0xf] %v898
      %1027 = vst [vmem:[%s116 + $0x38] sm:$0xf] %v899
      %1028 = vst [vmem:[%s116 + $0x3c] sm:$0xf] %v900
      %1029 = vst [vmem:[%s116 + $0x40] sm:$0xf] %v901
      %1030 = vst [vmem:[%s116 + $0x44] sm:$0xf] %v902
      %1031 = vst [vmem:[%s116 + $0x48] sm:$0xf] %v903
      %1032 = vst [vmem:[%s116 + $0x4c] sm:$0xf] %v904
      %1033 = vst [vmem:[%s116 + $0x50] sm:$0xf] %v905
      %1034 = vst [vmem:[%s116 + $0x54] sm:$0xf] %v906
      %1035 = vst [vmem:[%s116 + $0x58] sm:$0xf] %v907
      %1036 = vst [vmem:[%s116 + $0x5c] sm:$0xf] %v908
      %1037 = vst [vmem:[%s116 + $0x60] sm:$0xf] %v909
      %1038 = vst [vmem:[%s116 + $0x64] sm:$0xf] %v910
      %1039 = vst [vmem:[%s116 + $0x68] sm:$0xf] %v911
      %1040 = vst [vmem:[%s116 + $0x6c] sm:$0xf] %v912
      %1041 = vst [vmem:[%s116 + $0x70] sm:$0xf] %v913
      %1042 = vst [vmem:[%s116 + $0x74] sm:$0xf] %v914
      %1043 = vst [vmem:[%s116 + $0x78] sm:$0xf] %v915
      %1044 = vst [vmem:[%s116 + $0x7c] sm:$0xf] %v916
      %1045 = vst [vmem:[%s116 + $0x80] sm:$0xf] %v917
      %1046 = vst [vmem:[%s116 + $0x84] sm:$0xf] %v918
      %1047 = vst [vmem:[%s116 + $0x88] sm:$0xf] %v919
      %1048 = vst [vmem:[%s116 + $0x8c] sm:$0xf] %v920
      %1049 = vst [vmem:[%s116 + $0x90] sm:$0xf] %v921
      %1050 = vst [vmem:[%s116 + $0x94] sm:$0xf] %v922
      %1051 = vst [vmem:[%s116 + $0x98] sm:$0xf] %v923
      %1052 = vst [vmem:[%s116 + $0x9c] sm:$0xf] %v924
      %1053 = vst [vmem:[%s116 + $0xa0] sm:$0xf] %v925
      %1054 = vst [vmem:[%s116 + $0xa4] sm:$0xf] %v926
      %1055 = vst [vmem:[%s116 + $0xa8] sm:$0xf] %v927
      %1056 = vst [vmem:[%s116 + $0xac] sm:$0xf] %v928
      %1057 = vst [vmem:[%s116 + $0xb0] sm:$0xf] %v929
      %1058 = vst [vmem:[%s116 + $0xb4] sm:$0xf] %v930
      %1059 = vst [vmem:[%s116 + $0xb8] sm:$0xf] %v931
      %1060 = vst [vmem:[%s116 + $0xbc] sm:$0xf] %v932
      %1061 = vst [vmem:[%s116 + $0xc0] sm:$0xf] %v933
      %1062 = vst [vmem:[%s116 + $0xc4] sm:$0xf] %v934
      %1063 = vst [vmem:[%s116 + $0xc8] sm:$0xf] %v935
      %1064 = vst [vmem:[%s116 + $0xcc] sm:$0xf] %v936
      %1065 = vst [vmem:[%s116 + $0xd0] sm:$0xf] %v937
      %1066 = vst [vmem:[%s116 + $0xd4] sm:$0xf] %v938
      %1067 = vst [vmem:[%s116 + $0xd8] sm:$0xf] %v939
      %1068 = vst [vmem:[%s116 + $0xdc] sm:$0xf] %v940
      %1069 = vst [vmem:[%s116 + $0xe0] sm:$0xf] %v941
      %1070 = vst [vmem:[%s116 + $0xe4] sm:$0xf] %v942
      %1071 = vst [vmem:[%s116 + $0xe8] sm:$0xf] %v943
      %1072 = vst [vmem:[%s116 + $0xec] sm:$0xf] %v944
      %1073 = vst [vmem:[%s116 + $0xf0] sm:$0xf] %v945
      %1074 = vst [vmem:[%s116 + $0xf4] sm:$0xf] %v946
      %1075 = vst [vmem:[%s116 + $0xf8] sm:$0xf] %v947
      %1076 = vst [vmem:[%s116 + $0xfc] sm:$0xf] %v948
      %1077 = vst [vmem:[%s116 + $0x100] sm:$0xf] %v949
      %1078 = vst [vmem:[%s116 + $0x104] sm:$0xf] %v950
      %1079 = vst [vmem:[%s116 + $0x108] sm:$0xf] %v951
      %1080 = vst [vmem:[%s116 + $0x10c] sm:$0xf] %v952
      %1081 = vst [vmem:[%s116 + $0x110] sm:$0xf] %v953
      %1082 = vst [vmem:[%s116 + $0x114] sm:$0xf] %v954
      %1083 = vst [vmem:[%s116 + $0x118] sm:$0xf] %v955
      %1084 = vst [vmem:[%s116 + $0x11c] sm:$0xf] %v956
      %1085 = vst [vmem:[%s116 + $0x120] sm:$0xf] %v957
      %1086 = vst [vmem:[%s116 + $0x124] sm:$0xf] %v958
      %1087 = vst [vmem:[%s116 + $0x128] sm:$0xf] %v959
      %1088 = vst [vmem:[%s116 + $0x12c] sm:$0xf] %v960
      %1089 = vst [vmem:[%s116 + $0x130] sm:$0xf] %v961
      %1090 = vst [vmem:[%s116 + $0x134] sm:$0xf] %v962
      %1091 = vst [vmem:[%s116 + $0x138] sm:$0xf] %v963
      %1092 = vst [vmem:[%s116 + $0x13c] sm:$0xf] %v964
      %1093 = vst [vmem:[%s116 + $0x140] sm:$0xf] %v965
      %1094 = vst [vmem:[%s116 + $0x144] sm:$0xf] %v966
      %1095 = vst [vmem:[%s116 + $0x148] sm:$0xf] %v967
      %1096 = vst [vmem:[%s116 + $0x14c] sm:$0xf] %v968
      %1097 = vst [vmem:[%s116 + $0x150] sm:$0xf] %v969
      %1098 = vst [vmem:[%s116 + $0x154] sm:$0xf] %v970
      %1099 = vst [vmem:[%s116 + $0x158] sm:$0xf] %v971
      %1100 = vst [vmem:[%s116 + $0x15c] sm:$0xf] %v972
      %1101 = vst [vmem:[%s116 + $0x160] sm:$0xf] %v973
      %1102 = vst [vmem:[%s116 + $0x164] sm:$0xf] %v974
      %1103 = vst [vmem:[%s116 + $0x168] sm:$0xf] %v975
      %1104 = vst [vmem:[%s116 + $0x16c] sm:$0xf] %v976
      %1105 = vst [vmem:[%s116 + $0x170] sm:$0xf] %v977
      %1106 = vst [vmem:[%s116 + $0x174] sm:$0xf] %v978
      %1107 = vst [vmem:[%s116 + $0x178] sm:$0xf] %v979
      %1108 = vst [vmem:[%s116 + $0x17c] sm:$0xf] %v980
      %1109 = vst [vmem:[%s116 + $0x180] sm:$0xf] %v981
      %1110 = vst [vmem:[%s116 + $0x184] sm:$0xf] %v982
      %1111 = vst [vmem:[%s116 + $0x188] sm:$0xf] %v983
      %1112 = vst [vmem:[%s116 + $0x18c] sm:$0xf] %v984
      %1113 = vst [vmem:[%s116 + $0x190] sm:$0xf] %v985
      %1114 = vst [vmem:[%s116 + $0x194] sm:$0xf] %v986
      %1115 = vst [vmem:[%s116 + $0x198] sm:$0xf] %v987
      %1116 = vst [vmem:[%s116 + $0x19c] sm:$0xf] %v988
      %1117 = vst [vmem:[%s116 + $0x1a0] sm:$0xf] %v989
      %1118 = vst [vmem:[%s116 + $0x1a4] sm:$0xf] %v990
      %1119 = vst [vmem:[%s116 + $0x1a8] sm:$0xf] %v991
      %1120 = vst [vmem:[%s116 + $0x1ac] sm:$0xf] %v992
      %1121 = vst [vmem:[%s116 + $0x1b0] sm:$0xf] %v993
      %1122 = vst [vmem:[%s116 + $0x1b4] sm:$0xf] %v994
      %1123 = vst [vmem:[%s116 + $0x1b8] sm:$0xf] %v995
      %1124 = vst [vmem:[%s116 + $0x1bc] sm:$0xf] %v996
      %1125 = vst [vmem:[%s116 + $0x1c0] sm:$0xf] %v997
      %1126 = vst [vmem:[%s116 + $0x1c4] sm:$0xf] %v998
      %1127 = vst [vmem:[%s116 + $0x1c8] sm:$0xf] %v999
      %1128 = vst [vmem:[%s116 + $0x1cc] sm:$0xf] %v1000
      %1129 = vst [vmem:[%s116 + $0x1d0] sm:$0xf] %v1001
      %1130 = vst [vmem:[%s116 + $0x1d4] sm:$0xf] %v1002
      %1131 = vst [vmem:[%s116 + $0x1d8] sm:$0xf] %v1003
      %1132 = vst [vmem:[%s116 + $0x1dc] sm:$0xf] %v1004
      %1133 = vst [vmem:[%s116 + $0x1e0] sm:$0xf] %v1005
      %1134 = vst [vmem:[%s116 + $0x1e4] sm:$0xf] %v1006
      %1135 = vst [vmem:[%s116 + $0x1e8] sm:$0xf] %v1007
      %1136 = vst [vmem:[%s116 + $0x1ec] sm:$0xf] %v1008
      %1137 = vst [vmem:[%s116 + $0x1f0] sm:$0xf] %v1009
      %1138 = vst [vmem:[%s116 + $0x1f4] sm:$0xf] %v1010
      %1139 = vst [vmem:[%s116 + $0x1f8] sm:$0xf] %v1011
      %1140 = vst [vmem:[%s116 + $0x1fc] sm:$0xf] %v1012
      %p1141 = scmp.lt.s32.totalorder %s12, 1
      %s1142 = scalar_select %p1141, %s12, 1
      %s1143 = smul.addr %s1142, 128
      %s1144 = smul.addr %s1143, 4
      %s1145 = scalar_lea.vmem %s1, %s1144
      // Predicated region
      $region25: #{fcn16_forward.21} parent=23 // pred_check
        %p1146 = pneg %p56
      $region26: #{fcn16_forward.21} parent=23 // pred_check_branch
        %1148 = sbr.rel (%p1146) target = $region28
      $region27: #{fcn16_forward.21} parent=23 // pred_region
        _
      $region28: #{fcn16_forward.21} parent=23 // pred_fallthru
        _
    $region24: #{fcn16_forward.21} parent=5 // pred_fallthru
      _
    %p1149 = scmp.le.s32.totalorder 2, %s7
    // Predicated region
    $region29: #{fcn16_forward.21} parent=5 // pred_check
      %p1150 = pneg %p1149
    $region30: #{fcn16_forward.21} parent=5 // pred_check_branch
      %1152 = sbr.rel (%p1150) target = $region32
    $region31: #{fcn16_forward.21} parent=5 // pred_region
      %s1153 = ssub.s32 %s7, 2
      // Predicated region
      $region33: #{fcn16_forward.21} parent=31 // pred_check
        %p1154 = pneg %p62
      $region34: #{fcn16_forward.21} parent=31 // pred_check_branch
        %1156 = sbr.rel (%p1154) target = $region36
      $region35: #{fcn16_forward.21} parent=31 // pred_region
        %p1157 = scmp.lt.s32.totalorder %s13, 1
        %s1158 = scalar_select %p1157, %s13, 1
        %s1159 = smul.addr %s1158, 128
        %s1160 = smul.addr %s1159, 4
        %s1161 = scalar_lea.vmem %s1, %s1160
      $region36: #{fcn16_forward.21} parent=31 // pred_fallthru
        _
    $region32: #{fcn16_forward.21} parent=5 // pred_fallthru
      _
  $region6: #{fcn16_forward.21} parent=0 // loop_footer
    %s11 = sadd.s32 1, %s7
  $region7: #{fcn16_forward.21} parent=0 // loop_footer_branch
    %6 = sbr.rel target = $region3
  $region8: #{fcn16_forward.21} parent=0 // loop_exit
    _

// kernel: fcn16_forward.22
$region0: #{fcn16_forward.22}
  #allocation0 [shape = 'u32[]', space=smem, size = 0x4, offset = 0x4, fixed_abs, tag = 'smem constant byte address 0x4 - core index']
  #allocation1 [shape = 'u32[144,128]{1,0:T(1,128)}', space=vmem, size = 0x12000, scoped, tag = 'internal scratch']
  %s0 = inlined_call_operand.vmem [shape: bf16[2,34,34,128], index: 0, kind: input, shape index: {}]
  %s1 = inlined_call_operand.vmem [shape: bf16[1152,128], index: 1, kind: input, shape index: {}]
  %s2 = inlined_call_operand.vmem [shape: f32[1,128], index: 2, kind: input, shape index: {}]
  %s3 = inlined_call_operand.vmem [shape: bf16[2,32,32,128], index: 3, kind: output, shape index: {}]
  %s4 = sld [smem:[#allocation0]]
  $region52: #{fcn16_forward.22} parent=0
    _
  %s6 = ssub.s32 1, %s4
  %s7 = scalar_select 0, %s6, %s4
  loop: start=0, step=1, limit=4
  $region2: #{fcn16_forward.22} parent=0 // loop_pre_header
    _
  $region3: #{fcn16_forward.22} parent=0 // loop_header
    %s9 = sphi 0, %s13
    %p10 = scmp.ge.s32.totalorder %s9, 4
    %s19 = sphi 0, %s21
    %s22 = sphi 0, %s19
    %s23 = sphi 0, %s22
    %s39 = sphi 0, %s23
    %s43 = sphi 0, %s43
    %s45 = sphi 0, %s43
    %s46 = sphi 0, %s45
    %s60 = sphi 0, %s46
    %s64 = sphi 0, %s64
    %s66 = sphi 0, %s64
    %s67 = sphi 0, %s66
    %s81 = sphi 0, %s67
    %s87 = sphi 0, %s89
    %s90 = sphi 0, %s87
    %s91 = sphi 0, %s90
    %s107 = sphi 0, %s91
  $region4: #{fcn16_forward.22} parent=0 // loop_header_branch
    %12 = sbr.rel (%p10) target = $region8
  $region5: #{fcn16_forward.22} parent=0 // loop_body
    %s14 = ssub.s32 %s9, 1
    %s15 = ssub.s32 %s9, 2
    %s16 = sadd.s32 %s9, 1
    %s17 = ssub.s32 %s9, %s16
    %p18 = scmp.eq.s32.totalorder %s17, 0
    %s20 = sadd.s32 %s19, 1
    %s21 = scalar_select %p18, %s19, %s20
    %p24 = pneg %p18
    %p25 = scmp.eq.s32.totalorder %s9, 1
    %p26 = por %p24, %p25
    %p27 = scmp.ne.s32.totalorder %s19, %s22
    %p28 = scmp.eq.s32.totalorder %s9, 0
    %p29 = por %p27, %p28
    %p30 = scmp.ne.s32.totalorder %s19, %s22
    %p31 = scmp.eq.s32.totalorder %s14, 1
    %p32 = por %p30, %p31
    %p33 = scmp.ne.s32.totalorder %s22, %s23
    %p34 = scmp.eq.s32.totalorder %s14, 0
    %p35 = por %p33, %p34
    %p36 = scmp.ne.s32.totalorder %s22, %s23
    %p37 = scmp.eq.s32.totalorder %s15, 1
    %p38 = por %p36, %p37
    %p40 = scmp.ne.s32.totalorder %s23, %s39
    %p41 = scmp.eq.s32.totalorder %s15, 0
    %p42 = por %p40, %p41
    %s44 = sadd.s32 %s43, 1
    %p47 = scmp.eq.s32.totalorder %s9, 1
    %p48 = scmp.ne.s32.totalorder %s43, %s45
    %p49 = scmp.eq.s32.totalorder %s9, 0
    %p50 = por %p48, %p49
    %p51 = scmp.ne.s32.totalorder %s43, %s45
    %p52 = scmp.eq.s32.totalorder %s14, 1
    %p53 = por %p51, %p52
    %p54 = scmp.ne.s32.totalorder %s45, %s46
    %p55 = scmp.eq.s32.totalorder %s14, 0
    %p56 = por %p54, %p55
    %p57 = scmp.ne.s32.totalorder %s45, %s46
    %p58 = scmp.eq.s32.totalorder %s15, 1
    %p59 = por %p57, %p58
    %p61 = scmp.ne.s32.totalorder %s46, %s60
    %p62 = scmp.eq.s32.totalorder %s15, 0
    %p63 = por %p61, %p62
    %s65 = sadd.s32 %s64, 1
    %p68 = scmp.eq.s32.totalorder %s9, 1
    %p69 = scmp.ne.s32.totalorder %s64, %s66
    %p70 = scmp.eq.s32.totalorder %s9, 0
    %p71 = por %p69, %p70
    %p72 = scmp.ne.s32.totalorder %s64, %s66
    %p73 = scmp.eq.s32.totalorder %s14, 1
    %p74 = por %p72, %p73
    %p75 = scmp.ne.s32.totalorder %s66, %s67
    %p76 = scmp.eq.s32.totalorder %s14, 0
    %p77 = por %p75, %p76
    %p78 = scmp.ne.s32.totalorder %s66, %s67
    %p79 = scmp.eq.s32.totalorder %s15, 1
    %p80 = por %p78, %p79
    %p82 = scmp.ne.s32.totalorder %s67, %s81
    %p83 = scmp.eq.s32.totalorder %s15, 0
    %p84 = por %p82, %p83
    %s85 = ssub.s32 %s9, %s16
    %p86 = scmp.eq.s32.totalorder %s85, 0
    %s88 = sadd.s32 %s87, 1
    %s89 = scalar_select %p86, %s87, %s88
    %p92 = pneg %p86
    %p93 = scmp.eq.s32.totalorder %s9, 1
    %p94 = por %p92, %p93
    %p95 = scmp.ne.s32.totalorder %s87, %s90
    %p96 = scmp.eq.s32.totalorder %s9, 0
    %p97 = por %p95, %p96
    %p98 = scmp.ne.s32.totalorder %s87, %s90
    %p99 = scmp.eq.s32.totalorder %s14, 1
    %p100 = por %p98, %p99
    %p101 = scmp.ne.s32.totalorder %s90, %s91
    %p102 = scmp.eq.s32.totalorder %s14, 0
    %p103 = por %p101, %p102
    %p104 = scmp.ne.s32.totalorder %s90, %s91
    %p105 = scmp.eq.s32.totalorder %s15, 1
    %p106 = por %p104, %p105
    %p108 = scmp.ne.s32.totalorder %s91, %s107
    %p109 = scmp.eq.s32.totalorder %s15, 0
    %p110 = por %p108, %p109
    %p111 = scmp.le.s32.totalorder 1, %s9
    %p112 = scmp.lt.s32.totalorder %s9, 3
    %p113 = pnand %p111, %p112
    %p114 = pneg %p113
    // Predicated region
    $region9: #{fcn16_forward.22} parent=5 // pred_check
      _
    $region10: #{fcn16_forward.22} parent=5 // pred_check_branch
      %116 = sbr.rel (%p113) target = $region12
    $region11: #{fcn16_forward.22} parent=5 // pred_region
      %s117 = ssub.s32 %s9, 1
      // Predicated region
      $region13: #{fcn16_forward.22} parent=11 // pred_check
        %p118 = pneg %p56
      $region14: #{fcn16_forward.22} parent=11 // pred_check_branch
        %120 = sbr.rel (%p118) target = $region16
      $region15: #{fcn16_forward.22} parent=11 // pred_region
        _
      $region16: #{fcn16_forward.22} parent=11 // pred_fallthru
        _
      // Predicated region
      $region17: #{fcn16_forward.22} parent=11 // pred_check
        %p121 = pneg %p77
      $region18: #{fcn16_forward.22} parent=11 // pred_check_branch
        %123 = sbr.rel (%p121) target = $region20
      $region19: #{fcn16_forward.22} parent=11 // pred_region
        _
      $region20: #{fcn16_forward.22} parent=11 // pred_fallthru
        _
    $region12: #{fcn16_forward.22} parent=5 // pred_fallthru
      _
    %p124 = scmp.lt.s32.totalorder %s9, 2
    // Predicated region
    $region21: #{fcn16_forward.22} parent=5 // pred_check
      %p125 = pneg %p124
    $region22: #{fcn16_forward.22} parent=5 // pred_check_branch
      %127 = sbr.rel (%p125) target = $region24
    $region23: #{fcn16_forward.22} parent=5 // pred_region
      // Predicated region
      $region25: #{fcn16_forward.22} parent=23 // pred_check
        %p128 = pneg %p29
      $region26: #{fcn16_forward.22} parent=23 // pred_check_branch
        %130 = sbr.rel (%p128) target = $region28
      $region27: #{fcn16_forward.22} parent=23 // pred_region
        %p131 = scmp.lt.s32.totalorder %s9, 1
        %s132 = scalar_select %p131, %s9, 1
        %s133 = smul.addr %s132, 170
        %s134 = smul.addr %s133, 4
        %s135 = scalar_lea.vmem %s0, %s134
      $region28: #{fcn16_forward.22} parent=23 // pred_fallthru
        _
    $region24: #{fcn16_forward.22} parent=5 // pred_fallthru
      _
    %p136 = scmp.le.s32.totalorder 1, %s9
    %p137 = scmp.lt.s32.totalorder %s9, 3
    %p138 = pnand %p136, %p137
    %p139 = pneg %p138
    // Predicated region
    $region29: #{fcn16_forward.22} parent=5 // pred_check
      _
    $region30: #{fcn16_forward.22} parent=5 // pred_check_branch
      %141 = sbr.rel (%p138) target = $region32
    $region31: #{fcn16_forward.22} parent=5 // pred_region
      %s142 = ssub.s32 %s9, 1
      %p143 = scmp.lt.s32.totalorder %s14, 1
      %s144 = scalar_select %p143, %s14, 1
      %s145 = smul.addr %s144, 170
      %s146 = smul.addr %s145, 4
      %s147 = scalar_lea.vmem %s0, %s146
      %p148 = pneg %p35
      %p149 = pneg %p32
      %p150 = pneg %p56
      %p151 = pneg %p53
      %p152 = pneg %p77
      %p153 = pneg %p74
      %p154 = pneg %p103
      %p155 = pneg %p100
      %p156 = scmp.lt.s32.totalorder %s14, 1
      %s157 = scalar_select %p156, %s14, 1
      %s158 = smul.addr %s157, 128
      %s159 = smul.addr %s158, 4
      %s160 = scalar_lea.vmem %s3, %s159
      %p161 = scmp.lt.s32.totalorder %s14, 1
      %s162 = scalar_select %p161, %s14, 1
      %s163 = smul.addr %s162, 170
      %s164 = smul.addr %s163, 4
      %s165 = scalar_lea.vmem %s0, %s164
      %p166 = scmp.lt.s32.totalorder %s14, 1
      %s167 = scalar_select %p166, %s14, 1
      %s168 = smul.addr %s167, 128
      %s169 = smul.addr %s168, 4
      %s170 = scalar_lea.vmem %s3, %s169
      loop: start=0, step=1, limit=32
      $region33: #{fcn16_forward.22} parent=31 // loop_pre_header
        _
      $region34: #{fcn16_forward.22} parent=31 // loop_header
        %s173 = sphi 0, %s177
        %p174 = scmp.ge.s32.totalorder %s173, 32
      $region35: #{fcn16_forward.22} parent=31 // loop_header_branch
        %176 = sbr.rel (%p174) target = $region39
      $region36: #{fcn16_forward.22} parent=31 // loop_body
        %s178 = smul.u32 %s173, 5
        %s179 = smul.addr %s178, 4
        %s180 = scalar_lea.vmem %s165, %s179
        %v181 = vld [vmem:[%s180] sm:$0xf]
        %v182 = vld [vmem:[%s180 + $0x4] sm:$0xf]
        %v183 = vld [vmem:[%s180 + $0x8] sm:$0xf]
        %v184 = vld [vmem:[%s180 + $0xc] sm:$0xf]
        %v185 = vld [vmem:[%s180 + $0x10] sm:$0x1]
        %s186 = sadd.s32 %s173, 1
        %s187 = smul.u32 %s186, 5
        %s188 = smul.addr %s187, 4
        %s189 = scalar_lea.vmem %s165, %s188
        %v190 = vld [vmem:[%s189] sm:$0xf]
        %v191 = vld [vmem:[%s189 + $0x4] sm:$0xf]
        %v192 = vld [vmem:[%s189 + $0x8] sm:$0xf]
        %v193 = vld [vmem:[%s189 + $0xc] sm:$0xf]
        %v194 = vld [vmem:[%s189 + $0x10] sm:$0x1]
        %s195 = sadd.s32 %s173, 2
        %s196 = smul.u32 %s195, 5
        %s197 = smul.addr %s196, 4
        %s198 = scalar_lea.vmem %s165, %s197
        %v199 = vld [vmem:[%s198] sm:$0xf]
        %v200 = vld [vmem:[%s198 + $0x4] sm:$0xf]
        %v201 = vld [vmem:[%s198 + $0x8] sm:$0xf]
        %v202 = vld [vmem:[%s198 + $0xc] sm:$0xf]
        %v203 = vld [vmem:[%s198 + $0x10] sm:$0x1]
        %v208 = vunpack.c.l.b16 %v181
        %v209 = vunpack.c.l.b16 %v182
        %v210 = vunpack.c.l.b16 %v183
        %v211 = vunpack.c.l.b16 %v184
        %v212 = vpack.c.b16 %v209, %v208
        %v213 = vpack.c.b16 %v211, %v210
        %v217 = vunpack.c.l.b16 %v185
        %v218 = vpack.c.b16 %v217, %v217
        %vm219 = vsmask.f32 7424
        %v221 = vshrl.u32 %v212, 16
        %v223 = vshll.u32 %v212, 16
        %v225 = vrot.slane %v223, 1
        %v226 = vor.u32 %v221, %v225
        %v228 = vshll.u32 %v213, 16
        %v230 = vrot.slane %v228, 1
        %v231 = vsel %vm219, %v226, %v230
        %v232 = vshrl.u32 %v213, 16
        %v234 = vor.u32 %v232, %v230
        %v236 = vshll.u32 %v218, 16
        %v238 = vrot.slane %v236, 1
        %v239 = vsel %vm219, %v234, %v238
        %vm242 = vcmask 1046528
        %v243 = vrot.slane %v212, 1
        %v244 = vrot.slane %v213, 1
        %v245 = vsel %vm242, %v243, %v244
        %v246 = vrot.slane %v218, 1
        %v247 = vsel %vm242, %v244, %v246
        %v254 = vunpack.c.l.b16 %v190
        %v255 = vunpack.c.l.b16 %v191
        %v256 = vunpack.c.l.b16 %v192
        %v257 = vunpack.c.l.b16 %v193
        %v258 = vpack.c.b16 %v255, %v254
        %v259 = vpack.c.b16 %v257, %v256
        %v263 = vunpack.c.l.b16 %v194
        %v264 = vpack.c.b16 %v263, %v263
        %v266 = vshrl.u32 %v258, 16
        %v268 = vshll.u32 %v258, 16
        %v270 = vrot.slane %v268, 1
        %v271 = vor.u32 %v266, %v270
        %v273 = vshll.u32 %v259, 16
        %v275 = vrot.slane %v273, 1
        %v276 = vsel %vm219, %v271, %v275
        %v277 = vshrl.u32 %v259, 16
        %v279 = vor.u32 %v277, %v275
        %v281 = vshll.u32 %v264, 16
        %v283 = vrot.slane %v281, 1
        %v284 = vsel %vm219, %v279, %v283
        %v287 = vrot.slane %v258, 1
        %v288 = vrot.slane %v259, 1
        %v289 = vsel %vm242, %v287, %v288
        %v290 = vrot.slane %v264, 1
        %v291 = vsel %vm242, %v288, %v290
        %v298 = vunpack.c.l.b16 %v199
        %v299 = vunpack.c.l.b16 %v200
        %v300 = vunpack.c.l.b16 %v201
        %v301 = vunpack.c.l.b16 %v202
        %v302 = vpack.c.b16 %v299, %v298
        %v303 = vpack.c.b16 %v301, %v300
        %v307 = vunpack.c.l.b16 %v203
        %v308 = vpack.c.b16 %v307, %v307
        %v310 = vshrl.u32 %v302, 16
        %v312 = vshll.u32 %v302, 16
        %v314 = vrot.slane %v312, 1
        %v315 = vor.u32 %v310, %v314
        %v317 = vshll.u32 %v303, 16
        %v319 = vrot.slane %v317, 1
        %v320 = vsel %vm219, %v315, %v319
        %v321 = vshrl.u32 %v303, 16
        %v323 = vor.u32 %v321, %v319
        %v325 = vshll.u32 %v308, 16
        %v327 = vrot.slane %v325, 1
        %v328 = vsel %vm219, %v323, %v327
        %v331 = vrot.slane %v302, 1
        %v332 = vrot.slane %v303, 1
        %v333 = vsel %vm242, %v331, %v332
        %v334 = vrot.slane %v308, 1
        %v335 = vsel %vm242, %v332, %v334
        %v338 = vld [vmem:[%s1] sm:$0xf]
        %v339 = vld [vmem:[%s1 + $0x4] sm:$0xf]
        %v340 = vld [vmem:[%s1 + $0x8] sm:$0xf]
        %v341 = vld [vmem:[%s1 + $0xc] sm:$0xf]
        %v342 = vld [vmem:[%s1 + $0x10] sm:$0xf]
        %v343 = vld [vmem:[%s1 + $0x14] sm:$0xf]
        %v344 = vld [vmem:[%s1 + $0x18] sm:$0xf]
        %v345 = vld [vmem:[%s1 + $0x1c] sm:$0xf]
        %v346 = vld [vmem:[%s1 + $0x20] sm:$0xf]
        %v347 = vld [vmem:[%s1 + $0x24] sm:$0xf]
        %v348 = vld [vmem:[%s1 + $0x28] sm:$0xf]
        %v349 = vld [vmem:[%s1 + $0x2c] sm:$0xf]
        %v350 = vld [vmem:[%s1 + $0x30] sm:$0xf]
        %v351 = vld [vmem:[%s1 + $0x34] sm:$0xf]
        %v352 = vld [vmem:[%s1 + $0x38] sm:$0xf]
        %v353 = vld [vmem:[%s1 + $0x3c] sm:$0xf]
        %v354 = vld [vmem:[%s1 + $0x40] sm:$0xf]
        %v355 = vld [vmem:[%s1 + $0x44] sm:$0xf]
        %v356 = vld [vmem:[%s1 + $0x48] sm:$0xf]
        %v357 = vld [vmem:[%s1 + $0x4c] sm:$0xf]
        %v358 = vld [vmem:[%s1 + $0x50] sm:$0xf]
        %v359 = vld [vmem:[%s1 + $0x54] sm:$0xf]
        %v360 = vld [vmem:[%s1 + $0x58] sm:$0xf]
        %v361 = vld [vmem:[%s1 + $0x5c] sm:$0xf]
        %v362 = vld [vmem:[%s1 + $0x60] sm:$0xf]
        %v363 = vld [vmem:[%s1 + $0x64] sm:$0xf]
        %v364 = vld [vmem:[%s1 + $0x68] sm:$0xf]
        %v365 = vld [vmem:[%s1 + $0x6c] sm:$0xf]
        %v366 = vld [vmem:[%s1 + $0x70] sm:$0xf]
        %v367 = vld [vmem:[%s1 + $0x74] sm:$0xf]
        %v368 = vld [vmem:[%s1 + $0x78] sm:$0xf]
        %v369 = vld [vmem:[%s1 + $0x7c] sm:$0xf]
        %v370 = vld [vmem:[%s1 + $0x80] sm:$0xf]
        %v371 = vld [vmem:[%s1 + $0x84] sm:$0xf]
        %v372 = vld [vmem:[%s1 + $0x88] sm:$0xf]
        %v373 = vld [vmem:[%s1 + $0x8c] sm:$0xf]
        %v374 = vld [vmem:[%s1 + $0x90] sm:$0xf]
        %v375 = vld [vmem:[%s1 + $0x94] sm:$0xf]
        %v376 = vld [vmem:[%s1 + $0x98] sm:$0xf]
        %v377 = vld [vmem:[%s1 + $0x9c] sm:$0xf]
        %v378 = vld [vmem:[%s1 + $0xa0] sm:$0xf]
        %v379 = vld [vmem:[%s1 + $0xa4] sm:$0xf]
        %v380 = vld [vmem:[%s1 + $0xa8] sm:$0xf]
        %v381 = vld [vmem:[%s1 + $0xac] sm:$0xf]
        %v382 = vld [vmem:[%s1 + $0xb0] sm:$0xf]
        %v383 = vld [vmem:[%s1 + $0xb4] sm:$0xf]
        %v384 = vld [vmem:[%s1 + $0xb8] sm:$0xf]
        %v385 = vld [vmem:[%s1 + $0xbc] sm:$0xf]
        %v386 = vld [vmem:[%s1 + $0xc0] sm:$0xf]
        %v387 = vld [vmem:[%s1 + $0xc4] sm:$0xf]
        %v388 = vld [vmem:[%s1 + $0xc8] sm:$0xf]
        %v389 = vld [vmem:[%s1 + $0xcc] sm:$0xf]
        %v390 = vld [vmem:[%s1 + $0xd0] sm:$0xf]
        %v391 = vld [vmem:[%s1 + $0xd4] sm:$0xf]
        %v392 = vld [vmem:[%s1 + $0xd8] sm:$0xf]
        %v393 = vld [vmem:[%s1 + $0xdc] sm:$0xf]
        %v394 = vld [vmem:[%s1 + $0xe0] sm:$0xf]
        %v395 = vld [vmem:[%s1 + $0xe4] sm:$0xf]
        %v396 = vld [vmem:[%s1 + $0xe8] sm:$0xf]
        %v397 = vld [vmem:[%s1 + $0xec] sm:$0xf]
        %v398 = vld [vmem:[%s1 + $0xf0] sm:$0xf]
        %v399 = vld [vmem:[%s1 + $0xf4] sm:$0xf]
        %v400 = vld [vmem:[%s1 + $0xf8] sm:$0xf]
        %v401 = vld [vmem:[%s1 + $0xfc] sm:$0xf]
        %v402 = vld [vmem:[%s1 + $0x100] sm:$0xf]
        %v403 = vld [vmem:[%s1 + $0x104] sm:$0xf]
        %v404 = vld [vmem:[%s1 + $0x108] sm:$0xf]
        %v405 = vld [vmem:[%s1 + $0x10c] sm:$0xf]
        %v406 = vld [vmem:[%s1 + $0x110] sm:$0xf]
        %v407 = vld [vmem:[%s1 + $0x114] sm:$0xf]
        %v408 = vld [vmem:[%s1 + $0x118] sm:$0xf]
        %v409 = vld [vmem:[%s1 + $0x11c] sm:$0xf]
        %v410 = vld [vmem:[%s1 + $0x120] sm:$0xf]
        %v411 = vld [vmem:[%s1 + $0x124] sm:$0xf]
        %v412 = vld [vmem:[%s1 + $0x128] sm:$0xf]
        %v413 = vld [vmem:[%s1 + $0x12c] sm:$0xf]
        %v414 = vld [vmem:[%s1 + $0x130] sm:$0xf]
        %v415 = vld [vmem:[%s1 + $0x134] sm:$0xf]
        %v416 = vld [vmem:[%s1 + $0x138] sm:$0xf]
        %v417 = vld [vmem:[%s1 + $0x13c] sm:$0xf]
        %v418 = vld [vmem:[%s1 + $0x140] sm:$0xf]
        %v419 = vld [vmem:[%s1 + $0x144] sm:$0xf]
        %v420 = vld [vmem:[%s1 + $0x148] sm:$0xf]
        %v421 = vld [vmem:[%s1 + $0x14c] sm:$0xf]
        %v422 = vld [vmem:[%s1 + $0x150] sm:$0xf]
        %v423 = vld [vmem:[%s1 + $0x154] sm:$0xf]
        %v424 = vld [vmem:[%s1 + $0x158] sm:$0xf]
        %v425 = vld [vmem:[%s1 + $0x15c] sm:$0xf]
        %v426 = vld [vmem:[%s1 + $0x160] sm:$0xf]
        %v427 = vld [vmem:[%s1 + $0x164] sm:$0xf]
        %v428 = vld [vmem:[%s1 + $0x168] sm:$0xf]
        %v429 = vld [vmem:[%s1 + $0x16c] sm:$0xf]
        %v430 = vld [vmem:[%s1 + $0x170] sm:$0xf]
        %v431 = vld [vmem:[%s1 + $0x174] sm:$0xf]
        %v432 = vld [vmem:[%s1 + $0x178] sm:$0xf]
        %v433 = vld [vmem:[%s1 + $0x17c] sm:$0xf]
        %v434 = vld [vmem:[%s1 + $0x180] sm:$0xf]
        %v435 = vld [vmem:[%s1 + $0x184] sm:$0xf]
        %v436 = vld [vmem:[%s1 + $0x188] sm:$0xf]
        %v437 = vld [vmem:[%s1 + $0x18c] sm:$0xf]
        %v438 = vld [vmem:[%s1 + $0x190] sm:$0xf]
        %v439 = vld [vmem:[%s1 + $0x194] sm:$0xf]
        %v440 = vld [vmem:[%s1 + $0x198] sm:$0xf]
        %v441 = vld [vmem:[%s1 + $0x19c] sm:$0xf]
        %v442 = vld [vmem:[%s1 + $0x1a0] sm:$0xf]
        %v443 = vld [vmem:[%s1 + $0x1a4] sm:$0xf]
        %v444 = vld [vmem:[%s1 + $0x1a8] sm:$0xf]
        %v445 = vld [vmem:[%s1 + $0x1ac] sm:$0xf]
        %v446 = vld [vmem:[%s1 + $0x1b0] sm:$0xf]
        %v447 = vld [vmem:[%s1 + $0x1b4] sm:$0xf]
        %v448 = vld [vmem:[%s1 + $0x1b8] sm:$0xf]
        %v449 = vld [vmem:[%s1 + $0x1bc] sm:$0xf]
        %v450 = vld [vmem:[%s1 + $0x1c0] sm:$0xf]
        %v451 = vld [vmem:[%s1 + $0x1c4] sm:$0xf]
        %v452 = vld [vmem:[%s1 + $0x1c8] sm:$0xf]
        %v453 = vld [vmem:[%s1 + $0x1cc] sm:$0xf]
        %v454 = vld [vmem:[%s1 + $0x1d0] sm:$0xf]
        %v455 = vld [vmem:[%s1 + $0x1d4] sm:$0xf]
        %v456 = vld [vmem:[%s1 + $0x1d8] sm:$0xf]
        %v457 = vld [vmem:[%s1 + $0x1dc] sm:$0xf]
        %v458 = vld [vmem:[%s1 + $0x1e0] sm:$0xf]
        %v459 = vld [vmem:[%s1 + $0x1e4] sm:$0xf]
        %v460 = vld [vmem:[%s1 + $0x1e8] sm:$0xf]
        %v461 = vld [vmem:[%s1 + $0x1ec] sm:$0xf]
        %v462 = vld [vmem:[%s1 + $0x1f0] sm:$0xf]
        %v463 = vld [vmem:[%s1 + $0x1f4] sm:$0xf]
        %v464 = vld [vmem:[%s1 + $0x1f8] sm:$0xf]
        %v465 = vld [vmem:[%s1 + $0x1fc] sm:$0xf]
        %v466 = vld [vmem:[%s1 + $0x200] sm:$0xf]
        %v467 = vld [vmem:[%s1 + $0x204] sm:$0xf]
        %v468 = vld [vmem:[%s1 + $0x208] sm:$0xf]
        %v469 = vld [vmem:[%s1 + $0x20c] sm:$0xf]
        %v470 = vld [vmem:[%s1 + $0x210] sm:$0xf]
        %v471 = vld [vmem:[%s1 + $0x214] sm:$0xf]
        %v472 = vld [vmem:[%s1 + $0x218] sm:$0xf]
        %v473 = vld [vmem:[%s1 + $0x21c] sm:$0xf]
        %v474 = vld [vmem:[%s1 + $0x220] sm:$0xf]
        %v475 = vld [vmem:[%s1 + $0x224] sm:$0xf]
        %v476 = vld [vmem:[%s1 + $0x228] sm:$0xf]
        %v477 = vld [vmem:[%s1 + $0x22c] sm:$0xf]
        %v478 = vld [vmem:[%s1 + $0x230] sm:$0xf]
        %v479 = vld [vmem:[%s1 + $0x234] sm:$0xf]
        %v480 = vld [vmem:[%s1 + $0x238] sm:$0xf]
        %v481 = vld [vmem:[%s1 + $0x23c] sm:$0xf]
        %v482 = vld [vmem:[%s2] sm:$0x1]
        %v484 = vlaneseq
        %v485 = vshrl.u32 %v484, 7
        %v486 = vsub.s32 0, %v485
        %v487 = vrot.slane %v482, %v486
        %v633 = vunpack.c.l.b16 %v338
        %v634 = vunpack.c.l.b16 %v339
        %v635 = vunpack.c.l.b16 %v340
        %v636 = vunpack.c.l.b16 %v341
        %v637 = vunpack.c.l.b16 %v342
        %v638 = vunpack.c.l.b16 %v343
        %v639 = vunpack.c.l.b16 %v344
        %v640 = vunpack.c.l.b16 %v345
        %v641 = vunpack.c.l.b16 %v346
        %v642 = vunpack.c.l.b16 %v347
        %v643 = vunpack.c.l.b16 %v348
        %v644 = vunpack.c.l.b16 %v349
        %v645 = vunpack.c.l.b16 %v350
        %v646 = vunpack.c.l.b16 %v351
        %v647 = vunpack.c.l.b16 %v352
        %v648 = vunpack.c.l.b16 %v353
        %v649 = vunpack.c.l.b16 %v354
        %v650 = vunpack.c.l.b16 %v355
        %v651 = vunpack.c.l.b16 %v356
        %v652 = vunpack.c.l.b16 %v357
        %v653 = vunpack.c.l.b16 %v358
        %v654 = vunpack.c.l.b16 %v359
        %v655 = vunpack.c.l.b16 %v360
        %v656 = vunpack.c.l.b16 %v361
        %v657 = vunpack.c.l.b16 %v362
        %v658 = vunpack.c.l.b16 %v363
        %v659 = vunpack.c.l.b16 %v364
        %v660 = vunpack.c.l.b16 %v365
        %v661 = vunpack.c.l.b16 %v366
        %v662 = vunpack.c.l.b16 %v367
        %v663 = vunpack.c.l.b16 %v368
        %v664 = vunpack.c.l.b16 %v369
        %v665 = vunpack.c.l.b16 %v370
        %v666 = vunpack.c.l.b16 %v371
        %v667 = vunpack.c.l.b16 %v372
        %v668 = vunpack.c.l.b16 %v373
        %v669 = vunpack.c.l.b16 %v374
        %v670 = vunpack.c.l.b16 %v375
        %v671 = vunpack.c.l.b16 %v376
        %v672 = vunpack.c.l.b16 %v377
        %v673 = vunpack.c.l.b16 %v378
        %v674 = vunpack.c.l.b16 %v379
        %v675 = vunpack.c.l.b16 %v380
        %v676 = vunpack.c.l.b16 %v381
        %v677 = vunpack.c.l.b16 %v382
        %v678 = vunpack.c.l.b16 %v383
        %v679 = vunpack.c.l.b16 %v384
        %v680 = vunpack.c.l.b16 %v385
        %v681 = vunpack.c.l.b16 %v386
        %v682 = vunpack.c.l.b16 %v387
        %v683 = vunpack.c.l.b16 %v388
        %v684 = vunpack.c.l.b16 %v389
        %v685 = vunpack.c.l.b16 %v390
        %v686 = vunpack.c.l.b16 %v391
        %v687 = vunpack.c.l.b16 %v392
        %v688 = vunpack.c.l.b16 %v393
        %v689 = vunpack.c.l.b16 %v394
        %v690 = vunpack.c.l.b16 %v395
        %v691 = vunpack.c.l.b16 %v396
        %v692 = vunpack.c.l.b16 %v397
        %v693 = vunpack.c.l.b16 %v398
        %v694 = vunpack.c.l.b16 %v399
        %v695 = vunpack.c.l.b16 %v400
        %v696 = vunpack.c.l.b16 %v401
        %v697 = vunpack.c.l.b16 %v402
        %v698 = vunpack.c.l.b16 %v403
        %v699 = vunpack.c.l.b16 %v404
        %v700 = vunpack.c.l.b16 %v405
        %v701 = vunpack.c.l.b16 %v406
        %v702 = vunpack.c.l.b16 %v407
        %v703 = vunpack.c.l.b16 %v408
        %v704 = vunpack.c.l.b16 %v409
        %v705 = vunpack.c.l.b16 %v410
        %v706 = vunpack.c.l.b16 %v411
        %v707 = vunpack.c.l.b16 %v412
        %v708 = vunpack.c.l.b16 %v413
        %v709 = vunpack.c.l.b16 %v414
        %v710 = vunpack.c.l.b16 %v415
        %v711 = vunpack.c.l.b16 %v416
        %v712 = vunpack.c.l.b16 %v417
        %v713 = vunpack.c.l.b16 %v418
        %v714 = vunpack.c.l.b16 %v419
        %v715 = vunpack.c.l.b16 %v420
        %v716 = vunpack.c.l.b16 %v421
        %v717 = vunpack.c.l.b16 %v422
        %v718 = vunpack.c.l.b16 %v423
        %v719 = vunpack.c.l.b16 %v424
        %v720 = vunpack.c.l.b16 %v425
        %v721 = vunpack.c.l.b16 %v426
        %v722 = vunpack.c.l.b16 %v427
        %v723 = vunpack.c.l.b16 %v428
        %v724 = vunpack.c.l.b16 %v429
        %v725 = vunpack.c.l.b16 %v430
        %v726 = vunpack.c.l.b16 %v431
        %v727 = vunpack.c.l.b16 %v432
        %v728 = vunpack.c.l.b16 %v433
        %v729 = vunpack.c.l.b16 %v434
        %v730 = vunpack.c.l.b16 %v435
        %v731 = vunpack.c.l.b16 %v436
        %v732 = vunpack.c.l.b16 %v437
        %v733 = vunpack.c.l.b16 %v438
        %v734 = vunpack.c.l.b16 %v439
        %v735 = vunpack.c.l.b16 %v440
        %v736 = vunpack.c.l.b16 %v441
        %v737 = vunpack.c.l.b16 %v442
        %v738 = vunpack.c.l.b16 %v443
        %v739 = vunpack.c.l.b16 %v444
        %v740 = vunpack.c.l.b16 %v445
        %v741 = vunpack.c.l.b16 %v446
        %v742 = vunpack.c.l.b16 %v447
        %v743 = vunpack.c.l.b16 %v448
        %v744 = vunpack.c.l.b16 %v449
        %v745 = vunpack.c.l.b16 %v450
        %v746 = vunpack.c.l.b16 %v451
        %v747 = vunpack.c.l.b16 %v452
        %v748 = vunpack.c.l.b16 %v453
        %v749 = vunpack.c.l.b16 %v454
        %v750 = vunpack.c.l.b16 %v455
        %v751 = vunpack.c.l.b16 %v456
        %v752 = vunpack.c.l.b16 %v457
        %v753 = vunpack.c.l.b16 %v458
        %v754 = vunpack.c.l.b16 %v459
        %v755 = vunpack.c.l.b16 %v460
        %v756 = vunpack.c.l.b16 %v461
        %v757 = vunpack.c.l.b16 %v462
        %v758 = vunpack.c.l.b16 %v463
        %v759 = vunpack.c.l.b16 %v464
        %v760 = vunpack.c.l.b16 %v465
        %v761 = vunpack.c.l.b16 %v466
        %v762 = vunpack.c.l.b16 %v467
        %v763 = vunpack.c.l.b16 %v468
        %v764 = vunpack.c.l.b16 %v469
        %v765 = vunpack.c.l.b16 %v470
        %v766 = vunpack.c.l.b16 %v471
        %v767 = vunpack.c.l.b16 %v472
        %v768 = vunpack.c.l.b16 %v473
        %v769 = vunpack.c.l.b16 %v474
        %v770 = vunpack.c.l.b16 %v475
        %v771 = vunpack.c.l.b16 %v476
        %v772 = vunpack.c.l.b16 %v477
        %v773 = vunpack.c.l.b16 %v478
        %v774 = vunpack.c.l.b16 %v479
        %v775 = vunpack.c.l.b16 %v480
        %v776 = vunpack.c.l.b16 %v481
        %v777 = vpack.c.b16 %v634, %v633
        %v778 = vpack.c.b16 %v636, %v635
        %v779 = vpack.c.b16 %v638, %v637
        %v780 = vpack.c.b16 %v640, %v639
        %v781 = vpack.c.b16 %v642, %v641
        %v782 = vpack.c.b16 %v644, %v643
        %v783 = vpack.c.b16 %v646, %v645
        %v784 = vpack.c.b16 %v648, %v647
        %v785 = vpack.c.b16 %v650, %v649
        %v786 = vpack.c.b16 %v652, %v651
        %v787 = vpack.c.b16 %v654, %v653
        %v788 = vpack.c.b16 %v656, %v655
        %v789 = vpack.c.b16 %v658, %v657
        %v790 = vpack.c.b16 %v660, %v659
        %v791 = vpack.c.b16 %v662, %v661
        %v792 = vpack.c.b16 %v664, %v663
        %v793 = vpack.c.b16 %v666, %v665
        %v794 = vpack.c.b16 %v668, %v667
        %v795 = vpack.c.b16 %v670, %v669
        %v796 = vpack.c.b16 %v672, %v671
        %v797 = vpack.c.b16 %v674, %v673
        %v798 = vpack.c.b16 %v676, %v675
        %v799 = vpack.c.b16 %v678, %v677
        %v800 = vpack.c.b16 %v680, %v679
        %v801 = vpack.c.b16 %v682, %v681
        %v802 = vpack.c.b16 %v684, %v683
        %v803 = vpack.c.b16 %v686, %v685
        %v804 = vpack.c.b16 %v688, %v687
        %v805 = vpack.c.b16 %v690, %v689
        %v806 = vpack.c.b16 %v692, %v691
        %v807 = vpack.c.b16 %v694, %v693
        %v808 = vpack.c.b16 %v696, %v695
        %v809 = vpack.c.b16 %v698, %v697
        %v810 = vpack.c.b16 %v700, %v699
        %v811 = vpack.c.b16 %v702, %v701
        %v812 = vpack.c.b16 %v704, %v703
        %v813 = vpack.c.b16 %v706, %v705
        %v814 = vpack.c.b16 %v708, %v707
        %v815 = vpack.c.b16 %v710, %v709
        %v816 = vpack.c.b16 %v712, %v711
        %v817 = vpack.c.b16 %v714, %v713
        %v818 = vpack.c.b16 %v716, %v715
        %v819 = vpack.c.b16 %v718, %v717
        %v820 = vpack.c.b16 %v720, %v719
        %v821 = vpack.c.b16 %v722, %v721
        %v822 = vpack.c.b16 %v724, %v723
        %v823 = vpack.c.b16 %v726, %v725
        %v824 = vpack.c.b16 %v728, %v727
        %v825 = vpack.c.b16 %v730, %v729
        %v826 = vpack.c.b16 %v732, %v731
        %v827 = vpack.c.b16 %v734, %v733
        %v828 = vpack.c.b16 %v736, %v735
        %v829 = vpack.c.b16 %v738, %v737
        %v830 = vpack.c.b16 %v740, %v739
        %v831 = vpack.c.b16 %v742, %v741
        %v832 = vpack.c.b16 %v744, %v743
        %v833 = vpack.c.b16 %v746, %v745
        %v834 = vpack.c.b16 %v748, %v747
        %v835 = vpack.c.b16 %v750, %v749
        %v836 = vpack.c.b16 %v752, %v751
        %v837 = vpack.c.b16 %v754, %v753
        %v838 = vpack.c.b16 %v756, %v755
        %v839 = vpack.c.b16 %v758, %v757
        %v840 = vpack.c.b16 %v760, %v759
        %v841 = vpack.c.b16 %v762, %v761
        %v842 = vpack.c.b16 %v764, %v763
        %v843 = vpack.c.b16 %v766, %v765
        %v844 = vpack.c.b16 %v768, %v767
        %v845 = vpack.c.b16 %v770, %v769
        %v846 = vpack.c.b16 %v772, %v771
        %v847 = vpack.c.b16 %v774, %v773
        %v848 = vpack.c.b16 %v776, %v775
        %921 = vmatprep.subr.bf16.mxu0 0
        %922 = vmatpush1.bf16.msra.mxu0 %v777
        %923 = vmatprep.subr.bf16.mxu0 0
        %924 = vmatpush1.bf16.msra.mxu0 %v778
        %925 = vmatprep.subr.bf16.mxu0 0
        %926 = vmatpush1.bf16.msra.mxu0 %v779
        %927 = vmatprep.subr.bf16.mxu0 0
        %928 = vmatpush1.bf16.msra.mxu0 %v780
        %929 = vmatprep.subr.bf16.mxu0 0
        %930 = vmatpush1.bf16.msra.mxu0 %v781
        %931 = vmatprep.subr.bf16.mxu0 0
        %932 = vmatpush1.bf16.msra.mxu0 %v782
        %933 = vmatprep.subr.bf16.mxu0 0
        %934 = vmatpush1.bf16.msra.mxu0 %v783
        %935 = vmatprep.subr.bf16.mxu0 0
        %936 = vmatpush1.bf16.msra.mxu0 %v784
        %937 = vmatprep.subr.bf16.mxu0 0
        %938 = vmatpush1.bf16.msra.mxu0 %v785
        %939 = vmatprep.subr.bf16.mxu0 0
        %940 = vmatpush1.bf16.msra.mxu0 %v786
        %941 = vmatprep.subr.bf16.mxu0 0
        %942 = vmatpush1.bf16.msra.mxu0 %v787
        %943 = vmatprep.subr.bf16.mxu0 0
        %944 = vmatpush1.bf16.msra.mxu0 %v788
        %945 = vmatprep.subr.bf16.mxu0 0
        %946 = vmatpush1.bf16.msra.mxu0 %v789
        %947 = vmatprep.subr.bf16.mxu0 0
        %948 = vmatpush1.bf16.msra.mxu0 %v790
        %949 = vmatprep.subr.bf16.mxu0 0
        %950 = vmatpush1.bf16.msra.mxu0 %v791
        %951 = vmatprep.subr.bf16.mxu0 0
        %952 = vmatpush1.bf16.msra.mxu0 %v792
        %953 = vmatprep.mubr.bf16.mxu0 %v231
        %954 = vmatmul.mubr.bf16.gmra.mrb[0].mxu0 %v212
        %v955 = vpop.f32.mrb[0].mxu0
        %v956 = vadd.f32 %v487, %v955
        %v957 = vpop.f32.mrb[0].mxu0
        %v958 = vpop.f32.mrb[0].mxu0
        %v959 = vadd.f32 %v487, %v958
        %v960 = vpop.f32.mrb[0].mxu0
        %961 = vmatprep.mubr.bf16.mxu0 %v239
        %962 = vmatmul.mubr.bf16.gmra.mrb[0].mxu0 %v213
        %v963 = vpop.f32.mrb[0].mxu0
        %v964 = vadd.f32 %v487, %v963
        %v965 = vpop.f32.mrb[0].mxu0
        %v966 = vpop.f32.mrb[0].mxu0
        %v967 = vadd.f32 %v487, %v966
        %v968 = vpop.f32.mrb[0].mxu0
        %969 = vdwg.mxu0
        %970 = vmatprep.subr.bf16.mxu0 0
        %971 = vmatpush1.bf16.msra.mxu0 %v793
        %972 = vmatprep.subr.bf16.mxu0 0
        %973 = vmatpush1.bf16.msra.mxu0 %v794
        %974 = vmatprep.subr.bf16.mxu0 0
        %975 = vmatpush1.bf16.msra.mxu0 %v795
        %976 = vmatprep.subr.bf16.mxu0 0
        %977 = vmatpush1.bf16.msra.mxu0 %v796
        %978 = vmatprep.subr.bf16.mxu0 0
        %979 = vmatpush1.bf16.msra.mxu0 %v797
        %980 = vmatprep.subr.bf16.mxu0 0
        %981 = vmatpush1.bf16.msra.mxu0 %v798
        %982 = vmatprep.subr.bf16.mxu0 0
        %983 = vmatpush1.bf16.msra.mxu0 %v799
        %984 = vmatprep.subr.bf16.mxu0 0
        %985 = vmatpush1.bf16.msra.mxu0 %v800
        %986 = vmatprep.subr.bf16.mxu0 0
        %987 = vmatpush1.bf16.msra.mxu0 %v801
        %988 = vmatprep.subr.bf16.mxu0 0
        %989 = vmatpush1.bf16.msra.mxu0 %v802
        %990 = vmatprep.subr.bf16.mxu0 0
        %991 = vmatpush1.bf16.msra.mxu0 %v803
        %992 = vmatprep.subr.bf16.mxu0 0
        %993 = vmatpush1.bf16.msra.mxu0 %v804
        %994 = vmatprep.subr.bf16.mxu0 0
        %995 = vmatpush1.bf16.msra.mxu0 %v805
        %996 = vmatprep.subr.bf16.mxu0 0
        %997 = vmatpush1.bf16.msra.mxu0 %v806
        %998 = vmatprep.subr.bf16.mxu0 0
        %999 = vmatpush1.bf16.msra.mxu0 %v807
        %1000 = vmatprep.subr.bf16.mxu0 0
        %1001 = vmatpush1.bf16.msra.mxu0 %v808
        %1002 = vmatprep.mubr.bf16.mxu0 %v258
        %1003 = vmatmul.mubr.bf16.gmra.mrb[0].mxu0 %v245
        %v1004 = vpop.f32.mrb[0].mxu0
        %v1005 = vadd.f32 %v956, %v1004
        %v1006 = vpop.f32.mrb[0].mxu0
        %v1007 = vpop.f32.mrb[0].mxu0
        %v1008 = vadd.f32 %v959, %v1007
        %v1009 = vpop.f32.mrb[0].mxu0
        %1010 = vmatprep.mubr.bf16.mxu0 %v259
        %1011 = vmatmul.mubr.bf16.gmra.mrb[0].mxu0 %v247
        %v1012 = vpop.f32.mrb[0].mxu0
        %v1013 = vadd.f32 %v964, %v1012
        %v1014 = vpop.f32.mrb[0].mxu0
        %v1015 = vpop.f32.mrb[0].mxu0
        %v1016 = vadd.f32 %v967, %v1015
        %v1017 = vpop.f32.mrb[0].mxu0
        %1018 = vdwg.mxu0
        %1019 = vmatprep.subr.bf16.mxu0 0
        %1020 = vmatpush1.bf16.msra.mxu0 %v809
        %1021 = vmatprep.subr.bf16.mxu0 0
        %1022 = vmatpush1.bf16.msra.mxu0 %v810
        %1023 = vmatprep.subr.bf16.mxu0 0
        %1024 = vmatpush1.bf16.msra.mxu0 %v811
        %1025 = vmatprep.subr.bf16.mxu0 0
        %1026 = vmatpush1.bf16.msra.mxu0 %v812
        %1027 = vmatprep.subr.bf16.mxu0 0
        %1028 = vmatpush1.bf16.msra.mxu0 %v813
        %1029 = vmatprep.subr.bf16.mxu0 0
        %1030 = vmatpush1.bf16.msra.mxu0 %v814
        %1031 = vmatprep.subr.bf16.mxu0 0
        %1032 = vmatpush1.bf16.msra.mxu0 %v815
        %1033 = vmatprep.subr.bf16.mxu0 0
        %1034 = vmatpush1.bf16.msra.mxu0 %v816
        %1035 = vmatprep.subr.bf16.mxu0 0
        %1036 = vmatpush1.bf16.msra.mxu0 %v817
        %1037 = vmatprep.subr.bf16.mxu0 0
        %1038 = vmatpush1.bf16.msra.mxu0 %v818
        %1039 = vmatprep.subr.bf16.mxu0 0
        %1040 = vmatpush1.bf16.msra.mxu0 %v819
        %1041 = vmatprep.subr.bf16.mxu0 0
        %1042 = vmatpush1.bf16.msra.mxu0 %v820
        %1043 = vmatprep.subr.bf16.mxu0 0
        %1044 = vmatpush1.bf16.msra.mxu0 %v821
        %1045 = vmatprep.subr.bf16.mxu0 0
        %1046 = vmatpush1.bf16.msra.mxu0 %v822
        %1047 = vmatprep.subr.bf16.mxu0 0
        %1048 = vmatpush1.bf16.msra.mxu0 %v823
        %1049 = vmatprep.subr.bf16.mxu0 0
        %1050 = vmatpush1.bf16.msra.mxu0 %v824
        %1051 = vmatprep.mubr.bf16.mxu0 %v289
        %1052 = vmatmul.mubr.bf16.gmra.mrb[0].mxu0 %v276
        %v1053 = vpop.f32.mrb[0].mxu0
        %v1054 = vadd.f32 %v1005, %v1053
        %v1055 = vpop.f32.mrb[0].mxu0
        %v1056 = vpop.f32.mrb[0].mxu0
        %v1057 = vadd.f32 %v1008, %v1056
        %v1058 = vpop.f32.mrb[0].mxu0
        %1059 = vmatprep.mubr.bf16.mxu0 %v291
        %1060 = vmatmul.mubr.bf16.gmra.mrb[0].mxu0 %v284
        %v1061 = vpop.f32.mrb[0].mxu0
        %v1062 = vadd.f32 %v1013, %v1061
        %v1063 = vpop.f32.mrb[0].mxu0
        %v1064 = vpop.f32.mrb[0].mxu0
        %v1065 = vadd.f32 %v1016, %v1064
        %v1066 = vpop.f32.mrb[0].mxu0
        %1067 = vdwg.mxu0
        %1068 = vmatprep.subr.bf16.mxu0 0
        %1069 = vmatpush1.bf16.msra.mxu0 %v825
        %1070 = vmatprep.subr.bf16.mxu0 0
        %1071 = vmatpush1.bf16.msra.mxu0 %v826
        %1072 = vmatprep.subr.bf16.mxu0 0
        %1073 = vmatpush1.bf16.msra.mxu0 %v827
        %1074 = vmatprep.subr.bf16.mxu0 0
        %1075 = vmatpush1.bf16.msra.mxu0 %v828
        %1076 = vmatprep.subr.bf16.mxu0 0
        %1077 = vmatpush1.bf16.msra.mxu0 %v829
        %1078 = vmatprep.subr.bf16.mxu0 0
        %1079 = vmatpush1.bf16.msra.mxu0 %v830
        %1080 = vmatprep.subr.bf16.mxu0 0
        %1081 = vmatpush1.bf16.msra.mxu0 %v831
        %1082 = vmatprep.subr.bf16.mxu0 0
        %1083 = vmatpush1.bf16.msra.mxu0 %v832
        %1084 = vmatprep.subr.bf16.mxu0 0
        %1085 = vmatpush1.bf16.msra.mxu0 %v833
        %1086 = vmatprep.subr.bf16.mxu0 0
        %1087 = vmatpush1.bf16.msra.mxu0 %v834
        %1088 = vmatprep.subr.bf16.mxu0 0
        %1089 = vmatpush1.bf16.msra.mxu0 %v835
        %1090 = vmatprep.subr.bf16.mxu0 0
        %1091 = vmatpush1.bf16.msra.mxu0 %v836
        %1092 = vmatprep.subr.bf16.mxu0 0
        %1093 = vmatpush1.bf16.msra.mxu0 %v837
        %1094 = vmatprep.subr.bf16.mxu0 0
        %1095 = vmatpush1.bf16.msra.mxu0 %v838
        %1096 = vmatprep.subr.bf16.mxu0 0
        %1097 = vmatpush1.bf16.msra.mxu0 %v839
        %1098 = vmatprep.subr.bf16.mxu0 0
        %1099 = vmatpush1.bf16.msra.mxu0 %v840
        %1100 = vmatprep.mubr.bf16.mxu0 %v320
        %1101 = vmatmul.mubr.bf16.gmra.mrb[0].mxu0 %v302
        %v1102 = vpop.f32.mrb[0].mxu0
        %v1103 = vadd.f32 %v1054, %v1102
        %v1104 = vpop.f32.mrb[0].mxu0
        %v1105 = vpop.f32.mrb[0].mxu0
        %v1106 = vadd.f32 %v1057, %v1105
        %v1107 = vpop.f32.mrb[0].mxu0
        %1108 = vmatprep.mubr.bf16.mxu0 %v328
        %1109 = vmatmul.mubr.bf16.gmra.mrb[0].mxu0 %v303
        %v1110 = vpop.f32.mrb[0].mxu0
        %v1111 = vadd.f32 %v1062, %v1110
        %v1112 = vpop.f32.mrb[0].mxu0
        %v1113 = vpop.f32.mrb[0].mxu0
        %v1114 = vadd.f32 %v1065, %v1113
        %v1115 = vpop.f32.mrb[0].mxu0
        %1116 = vdwg.mxu0
        %1117 = vmatprep.subr.bf16.mxu0 0
        %1118 = vmatpush1.bf16.msra.mxu0 %v841
        %1119 = vmatprep.subr.bf16.mxu0 0
        %1120 = vmatpush1.bf16.msra.mxu0 %v842
        %1121 = vmatprep.subr.bf16.mxu0 0
        %1122 = vmatpush1.bf16.msra.mxu0 %v843
        %1123 = vmatprep.subr.bf16.mxu0 0
        %1124 = vmatpush1.bf16.msra.mxu0 %v844
        %1125 = vmatprep.subr.bf16.mxu0 0
        %1126 = vmatpush1.bf16.msra.mxu0 %v845
        %1127 = vmatprep.subr.bf16.mxu0 0
        %1128 = vmatpush1.bf16.msra.mxu0 %v846
        %1129 = vmatprep.subr.bf16.mxu0 0
        %1130 = vmatpush1.bf16.msra.mxu0 %v847
        %1131 = vmatprep.subr.bf16.mxu0 0
        %1132 = vmatpush1.bf16.msra.mxu0 %v848
        %1133 = vmatprep.subr.bf16.mxu0 0
        %1134 = vmatpush1.bf16.msra.mxu0 0
        %1135 = vmatprep.subr.bf16.mxu0 0
        %1136 = vmatpush1.bf16.msra.mxu0 0
        %1137 = vmatprep.subr.bf16.mxu0 0
        %1138 = vmatpush1.bf16.msra.mxu0 0
        %1139 = vmatprep.subr.bf16.mxu0 0
        %1140 = vmatpush1.bf16.msra.mxu0 0
        %1141 = vmatprep.subr.bf16.mxu0 0
        %1142 = vmatpush1.bf16.msra.mxu0 0
        %1143 = vmatprep.subr.bf16.mxu0 0
        %1144 = vmatpush1.bf16.msra.mxu0 0
        %1145 = vmatprep.subr.bf16.mxu0 0
        %1146 = vmatpush1.bf16.msra.mxu0 0
        %1147 = vmatprep.subr.bf16.mxu0 0
        %1148 = vmatpush1.bf16.msra.mxu0 0
        %1149 = vmatprep.mubr.bf16.mxu0 0
        %1150 = vmatmul.mubr.bf16.gmra.mrb[0].mxu0 %v333
        %v1151 = vpop.f32.mrb[0].mxu0
        %v1152 = vadd.f32 %v1103, %v1151
        %v1153 = vpop.f32.mrb[0].mxu0
        %v1154 = vpop.f32.mrb[0].mxu0
        %v1155 = vadd.f32 %v1106, %v1154
        %v1156 = vpop.f32.mrb[0].mxu0
        %1157 = vmatprep.mubr.bf16.mxu0 0
        %1158 = vmatmul.mubr.bf16.gmra.mrb[0].mxu0 %v335
        %v1159 = vpop.f32.mrb[0].mxu0
        %v1160 = vadd.f32 %v1111, %v1159
        %v1161 = vpop.f32.mrb[0].mxu0
        %v1162 = vpop.f32.mrb[0].mxu0
        %v1163 = vadd.f32 %v1114, %v1162
        %v1164 = vpop.f32.mrb[0].mxu0
        %1165 = vdwg.mxu0
        %v1166 = vmax.f32 %v1152, 0.0
        %v1167 = vmax.f32 %v1155, 0.0
        %v1168 = vmax.f32 %v1160, 0.0
        %v1169 = vmax.f32 %v1163, 0.0
        %v1170 = vpack.c.bf16 %v1167, %v1166
        %v1171 = vpack.c.bf16 %v1169, %v1168
        %v1174 = vunpack.c.l.b16 %v1170
        %v1175 = vunpack.c.h.b16 %v1170
        %v1176 = vunpack.c.l.b16 %v1171
        %v1177 = vunpack.c.h.b16 %v1171
        %v1178 = vpack.c.b16 %v1174, %v1174
        %v1179 = vpack.c.b16 %v1175, %v1175
        %v1180 = vpack.c.b16 %v1176, %v1176
        %v1181 = vpack.c.b16 %v1177, %v1177
        %s1186 = smul.u32 %s173, 4
        %s1187 = smul.addr %s1186, 4
        %s1188 = scalar_lea.vmem %s170, %s1187
        %1189 = vst [vmem:[%s1188] sm:$0xf] %v1178
        %1190 = vst [vmem:[%s1188 + $0x4] sm:$0xf] %v1179
        %1191 = vst [vmem:[%s1188 + $0x8] sm:$0xf] %v1180
        %1192 = vst [vmem:[%s1188 + $0xc] sm:$0xf] %v1181
      $region37: #{fcn16_forward.22} parent=31 // loop_footer
        %s177 = sadd.s32 1, %s173
      $region38: #{fcn16_forward.22} parent=31 // loop_footer_branch
        %172 = sbr.rel target = $region34
      $region39: #{fcn16_forward.22} parent=31 // loop_exit
        _
      %p1193 = scmp.lt.s32.totalorder %s14, 1
      %s1194 = scalar_select %p1193, %s14, 1
      %s1195 = smul.addr %s1194, 128
      %s1196 = smul.addr %s1195, 4
      %s1197 = scalar_lea.vmem %s3, %s1196
      // Predicated region
      $region40: #{fcn16_forward.22} parent=31 // pred_check
        %p1198 = pneg %p100
      $region41: #{fcn16_forward.22} parent=31 // pred_check_branch
        %1200 = sbr.rel (%p1198) target = $region43
      $region42: #{fcn16_forward.22} parent=31 // pred_region
        _
      $region43: #{fcn16_forward.22} parent=31 // pred_fallthru
        _
    $region32: #{fcn16_forward.22} parent=5 // pred_fallthru
      _
    %p1201 = scmp.le.s32.totalorder 2, %s9
    // Predicated region
    $region44: #{fcn16_forward.22} parent=5 // pred_check
      %p1202 = pneg %p1201
    $region45: #{fcn16_forward.22} parent=5 // pred_check_branch
      %1204 = sbr.rel (%p1202) target = $region47
    $region46: #{fcn16_forward.22} parent=5 // pred_region
      %s1205 = ssub.s32 %s9, 2
      // Predicated region
      $region48: #{fcn16_forward.22} parent=46 // pred_check
        %p1206 = pneg %p106
      $region49: #{fcn16_forward.22} parent=46 // pred_check_branch
        %1208 = sbr.rel (%p1206) target = $region51
      $region50: #{fcn16_forward.22} parent=46 // pred_region
        %p1209 = scmp.lt.s32.totalorder %s15, 1
        %s1210 = scalar_select %p1209, %s15, 1
        %s1211 = smul.addr %s1210, 128
        %s1212 = smul.addr %s1211, 4
        %s1213 = scalar_lea.vmem %s3, %s1212
      $region51: #{fcn16_forward.22} parent=46 // pred_fallthru
        _
    $region47: #{fcn16_forward.22} parent=5 // pred_fallthru
      _
  $region6: #{fcn16_forward.22} parent=0 // loop_footer
    %s13 = sadd.s32 1, %s9
  $region7: #{fcn16_forward.22} parent=0 // loop_footer_branch
    %8 = sbr.rel target = $region3
  $region8: #{fcn16_forward.22} parent=0 // loop_exit
    _

// kernel: fcn16_forward.24
$region0: #{fcn16_forward.24}
  #allocation0 [shape = 'u32[]', space=smem, size = 0x4, offset = 0x4, fixed_abs, tag = 'smem constant byte address 0x4 - core index']
  #allocation1 [shape = 'u32[144,128]{1,0:T(1,128)}', space=vmem, size = 0x12000, scoped, tag = 'internal scratch']
  %s0 = inlined_call_operand.vmem [shape: bf16[2,32,16,256], index: 0, kind: input, shape index: {}]
  %s1 = inlined_call_operand.vmem [shape: bf16[2,16,16,128], index: 1, kind: output, shape index: {}]
  %s2 = sld [smem:[#allocation0]]
  $region37: #{fcn16_forward.24} parent=0
    _
  %s4 = ssub.s32 1, %s2
  %s5 = scalar_select 0, %s4, %s2
  loop: start=0, step=1, limit=4
  $region2: #{fcn16_forward.24} parent=0 // loop_pre_header
    _
  $region3: #{fcn16_forward.24} parent=0 // loop_header
    %s7 = sphi 0, %s11
    %p8 = scmp.ge.s32.totalorder %s7, 4
    %s17 = sphi 0, %s19
    %s20 = sphi 0, %s17
    %s21 = sphi 0, %s20
    %s37 = sphi 0, %s21
    %s43 = sphi 0, %s45
    %s46 = sphi 0, %s43
    %s47 = sphi 0, %s46
    %s63 = sphi 0, %s47
  $region4: #{fcn16_forward.24} parent=0 // loop_header_branch
    %10 = sbr.rel (%p8) target = $region8
  $region5: #{fcn16_forward.24} parent=0 // loop_body
    %s12 = ssub.s32 %s7, 1
    %s13 = ssub.s32 %s7, 2
    %s14 = sadd.s32 %s7, 1
    %s15 = ssub.s32 %s7, %s14
    %p16 = scmp.eq.s32.totalorder %s15, 0
    %s18 = sadd.s32 %s17, 1
    %s19 = scalar_select %p16, %s17, %s18
    %p22 = pneg %p16
    %p23 = scmp.eq.s32.totalorder %s7, 1
    %p24 = por %p22, %p23
    %p25 = scmp.ne.s32.totalorder %s17, %s20
    %p26 = scmp.eq.s32.totalorder %s7, 0
    %p27 = por %p25, %p26
    %p28 = scmp.ne.s32.totalorder %s17, %s20
    %p29 = scmp.eq.s32.totalorder %s12, 1
    %p30 = por %p28, %p29
    %p31 = scmp.ne.s32.totalorder %s20, %s21
    %p32 = scmp.eq.s32.totalorder %s12, 0
    %p33 = por %p31, %p32
    %p34 = scmp.ne.s32.totalorder %s20, %s21
    %p35 = scmp.eq.s32.totalorder %s13, 1
    %p36 = por %p34, %p35
    %p38 = scmp.ne.s32.totalorder %s21, %s37
    %p39 = scmp.eq.s32.totalorder %s13, 0
    %p40 = por %p38, %p39
    %s41 = ssub.s32 %s7, %s14
    %p42 = scmp.eq.s32.totalorder %s41, 0
    %s44 = sadd.s32 %s43, 1
    %s45 = scalar_select %p42, %s43, %s44
    %p48 = pneg %p42
    %p49 = scmp.eq.s32.totalorder %s7, 1
    %p50 = por %p48, %p49
    %p51 = scmp.ne.s32.totalorder %s43, %s46
    %p52 = scmp.eq.s32.totalorder %s7, 0
    %p53 = por %p51, %p52
    %p54 = scmp.ne.s32.totalorder %s43, %s46
    %p55 = scmp.eq.s32.totalorder %s12, 1
    %p56 = por %p54, %p55
    %p57 = scmp.ne.s32.totalorder %s46, %s47
    %p58 = scmp.eq.s32.totalorder %s12, 0
    %p59 = por %p57, %p58
    %p60 = scmp.ne.s32.totalorder %s46, %s47
    %p61 = scmp.eq.s32.totalorder %s13, 1
    %p62 = por %p60, %p61
    %p64 = scmp.ne.s32.totalorder %s47, %s63
    %p65 = scmp.eq.s32.totalorder %s13, 0
    %p66 = por %p64, %p65
    %p67 = scmp.le.s32.totalorder 1, %s7
    %p68 = scmp.lt.s32.totalorder %s7, 3
    %p69 = pnand %p67, %p68
    %p70 = pneg %p69
    // Predicated region
    $region9: #{fcn16_forward.24} parent=5 // pred_check
      _
    $region10: #{fcn16_forward.24} parent=5 // pred_check_branch
      %72 = sbr.rel (%p69) target = $region12
    $region11: #{fcn16_forward.24} parent=5 // pred_region
      %s73 = ssub.s32 %s7, 1
    $region12: #{fcn16_forward.24} parent=5 // pred_fallthru
      _
    %p74 = scmp.lt.s32.totalorder %s7, 2
    // Predicated region
    $region13: #{fcn16_forward.24} parent=5 // pred_check
      %p75 = pneg %p74
    $region14: #{fcn16_forward.24} parent=5 // pred_check_branch
      %77 = sbr.rel (%p75) target = $region16
    $region15: #{fcn16_forward.24} parent=5 // pred_region
      // Predicated region
      $region17: #{fcn16_forward.24} parent=15 // pred_check
        %p78 = pneg %p27
      $region18: #{fcn16_forward.24} parent=15 // pred_check_branch
        %80 = sbr.rel (%p78) target = $region20
      $region19: #{fcn16_forward.24} parent=15 // pred_region
        %p81 = scmp.lt.s32.totalorder %s7, 1
        %s82 = scalar_select %p81, %s7, 1
        %s83 = smul.addr %s82, 128
        %s84 = smul.addr %s83, 4
        %s85 = scalar_lea.vmem %s0, %s84
      $region20: #{fcn16_forward.24} parent=15 // pred_fallthru
        _
    $region16: #{fcn16_forward.24} parent=5 // pred_fallthru
      _
    %p86 = scmp.le.s32.totalorder 1, %s7
    %p87 = scmp.lt.s32.totalorder %s7, 3
    %p88 = pnand %p86, %p87
    %p89 = pneg %p88
    // Predicated region
    $region21: #{fcn16_forward.24} parent=5 // pred_check
      _
    $region22: #{fcn16_forward.24} parent=5 // pred_check_branch
      %91 = sbr.rel (%p88) target = $region24
    $region23: #{fcn16_forward.24} parent=5 // pred_region
      %s92 = ssub.s32 %s7, 1
      %p93 = scmp.lt.s32.totalorder %s12, 1
      %s94 = scalar_select %p93, %s12, 1
      %s95 = smul.addr %s94, 128
      %s96 = smul.addr %s95, 4
      %s97 = scalar_lea.vmem %s0, %s96
      %p98 = pneg %p33
      %p99 = pneg %p30
      %p100 = pneg %p59
      %p101 = pneg %p56
      %p102 = scmp.lt.s32.totalorder %s12, 1
      %s103 = scalar_select %p102, %s12, 1
      %s104 = smul.addr %s103, 32
      %s105 = smul.addr %s104, 4
      %s106 = scalar_lea.vmem %s1, %s105
      %p107 = scmp.lt.s32.totalorder %s12, 1
      %s108 = scalar_select %p107, %s12, 1
      %s109 = smul.addr %s108, 128
      %s110 = smul.addr %s109, 4
      %s111 = scalar_lea.vmem %s0, %s110
      %p112 = scmp.lt.s32.totalorder %s12, 1
      %s113 = scalar_select %p112, %s12, 1
      %s114 = smul.addr %s113, 32
      %s115 = smul.addr %s114, 4
      %s116 = scalar_lea.vmem %s1, %s115
      %v117 = vld [vmem:[%s111] sm:$0xff]
      %v118 = vld [vmem:[%s111 + $0x8] sm:$0xff]
      %v119 = vld [vmem:[%s111 + $0x10] sm:$0xff]
      %v120 = vld [vmem:[%s111 + $0x18] sm:$0xff]
      %v121 = vld [vmem:[%s111 + $0x20] sm:$0xff]
      %v122 = vld [vmem:[%s111 + $0x28] sm:$0xff]
      %v123 = vld [vmem:[%s111 + $0x30] sm:$0xff]
      %v124 = vld [vmem:[%s111 + $0x38] sm:$0xff]
      %v125 = vld [vmem:[%s111 + $0x40] sm:$0xff]
      %v126 = vld [vmem:[%s111 + $0x48] sm:$0xff]
      %v127 = vld [vmem:[%s111 + $0x50] sm:$0xff]
      %v128 = vld [vmem:[%s111 + $0x58] sm:$0xff]
      %v129 = vld [vmem:[%s111 + $0x60] sm:$0xff]
      %v130 = vld [vmem:[%s111 + $0x68] sm:$0xff]
      %v131 = vld [vmem:[%s111 + $0x70] sm:$0xff]
      %v132 = vld [vmem:[%s111 + $0x78] sm:$0xff]
      %v133 = vld [vmem:[%s111 + $0x80] sm:$0xff]
      %v134 = vld [vmem:[%s111 + $0x88] sm:$0xff]
      %v135 = vld [vmem:[%s111 + $0x90] sm:$0xff]
      %v136 = vld [vmem:[%s111 + $0x98] sm:$0xff]
      %v137 = vld [vmem:[%s111 + $0xa0] sm:$0xff]
      %v138 = vld [vmem:[%s111 + $0xa8] sm:$0xff]
      %v139 = vld [vmem:[%s111 + $0xb0] sm:$0xff]
      %v140 = vld [vmem:[%s111 + $0xb8] sm:$0xff]
      %v141 = vld [vmem:[%s111 + $0xc0] sm:$0xff]
      %v142 = vld [vmem:[%s111 + $0xc8] sm:$0xff]
      %v143 = vld [vmem:[%s111 + $0xd0] sm:$0xff]
      %v144 = vld [vmem:[%s111 + $0xd8] sm:$0xff]
      %v145 = vld [vmem:[%s111 + $0xe0] sm:$0xff]
      %v146 = vld [vmem:[%s111 + $0xe8] sm:$0xff]
      %v147 = vld [vmem:[%s111 + $0xf0] sm:$0xff]
      %v148 = vld [vmem:[%s111 + $0xf8] sm:$0xff]
      %v149 = vld [vmem:[%s111 + $0x100] sm:$0xff]
      %v150 = vld [vmem:[%s111 + $0x108] sm:$0xff]
      %v151 = vld [vmem:[%s111 + $0x110] sm:$0xff]
      %v152 = vld [vmem:[%s111 + $0x118] sm:$0xff]
      %v153 = vld [vmem:[%s111 + $0x120] sm:$0xff]
      %v154 = vld [vmem:[%s111 + $0x128] sm:$0xff]
      %v155 = vld [vmem:[%s111 + $0x130] sm:$0xff]
      %v156 = vld [vmem:[%s111 + $0x138] sm:$0xff]
      %v157 = vld [vmem:[%s111 + $0x140] sm:$0xff]
      %v158 = vld [vmem:[%s111 + $0x148] sm:$0xff]
      %v159 = vld [vmem:[%s111 + $0x150] sm:$0xff]
      %v160 = vld [vmem:[%s111 + $0x158] sm:$0xff]
      %v161 = vld [vmem:[%s111 + $0x160] sm:$0xff]
      %v162 = vld [vmem:[%s111 + $0x168] sm:$0xff]
      %v163 = vld [vmem:[%s111 + $0x170] sm:$0xff]
      %v164 = vld [vmem:[%s111 + $0x178] sm:$0xff]
      %v165 = vld [vmem:[%s111 + $0x180] sm:$0xff]
      %v166 = vld [vmem:[%s111 + $0x188] sm:$0xff]
      %v167 = vld [vmem:[%s111 + $0x190] sm:$0xff]
      %v168 = vld [vmem:[%s111 + $0x198] sm:$0xff]
      %v169 = vld [vmem:[%s111 + $0x1a0] sm:$0xff]
      %v170 = vld [vmem:[%s111 + $0x1a8] sm:$0xff]
      %v171 = vld [vmem:[%s111 + $0x1b0] sm:$0xff]
      %v172 = vld [vmem:[%s111 + $0x1b8] sm:$0xff]
      %v173 = vld [vmem:[%s111 + $0x1c0] sm:$0xff]
      %v174 = vld [vmem:[%s111 + $0x1c8] sm:$0xff]
      %v175 = vld [vmem:[%s111 + $0x1d0] sm:$0xff]
      %v176 = vld [vmem:[%s111 + $0x1d8] sm:$0xff]
      %v177 = vld [vmem:[%s111 + $0x1e0] sm:$0xff]
      %v178 = vld [vmem:[%s111 + $0x1e8] sm:$0xff]
      %v179 = vld [vmem:[%s111 + $0x1f0] sm:$0xff]
      %v180 = vld [vmem:[%s111 + $0x1f8] sm:$0xff]
      %v181 = vmax.bf16 %v117, %v119
      %v182 = vmax.bf16 %v118, %v120
      %v183 = vmax.bf16 %v121, %v123
      %v184 = vmax.bf16 %v122, %v124
      %v185 = vmax.bf16 %v125, %v127
      %v186 = vmax.bf16 %v126, %v128
      %v187 = vmax.bf16 %v129, %v131
      %v188 = vmax.bf16 %v130, %v132
      %v189 = vmax.bf16 %v133, %v135
      %v190 = vmax.bf16 %v134, %v136
      %v191 = vmax.bf16 %v137, %v139
      %v192 = vmax.bf16 %v138, %v140
      %v193 = vmax.bf16 %v141, %v143
      %v194 = vmax.bf16 %v142, %v144
      %v195 = vmax.bf16 %v145, %v147
      %v196 = vmax.bf16 %v146, %v148
      %v197 = vmax.bf16 %v149, %v151
      %v198 = vmax.bf16 %v150, %v152
      %v199 = vmax.bf16 %v153, %v155
      %v200 = vmax.bf16 %v154, %v156
      %v201 = vmax.bf16 %v157, %v159
      %v202 = vmax.bf16 %v158, %v160
      %v203 = vmax.bf16 %v161, %v163
      %v204 = vmax.bf16 %v162, %v164
      %v205 = vmax.bf16 %v165, %v167
      %v206 = vmax.bf16 %v166, %v168
      %v207 = vmax.bf16 %v169, %v171
      %v208 = vmax.bf16 %v170, %v172
      %v209 = vmax.bf16 %v173, %v175
      %v210 = vmax.bf16 %v174, %v176
      %v211 = vmax.bf16 %v177, %v179
      %v212 = vmax.bf16 %v178, %v180
      %v245 = vrot.slane %v181, 4
      %v246 = vrot.slane %v182, 4
      %v247 = vrot.slane %v183, 4
      %v248 = vrot.slane %v184, 4
      %v249 = vrot.slane %v185, 4
      %v250 = vrot.slane %v186, 4
      %v251 = vrot.slane %v187, 4
      %v252 = vrot.slane %v188, 4
      %v253 = vrot.slane %v189, 4
      %v254 = vrot.slane %v190, 4
      %v255 = vrot.slane %v191, 4
      %v256 = vrot.slane %v192, 4
      %v257 = vrot.slane %v193, 4
      %v258 = vrot.slane %v194, 4
      %v259 = vrot.slane %v195, 4
      %v260 = vrot.slane %v196, 4
      %v261 = vrot.slane %v197, 4
      %v262 = vrot.slane %v198, 4
      %v263 = vrot.slane %v199, 4
      %v264 = vrot.slane %v200, 4
      %v265 = vrot.slane %v201, 4
      %v266 = vrot.slane %v202, 4
      %v267 = vrot.slane %v203, 4
      %v268 = vrot.slane %v204, 4
      %v269 = vrot.slane %v205, 4
      %v270 = vrot.slane %v206, 4
      %v271 = vrot.slane %v207, 4
      %v272 = vrot.slane %v208, 4
      %v273 = vrot.slane %v209, 4
      %v274 = vrot.slane %v210, 4
      %v275 = vrot.slane %v211, 4
      %v276 = vrot.slane %v212, 4
      %v309 = vmax.bf16 %v181, %v245
      %v310 = vmax.bf16 %v182, %v246
      %v311 = vmax.bf16 %v183, %v247
      %v312 = vmax.bf16 %v184, %v248
      %v313 = vmax.bf16 %v185, %v249
      %v314 = vmax.bf16 %v186, %v250
      %v315 = vmax.bf16 %v187, %v251
      %v316 = vmax.bf16 %v188, %v252
      %v317 = vmax.bf16 %v189, %v253
      %v318 = vmax.bf16 %v190, %v254
      %v319 = vmax.bf16 %v191, %v255
      %v320 = vmax.bf16 %v192, %v256
      %v321 = vmax.bf16 %v193, %v257
      %v322 = vmax.bf16 %v194, %v258
      %v323 = vmax.bf16 %v195, %v259
      %v324 = vmax.bf16 %v196, %v260
      %v325 = vmax.bf16 %v197, %v261
      %v326 = vmax.bf16 %v198, %v262
      %v327 = vmax.bf16 %v199, %v263
      %v328 = vmax.bf16 %v200, %v264
      %v329 = vmax.bf16 %v201, %v265
      %v330 = vmax.bf16 %v202, %v266
      %v331 = vmax.bf16 %v203, %v267
      %v332 = vmax.bf16 %v204, %v268
      %v333 = vmax.bf16 %v205, %v269
      %v334 = vmax.bf16 %v206, %v270
      %v335 = vmax.bf16 %v207, %v271
      %v336 = vmax.bf16 %v208, %v272
      %v337 = vmax.bf16 %v209, %v273
      %v338 = vmax.bf16 %v210, %v274
      %v339 = vmax.bf16 %v211, %v275
      %v340 = vmax.bf16 %v212, %v276
      %341 = vst [vmem:[%s116] sm:$0xf] %v309
      %342 = vst [vmem:[%s116 + $0x4] sm:$0xf] %v310
      %343 = vst [vmem:[%s116 + $0x8] sm:$0xf] %v311
      %344 = vst [vmem:[%s116 + $0xc] sm:$0xf] %v312
      %345 = vst [vmem:[%s116 + $0x10] sm:$0xf] %v313
      %346 = vst [vmem:[%s116 + $0x14] sm:$0xf] %v314
      %347 = vst [vmem:[%s116 + $0x18] sm:$0xf] %v315
      %348 = vst [vmem:[%s116 + $0x1c] sm:$0xf] %v316
      %349 = vst [vmem:[%s116 + $0x20] sm:$0xf] %v317
      %350 = vst [vmem:[%s116 + $0x24] sm:$0xf] %v318
      %351 = vst [vmem:[%s116 + $0x28] sm:$0xf] %v319
      %352 = vst [vmem:[%s116 + $0x2c] sm:$0xf] %v320
      %353 = vst [vmem:[%s116 + $0x30] sm:$0xf] %v321
      %354 = vst [vmem:[%s116 + $0x34] sm:$0xf] %v322
      %355 = vst [vmem:[%s116 + $0x38] sm:$0xf] %v323
      %356 = vst [vmem:[%s116 + $0x3c] sm:$0xf] %v324
      %357 = vst [vmem:[%s116 + $0x40] sm:$0xf] %v325
      %358 = vst [vmem:[%s116 + $0x44] sm:$0xf] %v326
      %359 = vst [vmem:[%s116 + $0x48] sm:$0xf] %v327
      %360 = vst [vmem:[%s116 + $0x4c] sm:$0xf] %v328
      %361 = vst [vmem:[%s116 + $0x50] sm:$0xf] %v329
      %362 = vst [vmem:[%s116 + $0x54] sm:$0xf] %v330
      %363 = vst [vmem:[%s116 + $0x58] sm:$0xf] %v331
      %364 = vst [vmem:[%s116 + $0x5c] sm:$0xf] %v332
      %365 = vst [vmem:[%s116 + $0x60] sm:$0xf] %v333
      %366 = vst [vmem:[%s116 + $0x64] sm:$0xf] %v334
      %367 = vst [vmem:[%s116 + $0x68] sm:$0xf] %v335
      %368 = vst [vmem:[%s116 + $0x6c] sm:$0xf] %v336
      %369 = vst [vmem:[%s116 + $0x70] sm:$0xf] %v337
      %370 = vst [vmem:[%s116 + $0x74] sm:$0xf] %v338
      %371 = vst [vmem:[%s116 + $0x78] sm:$0xf] %v339
      %372 = vst [vmem:[%s116 + $0x7c] sm:$0xf] %v340
      %p373 = scmp.lt.s32.totalorder %s12, 1
      %s374 = scalar_select %p373, %s12, 1
      %s375 = smul.addr %s374, 32
      %s376 = smul.addr %s375, 4
      %s377 = scalar_lea.vmem %s1, %s376
      // Predicated region
      $region25: #{fcn16_forward.24} parent=23 // pred_check
        %p378 = pneg %p56
      $region26: #{fcn16_forward.24} parent=23 // pred_check_branch
        %380 = sbr.rel (%p378) target = $region28
      $region27: #{fcn16_forward.24} parent=23 // pred_region
        _
      $region28: #{fcn16_forward.24} parent=23 // pred_fallthru
        _
    $region24: #{fcn16_forward.24} parent=5 // pred_fallthru
      _
    %p381 = scmp.le.s32.totalorder 2, %s7
    // Predicated region
    $region29: #{fcn16_forward.24} parent=5 // pred_check
      %p382 = pneg %p381
    $region30: #{fcn16_forward.24} parent=5 // pred_check_branch
      %384 = sbr.rel (%p382) target = $region32
    $region31: #{fcn16_forward.24} parent=5 // pred_region
      %s385 = ssub.s32 %s7, 2
      // Predicated region
      $region33: #{fcn16_forward.24} parent=31 // pred_check
        %p386 = pneg %p62
      $region34: #{fcn16_forward.24} parent=31 // pred_check_branch
        %388 = sbr.rel (%p386) target = $region36
      $region35: #{fcn16_forward.24} parent=31 // pred_region
        %p389 = scmp.lt.s32.totalorder %s13, 1
        %s390 = scalar_select %p389, %s13, 1
        %s391 = smul.addr %s390, 32
        %s392 = smul.addr %s391, 4
        %s393 = scalar_lea.vmem %s1, %s392
      $region36: #{fcn16_forward.24} parent=31 // pred_fallthru
        _
    $region32: #{fcn16_forward.24} parent=5 // pred_fallthru
      _
  $region6: #{fcn16_forward.24} parent=0 // loop_footer
    %s11 = sadd.s32 1, %s7
  $region7: #{fcn16_forward.24} parent=0 // loop_footer_branch
    %6 = sbr.rel target = $region3
  $region8: #{fcn16_forward.24} parent=0 // loop_exit
    _

// kernel: fcn16_forward.28
$region0: #{fcn16_forward.28}
  #allocation0 [shape = 'u32[]', space=smem, size = 0x4, offset = 0x4, fixed_abs, tag = 'smem constant byte address 0x4 - core index']
  #allocation1 [shape = 'u32[144,128]{1,0:T(1,128)}', space=vmem, size = 0x12000, scoped, tag = 'internal scratch']
  %s0 = inlined_call_operand.vmem [shape: bf16[2,16,8,256], index: 0, kind: input, shape index: {}]
  %s1 = inlined_call_operand.vmem [shape: bf16[2,8,8,128], index: 1, kind: output, shape index: {}]
  %s2 = sld [smem:[#allocation0]]
  $region37: #{fcn16_forward.28} parent=0
    _
  %s4 = ssub.s32 1, %s2
  %s5 = scalar_select 0, %s4, %s2
  loop: start=0, step=1, limit=4
  $region2: #{fcn16_forward.28} parent=0 // loop_pre_header
    _
  $region3: #{fcn16_forward.28} parent=0 // loop_header
    %s7 = sphi 0, %s11
    %p8 = scmp.ge.s32.totalorder %s7, 4
    %s17 = sphi 0, %s19
    %s20 = sphi 0, %s17
    %s21 = sphi 0, %s20
    %s37 = sphi 0, %s21
    %s43 = sphi 0, %s45
    %s46 = sphi 0, %s43
    %s47 = sphi 0, %s46
    %s63 = sphi 0, %s47
  $region4: #{fcn16_forward.28} parent=0 // loop_header_branch
    %10 = sbr.rel (%p8) target = $region8
  $region5: #{fcn16_forward.28} parent=0 // loop_body
    %s12 = ssub.s32 %s7, 1
    %s13 = ssub.s32 %s7, 2
    %s14 = sadd.s32 %s7, 1
    %s15 = ssub.s32 %s7, %s14
    %p16 = scmp.eq.s32.totalorder %s15, 0
    %s18 = sadd.s32 %s17, 1
    %s19 = scalar_select %p16, %s17, %s18
    %p22 = pneg %p16
    %p23 = scmp.eq.s32.totalorder %s7, 1
    %p24 = por %p22, %p23
    %p25 = scmp.ne.s32.totalorder %s17, %s20
    %p26 = scmp.eq.s32.totalorder %s7, 0
    %p27 = por %p25, %p26
    %p28 = scmp.ne.s32.totalorder %s17, %s20
    %p29 = scmp.eq.s32.totalorder %s12, 1
    %p30 = por %p28, %p29
    %p31 = scmp.ne.s32.totalorder %s20, %s21
    %p32 = scmp.eq.s32.totalorder %s12, 0
    %p33 = por %p31, %p32
    %p34 = scmp.ne.s32.totalorder %s20, %s21
    %p35 = scmp.eq.s32.totalorder %s13, 1
    %p36 = por %p34, %p35
    %p38 = scmp.ne.s32.totalorder %s21, %s37
    %p39 = scmp.eq.s32.totalorder %s13, 0
    %p40 = por %p38, %p39
    %s41 = ssub.s32 %s7, %s14
    %p42 = scmp.eq.s32.totalorder %s41, 0
    %s44 = sadd.s32 %s43, 1
    %s45 = scalar_select %p42, %s43, %s44
    %p48 = pneg %p42
    %p49 = scmp.eq.s32.totalorder %s7, 1
    %p50 = por %p48, %p49
    %p51 = scmp.ne.s32.totalorder %s43, %s46
    %p52 = scmp.eq.s32.totalorder %s7, 0
    %p53 = por %p51, %p52
    %p54 = scmp.ne.s32.totalorder %s43, %s46
    %p55 = scmp.eq.s32.totalorder %s12, 1
    %p56 = por %p54, %p55
    %p57 = scmp.ne.s32.totalorder %s46, %s47
    %p58 = scmp.eq.s32.totalorder %s12, 0
    %p59 = por %p57, %p58
    %p60 = scmp.ne.s32.totalorder %s46, %s47
    %p61 = scmp.eq.s32.totalorder %s13, 1
    %p62 = por %p60, %p61
    %p64 = scmp.ne.s32.totalorder %s47, %s63
    %p65 = scmp.eq.s32.totalorder %s13, 0
    %p66 = por %p64, %p65
    %p67 = scmp.le.s32.totalorder 1, %s7
    %p68 = scmp.lt.s32.totalorder %s7, 3
    %p69 = pnand %p67, %p68
    %p70 = pneg %p69
    // Predicated region
    $region9: #{fcn16_forward.28} parent=5 // pred_check
      _
    $region10: #{fcn16_forward.28} parent=5 // pred_check_branch
      %72 = sbr.rel (%p69) target = $region12
    $region11: #{fcn16_forward.28} parent=5 // pred_region
      %s73 = ssub.s32 %s7, 1
    $region12: #{fcn16_forward.28} parent=5 // pred_fallthru
      _
    %p74 = scmp.lt.s32.totalorder %s7, 2
    // Predicated region
    $region13: #{fcn16_forward.28} parent=5 // pred_check
      %p75 = pneg %p74
    $region14: #{fcn16_forward.28} parent=5 // pred_check_branch
      %77 = sbr.rel (%p75) target = $region16
    $region15: #{fcn16_forward.28} parent=5 // pred_region
      // Predicated region
      $region17: #{fcn16_forward.28} parent=15 // pred_check
        %p78 = pneg %p27
      $region18: #{fcn16_forward.28} parent=15 // pred_check_branch
        %80 = sbr.rel (%p78) target = $region20
      $region19: #{fcn16_forward.28} parent=15 // pred_region
        %p81 = scmp.lt.s32.totalorder %s7, 1
        %s82 = scalar_select %p81, %s7, 1
        %s83 = smul.addr %s82, 32
        %s84 = smul.addr %s83, 4
        %s85 = scalar_lea.vmem %s0, %s84
      $region20: #{fcn16_forward.28} parent=15 // pred_fallthru
        _
    $region16: #{fcn16_forward.28} parent=5 // pred_fallthru
      _
    %p86 = scmp.le.s32.totalorder 1, %s7
    %p87 = scmp.lt.s32.totalorder %s7, 3
    %p88 = pnand %p86, %p87
    %p89 = pneg %p88
    // Predicated region
    $region21: #{fcn16_forward.28} parent=5 // pred_check
      _
    $region22: #{fcn16_forward.28} parent=5 // pred_check_branch
      %91 = sbr.rel (%p88) target = $region24
    $region23: #{fcn16_forward.28} parent=5 // pred_region
      %s92 = ssub.s32 %s7, 1
      %p93 = scmp.lt.s32.totalorder %s12, 1
      %s94 = scalar_select %p93, %s12, 1
      %s95 = smul.addr %s94, 32
      %s96 = smul.addr %s95, 4
      %s97 = scalar_lea.vmem %s0, %s96
      %p98 = pneg %p33
      %p99 = pneg %p30
      %p100 = pneg %p59
      %p101 = pneg %p56
      %p102 = scmp.lt.s32.totalorder %s12, 1
      %s103 = scalar_select %p102, %s12, 1
      %s104 = smul.addr %s103, 8
      %s105 = smul.addr %s104, 4
      %s106 = scalar_lea.vmem %s1, %s105
      %p107 = scmp.lt.s32.totalorder %s12, 1
      %s108 = scalar_select %p107, %s12, 1
      %s109 = smul.addr %s108, 32
      %s110 = smul.addr %s109, 4
      %s111 = scalar_lea.vmem %s0, %s110
      %p112 = scmp.lt.s32.totalorder %s12, 1
      %s113 = scalar_select %p112, %s12, 1
      %s114 = smul.addr %s113, 8
      %s115 = smul.addr %s114, 4
      %s116 = scalar_lea.vmem %s1, %s115
      %v117 = vld [vmem:[%s111] sm:$0xff]
      %v118 = vld [vmem:[%s111 + $0x8] sm:$0xff]
      %v119 = vld [vmem:[%s111 + $0x10] sm:$0xff]
      %v120 = vld [vmem:[%s111 + $0x18] sm:$0xff]
      %v121 = vld [vmem:[%s111 + $0x20] sm:$0xff]
      %v122 = vld [vmem:[%s111 + $0x28] sm:$0xff]
      %v123 = vld [vmem:[%s111 + $0x30] sm:$0xff]
      %v124 = vld [vmem:[%s111 + $0x38] sm:$0xff]
      %v125 = vld [vmem:[%s111 + $0x40] sm:$0xff]
      %v126 = vld [vmem:[%s111 + $0x48] sm:$0xff]
      %v127 = vld [vmem:[%s111 + $0x50] sm:$0xff]
      %v128 = vld [vmem:[%s111 + $0x58] sm:$0xff]
      %v129 = vld [vmem:[%s111 + $0x60] sm:$0xff]
      %v130 = vld [vmem:[%s111 + $0x68] sm:$0xff]
      %v131 = vld [vmem:[%s111 + $0x70] sm:$0xff]
      %v132 = vld [vmem:[%s111 + $0x78] sm:$0xff]
      %v133 = vmax.bf16 %v117, %v118
      %v134 = vmax.bf16 %v119, %v120
      %v135 = vmax.bf16 %v121, %v122
      %v136 = vmax.bf16 %v123, %v124
      %v137 = vmax.bf16 %v125, %v126
      %v138 = vmax.bf16 %v127, %v128
      %v139 = vmax.bf16 %v129, %v130
      %v140 = vmax.bf16 %v131, %v132
      %v149 = vrot.slane %v133, 4
      %v150 = vrot.slane %v134, 4
      %v151 = vrot.slane %v135, 4
      %v152 = vrot.slane %v136, 4
      %v153 = vrot.slane %v137, 4
      %v154 = vrot.slane %v138, 4
      %v155 = vrot.slane %v139, 4
      %v156 = vrot.slane %v140, 4
      %v165 = vmax.bf16 %v133, %v149
      %v166 = vmax.bf16 %v134, %v150
      %v167 = vmax.bf16 %v135, %v151
      %v168 = vmax.bf16 %v136, %v152
      %v169 = vmax.bf16 %v137, %v153
      %v170 = vmax.bf16 %v138, %v154
      %v171 = vmax.bf16 %v139, %v155
      %v172 = vmax.bf16 %v140, %v156
      %173 = vst [vmem:[%s116] sm:$0xf] %v165
      %174 = vst [vmem:[%s116 + $0x4] sm:$0xf] %v166
      %175 = vst [vmem:[%s116 + $0x8] sm:$0xf] %v167
      %176 = vst [vmem:[%s116 + $0xc] sm:$0xf] %v168
      %177 = vst [vmem:[%s116 + $0x10] sm:$0xf] %v169
      %178 = vst [vmem:[%s116 + $0x14] sm:$0xf] %v170
      %179 = vst [vmem:[%s116 + $0x18] sm:$0xf] %v171
      %180 = vst [vmem:[%s116 + $0x1c] sm:$0xf] %v172
      %p181 = scmp.lt.s32.totalorder %s12, 1
      %s182 = scalar_select %p181, %s12, 1
      %s183 = smul.addr %s182, 8
      %s184 = smul.addr %s183, 4
      %s185 = scalar_lea.vmem %s1, %s184
      // Predicated region
      $region25: #{fcn16_forward.28} parent=23 // pred_check
        %p186 = pneg %p56
      $region26: #{fcn16_forward.28} parent=23 // pred_check_branch
        %188 = sbr.rel (%p186) target = $region28
      $region27: #{fcn16_forward.28} parent=23 // pred_region
        _
      $region28: #{fcn16_forward.28} parent=23 // pred_fallthru
        _
    $region24: #{fcn16_forward.28} parent=5 // pred_fallthru
      _
    %p189 = scmp.le.s32.totalorder 2, %s7
    // Predicated region
    $region29: #{fcn16_forward.28} parent=5 // pred_check
      %p190 = pneg %p189
    $region30: #{fcn16_forward.28} parent=5 // pred_check_branch
      %192 = sbr.rel (%p190) target = $region32
    $region31: #{fcn16_forward.28} parent=5 // pred_region
      %s193 = ssub.s32 %s7, 2
      // Predicated region
      $region33: #{fcn16_forward.28} parent=31 // pred_check
        %p194 = pneg %p62
      $region34: #{fcn16_forward.28} parent=31 // pred_check_branch
        %196 = sbr.rel (%p194) target = $region36
      $region35: #{fcn16_forward.28} parent=31 // pred_region
        %p197 = scmp.lt.s32.totalorder %s13, 1
        %s198 = scalar_select %p197, %s13, 1
        %s199 = smul.addr %s198, 8
        %s200 = smul.addr %s199, 4
        %s201 = scalar_lea.vmem %s1, %s200
      $region36: #{fcn16_forward.28} parent=31 // pred_fallthru
        _
    $region32: #{fcn16_forward.28} parent=5 // pred_fallthru
      _
  $region6: #{fcn16_forward.28} parent=0 // loop_footer
    %s11 = sadd.s32 1, %s7
  $region7: #{fcn16_forward.28} parent=0 // loop_footer_branch
    %6 = sbr.rel target = $region3
  $region8: #{fcn16_forward.28} parent=0 // loop_exit
    _

// kernel: fcn16_forward.25
$region0: #{fcn16_forward.25}
  #allocation0 [shape = 'u32[]', space=smem, size = 0x4, offset = 0x4, fixed_abs, tag = 'smem constant byte address 0x4 - core index']
  #allocation1 [shape = 'u32[144,128]{1,0:T(1,128)}', space=vmem, size = 0x12000, scoped, tag = 'internal scratch']
  %s0 = inlined_call_operand.vmem [shape: bf16[2,18,18,128], index: 0, kind: input, shape index: {}]
  %s1 = inlined_call_operand.vmem [shape: bf16[1152,128], index: 1, kind: input, shape index: {}]
  %s2 = inlined_call_operand.vmem [shape: f32[1,128], index: 2, kind: input, shape index: {}]
  %s3 = inlined_call_operand.vmem [shape: bf16[2,16,16,128], index: 3, kind: output, shape index: {}]
  %s4 = sld [smem:[#allocation0]]
  $region52: #{fcn16_forward.25} parent=0
    _
  %s6 = ssub.s32 1, %s4
  %s7 = scalar_select 0, %s6, %s4
  loop: start=0, step=1, limit=4
  $region2: #{fcn16_forward.25} parent=0 // loop_pre_header
    _
  $region3: #{fcn16_forward.25} parent=0 // loop_header
    %s9 = sphi 0, %s13
    %p10 = scmp.ge.s32.totalorder %s9, 4
    %s19 = sphi 0, %s21
    %s22 = sphi 0, %s19
    %s23 = sphi 0, %s22
    %s39 = sphi 0, %s23
    %s43 = sphi 0, %s43
    %s45 = sphi 0, %s43
    %s46 = sphi 0, %s45
    %s60 = sphi 0, %s46
    %s64 = sphi 0, %s64
    %s66 = sphi 0, %s64
    %s67 = sphi 0, %s66
    %s81 = sphi 0, %s67
    %s87 = sphi 0, %s89
    %s90 = sphi 0, %s87
    %s91 = sphi 0, %s90
    %s107 = sphi 0, %s91
  $region4: #{fcn16_forward.25} parent=0 // loop_header_branch
    %12 = sbr.rel (%p10) target = $region8
  $region5: #{fcn16_forward.25} parent=0 // loop_body
    %s14 = ssub.s32 %s9, 1
    %s15 = ssub.s32 %s9, 2
    %s16 = sadd.s32 %s9, 1
    %s17 = ssub.s32 %s9, %s16
    %p18 = scmp.eq.s32.totalorder %s17, 0
    %s20 = sadd.s32 %s19, 1
    %s21 = scalar_select %p18, %s19, %s20
    %p24 = pneg %p18
    %p25 = scmp.eq.s32.totalorder %s9, 1
    %p26 = por %p24, %p25
    %p27 = scmp.ne.s32.totalorder %s19, %s22
    %p28 = scmp.eq.s32.totalorder %s9, 0
    %p29 = por %p27, %p28
    %p30 = scmp.ne.s32.totalorder %s19, %s22
    %p31 = scmp.eq.s32.totalorder %s14, 1
    %p32 = por %p30, %p31
    %p33 = scmp.ne.s32.totalorder %s22, %s23
    %p34 = scmp.eq.s32.totalorder %s14, 0
    %p35 = por %p33, %p34
    %p36 = scmp.ne.s32.totalorder %s22, %s23
    %p37 = scmp.eq.s32.totalorder %s15, 1
    %p38 = por %p36, %p37
    %p40 = scmp.ne.s32.totalorder %s23, %s39
    %p41 = scmp.eq.s32.totalorder %s15, 0
    %p42 = por %p40, %p41
    %s44 = sadd.s32 %s43, 1
    %p47 = scmp.eq.s32.totalorder %s9, 1
    %p48 = scmp.ne.s32.totalorder %s43, %s45
    %p49 = scmp.eq.s32.totalorder %s9, 0
    %p50 = por %p48, %p49
    %p51 = scmp.ne.s32.totalorder %s43, %s45
    %p52 = scmp.eq.s32.totalorder %s14, 1
    %p53 = por %p51, %p52
    %p54 = scmp.ne.s32.totalorder %s45, %s46
    %p55 = scmp.eq.s32.totalorder %s14, 0
    %p56 = por %p54, %p55
    %p57 = scmp.ne.s32.totalorder %s45, %s46
    %p58 = scmp.eq.s32.totalorder %s15, 1
    %p59 = por %p57, %p58
    %p61 = scmp.ne.s32.totalorder %s46, %s60
    %p62 = scmp.eq.s32.totalorder %s15, 0
    %p63 = por %p61, %p62
    %s65 = sadd.s32 %s64, 1
    %p68 = scmp.eq.s32.totalorder %s9, 1
    %p69 = scmp.ne.s32.totalorder %s64, %s66
    %p70 = scmp.eq.s32.totalorder %s9, 0
    %p71 = por %p69, %p70
    %p72 = scmp.ne.s32.totalorder %s64, %s66
    %p73 = scmp.eq.s32.totalorder %s14, 1
    %p74 = por %p72, %p73
    %p75 = scmp.ne.s32.totalorder %s66, %s67
    %p76 = scmp.eq.s32.totalorder %s14, 0
    %p77 = por %p75, %p76
    %p78 = scmp.ne.s32.totalorder %s66, %s67
    %p79 = scmp.eq.s32.totalorder %s15, 1
    %p80 = por %p78, %p79
    %p82 = scmp.ne.s32.totalorder %s67, %s81
    %p83 = scmp.eq.s32.totalorder %s15, 0
    %p84 = por %p82, %p83
    %s85 = ssub.s32 %s9, %s16
    %p86 = scmp.eq.s32.totalorder %s85, 0
    %s88 = sadd.s32 %s87, 1
    %s89 = scalar_select %p86, %s87, %s88
    %p92 = pneg %p86
    %p93 = scmp.eq.s32.totalorder %s9, 1
    %p94 = por %p92, %p93
    %p95 = scmp.ne.s32.totalorder %s87, %s90
    %p96 = scmp.eq.s32.totalorder %s9, 0
    %p97 = por %p95, %p96
    %p98 = scmp.ne.s32.totalorder %s87, %s90
    %p99 = scmp.eq.s32.totalorder %s14, 1
    %p100 = por %p98, %p99
    %p101 = scmp.ne.s32.totalorder %s90, %s91
    %p102 = scmp.eq.s32.totalorder %s14, 0
    %p103 = por %p101, %p102
    %p104 = scmp.ne.s32.totalorder %s90, %s91
    %p105 = scmp.eq.s32.totalorder %s15, 1
    %p106 = por %p104, %p105
    %p108 = scmp.ne.s32.totalorder %s91, %s107
    %p109 = scmp.eq.s32.totalorder %s15, 0
    %p110 = por %p108, %p109
    %p111 = scmp.le.s32.totalorder 1, %s9
    %p112 = scmp.lt.s32.totalorder %s9, 3
    %p113 = pnand %p111, %p112
    %p114 = pneg %p113
    // Predicated region
    $region9: #{fcn16_forward.25} parent=5 // pred_check
      _
    $region10: #{fcn16_forward.25} parent=5 // pred_check_branch
      %116 = sbr.rel (%p113) target = $region12
    $region11: #{fcn16_forward.25} parent=5 // pred_region
      %s117 = ssub.s32 %s9, 1
      // Predicated region
      $region13: #{fcn16_forward.25} parent=11 // pred_check
        %p118 = pneg %p56
      $region14: #{fcn16_forward.25} parent=11 // pred_check_branch
        %120 = sbr.rel (%p118) target = $region16
      $region15: #{fcn16_forward.25} parent=11 // pred_region
        _
      $region16: #{fcn16_forward.25} parent=11 // pred_fallthru
        _
      // Predicated region
      $region17: #{fcn16_forward.25} parent=11 // pred_check
        %p121 = pneg %p77
      $region18: #{fcn16_forward.25} parent=11 // pred_check_branch
        %123 = sbr.rel (%p121) target = $region20
      $region19: #{fcn16_forward.25} parent=11 // pred_region
        _
      $region20: #{fcn16_forward.25} parent=11 // pred_fallthru
        _
    $region12: #{fcn16_forward.25} parent=5 // pred_fallthru
      _
    %p124 = scmp.lt.s32.totalorder %s9, 2
    // Predicated region
    $region21: #{fcn16_forward.25} parent=5 // pred_check
      %p125 = pneg %p124
    $region22: #{fcn16_forward.25} parent=5 // pred_check_branch
      %127 = sbr.rel (%p125) target = $region24
    $region23: #{fcn16_forward.25} parent=5 // pred_region
      // Predicated region
      $region25: #{fcn16_forward.25} parent=23 // pred_check
        %p128 = pneg %p29
      $region26: #{fcn16_forward.25} parent=23 // pred_check_branch
        %130 = sbr.rel (%p128) target = $region28
      $region27: #{fcn16_forward.25} parent=23 // pred_region
        %p131 = scmp.lt.s32.totalorder %s9, 1
        %s132 = scalar_select %p131, %s9, 1
        %s133 = smul.addr %s132, 54
        %s134 = smul.addr %s133, 4
        %s135 = scalar_lea.vmem %s0, %s134
      $region28: #{fcn16_forward.25} parent=23 // pred_fallthru
        _
    $region24: #{fcn16_forward.25} parent=5 // pred_fallthru
      _
    %p136 = scmp.le.s32.totalorder 1, %s9
    %p137 = scmp.lt.s32.totalorder %s9, 3
    %p138 = pnand %p136, %p137
    %p139 = pneg %p138
    // Predicated region
    $region29: #{fcn16_forward.25} parent=5 // pred_check
      _
    $region30: #{fcn16_forward.25} parent=5 // pred_check_branch
      %141 = sbr.rel (%p138) target = $region32
    $region31: #{fcn16_forward.25} parent=5 // pred_region
      %s142 = ssub.s32 %s9, 1
      %p143 = scmp.lt.s32.totalorder %s14, 1
      %s144 = scalar_select %p143, %s14, 1
      %s145 = smul.addr %s144, 54
      %s146 = smul.addr %s145, 4
      %s147 = scalar_lea.vmem %s0, %s146
      %p148 = pneg %p35
      %p149 = pneg %p32
      %p150 = pneg %p56
      %p151 = pneg %p53
      %p152 = pneg %p77
      %p153 = pneg %p74
      %p154 = pneg %p103
      %p155 = pneg %p100
      %p156 = scmp.lt.s32.totalorder %s14, 1
      %s157 = scalar_select %p156, %s14, 1
      %s158 = smul.addr %s157, 32
      %s159 = smul.addr %s158, 4
      %s160 = scalar_lea.vmem %s3, %s159
      %p161 = scmp.lt.s32.totalorder %s14, 1
      %s162 = scalar_select %p161, %s14, 1
      %s163 = smul.addr %s162, 54
      %s164 = smul.addr %s163, 4
      %s165 = scalar_lea.vmem %s0, %s164
      %p166 = scmp.lt.s32.totalorder %s14, 1
      %s167 = scalar_select %p166, %s14, 1
      %s168 = smul.addr %s167, 32
      %s169 = smul.addr %s168, 4
      %s170 = scalar_lea.vmem %s3, %s169
      loop: start=0, step=1, limit=16
      $region33: #{fcn16_forward.25} parent=31 // loop_pre_header
        _
      $region34: #{fcn16_forward.25} parent=31 // loop_header
        %s173 = sphi 0, %s177
        %p174 = scmp.ge.s32.totalorder %s173, 16
      $region35: #{fcn16_forward.25} parent=31 // loop_header_branch
        %176 = sbr.rel (%p174) target = $region39
      $region36: #{fcn16_forward.25} parent=31 // loop_body
        %s178 = smul.u32 %s173, 3
        %s179 = smul.addr %s178, 4
        %s180 = scalar_lea.vmem %s165, %s179
        %v181 = vld [vmem:[%s180] sm:$0xf]
        %v182 = vld [vmem:[%s180 + $0x4] sm:$0xf]
        %v183 = vld [vmem:[%s180 + $0x8] sm:$0x1]
        %s184 = sadd.s32 %s173, 1
        %s185 = smul.u32 %s184, 3
        %s186 = smul.addr %s185, 4
        %s187 = scalar_lea.vmem %s165, %s186
        %v188 = vld [vmem:[%s187] sm:$0xf]
        %v189 = vld [vmem:[%s187 + $0x4] sm:$0xf]
        %v190 = vld [vmem:[%s187 + $0x8] sm:$0x1]
        %s191 = sadd.s32 %s173, 2
        %s192 = smul.u32 %s191, 3
        %s193 = smul.addr %s192, 4
        %s194 = scalar_lea.vmem %s165, %s193
        %v195 = vld [vmem:[%s194] sm:$0xf]
        %v196 = vld [vmem:[%s194 + $0x4] sm:$0xf]
        %v197 = vld [vmem:[%s194 + $0x8] sm:$0x1]
        %v200 = vunpack.c.l.b16 %v181
        %v201 = vunpack.c.l.b16 %v182
        %v202 = vpack.c.b16 %v201, %v200
        %v205 = vunpack.c.l.b16 %v183
        %v206 = vpack.c.b16 %v205, %v205
        %vm207 = vsmask.f32 7424
        %v209 = vshrl.u32 %v202, 16
        %v211 = vshll.u32 %v202, 16
        %v213 = vrot.slane %v211, 1
        %v214 = vor.u32 %v209, %v213
        %v216 = vshll.u32 %v206, 16
        %v218 = vrot.slane %v216, 1
        %v219 = vsel %vm207, %v214, %v218
        %vm221 = vcmask 1046528
        %v222 = vrot.slane %v202, 1
        %v223 = vrot.slane %v206, 1
        %v224 = vsel %vm221, %v222, %v223
        %v228 = vunpack.c.l.b16 %v188
        %v229 = vunpack.c.l.b16 %v189
        %v230 = vpack.c.b16 %v229, %v228
        %v233 = vunpack.c.l.b16 %v190
        %v234 = vpack.c.b16 %v233, %v233
        %v236 = vshrl.u32 %v230, 16
        %v238 = vshll.u32 %v230, 16
        %v240 = vrot.slane %v238, 1
        %v241 = vor.u32 %v236, %v240
        %v243 = vshll.u32 %v234, 16
        %v245 = vrot.slane %v243, 1
        %v246 = vsel %vm207, %v241, %v245
        %v248 = vrot.slane %v230, 1
        %v249 = vrot.slane %v234, 1
        %v250 = vsel %vm221, %v248, %v249
        %v254 = vunpack.c.l.b16 %v195
        %v255 = vunpack.c.l.b16 %v196
        %v256 = vpack.c.b16 %v255, %v254
        %v259 = vunpack.c.l.b16 %v197
        %v260 = vpack.c.b16 %v259, %v259
        %v262 = vshrl.u32 %v256, 16
        %v264 = vshll.u32 %v256, 16
        %v266 = vrot.slane %v264, 1
        %v267 = vor.u32 %v262, %v266
        %v269 = vshll.u32 %v260, 16
        %v271 = vrot.slane %v269, 1
        %v272 = vsel %vm207, %v267, %v271
        %v274 = vrot.slane %v256, 1
        %v275 = vrot.slane %v260, 1
        %v276 = vsel %vm221, %v274, %v275
        %v278 = vld [vmem:[%s1] sm:$0xf]
        %v279 = vld [vmem:[%s1 + $0x4] sm:$0xf]
        %v280 = vld [vmem:[%s1 + $0x8] sm:$0xf]
        %v281 = vld [vmem:[%s1 + $0xc] sm:$0xf]
        %v282 = vld [vmem:[%s1 + $0x10] sm:$0xf]
        %v283 = vld [vmem:[%s1 + $0x14] sm:$0xf]
        %v284 = vld [vmem:[%s1 + $0x18] sm:$0xf]
        %v285 = vld [vmem:[%s1 + $0x1c] sm:$0xf]
        %v286 = vld [vmem:[%s1 + $0x20] sm:$0xf]
        %v287 = vld [vmem:[%s1 + $0x24] sm:$0xf]
        %v288 = vld [vmem:[%s1 + $0x28] sm:$0xf]
        %v289 = vld [vmem:[%s1 + $0x2c] sm:$0xf]
        %v290 = vld [vmem:[%s1 + $0x30] sm:$0xf]
        %v291 = vld [vmem:[%s1 + $0x34] sm:$0xf]
        %v292 = vld [vmem:[%s1 + $0x38] sm:$0xf]
        %v293 = vld [vmem:[%s1 + $0x3c] sm:$0xf]
        %v294 = vld [vmem:[%s1 + $0x40] sm:$0xf]
        %v295 = vld [vmem:[%s1 + $0x44] sm:$0xf]
        %v296 = vld [vmem:[%s1 + $0x48] sm:$0xf]
        %v297 = vld [vmem:[%s1 + $0x4c] sm:$0xf]
        %v298 = vld [vmem:[%s1 + $0x50] sm:$0xf]
        %v299 = vld [vmem:[%s1 + $0x54] sm:$0xf]
        %v300 = vld [vmem:[%s1 + $0x58] sm:$0xf]
        %v301 = vld [vmem:[%s1 + $0x5c] sm:$0xf]
        %v302 = vld [vmem:[%s1 + $0x60] sm:$0xf]
        %v303 = vld [vmem:[%s1 + $0x64] sm:$0xf]
        %v304 = vld [vmem:[%s1 + $0x68] sm:$0xf]
        %v305 = vld [vmem:[%s1 + $0x6c] sm:$0xf]
        %v306 = vld [vmem:[%s1 + $0x70] sm:$0xf]
        %v307 = vld [vmem:[%s1 + $0x74] sm:$0xf]
        %v308 = vld [vmem:[%s1 + $0x78] sm:$0xf]
        %v309 = vld [vmem:[%s1 + $0x7c] sm:$0xf]
        %v310 = vld [vmem:[%s1 + $0x80] sm:$0xf]
        %v311 = vld [vmem:[%s1 + $0x84] sm:$0xf]
        %v312 = vld [vmem:[%s1 + $0x88] sm:$0xf]
        %v313 = vld [vmem:[%s1 + $0x8c] sm:$0xf]
        %v314 = vld [vmem:[%s1 + $0x90] sm:$0xf]
        %v315 = vld [vmem:[%s1 + $0x94] sm:$0xf]
        %v316 = vld [vmem:[%s1 + $0x98] sm:$0xf]
        %v317 = vld [vmem:[%s1 + $0x9c] sm:$0xf]
        %v318 = vld [vmem:[%s1 + $0xa0] sm:$0xf]
        %v319 = vld [vmem:[%s1 + $0xa4] sm:$0xf]
        %v320 = vld [vmem:[%s1 + $0xa8] sm:$0xf]
        %v321 = vld [vmem:[%s1 + $0xac] sm:$0xf]
        %v322 = vld [vmem:[%s1 + $0xb0] sm:$0xf]
        %v323 = vld [vmem:[%s1 + $0xb4] sm:$0xf]
        %v324 = vld [vmem:[%s1 + $0xb8] sm:$0xf]
        %v325 = vld [vmem:[%s1 + $0xbc] sm:$0xf]
        %v326 = vld [vmem:[%s1 + $0xc0] sm:$0xf]
        %v327 = vld [vmem:[%s1 + $0xc4] sm:$0xf]
        %v328 = vld [vmem:[%s1 + $0xc8] sm:$0xf]
        %v329 = vld [vmem:[%s1 + $0xcc] sm:$0xf]
        %v330 = vld [vmem:[%s1 + $0xd0] sm:$0xf]
        %v331 = vld [vmem:[%s1 + $0xd4] sm:$0xf]
        %v332 = vld [vmem:[%s1 + $0xd8] sm:$0xf]
        %v333 = vld [vmem:[%s1 + $0xdc] sm:$0xf]
        %v334 = vld [vmem:[%s1 + $0xe0] sm:$0xf]
        %v335 = vld [vmem:[%s1 + $0xe4] sm:$0xf]
        %v336 = vld [vmem:[%s1 + $0xe8] sm:$0xf]
        %v337 = vld [vmem:[%s1 + $0xec] sm:$0xf]
        %v338 = vld [vmem:[%s1 + $0xf0] sm:$0xf]
        %v339 = vld [vmem:[%s1 + $0xf4] sm:$0xf]
        %v340 = vld [vmem:[%s1 + $0xf8] sm:$0xf]
        %v341 = vld [vmem:[%s1 + $0xfc] sm:$0xf]
        %v342 = vld [vmem:[%s1 + $0x100] sm:$0xf]
        %v343 = vld [vmem:[%s1 + $0x104] sm:$0xf]
        %v344 = vld [vmem:[%s1 + $0x108] sm:$0xf]
        %v345 = vld [vmem:[%s1 + $0x10c] sm:$0xf]
        %v346 = vld [vmem:[%s1 + $0x110] sm:$0xf]
        %v347 = vld [vmem:[%s1 + $0x114] sm:$0xf]
        %v348 = vld [vmem:[%s1 + $0x118] sm:$0xf]
        %v349 = vld [vmem:[%s1 + $0x11c] sm:$0xf]
        %v350 = vld [vmem:[%s1 + $0x120] sm:$0xf]
        %v351 = vld [vmem:[%s1 + $0x124] sm:$0xf]
        %v352 = vld [vmem:[%s1 + $0x128] sm:$0xf]
        %v353 = vld [vmem:[%s1 + $0x12c] sm:$0xf]
        %v354 = vld [vmem:[%s1 + $0x130] sm:$0xf]
        %v355 = vld [vmem:[%s1 + $0x134] sm:$0xf]
        %v356 = vld [vmem:[%s1 + $0x138] sm:$0xf]
        %v357 = vld [vmem:[%s1 + $0x13c] sm:$0xf]
        %v358 = vld [vmem:[%s1 + $0x140] sm:$0xf]
        %v359 = vld [vmem:[%s1 + $0x144] sm:$0xf]
        %v360 = vld [vmem:[%s1 + $0x148] sm:$0xf]
        %v361 = vld [vmem:[%s1 + $0x14c] sm:$0xf]
        %v362 = vld [vmem:[%s1 + $0x150] sm:$0xf]
        %v363 = vld [vmem:[%s1 + $0x154] sm:$0xf]
        %v364 = vld [vmem:[%s1 + $0x158] sm:$0xf]
        %v365 = vld [vmem:[%s1 + $0x15c] sm:$0xf]
        %v366 = vld [vmem:[%s1 + $0x160] sm:$0xf]
        %v367 = vld [vmem:[%s1 + $0x164] sm:$0xf]
        %v368 = vld [vmem:[%s1 + $0x168] sm:$0xf]
        %v369 = vld [vmem:[%s1 + $0x16c] sm:$0xf]
        %v370 = vld [vmem:[%s1 + $0x170] sm:$0xf]
        %v371 = vld [vmem:[%s1 + $0x174] sm:$0xf]
        %v372 = vld [vmem:[%s1 + $0x178] sm:$0xf]
        %v373 = vld [vmem:[%s1 + $0x17c] sm:$0xf]
        %v374 = vld [vmem:[%s1 + $0x180] sm:$0xf]
        %v375 = vld [vmem:[%s1 + $0x184] sm:$0xf]
        %v376 = vld [vmem:[%s1 + $0x188] sm:$0xf]
        %v377 = vld [vmem:[%s1 + $0x18c] sm:$0xf]
        %v378 = vld [vmem:[%s1 + $0x190] sm:$0xf]
        %v379 = vld [vmem:[%s1 + $0x194] sm:$0xf]
        %v380 = vld [vmem:[%s1 + $0x198] sm:$0xf]
        %v381 = vld [vmem:[%s1 + $0x19c] sm:$0xf]
        %v382 = vld [vmem:[%s1 + $0x1a0] sm:$0xf]
        %v383 = vld [vmem:[%s1 + $0x1a4] sm:$0xf]
        %v384 = vld [vmem:[%s1 + $0x1a8] sm:$0xf]
        %v385 = vld [vmem:[%s1 + $0x1ac] sm:$0xf]
        %v386 = vld [vmem:[%s1 + $0x1b0] sm:$0xf]
        %v387 = vld [vmem:[%s1 + $0x1b4] sm:$0xf]
        %v388 = vld [vmem:[%s1 + $0x1b8] sm:$0xf]
        %v389 = vld [vmem:[%s1 + $0x1bc] sm:$0xf]
        %v390 = vld [vmem:[%s1 + $0x1c0] sm:$0xf]
        %v391 = vld [vmem:[%s1 + $0x1c4] sm:$0xf]
        %v392 = vld [vmem:[%s1 + $0x1c8] sm:$0xf]
        %v393 = vld [vmem:[%s1 + $0x1cc] sm:$0xf]
        %v394 = vld [vmem:[%s1 + $0x1d0] sm:$0xf]
        %v395 = vld [vmem:[%s1 + $0x1d4] sm:$0xf]
        %v396 = vld [vmem:[%s1 + $0x1d8] sm:$0xf]
        %v397 = vld [vmem:[%s1 + $0x1dc] sm:$0xf]
        %v398 = vld [vmem:[%s1 + $0x1e0] sm:$0xf]
        %v399 = vld [vmem:[%s1 + $0x1e4] sm:$0xf]
        %v400 = vld [vmem:[%s1 + $0x1e8] sm:$0xf]
        %v401 = vld [vmem:[%s1 + $0x1ec] sm:$0xf]
        %v402 = vld [vmem:[%s1 + $0x1f0] sm:$0xf]
        %v403 = vld [vmem:[%s1 + $0x1f4] sm:$0xf]
        %v404 = vld [vmem:[%s1 + $0x1f8] sm:$0xf]
        %v405 = vld [vmem:[%s1 + $0x1fc] sm:$0xf]
        %v406 = vld [vmem:[%s1 + $0x200] sm:$0xf]
        %v407 = vld [vmem:[%s1 + $0x204] sm:$0xf]
        %v408 = vld [vmem:[%s1 + $0x208] sm:$0xf]
        %v409 = vld [vmem:[%s1 + $0x20c] sm:$0xf]
        %v410 = vld [vmem:[%s1 + $0x210] sm:$0xf]
        %v411 = vld [vmem:[%s1 + $0x214] sm:$0xf]
        %v412 = vld [vmem:[%s1 + $0x218] sm:$0xf]
        %v413 = vld [vmem:[%s1 + $0x21c] sm:$0xf]
        %v414 = vld [vmem:[%s1 + $0x220] sm:$0xf]
        %v415 = vld [vmem:[%s1 + $0x224] sm:$0xf]
        %v416 = vld [vmem:[%s1 + $0x228] sm:$0xf]
        %v417 = vld [vmem:[%s1 + $0x22c] sm:$0xf]
        %v418 = vld [vmem:[%s1 + $0x230] sm:$0xf]
        %v419 = vld [vmem:[%s1 + $0x234] sm:$0xf]
        %v420 = vld [vmem:[%s1 + $0x238] sm:$0xf]
        %v421 = vld [vmem:[%s1 + $0x23c] sm:$0xf]
        %v422 = vld [vmem:[%s2] sm:$0x1]
        %v424 = vlaneseq
        %v425 = vshrl.u32 %v424, 7
        %v426 = vsub.s32 0, %v425
        %v427 = vrot.slane %v422, %v426
        %v573 = vunpack.c.l.b16 %v278
        %v574 = vunpack.c.l.b16 %v279
        %v575 = vunpack.c.l.b16 %v280
        %v576 = vunpack.c.l.b16 %v281
        %v577 = vunpack.c.l.b16 %v282
        %v578 = vunpack.c.l.b16 %v283
        %v579 = vunpack.c.l.b16 %v284
        %v580 = vunpack.c.l.b16 %v285
        %v581 = vunpack.c.l.b16 %v286
        %v582 = vunpack.c.l.b16 %v287
        %v583 = vunpack.c.l.b16 %v288
        %v584 = vunpack.c.l.b16 %v289
        %v585 = vunpack.c.l.b16 %v290
        %v586 = vunpack.c.l.b16 %v291
        %v587 = vunpack.c.l.b16 %v292
        %v588 = vunpack.c.l.b16 %v293
        %v589 = vunpack.c.l.b16 %v294
        %v590 = vunpack.c.l.b16 %v295
        %v591 = vunpack.c.l.b16 %v296
        %v592 = vunpack.c.l.b16 %v297
        %v593 = vunpack.c.l.b16 %v298
        %v594 = vunpack.c.l.b16 %v299
        %v595 = vunpack.c.l.b16 %v300
        %v596 = vunpack.c.l.b16 %v301
        %v597 = vunpack.c.l.b16 %v302
        %v598 = vunpack.c.l.b16 %v303
        %v599 = vunpack.c.l.b16 %v304
        %v600 = vunpack.c.l.b16 %v305
        %v601 = vunpack.c.l.b16 %v306
        %v602 = vunpack.c.l.b16 %v307
        %v603 = vunpack.c.l.b16 %v308
        %v604 = vunpack.c.l.b16 %v309
        %v605 = vunpack.c.l.b16 %v310
        %v606 = vunpack.c.l.b16 %v311
        %v607 = vunpack.c.l.b16 %v312
        %v608 = vunpack.c.l.b16 %v313
        %v609 = vunpack.c.l.b16 %v314
        %v610 = vunpack.c.l.b16 %v315
        %v611 = vunpack.c.l.b16 %v316
        %v612 = vunpack.c.l.b16 %v317
        %v613 = vunpack.c.l.b16 %v318
        %v614 = vunpack.c.l.b16 %v319
        %v615 = vunpack.c.l.b16 %v320
        %v616 = vunpack.c.l.b16 %v321
        %v617 = vunpack.c.l.b16 %v322
        %v618 = vunpack.c.l.b16 %v323
        %v619 = vunpack.c.l.b16 %v324
        %v620 = vunpack.c.l.b16 %v325
        %v621 = vunpack.c.l.b16 %v326
        %v622 = vunpack.c.l.b16 %v327
        %v623 = vunpack.c.l.b16 %v328
        %v624 = vunpack.c.l.b16 %v329
        %v625 = vunpack.c.l.b16 %v330
        %v626 = vunpack.c.l.b16 %v331
        %v627 = vunpack.c.l.b16 %v332
        %v628 = vunpack.c.l.b16 %v333
        %v629 = vunpack.c.l.b16 %v334
        %v630 = vunpack.c.l.b16 %v335
        %v631 = vunpack.c.l.b16 %v336
        %v632 = vunpack.c.l.b16 %v337
        %v633 = vunpack.c.l.b16 %v338
        %v634 = vunpack.c.l.b16 %v339
        %v635 = vunpack.c.l.b16 %v340
        %v636 = vunpack.c.l.b16 %v341
        %v637 = vunpack.c.l.b16 %v342
        %v638 = vunpack.c.l.b16 %v343
        %v639 = vunpack.c.l.b16 %v344
        %v640 = vunpack.c.l.b16 %v345
        %v641 = vunpack.c.l.b16 %v346
        %v642 = vunpack.c.l.b16 %v347
        %v643 = vunpack.c.l.b16 %v348
        %v644 = vunpack.c.l.b16 %v349
        %v645 = vunpack.c.l.b16 %v350
        %v646 = vunpack.c.l.b16 %v351
        %v647 = vunpack.c.l.b16 %v352
        %v648 = vunpack.c.l.b16 %v353
        %v649 = vunpack.c.l.b16 %v354
        %v650 = vunpack.c.l.b16 %v355
        %v651 = vunpack.c.l.b16 %v356
        %v652 = vunpack.c.l.b16 %v357
        %v653 = vunpack.c.l.b16 %v358
        %v654 = vunpack.c.l.b16 %v359
        %v655 = vunpack.c.l.b16 %v360
        %v656 = vunpack.c.l.b16 %v361
        %v657 = vunpack.c.l.b16 %v362
        %v658 = vunpack.c.l.b16 %v363
        %v659 = vunpack.c.l.b16 %v364
        %v660 = vunpack.c.l.b16 %v365
        %v661 = vunpack.c.l.b16 %v366
        %v662 = vunpack.c.l.b16 %v367
        %v663 = vunpack.c.l.b16 %v368
        %v664 = vunpack.c.l.b16 %v369
        %v665 = vunpack.c.l.b16 %v370
        %v666 = vunpack.c.l.b16 %v371
        %v667 = vunpack.c.l.b16 %v372
        %v668 = vunpack.c.l.b16 %v373
        %v669 = vunpack.c.l.b16 %v374
        %v670 = vunpack.c.l.b16 %v375
        %v671 = vunpack.c.l.b16 %v376
        %v672 = vunpack.c.l.b16 %v377
        %v673 = vunpack.c.l.b16 %v378
        %v674 = vunpack.c.l.b16 %v379
        %v675 = vunpack.c.l.b16 %v380
        %v676 = vunpack.c.l.b16 %v381
        %v677 = vunpack.c.l.b16 %v382
        %v678 = vunpack.c.l.b16 %v383
        %v679 = vunpack.c.l.b16 %v384
        %v680 = vunpack.c.l.b16 %v385
        %v681 = vunpack.c.l.b16 %v386
        %v682 = vunpack.c.l.b16 %v387
        %v683 = vunpack.c.l.b16 %v388
        %v684 = vunpack.c.l.b16 %v389
        %v685 = vunpack.c.l.b16 %v390
        %v686 = vunpack.c.l.b16 %v391
        %v687 = vunpack.c.l.b16 %v392
        %v688 = vunpack.c.l.b16 %v393
        %v689 = vunpack.c.l.b16 %v394
        %v690 = vunpack.c.l.b16 %v395
        %v691 = vunpack.c.l.b16 %v396
        %v692 = vunpack.c.l.b16 %v397
        %v693 = vunpack.c.l.b16 %v398
        %v694 = vunpack.c.l.b16 %v399
        %v695 = vunpack.c.l.b16 %v400
        %v696 = vunpack.c.l.b16 %v401
        %v697 = vunpack.c.l.b16 %v402
        %v698 = vunpack.c.l.b16 %v403
        %v699 = vunpack.c.l.b16 %v404
        %v700 = vunpack.c.l.b16 %v405
        %v701 = vunpack.c.l.b16 %v406
        %v702 = vunpack.c.l.b16 %v407
        %v703 = vunpack.c.l.b16 %v408
        %v704 = vunpack.c.l.b16 %v409
        %v705 = vunpack.c.l.b16 %v410
        %v706 = vunpack.c.l.b16 %v411
        %v707 = vunpack.c.l.b16 %v412
        %v708 = vunpack.c.l.b16 %v413
        %v709 = vunpack.c.l.b16 %v414
        %v710 = vunpack.c.l.b16 %v415
        %v711 = vunpack.c.l.b16 %v416
        %v712 = vunpack.c.l.b16 %v417
        %v713 = vunpack.c.l.b16 %v418
        %v714 = vunpack.c.l.b16 %v419
        %v715 = vunpack.c.l.b16 %v420
        %v716 = vunpack.c.l.b16 %v421
        %v717 = vpack.c.b16 %v574, %v573
        %v718 = vpack.c.b16 %v576, %v575
        %v719 = vpack.c.b16 %v578, %v577
        %v720 = vpack.c.b16 %v580, %v579
        %v721 = vpack.c.b16 %v582, %v581
        %v722 = vpack.c.b16 %v584, %v583
        %v723 = vpack.c.b16 %v586, %v585
        %v724 = vpack.c.b16 %v588, %v587
        %v725 = vpack.c.b16 %v590, %v589
        %v726 = vpack.c.b16 %v592, %v591
        %v727 = vpack.c.b16 %v594, %v593
        %v728 = vpack.c.b16 %v596, %v595
        %v729 = vpack.c.b16 %v598, %v597
        %v730 = vpack.c.b16 %v600, %v599
        %v731 = vpack.c.b16 %v602, %v601
        %v732 = vpack.c.b16 %v604, %v603
        %v733 = vpack.c.b16 %v606, %v605
        %v734 = vpack.c.b16 %v608, %v607
        %v735 = vpack.c.b16 %v610, %v609
        %v736 = vpack.c.b16 %v612, %v611
        %v737 = vpack.c.b16 %v614, %v613
        %v738 = vpack.c.b16 %v616, %v615
        %v739 = vpack.c.b16 %v618, %v617
        %v740 = vpack.c.b16 %v620, %v619
        %v741 = vpack.c.b16 %v622, %v621
        %v742 = vpack.c.b16 %v624, %v623
        %v743 = vpack.c.b16 %v626, %v625
        %v744 = vpack.c.b16 %v628, %v627
        %v745 = vpack.c.b16 %v630, %v629
        %v746 = vpack.c.b16 %v632, %v631
        %v747 = vpack.c.b16 %v634, %v633
        %v748 = vpack.c.b16 %v636, %v635
        %v749 = vpack.c.b16 %v638, %v637
        %v750 = vpack.c.b16 %v640, %v639
        %v751 = vpack.c.b16 %v642, %v641
        %v752 = vpack.c.b16 %v644, %v643
        %v753 = vpack.c.b16 %v646, %v645
        %v754 = vpack.c.b16 %v648, %v647
        %v755 = vpack.c.b16 %v650, %v649
        %v756 = vpack.c.b16 %v652, %v651
        %v757 = vpack.c.b16 %v654, %v653
        %v758 = vpack.c.b16 %v656, %v655
        %v759 = vpack.c.b16 %v658, %v657
        %v760 = vpack.c.b16 %v660, %v659
        %v761 = vpack.c.b16 %v662, %v661
        %v762 = vpack.c.b16 %v664, %v663
        %v763 = vpack.c.b16 %v666, %v665
        %v764 = vpack.c.b16 %v668, %v667
        %v765 = vpack.c.b16 %v670, %v669
        %v766 = vpack.c.b16 %v672, %v671
        %v767 = vpack.c.b16 %v674, %v673
        %v768 = vpack.c.b16 %v676, %v675
        %v769 = vpack.c.b16 %v678, %v677
        %v770 = vpack.c.b16 %v680, %v679
        %v771 = vpack.c.b16 %v682, %v681
        %v772 = vpack.c.b16 %v684, %v683
        %v773 = vpack.c.b16 %v686, %v685
        %v774 = vpack.c.b16 %v688, %v687
        %v775 = vpack.c.b16 %v690, %v689
        %v776 = vpack.c.b16 %v692, %v691
        %v777 = vpack.c.b16 %v694, %v693
        %v778 = vpack.c.b16 %v696, %v695
        %v779 = vpack.c.b16 %v698, %v697
        %v780 = vpack.c.b16 %v700, %v699
        %v781 = vpack.c.b16 %v702, %v701
        %v782 = vpack.c.b16 %v704, %v703
        %v783 = vpack.c.b16 %v706, %v705
        %v784 = vpack.c.b16 %v708, %v707
        %v785 = vpack.c.b16 %v710, %v709
        %v786 = vpack.c.b16 %v712, %v711
        %v787 = vpack.c.b16 %v714, %v713
        %v788 = vpack.c.b16 %v716, %v715
        %861 = vmatprep.subr.bf16.mxu0 0
        %862 = vmatpush1.bf16.msra.mxu0 %v717
        %863 = vmatprep.subr.bf16.mxu0 0
        %864 = vmatpush1.bf16.msra.mxu0 %v718
        %865 = vmatprep.subr.bf16.mxu0 0
        %866 = vmatpush1.bf16.msra.mxu0 %v719
        %867 = vmatprep.subr.bf16.mxu0 0
        %868 = vmatpush1.bf16.msra.mxu0 %v720
        %869 = vmatprep.subr.bf16.mxu0 0
        %870 = vmatpush1.bf16.msra.mxu0 %v721
        %871 = vmatprep.subr.bf16.mxu0 0
        %872 = vmatpush1.bf16.msra.mxu0 %v722
        %873 = vmatprep.subr.bf16.mxu0 0
        %874 = vmatpush1.bf16.msra.mxu0 %v723
        %875 = vmatprep.subr.bf16.mxu0 0
        %876 = vmatpush1.bf16.msra.mxu0 %v724
        %877 = vmatprep.subr.bf16.mxu0 0
        %878 = vmatpush1.bf16.msra.mxu0 %v725
        %879 = vmatprep.subr.bf16.mxu0 0
        %880 = vmatpush1.bf16.msra.mxu0 %v726
        %881 = vmatprep.subr.bf16.mxu0 0
        %882 = vmatpush1.bf16.msra.mxu0 %v727
        %883 = vmatprep.subr.bf16.mxu0 0
        %884 = vmatpush1.bf16.msra.mxu0 %v728
        %885 = vmatprep.subr.bf16.mxu0 0
        %886 = vmatpush1.bf16.msra.mxu0 %v729
        %887 = vmatprep.subr.bf16.mxu0 0
        %888 = vmatpush1.bf16.msra.mxu0 %v730
        %889 = vmatprep.subr.bf16.mxu0 0
        %890 = vmatpush1.bf16.msra.mxu0 %v731
        %891 = vmatprep.subr.bf16.mxu0 0
        %892 = vmatpush1.bf16.msra.mxu0 %v732
        %893 = vmatprep.mubr.bf16.mxu0 %v219
        %894 = vmatmul.mubr.bf16.gmra.mrb[0].mxu0 %v202
        %v895 = vpop.f32.mrb[0].mxu0
        %v896 = vadd.f32 %v427, %v895
        %v897 = vpop.f32.mrb[0].mxu0
        %v898 = vpop.f32.mrb[0].mxu0
        %v899 = vadd.f32 %v427, %v898
        %v900 = vpop.f32.mrb[0].mxu0
        %901 = vdwg.mxu0
        %902 = vmatprep.subr.bf16.mxu0 0
        %903 = vmatpush1.bf16.msra.mxu0 %v733
        %904 = vmatprep.subr.bf16.mxu0 0
        %905 = vmatpush1.bf16.msra.mxu0 %v734
        %906 = vmatprep.subr.bf16.mxu0 0
        %907 = vmatpush1.bf16.msra.mxu0 %v735
        %908 = vmatprep.subr.bf16.mxu0 0
        %909 = vmatpush1.bf16.msra.mxu0 %v736
        %910 = vmatprep.subr.bf16.mxu0 0
        %911 = vmatpush1.bf16.msra.mxu0 %v737
        %912 = vmatprep.subr.bf16.mxu0 0
        %913 = vmatpush1.bf16.msra.mxu0 %v738
        %914 = vmatprep.subr.bf16.mxu0 0
        %915 = vmatpush1.bf16.msra.mxu0 %v739
        %916 = vmatprep.subr.bf16.mxu0 0
        %917 = vmatpush1.bf16.msra.mxu0 %v740
        %918 = vmatprep.subr.bf16.mxu0 0
        %919 = vmatpush1.bf16.msra.mxu0 %v741
        %920 = vmatprep.subr.bf16.mxu0 0
        %921 = vmatpush1.bf16.msra.mxu0 %v742
        %922 = vmatprep.subr.bf16.mxu0 0
        %923 = vmatpush1.bf16.msra.mxu0 %v743
        %924 = vmatprep.subr.bf16.mxu0 0
        %925 = vmatpush1.bf16.msra.mxu0 %v744
        %926 = vmatprep.subr.bf16.mxu0 0
        %927 = vmatpush1.bf16.msra.mxu0 %v745
        %928 = vmatprep.subr.bf16.mxu0 0
        %929 = vmatpush1.bf16.msra.mxu0 %v746
        %930 = vmatprep.subr.bf16.mxu0 0
        %931 = vmatpush1.bf16.msra.mxu0 %v747
        %932 = vmatprep.subr.bf16.mxu0 0
        %933 = vmatpush1.bf16.msra.mxu0 %v748
        %934 = vmatprep.mubr.bf16.mxu0 %v230
        %935 = vmatmul.mubr.bf16.gmra.mrb[0].mxu0 %v224
        %v936 = vpop.f32.mrb[0].mxu0
        %v937 = vadd.f32 %v896, %v936
        %v938 = vpop.f32.mrb[0].mxu0
        %v939 = vpop.f32.mrb[0].mxu0
        %v940 = vadd.f32 %v899, %v939
        %v941 = vpop.f32.mrb[0].mxu0
        %942 = vdwg.mxu0
        %943 = vmatprep.subr.bf16.mxu0 0
        %944 = vmatpush1.bf16.msra.mxu0 %v749
        %945 = vmatprep.subr.bf16.mxu0 0
        %946 = vmatpush1.bf16.msra.mxu0 %v750
        %947 = vmatprep.subr.bf16.mxu0 0
        %948 = vmatpush1.bf16.msra.mxu0 %v751
        %949 = vmatprep.subr.bf16.mxu0 0
        %950 = vmatpush1.bf16.msra.mxu0 %v752
        %951 = vmatprep.subr.bf16.mxu0 0
        %952 = vmatpush1.bf16.msra.mxu0 %v753
        %953 = vmatprep.subr.bf16.mxu0 0
        %954 = vmatpush1.bf16.msra.mxu0 %v754
        %955 = vmatprep.subr.bf16.mxu0 0
        %956 = vmatpush1.bf16.msra.mxu0 %v755
        %957 = vmatprep.subr.bf16.mxu0 0
        %958 = vmatpush1.bf16.msra.mxu0 %v756
        %959 = vmatprep.subr.bf16.mxu0 0
        %960 = vmatpush1.bf16.msra.mxu0 %v757
        %961 = vmatprep.subr.bf16.mxu0 0
        %962 = vmatpush1.bf16.msra.mxu0 %v758
        %963 = vmatprep.subr.bf16.mxu0 0
        %964 = vmatpush1.bf16.msra.mxu0 %v759
        %965 = vmatprep.subr.bf16.mxu0 0
        %966 = vmatpush1.bf16.msra.mxu0 %v760
        %967 = vmatprep.subr.bf16.mxu0 0
        %968 = vmatpush1.bf16.msra.mxu0 %v761
        %969 = vmatprep.subr.bf16.mxu0 0
        %970 = vmatpush1.bf16.msra.mxu0 %v762
        %971 = vmatprep.subr.bf16.mxu0 0
        %972 = vmatpush1.bf16.msra.mxu0 %v763
        %973 = vmatprep.subr.bf16.mxu0 0
        %974 = vmatpush1.bf16.msra.mxu0 %v764
        %975 = vmatprep.mubr.bf16.mxu0 %v250
        %976 = vmatmul.mubr.bf16.gmra.mrb[0].mxu0 %v246
        %v977 = vpop.f32.mrb[0].mxu0
        %v978 = vadd.f32 %v937, %v977
        %v979 = vpop.f32.mrb[0].mxu0
        %v980 = vpop.f32.mrb[0].mxu0
        %v981 = vadd.f32 %v940, %v980
        %v982 = vpop.f32.mrb[0].mxu0
        %983 = vdwg.mxu0
        %984 = vmatprep.subr.bf16.mxu0 0
        %985 = vmatpush1.bf16.msra.mxu0 %v765
        %986 = vmatprep.subr.bf16.mxu0 0
        %987 = vmatpush1.bf16.msra.mxu0 %v766
        %988 = vmatprep.subr.bf16.mxu0 0
        %989 = vmatpush1.bf16.msra.mxu0 %v767
        %990 = vmatprep.subr.bf16.mxu0 0
        %991 = vmatpush1.bf16.msra.mxu0 %v768
        %992 = vmatprep.subr.bf16.mxu0 0
        %993 = vmatpush1.bf16.msra.mxu0 %v769
        %994 = vmatprep.subr.bf16.mxu0 0
        %995 = vmatpush1.bf16.msra.mxu0 %v770
        %996 = vmatprep.subr.bf16.mxu0 0
        %997 = vmatpush1.bf16.msra.mxu0 %v771
        %998 = vmatprep.subr.bf16.mxu0 0
        %999 = vmatpush1.bf16.msra.mxu0 %v772
        %1000 = vmatprep.subr.bf16.mxu0 0
        %1001 = vmatpush1.bf16.msra.mxu0 %v773
        %1002 = vmatprep.subr.bf16.mxu0 0
        %1003 = vmatpush1.bf16.msra.mxu0 %v774
        %1004 = vmatprep.subr.bf16.mxu0 0
        %1005 = vmatpush1.bf16.msra.mxu0 %v775
        %1006 = vmatprep.subr.bf16.mxu0 0
        %1007 = vmatpush1.bf16.msra.mxu0 %v776
        %1008 = vmatprep.subr.bf16.mxu0 0
        %1009 = vmatpush1.bf16.msra.mxu0 %v777
        %1010 = vmatprep.subr.bf16.mxu0 0
        %1011 = vmatpush1.bf16.msra.mxu0 %v778
        %1012 = vmatprep.subr.bf16.mxu0 0
        %1013 = vmatpush1.bf16.msra.mxu0 %v779
        %1014 = vmatprep.subr.bf16.mxu0 0
        %1015 = vmatpush1.bf16.msra.mxu0 %v780
        %1016 = vmatprep.mubr.bf16.mxu0 %v272
        %1017 = vmatmul.mubr.bf16.gmra.mrb[0].mxu0 %v256
        %v1018 = vpop.f32.mrb[0].mxu0
        %v1019 = vadd.f32 %v978, %v1018
        %v1020 = vpop.f32.mrb[0].mxu0
        %v1021 = vpop.f32.mrb[0].mxu0
        %v1022 = vadd.f32 %v981, %v1021
        %v1023 = vpop.f32.mrb[0].mxu0
        %1024 = vdwg.mxu0
        %1025 = vmatprep.subr.bf16.mxu0 0
        %1026 = vmatpush1.bf16.msra.mxu0 %v781
        %1027 = vmatprep.subr.bf16.mxu0 0
        %1028 = vmatpush1.bf16.msra.mxu0 %v782
        %1029 = vmatprep.subr.bf16.mxu0 0
        %1030 = vmatpush1.bf16.msra.mxu0 %v783
        %1031 = vmatprep.subr.bf16.mxu0 0
        %1032 = vmatpush1.bf16.msra.mxu0 %v784
        %1033 = vmatprep.subr.bf16.mxu0 0
        %1034 = vmatpush1.bf16.msra.mxu0 %v785
        %1035 = vmatprep.subr.bf16.mxu0 0
        %1036 = vmatpush1.bf16.msra.mxu0 %v786
        %1037 = vmatprep.subr.bf16.mxu0 0
        %1038 = vmatpush1.bf16.msra.mxu0 %v787
        %1039 = vmatprep.subr.bf16.mxu0 0
        %1040 = vmatpush1.bf16.msra.mxu0 %v788
        %1041 = vmatprep.subr.bf16.mxu0 0
        %1042 = vmatpush1.bf16.msra.mxu0 0
        %1043 = vmatprep.subr.bf16.mxu0 0
        %1044 = vmatpush1.bf16.msra.mxu0 0
        %1045 = vmatprep.subr.bf16.mxu0 0
        %1046 = vmatpush1.bf16.msra.mxu0 0
        %1047 = vmatprep.subr.bf16.mxu0 0
        %1048 = vmatpush1.bf16.msra.mxu0 0
        %1049 = vmatprep.subr.bf16.mxu0 0
        %1050 = vmatpush1.bf16.msra.mxu0 0
        %1051 = vmatprep.subr.bf16.mxu0 0
        %1052 = vmatpush1.bf16.msra.mxu0 0
        %1053 = vmatprep.subr.bf16.mxu0 0
        %1054 = vmatpush1.bf16.msra.mxu0 0
        %1055 = vmatprep.subr.bf16.mxu0 0
        %1056 = vmatpush1.bf16.msra.mxu0 0
        %1057 = vmatprep.mubr.bf16.mxu0 0
        %1058 = vmatmul.mubr.bf16.gmra.mrb[0].mxu0 %v276
        %v1059 = vpop.f32.mrb[0].mxu0
        %v1060 = vadd.f32 %v1019, %v1059
        %v1061 = vpop.f32.mrb[0].mxu0
        %v1062 = vpop.f32.mrb[0].mxu0
        %v1063 = vadd.f32 %v1022, %v1062
        %v1064 = vpop.f32.mrb[0].mxu0
        %1065 = vdwg.mxu0
        %v1066 = vmax.f32 %v1060, 0.0
        %v1067 = vmax.f32 %v1063, 0.0
        %v1068 = vpack.c.bf16 %v1067, %v1066
        %v1070 = vunpack.c.l.b16 %v1068
        %v1071 = vunpack.c.h.b16 %v1068
        %v1072 = vpack.c.b16 %v1070, %v1070
        %v1073 = vpack.c.b16 %v1071, %v1071
        %s1076 = smul.u32 %s173, 2
        %s1077 = smul.addr %s1076, 4
        %s1078 = scalar_lea.vmem %s170, %s1077
        %1079 = vst [vmem:[%s1078] sm:$0xf] %v1072
        %1080 = vst [vmem:[%s1078 + $0x4] sm:$0xf] %v1073
      $region37: #{fcn16_forward.25} parent=31 // loop_footer
        %s177 = sadd.s32 1, %s173
      $region38: #{fcn16_forward.25} parent=31 // loop_footer_branch
        %172 = sbr.rel target = $region34
      $region39: #{fcn16_forward.25} parent=31 // loop_exit
        _
      %p1081 = scmp.lt.s32.totalorder %s14, 1
      %s1082 = scalar_select %p1081, %s14, 1
      %s1083 = smul.addr %s1082, 32
      %s1084 = smul.addr %s1083, 4
      %s1085 = scalar_lea.vmem %s3, %s1084
      // Predicated region
      $region40: #{fcn16_forward.25} parent=31 // pred_check
        %p1086 = pneg %p100
      $region41: #{fcn16_forward.25} parent=31 // pred_check_branch
        %1088 = sbr.rel (%p1086) target = $region43
      $region42: #{fcn16_forward.25} parent=31 // pred_region
        _
      $region43: #{fcn16_forward.25} parent=31 // pred_fallthru
        _
    $region32: #{fcn16_forward.25} parent=5 // pred_fallthru
      _
    %p1089 = scmp.le.s32.totalorder 2, %s9
    // Predicated region
    $region44: #{fcn16_forward.25} parent=5 // pred_check
      %p1090 = pneg %p1089
    $region45: #{fcn16_forward.25} parent=5 // pred_check_branch
      %1092 = sbr.rel (%p1090) target = $region47
    $region46: #{fcn16_forward.25} parent=5 // pred_region
      %s1093 = ssub.s32 %s9, 2
      // Predicated region
      $region48: #{fcn16_forward.25} parent=46 // pred_check
        %p1094 = pneg %p106
      $region49: #{fcn16_forward.25} parent=46 // pred_check_branch
        %1096 = sbr.rel (%p1094) target = $region51
      $region50: #{fcn16_forward.25} parent=46 // pred_region
        %p1097 = scmp.lt.s32.totalorder %s15, 1
        %s1098 = scalar_select %p1097, %s15, 1
        %s1099 = smul.addr %s1098, 32
        %s1100 = smul.addr %s1099, 4
        %s1101 = scalar_lea.vmem %s3, %s1100
      $region51: #{fcn16_forward.25} parent=46 // pred_fallthru
        _
    $region47: #{fcn16_forward.25} parent=5 // pred_fallthru
      _
  $region6: #{fcn16_forward.25} parent=0 // loop_footer
    %s13 = sadd.s32 1, %s9
  $region7: #{fcn16_forward.25} parent=0 // loop_footer_branch
    %8 = sbr.rel target = $region3
  $region8: #{fcn16_forward.25} parent=0 // loop_exit
    _

// kernel: fcn16_forward.29
$region0: #{fcn16_forward.29}
  #allocation0 [shape = 'u32[]', space=smem, size = 0x4, offset = 0x4, fixed_abs, tag = 'smem constant byte address 0x4 - core index']
  #allocation1 [shape = 'u32[144,128]{1,0:T(1,128)}', space=vmem, size = 0x12000, scoped, tag = 'internal scratch']
  %s0 = inlined_call_operand.vmem [shape: bf16[2,10,10,128], index: 0, kind: input, shape index: {}]
  %s1 = inlined_call_operand.vmem [shape: bf16[1152,128], index: 1, kind: input, shape index: {}]
  %s2 = inlined_call_operand.vmem [shape: f32[1,128], index: 2, kind: input, shape index: {}]
  %s3 = inlined_call_operand.vmem [shape: bf16[2,8,8,128], index: 3, kind: output, shape index: {}]
  %s4 = sld [smem:[#allocation0]]
  $region52: #{fcn16_forward.29} parent=0
    _
  %s6 = ssub.s32 1, %s4
  %s7 = scalar_select 0, %s6, %s4
  loop: start=0, step=1, limit=4
  $region2: #{fcn16_forward.29} parent=0 // loop_pre_header
    _
  $region3: #{fcn16_forward.29} parent=0 // loop_header
    %s9 = sphi 0, %s13
    %p10 = scmp.ge.s32.totalorder %s9, 4
    %s19 = sphi 0, %s21
    %s22 = sphi 0, %s19
    %s23 = sphi 0, %s22
    %s39 = sphi 0, %s23
    %s43 = sphi 0, %s43
    %s45 = sphi 0, %s43
    %s46 = sphi 0, %s45
    %s60 = sphi 0, %s46
    %s64 = sphi 0, %s64
    %s66 = sphi 0, %s64
    %s67 = sphi 0, %s66
    %s81 = sphi 0, %s67
    %s87 = sphi 0, %s89
    %s90 = sphi 0, %s87
    %s91 = sphi 0, %s90
    %s107 = sphi 0, %s91
  $region4: #{fcn16_forward.29} parent=0 // loop_header_branch
    %12 = sbr.rel (%p10) target = $region8
  $region5: #{fcn16_forward.29} parent=0 // loop_body
    %s14 = ssub.s32 %s9, 1
    %s15 = ssub.s32 %s9, 2
    %s16 = sadd.s32 %s9, 1
    %s17 = ssub.s32 %s9, %s16
    %p18 = scmp.eq.s32.totalorder %s17, 0
    %s20 = sadd.s32 %s19, 1
    %s21 = scalar_select %p18, %s19, %s20
    %p24 = pneg %p18
    %p25 = scmp.eq.s32.totalorder %s9, 1
    %p26 = por %p24, %p25
    %p27 = scmp.ne.s32.totalorder %s19, %s22
    %p28 = scmp.eq.s32.totalorder %s9, 0
    %p29 = por %p27, %p28
    %p30 = scmp.ne.s32.totalorder %s19, %s22
    %p31 = scmp.eq.s32.totalorder %s14, 1
    %p32 = por %p30, %p31
    %p33 = scmp.ne.s32.totalorder %s22, %s23
    %p34 = scmp.eq.s32.totalorder %s14, 0
    %p35 = por %p33, %p34
    %p36 = scmp.ne.s32.totalorder %s22, %s23
    %p37 = scmp.eq.s32.totalorder %s15, 1
    %p38 = por %p36, %p37
    %p40 = scmp.ne.s32.totalorder %s23, %s39
    %p41 = scmp.eq.s32.totalorder %s15, 0
    %p42 = por %p40, %p41
    %s44 = sadd.s32 %s43, 1
    %p47 = scmp.eq.s32.totalorder %s9, 1
    %p48 = scmp.ne.s32.totalorder %s43, %s45
    %p49 = scmp.eq.s32.totalorder %s9, 0
    %p50 = por %p48, %p49
    %p51 = scmp.ne.s32.totalorder %s43, %s45
    %p52 = scmp.eq.s32.totalorder %s14, 1
    %p53 = por %p51, %p52
    %p54 = scmp.ne.s32.totalorder %s45, %s46
    %p55 = scmp.eq.s32.totalorder %s14, 0
    %p56 = por %p54, %p55
    %p57 = scmp.ne.s32.totalorder %s45, %s46
    %p58 = scmp.eq.s32.totalorder %s15, 1
    %p59 = por %p57, %p58
    %p61 = scmp.ne.s32.totalorder %s46, %s60
    %p62 = scmp.eq.s32.totalorder %s15, 0
    %p63 = por %p61, %p62
    %s65 = sadd.s32 %s64, 1
    %p68 = scmp.eq.s32.totalorder %s9, 1
    %p69 = scmp.ne.s32.totalorder %s64, %s66
    %p70 = scmp.eq.s32.totalorder %s9, 0
    %p71 = por %p69, %p70
    %p72 = scmp.ne.s32.totalorder %s64, %s66
    %p73 = scmp.eq.s32.totalorder %s14, 1
    %p74 = por %p72, %p73
    %p75 = scmp.ne.s32.totalorder %s66, %s67
    %p76 = scmp.eq.s32.totalorder %s14, 0
    %p77 = por %p75, %p76
    %p78 = scmp.ne.s32.totalorder %s66, %s67
    %p79 = scmp.eq.s32.totalorder %s15, 1
    %p80 = por %p78, %p79
    %p82 = scmp.ne.s32.totalorder %s67, %s81
    %p83 = scmp.eq.s32.totalorder %s15, 0
    %p84 = por %p82, %p83
    %s85 = ssub.s32 %s9, %s16
    %p86 = scmp.eq.s32.totalorder %s85, 0
    %s88 = sadd.s32 %s87, 1
    %s89 = scalar_select %p86, %s87, %s88
    %p92 = pneg %p86
    %p93 = scmp.eq.s32.totalorder %s9, 1
    %p94 = por %p92, %p93
    %p95 = scmp.ne.s32.totalorder %s87, %s90
    %p96 = scmp.eq.s32.totalorder %s9, 0
    %p97 = por %p95, %p96
    %p98 = scmp.ne.s32.totalorder %s87, %s90
    %p99 = scmp.eq.s32.totalorder %s14, 1
    %p100 = por %p98, %p99
    %p101 = scmp.ne.s32.totalorder %s90, %s91
    %p102 = scmp.eq.s32.totalorder %s14, 0
    %p103 = por %p101, %p102
    %p104 = scmp.ne.s32.totalorder %s90, %s91
    %p105 = scmp.eq.s32.totalorder %s15, 1
    %p106 = por %p104, %p105
    %p108 = scmp.ne.s32.totalorder %s91, %s107
    %p109 = scmp.eq.s32.totalorder %s15, 0
    %p110 = por %p108, %p109
    %p111 = scmp.le.s32.totalorder 1, %s9
    %p112 = scmp.lt.s32.totalorder %s9, 3
    %p113 = pnand %p111, %p112
    %p114 = pneg %p113
    // Predicated region
    $region9: #{fcn16_forward.29} parent=5 // pred_check
      _
    $region10: #{fcn16_forward.29} parent=5 // pred_check_branch
      %116 = sbr.rel (%p113) target = $region12
    $region11: #{fcn16_forward.29} parent=5 // pred_region
      %s117 = ssub.s32 %s9, 1
      // Predicated region
      $region13: #{fcn16_forward.29} parent=11 // pred_check
        %p118 = pneg %p56
      $region14: #{fcn16_forward.29} parent=11 // pred_check_branch
        %120 = sbr.rel (%p118) target = $region16
      $region15: #{fcn16_forward.29} parent=11 // pred_region
        _
      $region16: #{fcn16_forward.29} parent=11 // pred_fallthru
        _
      // Predicated region
      $region17: #{fcn16_forward.29} parent=11 // pred_check
        %p121 = pneg %p77
      $region18: #{fcn16_forward.29} parent=11 // pred_check_branch
        %123 = sbr.rel (%p121) target = $region20
      $region19: #{fcn16_forward.29} parent=11 // pred_region
        _
      $region20: #{fcn16_forward.29} parent=11 // pred_fallthru
        _
    $region12: #{fcn16_forward.29} parent=5 // pred_fallthru
      _
    %p124 = scmp.lt.s32.totalorder %s9, 2
    // Predicated region
    $region21: #{fcn16_forward.29} parent=5 // pred_check
      %p125 = pneg %p124
    $region22: #{fcn16_forward.29} parent=5 // pred_check_branch
      %127 = sbr.rel (%p125) target = $region24
    $region23: #{fcn16_forward.29} parent=5 // pred_region
      // Predicated region
      $region25: #{fcn16_forward.29} parent=23 // pred_check
        %p128 = pneg %p29
      $region26: #{fcn16_forward.29} parent=23 // pred_check_branch
        %130 = sbr.rel (%p128) target = $region28
      $region27: #{fcn16_forward.29} parent=23 // pred_region
        %p131 = scmp.lt.s32.totalorder %s9, 1
        %s132 = scalar_select %p131, %s9, 1
        %s133 = smul.addr %s132, 20
        %s134 = smul.addr %s133, 4
        %s135 = scalar_lea.vmem %s0, %s134
      $region28: #{fcn16_forward.29} parent=23 // pred_fallthru
        _
    $region24: #{fcn16_forward.29} parent=5 // pred_fallthru
      _
    %p136 = scmp.le.s32.totalorder 1, %s9
    %p137 = scmp.lt.s32.totalorder %s9, 3
    %p138 = pnand %p136, %p137
    %p139 = pneg %p138
    // Predicated region
    $region29: #{fcn16_forward.29} parent=5 // pred_check
      _
    $region30: #{fcn16_forward.29} parent=5 // pred_check_branch
      %141 = sbr.rel (%p138) target = $region32
    $region31: #{fcn16_forward.29} parent=5 // pred_region
      %s142 = ssub.s32 %s9, 1
      %p143 = scmp.lt.s32.totalorder %s14, 1
      %s144 = scalar_select %p143, %s14, 1
      %s145 = smul.addr %s144, 20
      %s146 = smul.addr %s145, 4
      %s147 = scalar_lea.vmem %s0, %s146
      %p148 = pneg %p35
      %p149 = pneg %p32
      %p150 = pneg %p56
      %p151 = pneg %p53
      %p152 = pneg %p77
      %p153 = pneg %p74
      %p154 = pneg %p103
      %p155 = pneg %p100
      %p156 = scmp.lt.s32.totalorder %s14, 1
      %s157 = scalar_select %p156, %s14, 1
      %s158 = smul.addr %s157, 8
      %s159 = smul.addr %s158, 4
      %s160 = scalar_lea.vmem %s3, %s159
      %p161 = scmp.lt.s32.totalorder %s14, 1
      %s162 = scalar_select %p161, %s14, 1
      %s163 = smul.addr %s162, 20
      %s164 = smul.addr %s163, 4
      %s165 = scalar_lea.vmem %s0, %s164
      %p166 = scmp.lt.s32.totalorder %s14, 1
      %s167 = scalar_select %p166, %s14, 1
      %s168 = smul.addr %s167, 8
      %s169 = smul.addr %s168, 4
      %s170 = scalar_lea.vmem %s3, %s169
      loop: start=0, step=1, limit=8
      $region33: #{fcn16_forward.29} parent=31 // loop_pre_header
        _
      $region34: #{fcn16_forward.29} parent=31 // loop_header
        %s173 = sphi 0, %s177
        %p174 = scmp.ge.s32.totalorder %s173, 8
      $region35: #{fcn16_forward.29} parent=31 // loop_header_branch
        %176 = sbr.rel (%p174) target = $region39
      $region36: #{fcn16_forward.29} parent=31 // loop_body
        %s178 = smul.u32 %s173, 2
        %s179 = smul.addr %s178, 4
        %s180 = scalar_lea.vmem %s165, %s179
        %v181 = vld [vmem:[%s180] sm:$0xf]
        %v182 = vld [vmem:[%s180 + $0x4] sm:$0x1]
        %s183 = sadd.s32 %s173, 1
        %s184 = smul.u32 %s183, 2
        %s185 = smul.addr %s184, 4
        %s186 = scalar_lea.vmem %s165, %s185
        %v187 = vld [vmem:[%s186] sm:$0xf]
        %v188 = vld [vmem:[%s186 + $0x4] sm:$0x1]
        %s189 = sadd.s32 %s173, 2
        %s190 = smul.u32 %s189, 2
        %s191 = smul.addr %s190, 4
        %s192 = scalar_lea.vmem %s165, %s191
        %v193 = vld [vmem:[%s192] sm:$0xf]
        %v194 = vld [vmem:[%s192 + $0x4] sm:$0x1]
        %v197 = vunpack.c.l.b16 %v181
        %v198 = vunpack.c.l.b16 %v182
        %v199 = vpack.c.b16 %v198, %v197
        %v201 = vshrl.u32 %v199, 16
        %v203 = vshll.u32 %v199, 16
        %v205 = vrot.slane %v203, 1
        %v206 = vor.u32 %v201, %v205
        %v208 = vrot.slane %v199, 1
        %v212 = vunpack.c.l.b16 %v187
        %v213 = vunpack.c.l.b16 %v188
        %v214 = vpack.c.b16 %v213, %v212
        %v216 = vshrl.u32 %v214, 16
        %v218 = vshll.u32 %v214, 16
        %v220 = vrot.slane %v218, 1
        %v221 = vor.u32 %v216, %v220
        %v223 = vrot.slane %v214, 1
        %v227 = vunpack.c.l.b16 %v193
        %v228 = vunpack.c.l.b16 %v194
        %v229 = vpack.c.b16 %v228, %v227
        %v231 = vshrl.u32 %v229, 16
        %v233 = vshll.u32 %v229, 16
        %v235 = vrot.slane %v233, 1
        %v236 = vor.u32 %v231, %v235
        %v238 = vrot.slane %v229, 1
        %v240 = vld [vmem:[%s1] sm:$0xf]
        %v241 = vld [vmem:[%s1 + $0x4] sm:$0xf]
        %v242 = vld [vmem:[%s1 + $0x8] sm:$0xf]
        %v243 = vld [vmem:[%s1 + $0xc] sm:$0xf]
        %v244 = vld [vmem:[%s1 + $0x10] sm:$0xf]
        %v245 = vld [vmem:[%s1 + $0x14] sm:$0xf]
        %v246 = vld [vmem:[%s1 + $0x18] sm:$0xf]
        %v247 = vld [vmem:[%s1 + $0x1c] sm:$0xf]
        %v248 = vld [vmem:[%s1 + $0x20] sm:$0xf]
        %v249 = vld [vmem:[%s1 + $0x24] sm:$0xf]
        %v250 = vld [vmem:[%s1 + $0x28] sm:$0xf]
        %v251 = vld [vmem:[%s1 + $0x2c] sm:$0xf]
        %v252 = vld [vmem:[%s1 + $0x30] sm:$0xf]
        %v253 = vld [vmem:[%s1 + $0x34] sm:$0xf]
        %v254 = vld [vmem:[%s1 + $0x38] sm:$0xf]
        %v255 = vld [vmem:[%s1 + $0x3c] sm:$0xf]
        %v256 = vld [vmem:[%s1 + $0x40] sm:$0xf]
        %v257 = vld [vmem:[%s1 + $0x44] sm:$0xf]
        %v258 = vld [vmem:[%s1 + $0x48] sm:$0xf]
        %v259 = vld [vmem:[%s1 + $0x4c] sm:$0xf]
        %v260 = vld [vmem:[%s1 + $0x50] sm:$0xf]
        %v261 = vld [vmem:[%s1 + $0x54] sm:$0xf]
        %v262 = vld [vmem:[%s1 + $0x58] sm:$0xf]
        %v263 = vld [vmem:[%s1 + $0x5c] sm:$0xf]
        %v264 = vld [vmem:[%s1 + $0x60] sm:$0xf]
        %v265 = vld [vmem:[%s1 + $0x64] sm:$0xf]
        %v266 = vld [vmem:[%s1 + $0x68] sm:$0xf]
        %v267 = vld [vmem:[%s1 + $0x6c] sm:$0xf]
        %v268 = vld [vmem:[%s1 + $0x70] sm:$0xf]
        %v269 = vld [vmem:[%s1 + $0x74] sm:$0xf]
        %v270 = vld [vmem:[%s1 + $0x78] sm:$0xf]
        %v271 = vld [vmem:[%s1 + $0x7c] sm:$0xf]
        %v272 = vld [vmem:[%s1 + $0x80] sm:$0xf]
        %v273 = vld [vmem:[%s1 + $0x84] sm:$0xf]
        %v274 = vld [vmem:[%s1 + $0x88] sm:$0xf]
        %v275 = vld [vmem:[%s1 + $0x8c] sm:$0xf]
        %v276 = vld [vmem:[%s1 + $0x90] sm:$0xf]
        %v277 = vld [vmem:[%s1 + $0x94] sm:$0xf]
        %v278 = vld [vmem:[%s1 + $0x98] sm:$0xf]
        %v279 = vld [vmem:[%s1 + $0x9c] sm:$0xf]
        %v280 = vld [vmem:[%s1 + $0xa0] sm:$0xf]
        %v281 = vld [vmem:[%s1 + $0xa4] sm:$0xf]
        %v282 = vld [vmem:[%s1 + $0xa8] sm:$0xf]
        %v283 = vld [vmem:[%s1 + $0xac] sm:$0xf]
        %v284 = vld [vmem:[%s1 + $0xb0] sm:$0xf]
        %v285 = vld [vmem:[%s1 + $0xb4] sm:$0xf]
        %v286 = vld [vmem:[%s1 + $0xb8] sm:$0xf]
        %v287 = vld [vmem:[%s1 + $0xbc] sm:$0xf]
        %v288 = vld [vmem:[%s1 + $0xc0] sm:$0xf]
        %v289 = vld [vmem:[%s1 + $0xc4] sm:$0xf]
        %v290 = vld [vmem:[%s1 + $0xc8] sm:$0xf]
        %v291 = vld [vmem:[%s1 + $0xcc] sm:$0xf]
        %v292 = vld [vmem:[%s1 + $0xd0] sm:$0xf]
        %v293 = vld [vmem:[%s1 + $0xd4] sm:$0xf]
        %v294 = vld [vmem:[%s1 + $0xd8] sm:$0xf]
        %v295 = vld [vmem:[%s1 + $0xdc] sm:$0xf]
        %v296 = vld [vmem:[%s1 + $0xe0] sm:$0xf]
        %v297 = vld [vmem:[%s1 + $0xe4] sm:$0xf]
        %v298 = vld [vmem:[%s1 + $0xe8] sm:$0xf]
        %v299 = vld [vmem:[%s1 + $0xec] sm:$0xf]
        %v300 = vld [vmem:[%s1 + $0xf0] sm:$0xf]
        %v301 = vld [vmem:[%s1 + $0xf4] sm:$0xf]
        %v302 = vld [vmem:[%s1 + $0xf8] sm:$0xf]
        %v303 = vld [vmem:[%s1 + $0xfc] sm:$0xf]
        %v304 = vld [vmem:[%s1 + $0x100] sm:$0xf]
        %v305 = vld [vmem:[%s1 + $0x104] sm:$0xf]
        %v306 = vld [vmem:[%s1 + $0x108] sm:$0xf]
        %v307 = vld [vmem:[%s1 + $0x10c] sm:$0xf]
        %v308 = vld [vmem:[%s1 + $0x110] sm:$0xf]
        %v309 = vld [vmem:[%s1 + $0x114] sm:$0xf]
        %v310 = vld [vmem:[%s1 + $0x118] sm:$0xf]
        %v311 = vld [vmem:[%s1 + $0x11c] sm:$0xf]
        %v312 = vld [vmem:[%s1 + $0x120] sm:$0xf]
        %v313 = vld [vmem:[%s1 + $0x124] sm:$0xf]
        %v314 = vld [vmem:[%s1 + $0x128] sm:$0xf]
        %v315 = vld [vmem:[%s1 + $0x12c] sm:$0xf]
        %v316 = vld [vmem:[%s1 + $0x130] sm:$0xf]
        %v317 = vld [vmem:[%s1 + $0x134] sm:$0xf]
        %v318 = vld [vmem:[%s1 + $0x138] sm:$0xf]
        %v319 = vld [vmem:[%s1 + $0x13c] sm:$0xf]
        %v320 = vld [vmem:[%s1 + $0x140] sm:$0xf]
        %v321 = vld [vmem:[%s1 + $0x144] sm:$0xf]
        %v322 = vld [vmem:[%s1 + $0x148] sm:$0xf]
        %v323 = vld [vmem:[%s1 + $0x14c] sm:$0xf]
        %v324 = vld [vmem:[%s1 + $0x150] sm:$0xf]
        %v325 = vld [vmem:[%s1 + $0x154] sm:$0xf]
        %v326 = vld [vmem:[%s1 + $0x158] sm:$0xf]
        %v327 = vld [vmem:[%s1 + $0x15c] sm:$0xf]
        %v328 = vld [vmem:[%s1 + $0x160] sm:$0xf]
        %v329 = vld [vmem:[%s1 + $0x164] sm:$0xf]
        %v330 = vld [vmem:[%s1 + $0x168] sm:$0xf]
        %v331 = vld [vmem:[%s1 + $0x16c] sm:$0xf]
        %v332 = vld [vmem:[%s1 + $0x170] sm:$0xf]
        %v333 = vld [vmem:[%s1 + $0x174] sm:$0xf]
        %v334 = vld [vmem:[%s1 + $0x178] sm:$0xf]
        %v335 = vld [vmem:[%s1 + $0x17c] sm:$0xf]
        %v336 = vld [vmem:[%s1 + $0x180] sm:$0xf]
        %v337 = vld [vmem:[%s1 + $0x184] sm:$0xf]
        %v338 = vld [vmem:[%s1 + $0x188] sm:$0xf]
        %v339 = vld [vmem:[%s1 + $0x18c] sm:$0xf]
        %v340 = vld [vmem:[%s1 + $0x190] sm:$0xf]
        %v341 = vld [vmem:[%s1 + $0x194] sm:$0xf]
        %v342 = vld [vmem:[%s1 + $0x198] sm:$0xf]
        %v343 = vld [vmem:[%s1 + $0x19c] sm:$0xf]
        %v344 = vld [vmem:[%s1 + $0x1a0] sm:$0xf]
        %v345 = vld [vmem:[%s1 + $0x1a4] sm:$0xf]
        %v346 = vld [vmem:[%s1 + $0x1a8] sm:$0xf]
        %v347 = vld [vmem:[%s1 + $0x1ac] sm:$0xf]
        %v348 = vld [vmem:[%s1 + $0x1b0] sm:$0xf]
        %v349 = vld [vmem:[%s1 + $0x1b4] sm:$0xf]
        %v350 = vld [vmem:[%s1 + $0x1b8] sm:$0xf]
        %v351 = vld [vmem:[%s1 + $0x1bc] sm:$0xf]
        %v352 = vld [vmem:[%s1 + $0x1c0] sm:$0xf]
        %v353 = vld [vmem:[%s1 + $0x1c4] sm:$0xf]
        %v354 = vld [vmem:[%s1 + $0x1c8] sm:$0xf]
        %v355 = vld [vmem:[%s1 + $0x1cc] sm:$0xf]
        %v356 = vld [vmem:[%s1 + $0x1d0] sm:$0xf]
        %v357 = vld [vmem:[%s1 + $0x1d4] sm:$0xf]
        %v358 = vld [vmem:[%s1 + $0x1d8] sm:$0xf]
        %v359 = vld [vmem:[%s1 + $0x1dc] sm:$0xf]
        %v360 = vld [vmem:[%s1 + $0x1e0] sm:$0xf]
        %v361 = vld [vmem:[%s1 + $0x1e4] sm:$0xf]
        %v362 = vld [vmem:[%s1 + $0x1e8] sm:$0xf]
        %v363 = vld [vmem:[%s1 + $0x1ec] sm:$0xf]
        %v364 = vld [vmem:[%s1 + $0x1f0] sm:$0xf]
        %v365 = vld [vmem:[%s1 + $0x1f4] sm:$0xf]
        %v366 = vld [vmem:[%s1 + $0x1f8] sm:$0xf]
        %v367 = vld [vmem:[%s1 + $0x1fc] sm:$0xf]
        %v368 = vld [vmem:[%s1 + $0x200] sm:$0xf]
        %v369 = vld [vmem:[%s1 + $0x204] sm:$0xf]
        %v370 = vld [vmem:[%s1 + $0x208] sm:$0xf]
        %v371 = vld [vmem:[%s1 + $0x20c] sm:$0xf]
        %v372 = vld [vmem:[%s1 + $0x210] sm:$0xf]
        %v373 = vld [vmem:[%s1 + $0x214] sm:$0xf]
        %v374 = vld [vmem:[%s1 + $0x218] sm:$0xf]
        %v375 = vld [vmem:[%s1 + $0x21c] sm:$0xf]
        %v376 = vld [vmem:[%s1 + $0x220] sm:$0xf]
        %v377 = vld [vmem:[%s1 + $0x224] sm:$0xf]
        %v378 = vld [vmem:[%s1 + $0x228] sm:$0xf]
        %v379 = vld [vmem:[%s1 + $0x22c] sm:$0xf]
        %v380 = vld [vmem:[%s1 + $0x230] sm:$0xf]
        %v381 = vld [vmem:[%s1 + $0x234] sm:$0xf]
        %v382 = vld [vmem:[%s1 + $0x238] sm:$0xf]
        %v383 = vld [vmem:[%s1 + $0x23c] sm:$0xf]
        %v384 = vld [vmem:[%s2] sm:$0x1]
        %v386 = vlaneseq
        %v387 = vshrl.u32 %v386, 7
        %v388 = vsub.s32 0, %v387
        %v389 = vrot.slane %v384, %v388
        %v535 = vunpack.c.l.b16 %v240
        %v536 = vunpack.c.l.b16 %v241
        %v537 = vunpack.c.l.b16 %v242
        %v538 = vunpack.c.l.b16 %v243
        %v539 = vunpack.c.l.b16 %v244
        %v540 = vunpack.c.l.b16 %v245
        %v541 = vunpack.c.l.b16 %v246
        %v542 = vunpack.c.l.b16 %v247
        %v543 = vunpack.c.l.b16 %v248
        %v544 = vunpack.c.l.b16 %v249
        %v545 = vunpack.c.l.b16 %v250
        %v546 = vunpack.c.l.b16 %v251
        %v547 = vunpack.c.l.b16 %v252
        %v548 = vunpack.c.l.b16 %v253
        %v549 = vunpack.c.l.b16 %v254
        %v550 = vunpack.c.l.b16 %v255
        %v551 = vunpack.c.l.b16 %v256
        %v552 = vunpack.c.l.b16 %v257
        %v553 = vunpack.c.l.b16 %v258
        %v554 = vunpack.c.l.b16 %v259
        %v555 = vunpack.c.l.b16 %v260
        %v556 = vunpack.c.l.b16 %v261
        %v557 = vunpack.c.l.b16 %v262
        %v558 = vunpack.c.l.b16 %v263
        %v559 = vunpack.c.l.b16 %v264
        %v560 = vunpack.c.l.b16 %v265
        %v561 = vunpack.c.l.b16 %v266
        %v562 = vunpack.c.l.b16 %v267
        %v563 = vunpack.c.l.b16 %v268
        %v564 = vunpack.c.l.b16 %v269
        %v565 = vunpack.c.l.b16 %v270
        %v566 = vunpack.c.l.b16 %v271
        %v567 = vunpack.c.l.b16 %v272
        %v568 = vunpack.c.l.b16 %v273
        %v569 = vunpack.c.l.b16 %v274
        %v570 = vunpack.c.l.b16 %v275
        %v571 = vunpack.c.l.b16 %v276
        %v572 = vunpack.c.l.b16 %v277
        %v573 = vunpack.c.l.b16 %v278
        %v574 = vunpack.c.l.b16 %v279
        %v575 = vunpack.c.l.b16 %v280
        %v576 = vunpack.c.l.b16 %v281
        %v577 = vunpack.c.l.b16 %v282
        %v578 = vunpack.c.l.b16 %v283
        %v579 = vunpack.c.l.b16 %v284
        %v580 = vunpack.c.l.b16 %v285
        %v581 = vunpack.c.l.b16 %v286
        %v582 = vunpack.c.l.b16 %v287
        %v583 = vunpack.c.l.b16 %v288
        %v584 = vunpack.c.l.b16 %v289
        %v585 = vunpack.c.l.b16 %v290
        %v586 = vunpack.c.l.b16 %v291
        %v587 = vunpack.c.l.b16 %v292
        %v588 = vunpack.c.l.b16 %v293
        %v589 = vunpack.c.l.b16 %v294
        %v590 = vunpack.c.l.b16 %v295
        %v591 = vunpack.c.l.b16 %v296
        %v592 = vunpack.c.l.b16 %v297
        %v593 = vunpack.c.l.b16 %v298
        %v594 = vunpack.c.l.b16 %v299
        %v595 = vunpack.c.l.b16 %v300
        %v596 = vunpack.c.l.b16 %v301
        %v597 = vunpack.c.l.b16 %v302
        %v598 = vunpack.c.l.b16 %v303
        %v599 = vunpack.c.l.b16 %v304
        %v600 = vunpack.c.l.b16 %v305
        %v601 = vunpack.c.l.b16 %v306
        %v602 = vunpack.c.l.b16 %v307
        %v603 = vunpack.c.l.b16 %v308
        %v604 = vunpack.c.l.b16 %v309
        %v605 = vunpack.c.l.b16 %v310
        %v606 = vunpack.c.l.b16 %v311
        %v607 = vunpack.c.l.b16 %v312
        %v608 = vunpack.c.l.b16 %v313
        %v609 = vunpack.c.l.b16 %v314
        %v610 = vunpack.c.l.b16 %v315
        %v611 = vunpack.c.l.b16 %v316
        %v612 = vunpack.c.l.b16 %v317
        %v613 = vunpack.c.l.b16 %v318
        %v614 = vunpack.c.l.b16 %v319
        %v615 = vunpack.c.l.b16 %v320
        %v616 = vunpack.c.l.b16 %v321
        %v617 = vunpack.c.l.b16 %v322
        %v618 = vunpack.c.l.b16 %v323
        %v619 = vunpack.c.l.b16 %v324
        %v620 = vunpack.c.l.b16 %v325
        %v621 = vunpack.c.l.b16 %v326
        %v622 = vunpack.c.l.b16 %v327
        %v623 = vunpack.c.l.b16 %v328
        %v624 = vunpack.c.l.b16 %v329
        %v625 = vunpack.c.l.b16 %v330
        %v626 = vunpack.c.l.b16 %v331
        %v627 = vunpack.c.l.b16 %v332
        %v628 = vunpack.c.l.b16 %v333
        %v629 = vunpack.c.l.b16 %v334
        %v630 = vunpack.c.l.b16 %v335
        %v631 = vunpack.c.l.b16 %v336
        %v632 = vunpack.c.l.b16 %v337
        %v633 = vunpack.c.l.b16 %v338
        %v634 = vunpack.c.l.b16 %v339
        %v635 = vunpack.c.l.b16 %v340
        %v636 = vunpack.c.l.b16 %v341
        %v637 = vunpack.c.l.b16 %v342
        %v638 = vunpack.c.l.b16 %v343
        %v639 = vunpack.c.l.b16 %v344
        %v640 = vunpack.c.l.b16 %v345
        %v641 = vunpack.c.l.b16 %v346
        %v642 = vunpack.c.l.b16 %v347
        %v643 = vunpack.c.l.b16 %v348
        %v644 = vunpack.c.l.b16 %v349
        %v645 = vunpack.c.l.b16 %v350
        %v646 = vunpack.c.l.b16 %v351
        %v647 = vunpack.c.l.b16 %v352
        %v648 = vunpack.c.l.b16 %v353
        %v649 = vunpack.c.l.b16 %v354
        %v650 = vunpack.c.l.b16 %v355
        %v651 = vunpack.c.l.b16 %v356
        %v652 = vunpack.c.l.b16 %v357
        %v653 = vunpack.c.l.b16 %v358
        %v654 = vunpack.c.l.b16 %v359
        %v655 = vunpack.c.l.b16 %v360
        %v656 = vunpack.c.l.b16 %v361
        %v657 = vunpack.c.l.b16 %v362
        %v658 = vunpack.c.l.b16 %v363
        %v659 = vunpack.c.l.b16 %v364
        %v660 = vunpack.c.l.b16 %v365
        %v661 = vunpack.c.l.b16 %v366
        %v662 = vunpack.c.l.b16 %v367
        %v663 = vunpack.c.l.b16 %v368
        %v664 = vunpack.c.l.b16 %v369
        %v665 = vunpack.c.l.b16 %v370
        %v666 = vunpack.c.l.b16 %v371
        %v667 = vunpack.c.l.b16 %v372
        %v668 = vunpack.c.l.b16 %v373
        %v669 = vunpack.c.l.b16 %v374
        %v670 = vunpack.c.l.b16 %v375
        %v671 = vunpack.c.l.b16 %v376
        %v672 = vunpack.c.l.b16 %v377
        %v673 = vunpack.c.l.b16 %v378
        %v674 = vunpack.c.l.b16 %v379
        %v675 = vunpack.c.l.b16 %v380
        %v676 = vunpack.c.l.b16 %v381
        %v677 = vunpack.c.l.b16 %v382
        %v678 = vunpack.c.l.b16 %v383
        %v679 = vpack.c.b16 %v536, %v535
        %v680 = vpack.c.b16 %v538, %v537
        %v681 = vpack.c.b16 %v540, %v539
        %v682 = vpack.c.b16 %v542, %v541
        %v683 = vpack.c.b16 %v544, %v543
        %v684 = vpack.c.b16 %v546, %v545
        %v685 = vpack.c.b16 %v548, %v547
        %v686 = vpack.c.b16 %v550, %v549
        %v687 = vpack.c.b16 %v552, %v551
        %v688 = vpack.c.b16 %v554, %v553
        %v689 = vpack.c.b16 %v556, %v555
        %v690 = vpack.c.b16 %v558, %v557
        %v691 = vpack.c.b16 %v560, %v559
        %v692 = vpack.c.b16 %v562, %v561
        %v693 = vpack.c.b16 %v564, %v563
        %v694 = vpack.c.b16 %v566, %v565
        %v695 = vpack.c.b16 %v568, %v567
        %v696 = vpack.c.b16 %v570, %v569
        %v697 = vpack.c.b16 %v572, %v571
        %v698 = vpack.c.b16 %v574, %v573
        %v699 = vpack.c.b16 %v576, %v575
        %v700 = vpack.c.b16 %v578, %v577
        %v701 = vpack.c.b16 %v580, %v579
        %v702 = vpack.c.b16 %v582, %v581
        %v703 = vpack.c.b16 %v584, %v583
        %v704 = vpack.c.b16 %v586, %v585
        %v705 = vpack.c.b16 %v588, %v587
        %v706 = vpack.c.b16 %v590, %v589
        %v707 = vpack.c.b16 %v592, %v591
        %v708 = vpack.c.b16 %v594, %v593
        %v709 = vpack.c.b16 %v596, %v595
        %v710 = vpack.c.b16 %v598, %v597
        %v711 = vpack.c.b16 %v600, %v599
        %v712 = vpack.c.b16 %v602, %v601
        %v713 = vpack.c.b16 %v604, %v603
        %v714 = vpack.c.b16 %v606, %v605
        %v715 = vpack.c.b16 %v608, %v607
        %v716 = vpack.c.b16 %v610, %v609
        %v717 = vpack.c.b16 %v612, %v611
        %v718 = vpack.c.b16 %v614, %v613
        %v719 = vpack.c.b16 %v616, %v615
        %v720 = vpack.c.b16 %v618, %v617
        %v721 = vpack.c.b16 %v620, %v619
        %v722 = vpack.c.b16 %v622, %v621
        %v723 = vpack.c.b16 %v624, %v623
        %v724 = vpack.c.b16 %v626, %v625
        %v725 = vpack.c.b16 %v628, %v627
        %v726 = vpack.c.b16 %v630, %v629
        %v727 = vpack.c.b16 %v632, %v631
        %v728 = vpack.c.b16 %v634, %v633
        %v729 = vpack.c.b16 %v636, %v635
        %v730 = vpack.c.b16 %v638, %v637
        %v731 = vpack.c.b16 %v640, %v639
        %v732 = vpack.c.b16 %v642, %v641
        %v733 = vpack.c.b16 %v644, %v643
        %v734 = vpack.c.b16 %v646, %v645
        %v735 = vpack.c.b16 %v648, %v647
        %v736 = vpack.c.b16 %v650, %v649
        %v737 = vpack.c.b16 %v652, %v651
        %v738 = vpack.c.b16 %v654, %v653
        %v739 = vpack.c.b16 %v656, %v655
        %v740 = vpack.c.b16 %v658, %v657
        %v741 = vpack.c.b16 %v660, %v659
        %v742 = vpack.c.b16 %v662, %v661
        %v743 = vpack.c.b16 %v664, %v663
        %v744 = vpack.c.b16 %v666, %v665
        %v745 = vpack.c.b16 %v668, %v667
        %v746 = vpack.c.b16 %v670, %v669
        %v747 = vpack.c.b16 %v672, %v671
        %v748 = vpack.c.b16 %v674, %v673
        %v749 = vpack.c.b16 %v676, %v675
        %v750 = vpack.c.b16 %v678, %v677
        %823 = vmatprep.subr.bf16.mxu0 0
        %824 = vmatpush1.bf16.msra.mxu0 %v679
        %825 = vmatprep.subr.bf16.mxu0 0
        %826 = vmatpush1.bf16.msra.mxu0 %v680
        %827 = vmatprep.subr.bf16.mxu0 0
        %828 = vmatpush1.bf16.msra.mxu0 %v681
        %829 = vmatprep.subr.bf16.mxu0 0
        %830 = vmatpush1.bf16.msra.mxu0 %v682
        %831 = vmatprep.subr.bf16.mxu0 0
        %832 = vmatpush1.bf16.msra.mxu0 %v683
        %833 = vmatprep.subr.bf16.mxu0 0
        %834 = vmatpush1.bf16.msra.mxu0 %v684
        %835 = vmatprep.subr.bf16.mxu0 0
        %836 = vmatpush1.bf16.msra.mxu0 %v685
        %837 = vmatprep.subr.bf16.mxu0 0
        %838 = vmatpush1.bf16.msra.mxu0 %v686
        %839 = vmatprep.subr.bf16.mxu0 0
        %840 = vmatpush1.bf16.msra.mxu0 %v687
        %841 = vmatprep.subr.bf16.mxu0 0
        %842 = vmatpush1.bf16.msra.mxu0 %v688
        %843 = vmatprep.subr.bf16.mxu0 0
        %844 = vmatpush1.bf16.msra.mxu0 %v689
        %845 = vmatprep.subr.bf16.mxu0 0
        %846 = vmatpush1.bf16.msra.mxu0 %v690
        %847 = vmatprep.subr.bf16.mxu0 0
        %848 = vmatpush1.bf16.msra.mxu0 %v691
        %849 = vmatprep.subr.bf16.mxu0 0
        %850 = vmatpush1.bf16.msra.mxu0 %v692
        %851 = vmatprep.subr.bf16.mxu0 0
        %852 = vmatpush1.bf16.msra.mxu0 %v693
        %853 = vmatprep.subr.bf16.mxu0 0
        %854 = vmatpush1.bf16.msra.mxu0 %v694
        %855 = vmatprep.mubr.bf16.mxu0 %v206
        %856 = vmatmul.mubr.bf16.gmra.mrb[0].mxu0 %v181
        %v857 = vpop.f32.mrb[0].mxu0
        %v858 = vadd.f32 %v389, %v857
        %v859 = vpop.f32.mrb[0].mxu0
        %v860 = vpop.f32.mrb[0].mxu0
        %v861 = vpop.f32.mrb[0].mxu0
        %862 = vdwg.mxu0
        %863 = vmatprep.subr.bf16.mxu0 0
        %864 = vmatpush1.bf16.msra.mxu0 %v695
        %865 = vmatprep.subr.bf16.mxu0 0
        %866 = vmatpush1.bf16.msra.mxu0 %v696
        %867 = vmatprep.subr.bf16.mxu0 0
        %868 = vmatpush1.bf16.msra.mxu0 %v697
        %869 = vmatprep.subr.bf16.mxu0 0
        %870 = vmatpush1.bf16.msra.mxu0 %v698
        %871 = vmatprep.subr.bf16.mxu0 0
        %872 = vmatpush1.bf16.msra.mxu0 %v699
        %873 = vmatprep.subr.bf16.mxu0 0
        %874 = vmatpush1.bf16.msra.mxu0 %v700
        %875 = vmatprep.subr.bf16.mxu0 0
        %876 = vmatpush1.bf16.msra.mxu0 %v701
        %877 = vmatprep.subr.bf16.mxu0 0
        %878 = vmatpush1.bf16.msra.mxu0 %v702
        %879 = vmatprep.subr.bf16.mxu0 0
        %880 = vmatpush1.bf16.msra.mxu0 %v703
        %881 = vmatprep.subr.bf16.mxu0 0
        %882 = vmatpush1.bf16.msra.mxu0 %v704
        %883 = vmatprep.subr.bf16.mxu0 0
        %884 = vmatpush1.bf16.msra.mxu0 %v705
        %885 = vmatprep.subr.bf16.mxu0 0
        %886 = vmatpush1.bf16.msra.mxu0 %v706
        %887 = vmatprep.subr.bf16.mxu0 0
        %888 = vmatpush1.bf16.msra.mxu0 %v707
        %889 = vmatprep.subr.bf16.mxu0 0
        %890 = vmatpush1.bf16.msra.mxu0 %v708
        %891 = vmatprep.subr.bf16.mxu0 0
        %892 = vmatpush1.bf16.msra.mxu0 %v709
        %893 = vmatprep.subr.bf16.mxu0 0
        %894 = vmatpush1.bf16.msra.mxu0 %v710
        %895 = vmatprep.mubr.bf16.mxu0 %v187
        %896 = vmatmul.mubr.bf16.gmra.mrb[0].mxu0 %v208
        %v897 = vpop.f32.mrb[0].mxu0
        %v898 = vadd.f32 %v858, %v897
        %v899 = vpop.f32.mrb[0].mxu0
        %v900 = vpop.f32.mrb[0].mxu0
        %v901 = vpop.f32.mrb[0].mxu0
        %902 = vdwg.mxu0
        %903 = vmatprep.subr.bf16.mxu0 0
        %904 = vmatpush1.bf16.msra.mxu0 %v711
        %905 = vmatprep.subr.bf16.mxu0 0
        %906 = vmatpush1.bf16.msra.mxu0 %v712
        %907 = vmatprep.subr.bf16.mxu0 0
        %908 = vmatpush1.bf16.msra.mxu0 %v713
        %909 = vmatprep.subr.bf16.mxu0 0
        %910 = vmatpush1.bf16.msra.mxu0 %v714
        %911 = vmatprep.subr.bf16.mxu0 0
        %912 = vmatpush1.bf16.msra.mxu0 %v715
        %913 = vmatprep.subr.bf16.mxu0 0
        %914 = vmatpush1.bf16.msra.mxu0 %v716
        %915 = vmatprep.subr.bf16.mxu0 0
        %916 = vmatpush1.bf16.msra.mxu0 %v717
        %917 = vmatprep.subr.bf16.mxu0 0
        %918 = vmatpush1.bf16.msra.mxu0 %v718
        %919 = vmatprep.subr.bf16.mxu0 0
        %920 = vmatpush1.bf16.msra.mxu0 %v719
        %921 = vmatprep.subr.bf16.mxu0 0
        %922 = vmatpush1.bf16.msra.mxu0 %v720
        %923 = vmatprep.subr.bf16.mxu0 0
        %924 = vmatpush1.bf16.msra.mxu0 %v721
        %925 = vmatprep.subr.bf16.mxu0 0
        %926 = vmatpush1.bf16.msra.mxu0 %v722
        %927 = vmatprep.subr.bf16.mxu0 0
        %928 = vmatpush1.bf16.msra.mxu0 %v723
        %929 = vmatprep.subr.bf16.mxu0 0
        %930 = vmatpush1.bf16.msra.mxu0 %v724
        %931 = vmatprep.subr.bf16.mxu0 0
        %932 = vmatpush1.bf16.msra.mxu0 %v725
        %933 = vmatprep.subr.bf16.mxu0 0
        %934 = vmatpush1.bf16.msra.mxu0 %v726
        %935 = vmatprep.mubr.bf16.mxu0 %v223
        %936 = vmatmul.mubr.bf16.gmra.mrb[0].mxu0 %v221
        %v937 = vpop.f32.mrb[0].mxu0
        %v938 = vadd.f32 %v898, %v937
        %v939 = vpop.f32.mrb[0].mxu0
        %v940 = vpop.f32.mrb[0].mxu0
        %v941 = vpop.f32.mrb[0].mxu0
        %942 = vdwg.mxu0
        %943 = vmatprep.subr.bf16.mxu0 0
        %944 = vmatpush1.bf16.msra.mxu0 %v727
        %945 = vmatprep.subr.bf16.mxu0 0
        %946 = vmatpush1.bf16.msra.mxu0 %v728
        %947 = vmatprep.subr.bf16.mxu0 0
        %948 = vmatpush1.bf16.msra.mxu0 %v729
        %949 = vmatprep.subr.bf16.mxu0 0
        %950 = vmatpush1.bf16.msra.mxu0 %v730
        %951 = vmatprep.subr.bf16.mxu0 0
        %952 = vmatpush1.bf16.msra.mxu0 %v731
        %953 = vmatprep.subr.bf16.mxu0 0
        %954 = vmatpush1.bf16.msra.mxu0 %v732
        %955 = vmatprep.subr.bf16.mxu0 0
        %956 = vmatpush1.bf16.msra.mxu0 %v733
        %957 = vmatprep.subr.bf16.mxu0 0
        %958 = vmatpush1.bf16.msra.mxu0 %v734
        %959 = vmatprep.subr.bf16.mxu0 0
        %960 = vmatpush1.bf16.msra.mxu0 %v735
        %961 = vmatprep.subr.bf16.mxu0 0
        %962 = vmatpush1.bf16.msra.mxu0 %v736
        %963 = vmatprep.subr.bf16.mxu0 0
        %964 = vmatpush1.bf16.msra.mxu0 %v737
        %965 = vmatprep.subr.bf16.mxu0 0
        %966 = vmatpush1.bf16.msra.mxu0 %v738
        %967 = vmatprep.subr.bf16.mxu0 0
        %968 = vmatpush1.bf16.msra.mxu0 %v739
        %969 = vmatprep.subr.bf16.mxu0 0
        %970 = vmatpush1.bf16.msra.mxu0 %v740
        %971 = vmatprep.subr.bf16.mxu0 0
        %972 = vmatpush1.bf16.msra.mxu0 %v741
        %973 = vmatprep.subr.bf16.mxu0 0
        %974 = vmatpush1.bf16.msra.mxu0 %v742
        %975 = vmatprep.mubr.bf16.mxu0 %v236
        %976 = vmatmul.mubr.bf16.gmra.mrb[0].mxu0 %v193
        %v977 = vpop.f32.mrb[0].mxu0
        %v978 = vadd.f32 %v938, %v977
        %v979 = vpop.f32.mrb[0].mxu0
        %v980 = vpop.f32.mrb[0].mxu0
        %v981 = vpop.f32.mrb[0].mxu0
        %982 = vdwg.mxu0
        %983 = vmatprep.subr.bf16.mxu0 0
        %984 = vmatpush1.bf16.msra.mxu0 %v743
        %985 = vmatprep.subr.bf16.mxu0 0
        %986 = vmatpush1.bf16.msra.mxu0 %v744
        %987 = vmatprep.subr.bf16.mxu0 0
        %988 = vmatpush1.bf16.msra.mxu0 %v745
        %989 = vmatprep.subr.bf16.mxu0 0
        %990 = vmatpush1.bf16.msra.mxu0 %v746
        %991 = vmatprep.subr.bf16.mxu0 0
        %992 = vmatpush1.bf16.msra.mxu0 %v747
        %993 = vmatprep.subr.bf16.mxu0 0
        %994 = vmatpush1.bf16.msra.mxu0 %v748
        %995 = vmatprep.subr.bf16.mxu0 0
        %996 = vmatpush1.bf16.msra.mxu0 %v749
        %997 = vmatprep.subr.bf16.mxu0 0
        %998 = vmatpush1.bf16.msra.mxu0 %v750
        %999 = vmatprep.subr.bf16.mxu0 0
        %1000 = vmatpush1.bf16.msra.mxu0 0
        %1001 = vmatprep.subr.bf16.mxu0 0
        %1002 = vmatpush1.bf16.msra.mxu0 0
        %1003 = vmatprep.subr.bf16.mxu0 0
        %1004 = vmatpush1.bf16.msra.mxu0 0
        %1005 = vmatprep.subr.bf16.mxu0 0
        %1006 = vmatpush1.bf16.msra.mxu0 0
        %1007 = vmatprep.subr.bf16.mxu0 0
        %1008 = vmatpush1.bf16.msra.mxu0 0
        %1009 = vmatprep.subr.bf16.mxu0 0
        %1010 = vmatpush1.bf16.msra.mxu0 0
        %1011 = vmatprep.subr.bf16.mxu0 0
        %1012 = vmatpush1.bf16.msra.mxu0 0
        %1013 = vmatprep.subr.bf16.mxu0 0
        %1014 = vmatpush1.bf16.msra.mxu0 0
        %1015 = vmatprep.mubr.bf16.mxu0 0
        %1016 = vmatmul.mubr.bf16.gmra.mrb[0].mxu0 %v238
        %v1017 = vpop.f32.mrb[0].mxu0
        %v1018 = vadd.f32 %v978, %v1017
        %v1019 = vpop.f32.mrb[0].mxu0
        %v1020 = vpop.f32.mrb[0].mxu0
        %v1021 = vpop.f32.mrb[0].mxu0
        %1022 = vdwg.mxu0
        %v1023 = vmax.f32 %v1018, 0.0
        %v1024 = vpack.c.bf16 %v1023, %v1023
        %s1025 = smul.addr %s173, 4
        %s1026 = scalar_lea.vmem %s170, %s1025
        %1027 = vst [vmem:[%s1026] sm:$0xf] %v1024
      $region37: #{fcn16_forward.29} parent=31 // loop_footer
        %s177 = sadd.s32 1, %s173
      $region38: #{fcn16_forward.29} parent=31 // loop_footer_branch
        %172 = sbr.rel target = $region34
      $region39: #{fcn16_forward.29} parent=31 // loop_exit
        _
      %p1028 = scmp.lt.s32.totalorder %s14, 1
      %s1029 = scalar_select %p1028, %s14, 1
      %s1030 = smul.addr %s1029, 8
      %s1031 = smul.addr %s1030, 4
      %s1032 = scalar_lea.vmem %s3, %s1031
      // Predicated region
      $region40: #{fcn16_forward.29} parent=31 // pred_check
        %p1033 = pneg %p100
      $region41: #{fcn16_forward.29} parent=31 // pred_check_branch
        %1035 = sbr.rel (%p1033) target = $region43
      $region42: #{fcn16_forward.29} parent=31 // pred_region
        _
      $region43: #{fcn16_forward.29} parent=31 // pred_fallthru
        _
    $region32: #{fcn16_forward.29} parent=5 // pred_fallthru
      _
    %p1036 = scmp.le.s32.totalorder 2, %s9
    // Predicated region
    $region44: #{fcn16_forward.29} parent=5 // pred_check
      %p1037 = pneg %p1036
    $region45: #{fcn16_forward.29} parent=5 // pred_check_branch
      %1039 = sbr.rel (%p1037) target = $region47
    $region46: #{fcn16_forward.29} parent=5 // pred_region
      %s1040 = ssub.s32 %s9, 2
      // Predicated region
      $region48: #{fcn16_forward.29} parent=46 // pred_check
        %p1041 = pneg %p106
      $region49: #{fcn16_forward.29} parent=46 // pred_check_branch
        %1043 = sbr.rel (%p1041) target = $region51
      $region50: #{fcn16_forward.29} parent=46 // pred_region
        %p1044 = scmp.lt.s32.totalorder %s15, 1
        %s1045 = scalar_select %p1044, %s15, 1
        %s1046 = smul.addr %s1045, 8
        %s1047 = smul.addr %s1046, 4
        %s1048 = scalar_lea.vmem %s3, %s1047
      $region51: #{fcn16_forward.29} parent=46 // pred_fallthru
        _
    $region47: #{fcn16_forward.29} parent=5 // pred_fallthru
      _
  $region6: #{fcn16_forward.29} parent=0 // loop_footer
    %s13 = sadd.s32 1, %s9
  $region7: #{fcn16_forward.29} parent=0 // loop_footer_branch
    %8 = sbr.rel target = $region3
  $region8: #{fcn16_forward.29} parent=0 // loop_exit
    _

// kernel: fcn16_forward.32
$region0: #{fcn16_forward.32}
  #allocation0 [shape = 'u32[]', space=smem, size = 0x4, offset = 0x4, fixed_abs, tag = 'smem constant byte address 0x4 - core index']
  #allocation1 [shape = 'u32[144,128]{1,0:T(1,128)}', space=vmem, size = 0x12000, scoped, tag = 'internal scratch']
  %s0 = inlined_call_operand.vmem [shape: bf16[2,8,4,256], index: 0, kind: input, shape index: {}]
  %s1 = inlined_call_operand.vmem [shape: bf16[2,4,4,128], index: 1, kind: output, shape index: {}]
  %s2 = sld [smem:[#allocation0]]
  $region37: #{fcn16_forward.32} parent=0
    _
  %s4 = ssub.s32 1, %s2
  %s5 = scalar_select 0, %s4, %s2
  loop: start=0, step=1, limit=4
  $region2: #{fcn16_forward.32} parent=0 // loop_pre_header
    _
  $region3: #{fcn16_forward.32} parent=0 // loop_header
    %s7 = sphi 0, %s11
    %p8 = scmp.ge.s32.totalorder %s7, 4
    %s17 = sphi 0, %s19
    %s20 = sphi 0, %s17
    %s21 = sphi 0, %s20
    %s37 = sphi 0, %s21
    %s43 = sphi 0, %s45
    %s46 = sphi 0, %s43
    %s47 = sphi 0, %s46
    %s63 = sphi 0, %s47
  $region4: #{fcn16_forward.32} parent=0 // loop_header_branch
    %10 = sbr.rel (%p8) target = $region8
  $region5: #{fcn16_forward.32} parent=0 // loop_body
    %s12 = ssub.s32 %s7, 1
    %s13 = ssub.s32 %s7, 2
    %s14 = sadd.s32 %s7, 1
    %s15 = ssub.s32 %s7, %s14
    %p16 = scmp.eq.s32.totalorder %s15, 0
    %s18 = sadd.s32 %s17, 1
    %s19 = scalar_select %p16, %s17, %s18
    %p22 = pneg %p16
    %p23 = scmp.eq.s32.totalorder %s7, 1
    %p24 = por %p22, %p23
    %p25 = scmp.ne.s32.totalorder %s17, %s20
    %p26 = scmp.eq.s32.totalorder %s7, 0
    %p27 = por %p25, %p26
    %p28 = scmp.ne.s32.totalorder %s17, %s20
    %p29 = scmp.eq.s32.totalorder %s12, 1
    %p30 = por %p28, %p29
    %p31 = scmp.ne.s32.totalorder %s20, %s21
    %p32 = scmp.eq.s32.totalorder %s12, 0
    %p33 = por %p31, %p32
    %p34 = scmp.ne.s32.totalorder %s20, %s21
    %p35 = scmp.eq.s32.totalorder %s13, 1
    %p36 = por %p34, %p35
    %p38 = scmp.ne.s32.totalorder %s21, %s37
    %p39 = scmp.eq.s32.totalorder %s13, 0
    %p40 = por %p38, %p39
    %s41 = ssub.s32 %s7, %s14
    %p42 = scmp.eq.s32.totalorder %s41, 0
    %s44 = sadd.s32 %s43, 1
    %s45 = scalar_select %p42, %s43, %s44
    %p48 = pneg %p42
    %p49 = scmp.eq.s32.totalorder %s7, 1
    %p50 = por %p48, %p49
    %p51 = scmp.ne.s32.totalorder %s43, %s46
    %p52 = scmp.eq.s32.totalorder %s7, 0
    %p53 = por %p51, %p52
    %p54 = scmp.ne.s32.totalorder %s43, %s46
    %p55 = scmp.eq.s32.totalorder %s12, 1
    %p56 = por %p54, %p55
    %p57 = scmp.ne.s32.totalorder %s46, %s47
    %p58 = scmp.eq.s32.totalorder %s12, 0
    %p59 = por %p57, %p58
    %p60 = scmp.ne.s32.totalorder %s46, %s47
    %p61 = scmp.eq.s32.totalorder %s13, 1
    %p62 = por %p60, %p61
    %p64 = scmp.ne.s32.totalorder %s47, %s63
    %p65 = scmp.eq.s32.totalorder %s13, 0
    %p66 = por %p64, %p65
    %p67 = scmp.le.s32.totalorder 1, %s7
    %p68 = scmp.lt.s32.totalorder %s7, 3
    %p69 = pnand %p67, %p68
    %p70 = pneg %p69
    // Predicated region
    $region9: #{fcn16_forward.32} parent=5 // pred_check
      _
    $region10: #{fcn16_forward.32} parent=5 // pred_check_branch
      %72 = sbr.rel (%p69) target = $region12
    $region11: #{fcn16_forward.32} parent=5 // pred_region
      %s73 = ssub.s32 %s7, 1
    $region12: #{fcn16_forward.32} parent=5 // pred_fallthru
      _
    %p74 = scmp.lt.s32.totalorder %s7, 2
    // Predicated region
    $region13: #{fcn16_forward.32} parent=5 // pred_check
      %p75 = pneg %p74
    $region14: #{fcn16_forward.32} parent=5 // pred_check_branch
      %77 = sbr.rel (%p75) target = $region16
    $region15: #{fcn16_forward.32} parent=5 // pred_region
      // Predicated region
      $region17: #{fcn16_forward.32} parent=15 // pred_check
        %p78 = pneg %p27
      $region18: #{fcn16_forward.32} parent=15 // pred_check_branch
        %80 = sbr.rel (%p78) target = $region20
      $region19: #{fcn16_forward.32} parent=15 // pred_region
        %p81 = scmp.lt.s32.totalorder %s7, 1
        %s82 = scalar_select %p81, %s7, 1
        %s83 = smul.addr %s82, 16
        %s84 = smul.addr %s83, 2
        %s85 = scalar_lea.vmem %s0, %s84
      $region20: #{fcn16_forward.32} parent=15 // pred_fallthru
        _
    $region16: #{fcn16_forward.32} parent=5 // pred_fallthru
      _
    %p86 = scmp.le.s32.totalorder 1, %s7
    %p87 = scmp.lt.s32.totalorder %s7, 3
    %p88 = pnand %p86, %p87
    %p89 = pneg %p88
    // Predicated region
    $region21: #{fcn16_forward.32} parent=5 // pred_check
      _
    $region22: #{fcn16_forward.32} parent=5 // pred_check_branch
      %91 = sbr.rel (%p88) target = $region24
    $region23: #{fcn16_forward.32} parent=5 // pred_region
      %s92 = ssub.s32 %s7, 1
      %p93 = scmp.lt.s32.totalorder %s12, 1
      %s94 = scalar_select %p93, %s12, 1
      %s95 = smul.addr %s94, 16
      %s96 = smul.addr %s95, 2
      %s97 = scalar_lea.vmem %s0, %s96
      %p98 = pneg %p33
      %p99 = pneg %p30
      %p100 = pneg %p59
      %p101 = pneg %p56
      %p102 = scmp.lt.s32.totalorder %s12, 1
      %s103 = scalar_select %p102, %s12, 1
      %s104 = smul.addr %s103, 4
      %s105 = smul.addr %s104, 2
      %s106 = scalar_lea.vmem %s1, %s105
      %p107 = scmp.lt.s32.totalorder %s12, 1
      %s108 = scalar_select %p107, %s12, 1
      %s109 = smul.addr %s108, 16
      %s110 = smul.addr %s109, 2
      %s111 = scalar_lea.vmem %s0, %s110
      %p112 = scmp.lt.s32.totalorder %s12, 1
      %s113 = scalar_select %p112, %s12, 1
      %s114 = smul.addr %s113, 4
      %s115 = smul.addr %s114, 2
      %s116 = scalar_lea.vmem %s1, %s115
      %v117 = vld [vmem:[%s111] sm:$0xf]
      %v118 = vld [vmem:[%s111 + $0x4] sm:$0xf]
      %v119 = vld [vmem:[%s111 + $0x8] sm:$0xf]
      %v120 = vld [vmem:[%s111 + $0xc] sm:$0xf]
      %v121 = vld [vmem:[%s111 + $0x10] sm:$0xf]
      %v122 = vld [vmem:[%s111 + $0x14] sm:$0xf]
      %v123 = vld [vmem:[%s111 + $0x18] sm:$0xf]
      %v124 = vld [vmem:[%s111 + $0x1c] sm:$0xf]
      %v125 = vmax.bf16 %v117, %v118
      %v126 = vmax.bf16 %v119, %v120
      %v127 = vmax.bf16 %v121, %v122
      %v128 = vmax.bf16 %v123, %v124
      %v133 = vrot.slane %v125, 2
      %v134 = vrot.slane %v126, 2
      %v135 = vrot.slane %v127, 2
      %v136 = vrot.slane %v128, 2
      %v141 = vmax.bf16 %v125, %v133
      %v142 = vmax.bf16 %v126, %v134
      %v143 = vmax.bf16 %v127, %v135
      %v144 = vmax.bf16 %v128, %v136
      %145 = vst [vmem:[%s116] sm:$0x3] %v141
      %146 = vst [vmem:[%s116 + $0x2] sm:$0x3] %v142
      %147 = vst [vmem:[%s116 + $0x4] sm:$0x3] %v143
      %148 = vst [vmem:[%s116 + $0x6] sm:$0x3] %v144
      %p149 = scmp.lt.s32.totalorder %s12, 1
      %s150 = scalar_select %p149, %s12, 1
      %s151 = smul.addr %s150, 4
      %s152 = smul.addr %s151, 2
      %s153 = scalar_lea.vmem %s1, %s152
      // Predicated region
      $region25: #{fcn16_forward.32} parent=23 // pred_check
        %p154 = pneg %p56
      $region26: #{fcn16_forward.32} parent=23 // pred_check_branch
        %156 = sbr.rel (%p154) target = $region28
      $region27: #{fcn16_forward.32} parent=23 // pred_region
        _
      $region28: #{fcn16_forward.32} parent=23 // pred_fallthru
        _
    $region24: #{fcn16_forward.32} parent=5 // pred_fallthru
      _
    %p157 = scmp.le.s32.totalorder 2, %s7
    // Predicated region
    $region29: #{fcn16_forward.32} parent=5 // pred_check
      %p158 = pneg %p157
    $region30: #{fcn16_forward.32} parent=5 // pred_check_branch
      %160 = sbr.rel (%p158) target = $region32
    $region31: #{fcn16_forward.32} parent=5 // pred_region
      %s161 = ssub.s32 %s7, 2
      // Predicated region
      $region33: #{fcn16_forward.32} parent=31 // pred_check
        %p162 = pneg %p62
      $region34: #{fcn16_forward.32} parent=31 // pred_check_branch
        %164 = sbr.rel (%p162) target = $region36
      $region35: #{fcn16_forward.32} parent=31 // pred_region
        %p165 = scmp.lt.s32.totalorder %s13, 1
        %s166 = scalar_select %p165, %s13, 1
        %s167 = smul.addr %s166, 4
        %s168 = smul.addr %s167, 2
        %s169 = scalar_lea.vmem %s1, %s168
      $region36: #{fcn16_forward.32} parent=31 // pred_fallthru
        _
    $region32: #{fcn16_forward.32} parent=5 // pred_fallthru
      _
  $region6: #{fcn16_forward.32} parent=0 // loop_footer
    %s11 = sadd.s32 1, %s7
  $region7: #{fcn16_forward.32} parent=0 // loop_footer_branch
    %6 = sbr.rel target = $region3
  $region8: #{fcn16_forward.32} parent=0 // loop_exit
    _

// kernel: fcn16_forward.36
$region0: #{fcn16_forward.36}
  #allocation0 [shape = 'u32[]', space=smem, size = 0x4, offset = 0x4, fixed_abs, tag = 'smem constant byte address 0x4 - core index']
  #allocation1 [shape = 'u32[144,128]{1,0:T(1,128)}', space=vmem, size = 0x12000, scoped, tag = 'internal scratch']
  %s0 = inlined_call_operand.vmem [shape: bf16[2,4,2,256], index: 0, kind: input, shape index: {}]
  %s1 = inlined_call_operand.vmem [shape: bf16[2,2,2,128], index: 1, kind: output, shape index: {}]
  %s2 = sld [smem:[#allocation0]]
  $region37: #{fcn16_forward.36} parent=0
    _
  %s4 = ssub.s32 1, %s2
  %s5 = scalar_select 0, %s4, %s2
  loop: start=0, step=1, limit=4
  $region2: #{fcn16_forward.36} parent=0 // loop_pre_header
    _
  $region3: #{fcn16_forward.36} parent=0 // loop_header
    %s7 = sphi 0, %s11
    %p8 = scmp.ge.s32.totalorder %s7, 4
    %s17 = sphi 0, %s19
    %s20 = sphi 0, %s17
    %s21 = sphi 0, %s20
    %s37 = sphi 0, %s21
    %s43 = sphi 0, %s45
    %s46 = sphi 0, %s43
    %s47 = sphi 0, %s46
    %s63 = sphi 0, %s47
  $region4: #{fcn16_forward.36} parent=0 // loop_header_branch
    %10 = sbr.rel (%p8) target = $region8
  $region5: #{fcn16_forward.36} parent=0 // loop_body
    %s12 = ssub.s32 %s7, 1
    %s13 = ssub.s32 %s7, 2
    %s14 = sadd.s32 %s7, 1
    %s15 = ssub.s32 %s7, %s14
    %p16 = scmp.eq.s32.totalorder %s15, 0
    %s18 = sadd.s32 %s17, 1
    %s19 = scalar_select %p16, %s17, %s18
    %p22 = pneg %p16
    %p23 = scmp.eq.s32.totalorder %s7, 1
    %p24 = por %p22, %p23
    %p25 = scmp.ne.s32.totalorder %s17, %s20
    %p26 = scmp.eq.s32.totalorder %s7, 0
    %p27 = por %p25, %p26
    %p28 = scmp.ne.s32.totalorder %s17, %s20
    %p29 = scmp.eq.s32.totalorder %s12, 1
    %p30 = por %p28, %p29
    %p31 = scmp.ne.s32.totalorder %s20, %s21
    %p32 = scmp.eq.s32.totalorder %s12, 0
    %p33 = por %p31, %p32
    %p34 = scmp.ne.s32.totalorder %s20, %s21
    %p35 = scmp.eq.s32.totalorder %s13, 1
    %p36 = por %p34, %p35
    %p38 = scmp.ne.s32.totalorder %s21, %s37
    %p39 = scmp.eq.s32.totalorder %s13, 0
    %p40 = por %p38, %p39
    %s41 = ssub.s32 %s7, %s14
    %p42 = scmp.eq.s32.totalorder %s41, 0
    %s44 = sadd.s32 %s43, 1
    %s45 = scalar_select %p42, %s43, %s44
    %p48 = pneg %p42
    %p49 = scmp.eq.s32.totalorder %s7, 1
    %p50 = por %p48, %p49
    %p51 = scmp.ne.s32.totalorder %s43, %s46
    %p52 = scmp.eq.s32.totalorder %s7, 0
    %p53 = por %p51, %p52
    %p54 = scmp.ne.s32.totalorder %s43, %s46
    %p55 = scmp.eq.s32.totalorder %s12, 1
    %p56 = por %p54, %p55
    %p57 = scmp.ne.s32.totalorder %s46, %s47
    %p58 = scmp.eq.s32.totalorder %s12, 0
    %p59 = por %p57, %p58
    %p60 = scmp.ne.s32.totalorder %s46, %s47
    %p61 = scmp.eq.s32.totalorder %s13, 1
    %p62 = por %p60, %p61
    %p64 = scmp.ne.s32.totalorder %s47, %s63
    %p65 = scmp.eq.s32.totalorder %s13, 0
    %p66 = por %p64, %p65
    %p67 = scmp.le.s32.totalorder 1, %s7
    %p68 = scmp.lt.s32.totalorder %s7, 3
    %p69 = pnand %p67, %p68
    %p70 = pneg %p69
    // Predicated region
    $region9: #{fcn16_forward.36} parent=5 // pred_check
      _
    $region10: #{fcn16_forward.36} parent=5 // pred_check_branch
      %72 = sbr.rel (%p69) target = $region12
    $region11: #{fcn16_forward.36} parent=5 // pred_region
      %s73 = ssub.s32 %s7, 1
    $region12: #{fcn16_forward.36} parent=5 // pred_fallthru
      _
    %p74 = scmp.lt.s32.totalorder %s7, 2
    // Predicated region
    $region13: #{fcn16_forward.36} parent=5 // pred_check
      %p75 = pneg %p74
    $region14: #{fcn16_forward.36} parent=5 // pred_check_branch
      %77 = sbr.rel (%p75) target = $region16
    $region15: #{fcn16_forward.36} parent=5 // pred_region
      // Predicated region
      $region17: #{fcn16_forward.36} parent=15 // pred_check
        %p78 = pneg %p27
      $region18: #{fcn16_forward.36} parent=15 // pred_check_branch
        %80 = sbr.rel (%p78) target = $region20
      $region19: #{fcn16_forward.36} parent=15 // pred_region
        %p81 = scmp.lt.s32.totalorder %s7, 1
        %s82 = scalar_select %p81, %s7, 1
        %s83 = smul.addr %s82, 8
        %s84 = scalar_lea.vmem %s0, %s83
      $region20: #{fcn16_forward.36} parent=15 // pred_fallthru
        _
    $region16: #{fcn16_forward.36} parent=5 // pred_fallthru
      _
    %p85 = scmp.le.s32.totalorder 1, %s7
    %p86 = scmp.lt.s32.totalorder %s7, 3
    %p87 = pnand %p85, %p86
    %p88 = pneg %p87
    // Predicated region
    $region21: #{fcn16_forward.36} parent=5 // pred_check
      _
    $region22: #{fcn16_forward.36} parent=5 // pred_check_branch
      %90 = sbr.rel (%p87) target = $region24
    $region23: #{fcn16_forward.36} parent=5 // pred_region
      %s91 = ssub.s32 %s7, 1
      %p92 = scmp.lt.s32.totalorder %s12, 1
      %s93 = scalar_select %p92, %s12, 1
      %s94 = smul.addr %s93, 8
      %s95 = scalar_lea.vmem %s0, %s94
      %p96 = pneg %p33
      %p97 = pneg %p30
      %p98 = pneg %p59
      %p99 = pneg %p56
      %p100 = scmp.lt.s32.totalorder %s12, 1
      %s101 = scalar_select %p100, %s12, 1
      %s102 = smul.addr %s101, 2
      %s103 = scalar_lea.vmem %s1, %s102
      %p104 = scmp.lt.s32.totalorder %s12, 1
      %s105 = scalar_select %p104, %s12, 1
      %s106 = smul.addr %s105, 8
      %s107 = scalar_lea.vmem %s0, %s106
      %p108 = scmp.lt.s32.totalorder %s12, 1
      %s109 = scalar_select %p108, %s12, 1
      %s110 = smul.addr %s109, 2
      %s111 = scalar_lea.vmem %s1, %s110
      %v112 = vld [vmem:[%s107] sm:$0x3]
      %v113 = vld [vmem:[%s107 + $0x2] sm:$0x3]
      %v114 = vld [vmem:[%s107 + $0x4] sm:$0x3]
      %v115 = vld [vmem:[%s107 + $0x6] sm:$0x3]
      %v116 = vmax.bf16 %v112, %v113
      %v117 = vmax.bf16 %v114, %v115
      %v120 = vrot.slane %v116, 1
      %v121 = vrot.slane %v117, 1
      %v124 = vmax.bf16 %v116, %v120
      %v125 = vmax.bf16 %v117, %v121
      %126 = vst [vmem:[%s111] sm:$0x1] %v124
      %127 = vst [vmem:[%s111 + $0x1] sm:$0x1] %v125
      %p128 = scmp.lt.s32.totalorder %s12, 1
      %s129 = scalar_select %p128, %s12, 1
      %s130 = smul.addr %s129, 2
      %s131 = scalar_lea.vmem %s1, %s130
      // Predicated region
      $region25: #{fcn16_forward.36} parent=23 // pred_check
        %p132 = pneg %p56
      $region26: #{fcn16_forward.36} parent=23 // pred_check_branch
        %134 = sbr.rel (%p132) target = $region28
      $region27: #{fcn16_forward.36} parent=23 // pred_region
        _
      $region28: #{fcn16_forward.36} parent=23 // pred_fallthru
        _
    $region24: #{fcn16_forward.36} parent=5 // pred_fallthru
      _
    %p135 = scmp.le.s32.totalorder 2, %s7
    // Predicated region
    $region29: #{fcn16_forward.36} parent=5 // pred_check
      %p136 = pneg %p135
    $region30: #{fcn16_forward.36} parent=5 // pred_check_branch
      %138 = sbr.rel (%p136) target = $region32
    $region31: #{fcn16_forward.36} parent=5 // pred_region
      %s139 = ssub.s32 %s7, 2
      // Predicated region
      $region33: #{fcn16_forward.36} parent=31 // pred_check
        %p140 = pneg %p62
      $region34: #{fcn16_forward.36} parent=31 // pred_check_branch
        %142 = sbr.rel (%p140) target = $region36
      $region35: #{fcn16_forward.36} parent=31 // pred_region
        %p143 = scmp.lt.s32.totalorder %s13, 1
        %s144 = scalar_select %p143, %s13, 1
        %s145 = smul.addr %s144, 2
        %s146 = scalar_lea.vmem %s1, %s145
      $region36: #{fcn16_forward.36} parent=31 // pred_fallthru
        _
    $region32: #{fcn16_forward.36} parent=5 // pred_fallthru
      _
  $region6: #{fcn16_forward.36} parent=0 // loop_footer
    %s11 = sadd.s32 1, %s7
  $region7: #{fcn16_forward.36} parent=0 // loop_footer_branch
    %6 = sbr.rel target = $region3
  $region8: #{fcn16_forward.36} parent=0 // loop_exit
    _

// kernel: fcn16_forward.33
$region0: #{fcn16_forward.33}
  #allocation0 [shape = 'u32[]', space=smem, size = 0x4, offset = 0x4, fixed_abs, tag = 'smem constant byte address 0x4 - core index']
  #allocation1 [shape = 'u32[144,128]{1,0:T(1,128)}', space=vmem, size = 0x12000, scoped, tag = 'internal scratch']
  %s0 = inlined_call_operand.vmem [shape: bf16[2,6,6,128], index: 0, kind: input, shape index: {}]
  %s1 = inlined_call_operand.vmem [shape: bf16[1152,128], index: 1, kind: input, shape index: {}]
  %s2 = inlined_call_operand.vmem [shape: f32[1,128], index: 2, kind: input, shape index: {}]
  %s3 = inlined_call_operand.vmem [shape: bf16[2,4,4,128], index: 3, kind: output, shape index: {}]
  %s4 = sld [smem:[#allocation0]]
  $region52: #{fcn16_forward.33} parent=0
    _
  %s6 = ssub.s32 1, %s4
  %s7 = scalar_select 0, %s6, %s4
  loop: start=0, step=1, limit=4
  $region2: #{fcn16_forward.33} parent=0 // loop_pre_header
    _
  $region3: #{fcn16_forward.33} parent=0 // loop_header
    %s9 = sphi 0, %s13
    %p10 = scmp.ge.s32.totalorder %s9, 4
    %s19 = sphi 0, %s21
    %s22 = sphi 0, %s19
    %s23 = sphi 0, %s22
    %s39 = sphi 0, %s23
    %s43 = sphi 0, %s43
    %s45 = sphi 0, %s43
    %s46 = sphi 0, %s45
    %s60 = sphi 0, %s46
    %s64 = sphi 0, %s64
    %s66 = sphi 0, %s64
    %s67 = sphi 0, %s66
    %s81 = sphi 0, %s67
    %s87 = sphi 0, %s89
    %s90 = sphi 0, %s87
    %s91 = sphi 0, %s90
    %s107 = sphi 0, %s91
  $region4: #{fcn16_forward.33} parent=0 // loop_header_branch
    %12 = sbr.rel (%p10) target = $region8
  $region5: #{fcn16_forward.33} parent=0 // loop_body
    %s14 = ssub.s32 %s9, 1
    %s15 = ssub.s32 %s9, 2
    %s16 = sadd.s32 %s9, 1
    %s17 = ssub.s32 %s9, %s16
    %p18 = scmp.eq.s32.totalorder %s17, 0
    %s20 = sadd.s32 %s19, 1
    %s21 = scalar_select %p18, %s19, %s20
    %p24 = pneg %p18
    %p25 = scmp.eq.s32.totalorder %s9, 1
    %p26 = por %p24, %p25
    %p27 = scmp.ne.s32.totalorder %s19, %s22
    %p28 = scmp.eq.s32.totalorder %s9, 0
    %p29 = por %p27, %p28
    %p30 = scmp.ne.s32.totalorder %s19, %s22
    %p31 = scmp.eq.s32.totalorder %s14, 1
    %p32 = por %p30, %p31
    %p33 = scmp.ne.s32.totalorder %s22, %s23
    %p34 = scmp.eq.s32.totalorder %s14, 0
    %p35 = por %p33, %p34
    %p36 = scmp.ne.s32.totalorder %s22, %s23
    %p37 = scmp.eq.s32.totalorder %s15, 1
    %p38 = por %p36, %p37
    %p40 = scmp.ne.s32.totalorder %s23, %s39
    %p41 = scmp.eq.s32.totalorder %s15, 0
    %p42 = por %p40, %p41
    %s44 = sadd.s32 %s43, 1
    %p47 = scmp.eq.s32.totalorder %s9, 1
    %p48 = scmp.ne.s32.totalorder %s43, %s45
    %p49 = scmp.eq.s32.totalorder %s9, 0
    %p50 = por %p48, %p49
    %p51 = scmp.ne.s32.totalorder %s43, %s45
    %p52 = scmp.eq.s32.totalorder %s14, 1
    %p53 = por %p51, %p52
    %p54 = scmp.ne.s32.totalorder %s45, %s46
    %p55 = scmp.eq.s32.totalorder %s14, 0
    %p56 = por %p54, %p55
    %p57 = scmp.ne.s32.totalorder %s45, %s46
    %p58 = scmp.eq.s32.totalorder %s15, 1
    %p59 = por %p57, %p58
    %p61 = scmp.ne.s32.totalorder %s46, %s60
    %p62 = scmp.eq.s32.totalorder %s15, 0
    %p63 = por %p61, %p62
    %s65 = sadd.s32 %s64, 1
    %p68 = scmp.eq.s32.totalorder %s9, 1
    %p69 = scmp.ne.s32.totalorder %s64, %s66
    %p70 = scmp.eq.s32.totalorder %s9, 0
    %p71 = por %p69, %p70
    %p72 = scmp.ne.s32.totalorder %s64, %s66
    %p73 = scmp.eq.s32.totalorder %s14, 1
    %p74 = por %p72, %p73
    %p75 = scmp.ne.s32.totalorder %s66, %s67
    %p76 = scmp.eq.s32.totalorder %s14, 0
    %p77 = por %p75, %p76
    %p78 = scmp.ne.s32.totalorder %s66, %s67
    %p79 = scmp.eq.s32.totalorder %s15, 1
    %p80 = por %p78, %p79
    %p82 = scmp.ne.s32.totalorder %s67, %s81
    %p83 = scmp.eq.s32.totalorder %s15, 0
    %p84 = por %p82, %p83
    %s85 = ssub.s32 %s9, %s16
    %p86 = scmp.eq.s32.totalorder %s85, 0
    %s88 = sadd.s32 %s87, 1
    %s89 = scalar_select %p86, %s87, %s88
    %p92 = pneg %p86
    %p93 = scmp.eq.s32.totalorder %s9, 1
    %p94 = por %p92, %p93
    %p95 = scmp.ne.s32.totalorder %s87, %s90
    %p96 = scmp.eq.s32.totalorder %s9, 0
    %p97 = por %p95, %p96
    %p98 = scmp.ne.s32.totalorder %s87, %s90
    %p99 = scmp.eq.s32.totalorder %s14, 1
    %p100 = por %p98, %p99
    %p101 = scmp.ne.s32.totalorder %s90, %s91
    %p102 = scmp.eq.s32.totalorder %s14, 0
    %p103 = por %p101, %p102
    %p104 = scmp.ne.s32.totalorder %s90, %s91
    %p105 = scmp.eq.s32.totalorder %s15, 1
    %p106 = por %p104, %p105
    %p108 = scmp.ne.s32.totalorder %s91, %s107
    %p109 = scmp.eq.s32.totalorder %s15, 0
    %p110 = por %p108, %p109
    %p111 = scmp.le.s32.totalorder 1, %s9
    %p112 = scmp.lt.s32.totalorder %s9, 3
    %p113 = pnand %p111, %p112
    %p114 = pneg %p113
    // Predicated region
    $region9: #{fcn16_forward.33} parent=5 // pred_check
      _
    $region10: #{fcn16_forward.33} parent=5 // pred_check_branch
      %116 = sbr.rel (%p113) target = $region12
    $region11: #{fcn16_forward.33} parent=5 // pred_region
      %s117 = ssub.s32 %s9, 1
      // Predicated region
      $region13: #{fcn16_forward.33} parent=11 // pred_check
        %p118 = pneg %p56
      $region14: #{fcn16_forward.33} parent=11 // pred_check_branch
        %120 = sbr.rel (%p118) target = $region16
      $region15: #{fcn16_forward.33} parent=11 // pred_region
        _
      $region16: #{fcn16_forward.33} parent=11 // pred_fallthru
        _
      // Predicated region
      $region17: #{fcn16_forward.33} parent=11 // pred_check
        %p121 = pneg %p77
      $region18: #{fcn16_forward.33} parent=11 // pred_check_branch
        %123 = sbr.rel (%p121) target = $region20
      $region19: #{fcn16_forward.33} parent=11 // pred_region
        _
      $region20: #{fcn16_forward.33} parent=11 // pred_fallthru
        _
    $region12: #{fcn16_forward.33} parent=5 // pred_fallthru
      _
    %p124 = scmp.lt.s32.totalorder %s9, 2
    // Predicated region
    $region21: #{fcn16_forward.33} parent=5 // pred_check
      %p125 = pneg %p124
    $region22: #{fcn16_forward.33} parent=5 // pred_check_branch
      %127 = sbr.rel (%p125) target = $region24
    $region23: #{fcn16_forward.33} parent=5 // pred_region
      // Predicated region
      $region25: #{fcn16_forward.33} parent=23 // pred_check
        %p128 = pneg %p29
      $region26: #{fcn16_forward.33} parent=23 // pred_check_branch
        %130 = sbr.rel (%p128) target = $region28
      $region27: #{fcn16_forward.33} parent=23 // pred_region
        %p131 = scmp.lt.s32.totalorder %s9, 1
        %s132 = scalar_select %p131, %s9, 1
        %s133 = smul.addr %s132, 6
        %s134 = smul.addr %s133, 4
        %s135 = scalar_lea.vmem %s0, %s134
      $region28: #{fcn16_forward.33} parent=23 // pred_fallthru
        _
    $region24: #{fcn16_forward.33} parent=5 // pred_fallthru
      _
    %p136 = scmp.le.s32.totalorder 1, %s9
    %p137 = scmp.lt.s32.totalorder %s9, 3
    %p138 = pnand %p136, %p137
    %p139 = pneg %p138
    // Predicated region
    $region29: #{fcn16_forward.33} parent=5 // pred_check
      _
    $region30: #{fcn16_forward.33} parent=5 // pred_check_branch
      %141 = sbr.rel (%p138) target = $region32
    $region31: #{fcn16_forward.33} parent=5 // pred_region
      %s142 = ssub.s32 %s9, 1
      %p143 = scmp.lt.s32.totalorder %s14, 1
      %s144 = scalar_select %p143, %s14, 1
      %s145 = smul.addr %s144, 6
      %s146 = smul.addr %s145, 4
      %s147 = scalar_lea.vmem %s0, %s146
      %p148 = pneg %p35
      %p149 = pneg %p32
      %p150 = pneg %p56
      %p151 = pneg %p53
      %p152 = pneg %p77
      %p153 = pneg %p74
      %p154 = pneg %p103
      %p155 = pneg %p100
      %p156 = scmp.lt.s32.totalorder %s14, 1
      %s157 = scalar_select %p156, %s14, 1
      %s158 = smul.addr %s157, 4
      %s159 = smul.addr %s158, 2
      %s160 = scalar_lea.vmem %s3, %s159
      %p161 = scmp.lt.s32.totalorder %s14, 1
      %s162 = scalar_select %p161, %s14, 1
      %s163 = smul.addr %s162, 6
      %s164 = smul.addr %s163, 4
      %s165 = scalar_lea.vmem %s0, %s164
      %p166 = scmp.lt.s32.totalorder %s14, 1
      %s167 = scalar_select %p166, %s14, 1
      %s168 = smul.addr %s167, 4
      %s169 = smul.addr %s168, 2
      %s170 = scalar_lea.vmem %s3, %s169
      loop: start=0, step=1, limit=4
      $region33: #{fcn16_forward.33} parent=31 // loop_pre_header
        _
      $region34: #{fcn16_forward.33} parent=31 // loop_header
        %s173 = sphi 0, %s177
        %p174 = scmp.ge.s32.totalorder %s173, 4
      $region35: #{fcn16_forward.33} parent=31 // loop_header_branch
        %176 = sbr.rel (%p174) target = $region39
      $region36: #{fcn16_forward.33} parent=31 // loop_body
        %s178 = smul.addr %s173, 4
        %s179 = scalar_lea.vmem %s165, %s178
        %v180 = vld [vmem:[%s179] sm:$0x7]
        %s181 = sadd.s32 %s173, 1
        %s182 = smul.addr %s181, 4
        %s183 = scalar_lea.vmem %s165, %s182
        %v184 = vld [vmem:[%s183] sm:$0x7]
        %s185 = sadd.s32 %s173, 2
        %s186 = smul.addr %s185, 4
        %s187 = scalar_lea.vmem %s165, %s186
        %v188 = vld [vmem:[%s187] sm:$0x7]
        %v190 = vunpack.c.l.b16 %v180
        %v191 = vpack.c.b16 %v190, %v190
        %v193 = vshrl.u32 %v191, 16
        %v195 = vshll.u32 %v191, 16
        %v197 = vrot.slane %v195, 1
        %v198 = vor.u32 %v193, %v197
        %v200 = vrot.slane %v191, 1
        %v203 = vunpack.c.l.b16 %v184
        %v204 = vpack.c.b16 %v203, %v203
        %v206 = vshrl.u32 %v204, 16
        %v208 = vshll.u32 %v204, 16
        %v210 = vrot.slane %v208, 1
        %v211 = vor.u32 %v206, %v210
        %v213 = vrot.slane %v204, 1
        %v216 = vunpack.c.l.b16 %v188
        %v217 = vpack.c.b16 %v216, %v216
        %v219 = vshrl.u32 %v217, 16
        %v221 = vshll.u32 %v217, 16
        %v223 = vrot.slane %v221, 1
        %v224 = vor.u32 %v219, %v223
        %v226 = vrot.slane %v217, 1
        %v228 = vld [vmem:[%s1] sm:$0xf]
        %v229 = vld [vmem:[%s1 + $0x4] sm:$0xf]
        %v230 = vld [vmem:[%s1 + $0x8] sm:$0xf]
        %v231 = vld [vmem:[%s1 + $0xc] sm:$0xf]
        %v232 = vld [vmem:[%s1 + $0x10] sm:$0xf]
        %v233 = vld [vmem:[%s1 + $0x14] sm:$0xf]
        %v234 = vld [vmem:[%s1 + $0x18] sm:$0xf]
        %v235 = vld [vmem:[%s1 + $0x1c] sm:$0xf]
        %v236 = vld [vmem:[%s1 + $0x20] sm:$0xf]
        %v237 = vld [vmem:[%s1 + $0x24] sm:$0xf]
        %v238 = vld [vmem:[%s1 + $0x28] sm:$0xf]
        %v239 = vld [vmem:[%s1 + $0x2c] sm:$0xf]
        %v240 = vld [vmem:[%s1 + $0x30] sm:$0xf]
        %v241 = vld [vmem:[%s1 + $0x34] sm:$0xf]
        %v242 = vld [vmem:[%s1 + $0x38] sm:$0xf]
        %v243 = vld [vmem:[%s1 + $0x3c] sm:$0xf]
        %v244 = vld [vmem:[%s1 + $0x40] sm:$0xf]
        %v245 = vld [vmem:[%s1 + $0x44] sm:$0xf]
        %v246 = vld [vmem:[%s1 + $0x48] sm:$0xf]
        %v247 = vld [vmem:[%s1 + $0x4c] sm:$0xf]
        %v248 = vld [vmem:[%s1 + $0x50] sm:$0xf]
        %v249 = vld [vmem:[%s1 + $0x54] sm:$0xf]
        %v250 = vld [vmem:[%s1 + $0x58] sm:$0xf]
        %v251 = vld [vmem:[%s1 + $0x5c] sm:$0xf]
        %v252 = vld [vmem:[%s1 + $0x60] sm:$0xf]
        %v253 = vld [vmem:[%s1 + $0x64] sm:$0xf]
        %v254 = vld [vmem:[%s1 + $0x68] sm:$0xf]
        %v255 = vld [vmem:[%s1 + $0x6c] sm:$0xf]
        %v256 = vld [vmem:[%s1 + $0x70] sm:$0xf]
        %v257 = vld [vmem:[%s1 + $0x74] sm:$0xf]
        %v258 = vld [vmem:[%s1 + $0x78] sm:$0xf]
        %v259 = vld [vmem:[%s1 + $0x7c] sm:$0xf]
        %v260 = vld [vmem:[%s1 + $0x80] sm:$0xf]
        %v261 = vld [vmem:[%s1 + $0x84] sm:$0xf]
        %v262 = vld [vmem:[%s1 + $0x88] sm:$0xf]
        %v263 = vld [vmem:[%s1 + $0x8c] sm:$0xf]
        %v264 = vld [vmem:[%s1 + $0x90] sm:$0xf]
        %v265 = vld [vmem:[%s1 + $0x94] sm:$0xf]
        %v266 = vld [vmem:[%s1 + $0x98] sm:$0xf]
        %v267 = vld [vmem:[%s1 + $0x9c] sm:$0xf]
        %v268 = vld [vmem:[%s1 + $0xa0] sm:$0xf]
        %v269 = vld [vmem:[%s1 + $0xa4] sm:$0xf]
        %v270 = vld [vmem:[%s1 + $0xa8] sm:$0xf]
        %v271 = vld [vmem:[%s1 + $0xac] sm:$0xf]
        %v272 = vld [vmem:[%s1 + $0xb0] sm:$0xf]
        %v273 = vld [vmem:[%s1 + $0xb4] sm:$0xf]
        %v274 = vld [vmem:[%s1 + $0xb8] sm:$0xf]
        %v275 = vld [vmem:[%s1 + $0xbc] sm:$0xf]
        %v276 = vld [vmem:[%s1 + $0xc0] sm:$0xf]
        %v277 = vld [vmem:[%s1 + $0xc4] sm:$0xf]
        %v278 = vld [vmem:[%s1 + $0xc8] sm:$0xf]
        %v279 = vld [vmem:[%s1 + $0xcc] sm:$0xf]
        %v280 = vld [vmem:[%s1 + $0xd0] sm:$0xf]
        %v281 = vld [vmem:[%s1 + $0xd4] sm:$0xf]
        %v282 = vld [vmem:[%s1 + $0xd8] sm:$0xf]
        %v283 = vld [vmem:[%s1 + $0xdc] sm:$0xf]
        %v284 = vld [vmem:[%s1 + $0xe0] sm:$0xf]
        %v285 = vld [vmem:[%s1 + $0xe4] sm:$0xf]
        %v286 = vld [vmem:[%s1 + $0xe8] sm:$0xf]
        %v287 = vld [vmem:[%s1 + $0xec] sm:$0xf]
        %v288 = vld [vmem:[%s1 + $0xf0] sm:$0xf]
        %v289 = vld [vmem:[%s1 + $0xf4] sm:$0xf]
        %v290 = vld [vmem:[%s1 + $0xf8] sm:$0xf]
        %v291 = vld [vmem:[%s1 + $0xfc] sm:$0xf]
        %v292 = vld [vmem:[%s1 + $0x100] sm:$0xf]
        %v293 = vld [vmem:[%s1 + $0x104] sm:$0xf]
        %v294 = vld [vmem:[%s1 + $0x108] sm:$0xf]
        %v295 = vld [vmem:[%s1 + $0x10c] sm:$0xf]
        %v296 = vld [vmem:[%s1 + $0x110] sm:$0xf]
        %v297 = vld [vmem:[%s1 + $0x114] sm:$0xf]
        %v298 = vld [vmem:[%s1 + $0x118] sm:$0xf]
        %v299 = vld [vmem:[%s1 + $0x11c] sm:$0xf]
        %v300 = vld [vmem:[%s1 + $0x120] sm:$0xf]
        %v301 = vld [vmem:[%s1 + $0x124] sm:$0xf]
        %v302 = vld [vmem:[%s1 + $0x128] sm:$0xf]
        %v303 = vld [vmem:[%s1 + $0x12c] sm:$0xf]
        %v304 = vld [vmem:[%s1 + $0x130] sm:$0xf]
        %v305 = vld [vmem:[%s1 + $0x134] sm:$0xf]
        %v306 = vld [vmem:[%s1 + $0x138] sm:$0xf]
        %v307 = vld [vmem:[%s1 + $0x13c] sm:$0xf]
        %v308 = vld [vmem:[%s1 + $0x140] sm:$0xf]
        %v309 = vld [vmem:[%s1 + $0x144] sm:$0xf]
        %v310 = vld [vmem:[%s1 + $0x148] sm:$0xf]
        %v311 = vld [vmem:[%s1 + $0x14c] sm:$0xf]
        %v312 = vld [vmem:[%s1 + $0x150] sm:$0xf]
        %v313 = vld [vmem:[%s1 + $0x154] sm:$0xf]
        %v314 = vld [vmem:[%s1 + $0x158] sm:$0xf]
        %v315 = vld [vmem:[%s1 + $0x15c] sm:$0xf]
        %v316 = vld [vmem:[%s1 + $0x160] sm:$0xf]
        %v317 = vld [vmem:[%s1 + $0x164] sm:$0xf]
        %v318 = vld [vmem:[%s1 + $0x168] sm:$0xf]
        %v319 = vld [vmem:[%s1 + $0x16c] sm:$0xf]
        %v320 = vld [vmem:[%s1 + $0x170] sm:$0xf]
        %v321 = vld [vmem:[%s1 + $0x174] sm:$0xf]
        %v322 = vld [vmem:[%s1 + $0x178] sm:$0xf]
        %v323 = vld [vmem:[%s1 + $0x17c] sm:$0xf]
        %v324 = vld [vmem:[%s1 + $0x180] sm:$0xf]
        %v325 = vld [vmem:[%s1 + $0x184] sm:$0xf]
        %v326 = vld [vmem:[%s1 + $0x188] sm:$0xf]
        %v327 = vld [vmem:[%s1 + $0x18c] sm:$0xf]
        %v328 = vld [vmem:[%s1 + $0x190] sm:$0xf]
        %v329 = vld [vmem:[%s1 + $0x194] sm:$0xf]
        %v330 = vld [vmem:[%s1 + $0x198] sm:$0xf]
        %v331 = vld [vmem:[%s1 + $0x19c] sm:$0xf]
        %v332 = vld [vmem:[%s1 + $0x1a0] sm:$0xf]
        %v333 = vld [vmem:[%s1 + $0x1a4] sm:$0xf]
        %v334 = vld [vmem:[%s1 + $0x1a8] sm:$0xf]
        %v335 = vld [vmem:[%s1 + $0x1ac] sm:$0xf]
        %v336 = vld [vmem:[%s1 + $0x1b0] sm:$0xf]
        %v337 = vld [vmem:[%s1 + $0x1b4] sm:$0xf]
        %v338 = vld [vmem:[%s1 + $0x1b8] sm:$0xf]
        %v339 = vld [vmem:[%s1 + $0x1bc] sm:$0xf]
        %v340 = vld [vmem:[%s1 + $0x1c0] sm:$0xf]
        %v341 = vld [vmem:[%s1 + $0x1c4] sm:$0xf]
        %v342 = vld [vmem:[%s1 + $0x1c8] sm:$0xf]
        %v343 = vld [vmem:[%s1 + $0x1cc] sm:$0xf]
        %v344 = vld [vmem:[%s1 + $0x1d0] sm:$0xf]
        %v345 = vld [vmem:[%s1 + $0x1d4] sm:$0xf]
        %v346 = vld [vmem:[%s1 + $0x1d8] sm:$0xf]
        %v347 = vld [vmem:[%s1 + $0x1dc] sm:$0xf]
        %v348 = vld [vmem:[%s1 + $0x1e0] sm:$0xf]
        %v349 = vld [vmem:[%s1 + $0x1e4] sm:$0xf]
        %v350 = vld [vmem:[%s1 + $0x1e8] sm:$0xf]
        %v351 = vld [vmem:[%s1 + $0x1ec] sm:$0xf]
        %v352 = vld [vmem:[%s1 + $0x1f0] sm:$0xf]
        %v353 = vld [vmem:[%s1 + $0x1f4] sm:$0xf]
        %v354 = vld [vmem:[%s1 + $0x1f8] sm:$0xf]
        %v355 = vld [vmem:[%s1 + $0x1fc] sm:$0xf]
        %v356 = vld [vmem:[%s1 + $0x200] sm:$0xf]
        %v357 = vld [vmem:[%s1 + $0x204] sm:$0xf]
        %v358 = vld [vmem:[%s1 + $0x208] sm:$0xf]
        %v359 = vld [vmem:[%s1 + $0x20c] sm:$0xf]
        %v360 = vld [vmem:[%s1 + $0x210] sm:$0xf]
        %v361 = vld [vmem:[%s1 + $0x214] sm:$0xf]
        %v362 = vld [vmem:[%s1 + $0x218] sm:$0xf]
        %v363 = vld [vmem:[%s1 + $0x21c] sm:$0xf]
        %v364 = vld [vmem:[%s1 + $0x220] sm:$0xf]
        %v365 = vld [vmem:[%s1 + $0x224] sm:$0xf]
        %v366 = vld [vmem:[%s1 + $0x228] sm:$0xf]
        %v367 = vld [vmem:[%s1 + $0x22c] sm:$0xf]
        %v368 = vld [vmem:[%s1 + $0x230] sm:$0xf]
        %v369 = vld [vmem:[%s1 + $0x234] sm:$0xf]
        %v370 = vld [vmem:[%s1 + $0x238] sm:$0xf]
        %v371 = vld [vmem:[%s1 + $0x23c] sm:$0xf]
        %v372 = vld [vmem:[%s2] sm:$0x1]
        %v374 = vlaneseq
        %v375 = vshrl.u32 %v374, 7
        %v376 = vsub.s32 0, %v375
        %v377 = vrot.slane %v372, %v376
        %v523 = vunpack.c.l.b16 %v228
        %v524 = vunpack.c.l.b16 %v229
        %v525 = vunpack.c.l.b16 %v230
        %v526 = vunpack.c.l.b16 %v231
        %v527 = vunpack.c.l.b16 %v232
        %v528 = vunpack.c.l.b16 %v233
        %v529 = vunpack.c.l.b16 %v234
        %v530 = vunpack.c.l.b16 %v235
        %v531 = vunpack.c.l.b16 %v236
        %v532 = vunpack.c.l.b16 %v237
        %v533 = vunpack.c.l.b16 %v238
        %v534 = vunpack.c.l.b16 %v239
        %v535 = vunpack.c.l.b16 %v240
        %v536 = vunpack.c.l.b16 %v241
        %v537 = vunpack.c.l.b16 %v242
        %v538 = vunpack.c.l.b16 %v243
        %v539 = vunpack.c.l.b16 %v244
        %v540 = vunpack.c.l.b16 %v245
        %v541 = vunpack.c.l.b16 %v246
        %v542 = vunpack.c.l.b16 %v247
        %v543 = vunpack.c.l.b16 %v248
        %v544 = vunpack.c.l.b16 %v249
        %v545 = vunpack.c.l.b16 %v250
        %v546 = vunpack.c.l.b16 %v251
        %v547 = vunpack.c.l.b16 %v252
        %v548 = vunpack.c.l.b16 %v253
        %v549 = vunpack.c.l.b16 %v254
        %v550 = vunpack.c.l.b16 %v255
        %v551 = vunpack.c.l.b16 %v256
        %v552 = vunpack.c.l.b16 %v257
        %v553 = vunpack.c.l.b16 %v258
        %v554 = vunpack.c.l.b16 %v259
        %v555 = vunpack.c.l.b16 %v260
        %v556 = vunpack.c.l.b16 %v261
        %v557 = vunpack.c.l.b16 %v262
        %v558 = vunpack.c.l.b16 %v263
        %v559 = vunpack.c.l.b16 %v264
        %v560 = vunpack.c.l.b16 %v265
        %v561 = vunpack.c.l.b16 %v266
        %v562 = vunpack.c.l.b16 %v267
        %v563 = vunpack.c.l.b16 %v268
        %v564 = vunpack.c.l.b16 %v269
        %v565 = vunpack.c.l.b16 %v270
        %v566 = vunpack.c.l.b16 %v271
        %v567 = vunpack.c.l.b16 %v272
        %v568 = vunpack.c.l.b16 %v273
        %v569 = vunpack.c.l.b16 %v274
        %v570 = vunpack.c.l.b16 %v275
        %v571 = vunpack.c.l.b16 %v276
        %v572 = vunpack.c.l.b16 %v277
        %v573 = vunpack.c.l.b16 %v278
        %v574 = vunpack.c.l.b16 %v279
        %v575 = vunpack.c.l.b16 %v280
        %v576 = vunpack.c.l.b16 %v281
        %v577 = vunpack.c.l.b16 %v282
        %v578 = vunpack.c.l.b16 %v283
        %v579 = vunpack.c.l.b16 %v284
        %v580 = vunpack.c.l.b16 %v285
        %v581 = vunpack.c.l.b16 %v286
        %v582 = vunpack.c.l.b16 %v287
        %v583 = vunpack.c.l.b16 %v288
        %v584 = vunpack.c.l.b16 %v289
        %v585 = vunpack.c.l.b16 %v290
        %v586 = vunpack.c.l.b16 %v291
        %v587 = vunpack.c.l.b16 %v292
        %v588 = vunpack.c.l.b16 %v293
        %v589 = vunpack.c.l.b16 %v294
        %v590 = vunpack.c.l.b16 %v295
        %v591 = vunpack.c.l.b16 %v296
        %v592 = vunpack.c.l.b16 %v297
        %v593 = vunpack.c.l.b16 %v298
        %v594 = vunpack.c.l.b16 %v299
        %v595 = vunpack.c.l.b16 %v300
        %v596 = vunpack.c.l.b16 %v301
        %v597 = vunpack.c.l.b16 %v302
        %v598 = vunpack.c.l.b16 %v303
        %v599 = vunpack.c.l.b16 %v304
        %v600 = vunpack.c.l.b16 %v305
        %v601 = vunpack.c.l.b16 %v306
        %v602 = vunpack.c.l.b16 %v307
        %v603 = vunpack.c.l.b16 %v308
        %v604 = vunpack.c.l.b16 %v309
        %v605 = vunpack.c.l.b16 %v310
        %v606 = vunpack.c.l.b16 %v311
        %v607 = vunpack.c.l.b16 %v312
        %v608 = vunpack.c.l.b16 %v313
        %v609 = vunpack.c.l.b16 %v314
        %v610 = vunpack.c.l.b16 %v315
        %v611 = vunpack.c.l.b16 %v316
        %v612 = vunpack.c.l.b16 %v317
        %v613 = vunpack.c.l.b16 %v318
        %v614 = vunpack.c.l.b16 %v319
        %v615 = vunpack.c.l.b16 %v320
        %v616 = vunpack.c.l.b16 %v321
        %v617 = vunpack.c.l.b16 %v322
        %v618 = vunpack.c.l.b16 %v323
        %v619 = vunpack.c.l.b16 %v324
        %v620 = vunpack.c.l.b16 %v325
        %v621 = vunpack.c.l.b16 %v326
        %v622 = vunpack.c.l.b16 %v327
        %v623 = vunpack.c.l.b16 %v328
        %v624 = vunpack.c.l.b16 %v329
        %v625 = vunpack.c.l.b16 %v330
        %v626 = vunpack.c.l.b16 %v331
        %v627 = vunpack.c.l.b16 %v332
        %v628 = vunpack.c.l.b16 %v333
        %v629 = vunpack.c.l.b16 %v334
        %v630 = vunpack.c.l.b16 %v335
        %v631 = vunpack.c.l.b16 %v336
        %v632 = vunpack.c.l.b16 %v337
        %v633 = vunpack.c.l.b16 %v338
        %v634 = vunpack.c.l.b16 %v339
        %v635 = vunpack.c.l.b16 %v340
        %v636 = vunpack.c.l.b16 %v341
        %v637 = vunpack.c.l.b16 %v342
        %v638 = vunpack.c.l.b16 %v343
        %v639 = vunpack.c.l.b16 %v344
        %v640 = vunpack.c.l.b16 %v345
        %v641 = vunpack.c.l.b16 %v346
        %v642 = vunpack.c.l.b16 %v347
        %v643 = vunpack.c.l.b16 %v348
        %v644 = vunpack.c.l.b16 %v349
        %v645 = vunpack.c.l.b16 %v350
        %v646 = vunpack.c.l.b16 %v351
        %v647 = vunpack.c.l.b16 %v352
        %v648 = vunpack.c.l.b16 %v353
        %v649 = vunpack.c.l.b16 %v354
        %v650 = vunpack.c.l.b16 %v355
        %v651 = vunpack.c.l.b16 %v356
        %v652 = vunpack.c.l.b16 %v357
        %v653 = vunpack.c.l.b16 %v358
        %v654 = vunpack.c.l.b16 %v359
        %v655 = vunpack.c.l.b16 %v360
        %v656 = vunpack.c.l.b16 %v361
        %v657 = vunpack.c.l.b16 %v362
        %v658 = vunpack.c.l.b16 %v363
        %v659 = vunpack.c.l.b16 %v364
        %v660 = vunpack.c.l.b16 %v365
        %v661 = vunpack.c.l.b16 %v366
        %v662 = vunpack.c.l.b16 %v367
        %v663 = vunpack.c.l.b16 %v368
        %v664 = vunpack.c.l.b16 %v369
        %v665 = vunpack.c.l.b16 %v370
        %v666 = vunpack.c.l.b16 %v371
        %v667 = vpack.c.b16 %v524, %v523
        %v668 = vpack.c.b16 %v526, %v525
        %v669 = vpack.c.b16 %v528, %v527
        %v670 = vpack.c.b16 %v530, %v529
        %v671 = vpack.c.b16 %v532, %v531
        %v672 = vpack.c.b16 %v534, %v533
        %v673 = vpack.c.b16 %v536, %v535
        %v674 = vpack.c.b16 %v538, %v537
        %v675 = vpack.c.b16 %v540, %v539
        %v676 = vpack.c.b16 %v542, %v541
        %v677 = vpack.c.b16 %v544, %v543
        %v678 = vpack.c.b16 %v546, %v545
        %v679 = vpack.c.b16 %v548, %v547
        %v680 = vpack.c.b16 %v550, %v549
        %v681 = vpack.c.b16 %v552, %v551
        %v682 = vpack.c.b16 %v554, %v553
        %v683 = vpack.c.b16 %v556, %v555
        %v684 = vpack.c.b16 %v558, %v557
        %v685 = vpack.c.b16 %v560, %v559
        %v686 = vpack.c.b16 %v562, %v561
        %v687 = vpack.c.b16 %v564, %v563
        %v688 = vpack.c.b16 %v566, %v565
        %v689 = vpack.c.b16 %v568, %v567
        %v690 = vpack.c.b16 %v570, %v569
        %v691 = vpack.c.b16 %v572, %v571
        %v692 = vpack.c.b16 %v574, %v573
        %v693 = vpack.c.b16 %v576, %v575
        %v694 = vpack.c.b16 %v578, %v577
        %v695 = vpack.c.b16 %v580, %v579
        %v696 = vpack.c.b16 %v582, %v581
        %v697 = vpack.c.b16 %v584, %v583
        %v698 = vpack.c.b16 %v586, %v585
        %v699 = vpack.c.b16 %v588, %v587
        %v700 = vpack.c.b16 %v590, %v589
        %v701 = vpack.c.b16 %v592, %v591
        %v702 = vpack.c.b16 %v594, %v593
        %v703 = vpack.c.b16 %v596, %v595
        %v704 = vpack.c.b16 %v598, %v597
        %v705 = vpack.c.b16 %v600, %v599
        %v706 = vpack.c.b16 %v602, %v601
        %v707 = vpack.c.b16 %v604, %v603
        %v708 = vpack.c.b16 %v606, %v605
        %v709 = vpack.c.b16 %v608, %v607
        %v710 = vpack.c.b16 %v610, %v609
        %v711 = vpack.c.b16 %v612, %v611
        %v712 = vpack.c.b16 %v614, %v613
        %v713 = vpack.c.b16 %v616, %v615
        %v714 = vpack.c.b16 %v618, %v617
        %v715 = vpack.c.b16 %v620, %v619
        %v716 = vpack.c.b16 %v622, %v621
        %v717 = vpack.c.b16 %v624, %v623
        %v718 = vpack.c.b16 %v626, %v625
        %v719 = vpack.c.b16 %v628, %v627
        %v720 = vpack.c.b16 %v630, %v629
        %v721 = vpack.c.b16 %v632, %v631
        %v722 = vpack.c.b16 %v634, %v633
        %v723 = vpack.c.b16 %v636, %v635
        %v724 = vpack.c.b16 %v638, %v637
        %v725 = vpack.c.b16 %v640, %v639
        %v726 = vpack.c.b16 %v642, %v641
        %v727 = vpack.c.b16 %v644, %v643
        %v728 = vpack.c.b16 %v646, %v645
        %v729 = vpack.c.b16 %v648, %v647
        %v730 = vpack.c.b16 %v650, %v649
        %v731 = vpack.c.b16 %v652, %v651
        %v732 = vpack.c.b16 %v654, %v653
        %v733 = vpack.c.b16 %v656, %v655
        %v734 = vpack.c.b16 %v658, %v657
        %v735 = vpack.c.b16 %v660, %v659
        %v736 = vpack.c.b16 %v662, %v661
        %v737 = vpack.c.b16 %v664, %v663
        %v738 = vpack.c.b16 %v666, %v665
        %811 = vmatprep.subr.bf16.mxu0 0
        %812 = vmatpush1.bf16.msra.mxu0 %v667
        %813 = vmatprep.subr.bf16.mxu0 0
        %814 = vmatpush1.bf16.msra.mxu0 %v668
        %815 = vmatprep.subr.bf16.mxu0 0
        %816 = vmatpush1.bf16.msra.mxu0 %v669
        %817 = vmatprep.subr.bf16.mxu0 0
        %818 = vmatpush1.bf16.msra.mxu0 %v670
        %819 = vmatprep.subr.bf16.mxu0 0
        %820 = vmatpush1.bf16.msra.mxu0 %v671
        %821 = vmatprep.subr.bf16.mxu0 0
        %822 = vmatpush1.bf16.msra.mxu0 %v672
        %823 = vmatprep.subr.bf16.mxu0 0
        %824 = vmatpush1.bf16.msra.mxu0 %v673
        %825 = vmatprep.subr.bf16.mxu0 0
        %826 = vmatpush1.bf16.msra.mxu0 %v674
        %827 = vmatprep.subr.bf16.mxu0 0
        %828 = vmatpush1.bf16.msra.mxu0 %v675
        %829 = vmatprep.subr.bf16.mxu0 0
        %830 = vmatpush1.bf16.msra.mxu0 %v676
        %831 = vmatprep.subr.bf16.mxu0 0
        %832 = vmatpush1.bf16.msra.mxu0 %v677
        %833 = vmatprep.subr.bf16.mxu0 0
        %834 = vmatpush1.bf16.msra.mxu0 %v678
        %835 = vmatprep.subr.bf16.mxu0 0
        %836 = vmatpush1.bf16.msra.mxu0 %v679
        %837 = vmatprep.subr.bf16.mxu0 0
        %838 = vmatpush1.bf16.msra.mxu0 %v680
        %839 = vmatprep.subr.bf16.mxu0 0
        %840 = vmatpush1.bf16.msra.mxu0 %v681
        %841 = vmatprep.subr.bf16.mxu0 0
        %842 = vmatpush1.bf16.msra.mxu0 %v682
        %843 = vmatprep.mubr.bf16.mxu0 %v198
        %844 = vmatmul.mubr.bf16.gmra.mrb[0].mxu0 %v180
        %v845 = vpop.f32.mrb[0].mxu0
        %v846 = vadd.f32 %v377, %v845
        %v847 = vpop.f32.mrb[0].mxu0
        %v848 = vpop.f32.mrb[0].mxu0
        %v849 = vpop.f32.mrb[0].mxu0
        %850 = vdwg.mxu0
        %851 = vmatprep.subr.bf16.mxu0 0
        %852 = vmatpush1.bf16.msra.mxu0 %v683
        %853 = vmatprep.subr.bf16.mxu0 0
        %854 = vmatpush1.bf16.msra.mxu0 %v684
        %855 = vmatprep.subr.bf16.mxu0 0
        %856 = vmatpush1.bf16.msra.mxu0 %v685
        %857 = vmatprep.subr.bf16.mxu0 0
        %858 = vmatpush1.bf16.msra.mxu0 %v686
        %859 = vmatprep.subr.bf16.mxu0 0
        %860 = vmatpush1.bf16.msra.mxu0 %v687
        %861 = vmatprep.subr.bf16.mxu0 0
        %862 = vmatpush1.bf16.msra.mxu0 %v688
        %863 = vmatprep.subr.bf16.mxu0 0
        %864 = vmatpush1.bf16.msra.mxu0 %v689
        %865 = vmatprep.subr.bf16.mxu0 0
        %866 = vmatpush1.bf16.msra.mxu0 %v690
        %867 = vmatprep.subr.bf16.mxu0 0
        %868 = vmatpush1.bf16.msra.mxu0 %v691
        %869 = vmatprep.subr.bf16.mxu0 0
        %870 = vmatpush1.bf16.msra.mxu0 %v692
        %871 = vmatprep.subr.bf16.mxu0 0
        %872 = vmatpush1.bf16.msra.mxu0 %v693
        %873 = vmatprep.subr.bf16.mxu0 0
        %874 = vmatpush1.bf16.msra.mxu0 %v694
        %875 = vmatprep.subr.bf16.mxu0 0
        %876 = vmatpush1.bf16.msra.mxu0 %v695
        %877 = vmatprep.subr.bf16.mxu0 0
        %878 = vmatpush1.bf16.msra.mxu0 %v696
        %879 = vmatprep.subr.bf16.mxu0 0
        %880 = vmatpush1.bf16.msra.mxu0 %v697
        %881 = vmatprep.subr.bf16.mxu0 0
        %882 = vmatpush1.bf16.msra.mxu0 %v698
        %883 = vmatprep.mubr.bf16.mxu0 %v184
        %884 = vmatmul.mubr.bf16.gmra.mrb[0].mxu0 %v200
        %v885 = vpop.f32.mrb[0].mxu0
        %v886 = vadd.f32 %v846, %v885
        %v887 = vpop.f32.mrb[0].mxu0
        %v888 = vpop.f32.mrb[0].mxu0
        %v889 = vpop.f32.mrb[0].mxu0
        %890 = vdwg.mxu0
        %891 = vmatprep.subr.bf16.mxu0 0
        %892 = vmatpush1.bf16.msra.mxu0 %v699
        %893 = vmatprep.subr.bf16.mxu0 0
        %894 = vmatpush1.bf16.msra.mxu0 %v700
        %895 = vmatprep.subr.bf16.mxu0 0
        %896 = vmatpush1.bf16.msra.mxu0 %v701
        %897 = vmatprep.subr.bf16.mxu0 0
        %898 = vmatpush1.bf16.msra.mxu0 %v702
        %899 = vmatprep.subr.bf16.mxu0 0
        %900 = vmatpush1.bf16.msra.mxu0 %v703
        %901 = vmatprep.subr.bf16.mxu0 0
        %902 = vmatpush1.bf16.msra.mxu0 %v704
        %903 = vmatprep.subr.bf16.mxu0 0
        %904 = vmatpush1.bf16.msra.mxu0 %v705
        %905 = vmatprep.subr.bf16.mxu0 0
        %906 = vmatpush1.bf16.msra.mxu0 %v706
        %907 = vmatprep.subr.bf16.mxu0 0
        %908 = vmatpush1.bf16.msra.mxu0 %v707
        %909 = vmatprep.subr.bf16.mxu0 0
        %910 = vmatpush1.bf16.msra.mxu0 %v708
        %911 = vmatprep.subr.bf16.mxu0 0
        %912 = vmatpush1.bf16.msra.mxu0 %v709
        %913 = vmatprep.subr.bf16.mxu0 0
        %914 = vmatpush1.bf16.msra.mxu0 %v710
        %915 = vmatprep.subr.bf16.mxu0 0
        %916 = vmatpush1.bf16.msra.mxu0 %v711
        %917 = vmatprep.subr.bf16.mxu0 0
        %918 = vmatpush1.bf16.msra.mxu0 %v712
        %919 = vmatprep.subr.bf16.mxu0 0
        %920 = vmatpush1.bf16.msra.mxu0 %v713
        %921 = vmatprep.subr.bf16.mxu0 0
        %922 = vmatpush1.bf16.msra.mxu0 %v714
        %923 = vmatprep.mubr.bf16.mxu0 %v213
        %924 = vmatmul.mubr.bf16.gmra.mrb[0].mxu0 %v211
        %v925 = vpop.f32.mrb[0].mxu0
        %v926 = vadd.f32 %v886, %v925
        %v927 = vpop.f32.mrb[0].mxu0
        %v928 = vpop.f32.mrb[0].mxu0
        %v929 = vpop.f32.mrb[0].mxu0
        %930 = vdwg.mxu0
        %931 = vmatprep.subr.bf16.mxu0 0
        %932 = vmatpush1.bf16.msra.mxu0 %v715
        %933 = vmatprep.subr.bf16.mxu0 0
        %934 = vmatpush1.bf16.msra.mxu0 %v716
        %935 = vmatprep.subr.bf16.mxu0 0
        %936 = vmatpush1.bf16.msra.mxu0 %v717
        %937 = vmatprep.subr.bf16.mxu0 0
        %938 = vmatpush1.bf16.msra.mxu0 %v718
        %939 = vmatprep.subr.bf16.mxu0 0
        %940 = vmatpush1.bf16.msra.mxu0 %v719
        %941 = vmatprep.subr.bf16.mxu0 0
        %942 = vmatpush1.bf16.msra.mxu0 %v720
        %943 = vmatprep.subr.bf16.mxu0 0
        %944 = vmatpush1.bf16.msra.mxu0 %v721
        %945 = vmatprep.subr.bf16.mxu0 0
        %946 = vmatpush1.bf16.msra.mxu0 %v722
        %947 = vmatprep.subr.bf16.mxu0 0
        %948 = vmatpush1.bf16.msra.mxu0 %v723
        %949 = vmatprep.subr.bf16.mxu0 0
        %950 = vmatpush1.bf16.msra.mxu0 %v724
        %951 = vmatprep.subr.bf16.mxu0 0
        %952 = vmatpush1.bf16.msra.mxu0 %v725
        %953 = vmatprep.subr.bf16.mxu0 0
        %954 = vmatpush1.bf16.msra.mxu0 %v726
        %955 = vmatprep.subr.bf16.mxu0 0
        %956 = vmatpush1.bf16.msra.mxu0 %v727
        %957 = vmatprep.subr.bf16.mxu0 0
        %958 = vmatpush1.bf16.msra.mxu0 %v728
        %959 = vmatprep.subr.bf16.mxu0 0
        %960 = vmatpush1.bf16.msra.mxu0 %v729
        %961 = vmatprep.subr.bf16.mxu0 0
        %962 = vmatpush1.bf16.msra.mxu0 %v730
        %963 = vmatprep.mubr.bf16.mxu0 %v224
        %964 = vmatmul.mubr.bf16.gmra.mrb[0].mxu0 %v188
        %v965 = vpop.f32.mrb[0].mxu0
        %v966 = vadd.f32 %v926, %v965
        %v967 = vpop.f32.mrb[0].mxu0
        %v968 = vpop.f32.mrb[0].mxu0
        %v969 = vpop.f32.mrb[0].mxu0
        %970 = vdwg.mxu0
        %971 = vmatprep.subr.bf16.mxu0 0
        %972 = vmatpush1.bf16.msra.mxu0 %v731
        %973 = vmatprep.subr.bf16.mxu0 0
        %974 = vmatpush1.bf16.msra.mxu0 %v732
        %975 = vmatprep.subr.bf16.mxu0 0
        %976 = vmatpush1.bf16.msra.mxu0 %v733
        %977 = vmatprep.subr.bf16.mxu0 0
        %978 = vmatpush1.bf16.msra.mxu0 %v734
        %979 = vmatprep.subr.bf16.mxu0 0
        %980 = vmatpush1.bf16.msra.mxu0 %v735
        %981 = vmatprep.subr.bf16.mxu0 0
        %982 = vmatpush1.bf16.msra.mxu0 %v736
        %983 = vmatprep.subr.bf16.mxu0 0
        %984 = vmatpush1.bf16.msra.mxu0 %v737
        %985 = vmatprep.subr.bf16.mxu0 0
        %986 = vmatpush1.bf16.msra.mxu0 %v738
        %987 = vmatprep.subr.bf16.mxu0 0
        %988 = vmatpush1.bf16.msra.mxu0 0
        %989 = vmatprep.subr.bf16.mxu0 0
        %990 = vmatpush1.bf16.msra.mxu0 0
        %991 = vmatprep.subr.bf16.mxu0 0
        %992 = vmatpush1.bf16.msra.mxu0 0
        %993 = vmatprep.subr.bf16.mxu0 0
        %994 = vmatpush1.bf16.msra.mxu0 0
        %995 = vmatprep.subr.bf16.mxu0 0
        %996 = vmatpush1.bf16.msra.mxu0 0
        %997 = vmatprep.subr.bf16.mxu0 0
        %998 = vmatpush1.bf16.msra.mxu0 0
        %999 = vmatprep.subr.bf16.mxu0 0
        %1000 = vmatpush1.bf16.msra.mxu0 0
        %1001 = vmatprep.subr.bf16.mxu0 0
        %1002 = vmatpush1.bf16.msra.mxu0 0
        %1003 = vmatprep.mubr.bf16.mxu0 0
        %1004 = vmatmul.mubr.bf16.gmra.mrb[0].mxu0 %v226
        %v1005 = vpop.f32.mrb[0].mxu0
        %v1006 = vadd.f32 %v966, %v1005
        %v1007 = vpop.f32.mrb[0].mxu0
        %v1008 = vpop.f32.mrb[0].mxu0
        %v1009 = vpop.f32.mrb[0].mxu0
        %1010 = vdwg.mxu0
        %v1011 = vmax.f32 %v1006, 0.0
        %v1012 = vpack.c.bf16 %v1011, %v1011
        %s1013 = smul.addr %s173, 2
        %s1014 = scalar_lea.vmem %s170, %s1013
        %1015 = vst [vmem:[%s1014] sm:$0x3] %v1012
      $region37: #{fcn16_forward.33} parent=31 // loop_footer
        %s177 = sadd.s32 1, %s173
      $region38: #{fcn16_forward.33} parent=31 // loop_footer_branch
        %172 = sbr.rel target = $region34
      $region39: #{fcn16_forward.33} parent=31 // loop_exit
        _
      %p1016 = scmp.lt.s32.totalorder %s14, 1
      %s1017 = scalar_select %p1016, %s14, 1
      %s1018 = smul.addr %s1017, 4
      %s1019 = smul.addr %s1018, 2
      %s1020 = scalar_lea.vmem %s3, %s1019
      // Predicated region
      $region40: #{fcn16_forward.33} parent=31 // pred_check
        %p1021 = pneg %p100
      $region41: #{fcn16_forward.33} parent=31 // pred_check_branch
        %1023 = sbr.rel (%p1021) target = $region43
      $region42: #{fcn16_forward.33} parent=31 // pred_region
        _
      $region43: #{fcn16_forward.33} parent=31 // pred_fallthru
        _
    $region32: #{fcn16_forward.33} parent=5 // pred_fallthru
      _
    %p1024 = scmp.le.s32.totalorder 2, %s9
    // Predicated region
    $region44: #{fcn16_forward.33} parent=5 // pred_check
      %p1025 = pneg %p1024
    $region45: #{fcn16_forward.33} parent=5 // pred_check_branch
      %1027 = sbr.rel (%p1025) target = $region47
    $region46: #{fcn16_forward.33} parent=5 // pred_region
      %s1028 = ssub.s32 %s9, 2
      // Predicated region
      $region48: #{fcn16_forward.33} parent=46 // pred_check
        %p1029 = pneg %p106
      $region49: #{fcn16_forward.33} parent=46 // pred_check_branch
        %1031 = sbr.rel (%p1029) target = $region51
      $region50: #{fcn16_forward.33} parent=46 // pred_region
        %p1032 = scmp.lt.s32.totalorder %s15, 1
        %s1033 = scalar_select %p1032, %s15, 1
        %s1034 = smul.addr %s1033, 4
        %s1035 = smul.addr %s1034, 2
        %s1036 = scalar_lea.vmem %s3, %s1035
      $region51: #{fcn16_forward.33} parent=46 // pred_fallthru
        _
    $region47: #{fcn16_forward.33} parent=5 // pred_fallthru
      _
  $region6: #{fcn16_forward.33} parent=0 // loop_footer
    %s13 = sadd.s32 1, %s9
  $region7: #{fcn16_forward.33} parent=0 // loop_footer_branch
    %8 = sbr.rel target = $region3
  $region8: #{fcn16_forward.33} parent=0 // loop_exit
    _

// kernel: fcn16_forward.37
$region0: #{fcn16_forward.37}
  #allocation0 [shape = 'u32[]', space=smem, size = 0x4, offset = 0x4, fixed_abs, tag = 'smem constant byte address 0x4 - core index']
  #allocation1 [shape = 'u32[144,128]{1,0:T(1,128)}', space=vmem, size = 0x12000, scoped, tag = 'internal scratch']
  %s0 = inlined_call_operand.vmem [shape: bf16[2,2,128,2], index: 0, kind: input, shape index: {}]
  %s1 = inlined_call_operand.vmem [shape: bf16[2,4,128,4], index: 1, kind: input, shape index: {}]
  %s2 = inlined_call_operand.vmem [shape: bf16[8,128], index: 2, kind: input, shape index: {}]
  %s3 = inlined_call_operand.vmem [shape: f32[8,1], index: 3, kind: input, shape index: {}]
  %s4 = inlined_call_operand.vmem [shape: bf16[8,128], index: 4, kind: input, shape index: {}]
  %s5 = inlined_call_operand.vmem [shape: f32[8,1], index: 5, kind: input, shape index: {}]
  %s6 = inlined_call_operand.vmem [shape: f32[64,2], index: 6, kind: input, shape index: {}]
  %s7 = inlined_call_operand.vmem [shape: f32[2,64], index: 7, kind: input, shape index: {}]
  %s8 = inlined_call_operand.vmem [shape: f32[64,4], index: 8, kind: input, shape index: {}]
  %s9 = inlined_call_operand.vmem [shape: f32[4,64], index: 9, kind: input, shape index: {}]
  %s10 = inlined_call_operand.hbm [shape: f32[2,4,64,64], index: 10, kind: output, shape index: {}]
  %s11 = sld [smem:[#allocation0]]
  $region73: #{fcn16_forward.37} parent=0
    _
  %s13 = ssub.s32 1, %s11
  %s14 = scalar_select 0, %s13, %s11
  $region1: #{fcn16_forward.37} parent=0
    #allocation2 [shape = 'u8[262144]{0}', space=vmem, size = 0x40000, scoped, tag = 'output window, operand 0']
    #allocation3 [shape = 's32[2]{0}', space=sflag, size = 0x8, scoped, tag = 'scoped memory for fcn16_forward.37']
    %15 = vsyncpa [#allocation3], 0
    %s16 = scalar_lea.sflag [#allocation3], 1
    %17 = vsyncpa %s16, 0
    loop: start=0, step=1, limit=4
    $region2: #{fcn16_forward.37} parent=1 // loop_pre_header
      _
    $region3: #{fcn16_forward.37} parent=1 // loop_header
      %s19 = sphi 0, %s23
      %p20 = scmp.ge.s32.totalorder %s19, 4
      %s29 = sphi 0, %s31
      %s32 = sphi 0, %s29
      %s33 = sphi 0, %s32
      %s49 = sphi 0, %s33
      %s55 = sphi 0, %s57
      %s58 = sphi 0, %s55
      %s59 = sphi 0, %s58
      %s75 = sphi 0, %s59
      %s79 = sphi 0, %s79
      %s81 = sphi 0, %s79
      %s82 = sphi 0, %s81
      %s96 = sphi 0, %s82
      %s100 = sphi 0, %s100
      %s102 = sphi 0, %s100
      %s103 = sphi 0, %s102
      %s117 = sphi 0, %s103
      %s121 = sphi 0, %s121
      %s123 = sphi 0, %s121
      %s124 = sphi 0, %s123
      %s138 = sphi 0, %s124
      %s142 = sphi 0, %s142
      %s144 = sphi 0, %s142
      %s145 = sphi 0, %s144
      %s159 = sphi 0, %s145
      %s163 = sphi 0, %s163
      %s165 = sphi 0, %s163
      %s166 = sphi 0, %s165
      %s180 = sphi 0, %s166
      %s184 = sphi 0, %s184
      %s186 = sphi 0, %s184
      %s187 = sphi 0, %s186
      %s201 = sphi 0, %s187
      %s205 = sphi 0, %s205
      %s207 = sphi 0, %s205
      %s208 = sphi 0, %s207
      %s222 = sphi 0, %s208
      %s226 = sphi 0, %s226
      %s228 = sphi 0, %s226
      %s229 = sphi 0, %s228
      %s243 = sphi 0, %s229
      %s249 = sphi 0, %s251
      %s252 = sphi 0, %s249
      %s253 = sphi 0, %s252
      %s269 = sphi 0, %s253
    $region4: #{fcn16_forward.37} parent=1 // loop_header_branch
      %22 = sbr.rel (%p20) target = $region8
    $region5: #{fcn16_forward.37} parent=1 // loop_body
      %s24 = ssub.s32 %s19, 1
      %s25 = ssub.s32 %s19, 2
      %s26 = sadd.s32 %s19, 1
      %s27 = ssub.s32 %s19, %s26
      %p28 = scmp.eq.s32.totalorder %s27, 0
      %s30 = sadd.s32 %s29, 1
      %s31 = scalar_select %p28, %s29, %s30
      %p34 = pneg %p28
      %p35 = scmp.eq.s32.totalorder %s19, 1
      %p36 = por %p34, %p35
      %p37 = scmp.ne.s32.totalorder %s29, %s32
      %p38 = scmp.eq.s32.totalorder %s19, 0
      %p39 = por %p37, %p38
      %p40 = scmp.ne.s32.totalorder %s29, %s32
      %p41 = scmp.eq.s32.totalorder %s24, 1
      %p42 = por %p40, %p41
      %p43 = scmp.ne.s32.totalorder %s32, %s33
      %p44 = scmp.eq.s32.totalorder %s24, 0
      %p45 = por %p43, %p44
      %p46 = scmp.ne.s32.totalorder %s32, %s33
      %p47 = scmp.eq.s32.totalorder %s25, 1
      %p48 = por %p46, %p47
      %p50 = scmp.ne.s32.totalorder %s33, %s49
      %p51 = scmp.eq.s32.totalorder %s25, 0
      %p52 = por %p50, %p51
      %s53 = ssub.s32 %s19, %s26
      %p54 = scmp.eq.s32.totalorder %s53, 0
      %s56 = sadd.s32 %s55, 1
      %s57 = scalar_select %p54, %s55, %s56
      %p60 = pneg %p54
      %p61 = scmp.eq.s32.totalorder %s19, 1
      %p62 = por %p60, %p61
      %p63 = scmp.ne.s32.totalorder %s55, %s58
      %p64 = scmp.eq.s32.totalorder %s19, 0
      %p65 = por %p63, %p64
      %p66 = scmp.ne.s32.totalorder %s55, %s58
      %p67 = scmp.eq.s32.totalorder %s24, 1
      %p68 = por %p66, %p67
      %p69 = scmp.ne.s32.totalorder %s58, %s59
      %p70 = scmp.eq.s32.totalorder %s24, 0
      %p71 = por %p69, %p70
      %p72 = scmp.ne.s32.totalorder %s58, %s59
      %p73 = scmp.eq.s32.totalorder %s25, 1
      %p74 = por %p72, %p73
      %p76 = scmp.ne.s32.totalorder %s59, %s75
      %p77 = scmp.eq.s32.totalorder %s25, 0
      %p78 = por %p76, %p77
      %s80 = sadd.s32 %s79, 1
      %p83 = scmp.eq.s32.totalorder %s19, 1
      %p84 = scmp.ne.s32.totalorder %s79, %s81
      %p85 = scmp.eq.s32.totalorder %s19, 0
      %p86 = por %p84, %p85
      %p87 = scmp.ne.s32.totalorder %s79, %s81
      %p88 = scmp.eq.s32.totalorder %s24, 1
      %p89 = por %p87, %p88
      %p90 = scmp.ne.s32.totalorder %s81, %s82
      %p91 = scmp.eq.s32.totalorder %s24, 0
      %p92 = por %p90, %p91
      %p93 = scmp.ne.s32.totalorder %s81, %s82
      %p94 = scmp.eq.s32.totalorder %s25, 1
      %p95 = por %p93, %p94
      %p97 = scmp.ne.s32.totalorder %s82, %s96
      %p98 = scmp.eq.s32.totalorder %s25, 0
      %p99 = por %p97, %p98
      %s101 = sadd.s32 %s100, 1
      %p104 = scmp.eq.s32.totalorder %s19, 1
      %p105 = scmp.ne.s32.totalorder %s100, %s102
      %p106 = scmp.eq.s32.totalorder %s19, 0
      %p107 = por %p105, %p106
      %p108 = scmp.ne.s32.totalorder %s100, %s102
      %p109 = scmp.eq.s32.totalorder %s24, 1
      %p110 = por %p108, %p109
      %p111 = scmp.ne.s32.totalorder %s102, %s103
      %p112 = scmp.eq.s32.totalorder %s24, 0
      %p113 = por %p111, %p112
      %p114 = scmp.ne.s32.totalorder %s102, %s103
      %p115 = scmp.eq.s32.totalorder %s25, 1
      %p116 = por %p114, %p115
      %p118 = scmp.ne.s32.totalorder %s103, %s117
      %p119 = scmp.eq.s32.totalorder %s25, 0
      %p120 = por %p118, %p119
      %s122 = sadd.s32 %s121, 1
      %p125 = scmp.eq.s32.totalorder %s19, 1
      %p126 = scmp.ne.s32.totalorder %s121, %s123
      %p127 = scmp.eq.s32.totalorder %s19, 0
      %p128 = por %p126, %p127
      %p129 = scmp.ne.s32.totalorder %s121, %s123
      %p130 = scmp.eq.s32.totalorder %s24, 1
      %p131 = por %p129, %p130
      %p132 = scmp.ne.s32.totalorder %s123, %s124
      %p133 = scmp.eq.s32.totalorder %s24, 0
      %p134 = por %p132, %p133
      %p135 = scmp.ne.s32.totalorder %s123, %s124
      %p136 = scmp.eq.s32.totalorder %s25, 1
      %p137 = por %p135, %p136
      %p139 = scmp.ne.s32.totalorder %s124, %s138
      %p140 = scmp.eq.s32.totalorder %s25, 0
      %p141 = por %p139, %p140
      %s143 = sadd.s32 %s142, 1
      %p146 = scmp.eq.s32.totalorder %s19, 1
      %p147 = scmp.ne.s32.totalorder %s142, %s144
      %p148 = scmp.eq.s32.totalorder %s19, 0
      %p149 = por %p147, %p148
      %p150 = scmp.ne.s32.totalorder %s142, %s144
      %p151 = scmp.eq.s32.totalorder %s24, 1
      %p152 = por %p150, %p151
      %p153 = scmp.ne.s32.totalorder %s144, %s145
      %p154 = scmp.eq.s32.totalorder %s24, 0
      %p155 = por %p153, %p154
      %p156 = scmp.ne.s32.totalorder %s144, %s145
      %p157 = scmp.eq.s32.totalorder %s25, 1
      %p158 = por %p156, %p157
      %p160 = scmp.ne.s32.totalorder %s145, %s159
      %p161 = scmp.eq.s32.totalorder %s25, 0
      %p162 = por %p160, %p161
      %s164 = sadd.s32 %s163, 1
      %p167 = scmp.eq.s32.totalorder %s19, 1
      %p168 = scmp.ne.s32.totalorder %s163, %s165
      %p169 = scmp.eq.s32.totalorder %s19, 0
      %p170 = por %p168, %p169
      %p171 = scmp.ne.s32.totalorder %s163, %s165
      %p172 = scmp.eq.s32.totalorder %s24, 1
      %p173 = por %p171, %p172
      %p174 = scmp.ne.s32.totalorder %s165, %s166
      %p175 = scmp.eq.s32.totalorder %s24, 0
      %p176 = por %p174, %p175
      %p177 = scmp.ne.s32.totalorder %s165, %s166
      %p178 = scmp.eq.s32.totalorder %s25, 1
      %p179 = por %p177, %p178
      %p181 = scmp.ne.s32.totalorder %s166, %s180
      %p182 = scmp.eq.s32.totalorder %s25, 0
      %p183 = por %p181, %p182
      %s185 = sadd.s32 %s184, 1
      %p188 = scmp.eq.s32.totalorder %s19, 1
      %p189 = scmp.ne.s32.totalorder %s184, %s186
      %p190 = scmp.eq.s32.totalorder %s19, 0
      %p191 = por %p189, %p190
      %p192 = scmp.ne.s32.totalorder %s184, %s186
      %p193 = scmp.eq.s32.totalorder %s24, 1
      %p194 = por %p192, %p193
      %p195 = scmp.ne.s32.totalorder %s186, %s187
      %p196 = scmp.eq.s32.totalorder %s24, 0
      %p197 = por %p195, %p196
      %p198 = scmp.ne.s32.totalorder %s186, %s187
      %p199 = scmp.eq.s32.totalorder %s25, 1
      %p200 = por %p198, %p199
      %p202 = scmp.ne.s32.totalorder %s187, %s201
      %p203 = scmp.eq.s32.totalorder %s25, 0
      %p204 = por %p202, %p203
      %s206 = sadd.s32 %s205, 1
      %p209 = scmp.eq.s32.totalorder %s19, 1
      %p210 = scmp.ne.s32.totalorder %s205, %s207
      %p211 = scmp.eq.s32.totalorder %s19, 0
      %p212 = por %p210, %p211
      %p213 = scmp.ne.s32.totalorder %s205, %s207
      %p214 = scmp.eq.s32.totalorder %s24, 1
      %p215 = por %p213, %p214
      %p216 = scmp.ne.s32.totalorder %s207, %s208
      %p217 = scmp.eq.s32.totalorder %s24, 0
      %p218 = por %p216, %p217
      %p219 = scmp.ne.s32.totalorder %s207, %s208
      %p220 = scmp.eq.s32.totalorder %s25, 1
      %p221 = por %p219, %p220
      %p223 = scmp.ne.s32.totalorder %s208, %s222
      %p224 = scmp.eq.s32.totalorder %s25, 0
      %p225 = por %p223, %p224
      %s227 = sadd.s32 %s226, 1
      %p230 = scmp.eq.s32.totalorder %s19, 1
      %p231 = scmp.ne.s32.totalorder %s226, %s228
      %p232 = scmp.eq.s32.totalorder %s19, 0
      %p233 = por %p231, %p232
      %p234 = scmp.ne.s32.totalorder %s226, %s228
      %p235 = scmp.eq.s32.totalorder %s24, 1
      %p236 = por %p234, %p235
      %p237 = scmp.ne.s32.totalorder %s228, %s229
      %p238 = scmp.eq.s32.totalorder %s24, 0
      %p239 = por %p237, %p238
      %p240 = scmp.ne.s32.totalorder %s228, %s229
      %p241 = scmp.eq.s32.totalorder %s25, 1
      %p242 = por %p240, %p241
      %p244 = scmp.ne.s32.totalorder %s229, %s243
      %p245 = scmp.eq.s32.totalorder %s25, 0
      %p246 = por %p244, %p245
      %s247 = ssub.s32 %s19, %s26
      %p248 = scmp.eq.s32.totalorder %s247, 0
      %s250 = sadd.s32 %s249, 1
      %s251 = scalar_select %p248, %s249, %s250
      %p254 = pneg %p248
      %p255 = scmp.eq.s32.totalorder %s19, 1
      %p256 = por %p254, %p255
      %p257 = scmp.ne.s32.totalorder %s249, %s252
      %p258 = scmp.eq.s32.totalorder %s19, 0
      %p259 = por %p257, %p258
      %p260 = scmp.ne.s32.totalorder %s249, %s252
      %p261 = scmp.eq.s32.totalorder %s24, 1
      %p262 = por %p260, %p261
      %p263 = scmp.ne.s32.totalorder %s252, %s253
      %p264 = scmp.eq.s32.totalorder %s24, 0
      %p265 = por %p263, %p264
      %p266 = scmp.ne.s32.totalorder %s252, %s253
      %p267 = scmp.eq.s32.totalorder %s25, 1
      %p268 = por %p266, %p267
      %p270 = scmp.ne.s32.totalorder %s253, %s269
      %p271 = scmp.eq.s32.totalorder %s25, 0
      %p272 = por %p270, %p271
      %p273 = scmp.le.s32.totalorder 1, %s19
      %p274 = scmp.lt.s32.totalorder %s19, 3
      %p275 = pnand %p273, %p274
      %p276 = pneg %p275
      // Predicated region
      $region9: #{fcn16_forward.37} parent=5 // pred_check
        _
      $region10: #{fcn16_forward.37} parent=5 // pred_check_branch
        %278 = sbr.rel (%p275) target = $region12
      $region11: #{fcn16_forward.37} parent=5 // pred_region
        %s279 = ssub.s32 %s19, 1
        // Predicated region
        $region13: #{fcn16_forward.37} parent=11 // pred_check
          %p280 = pneg %p92
        $region14: #{fcn16_forward.37} parent=11 // pred_check_branch
          %282 = sbr.rel (%p280) target = $region16
        $region15: #{fcn16_forward.37} parent=11 // pred_region
          _
        $region16: #{fcn16_forward.37} parent=11 // pred_fallthru
          _
        // Predicated region
        $region17: #{fcn16_forward.37} parent=11 // pred_check
          %p283 = pneg %p113
        $region18: #{fcn16_forward.37} parent=11 // pred_check_branch
          %285 = sbr.rel (%p283) target = $region20
        $region19: #{fcn16_forward.37} parent=11 // pred_region
          _
        $region20: #{fcn16_forward.37} parent=11 // pred_fallthru
          _
        // Predicated region
        $region21: #{fcn16_forward.37} parent=11 // pred_check
          %p286 = pneg %p134
        $region22: #{fcn16_forward.37} parent=11 // pred_check_branch
          %288 = sbr.rel (%p286) target = $region24
        $region23: #{fcn16_forward.37} parent=11 // pred_region
          _
        $region24: #{fcn16_forward.37} parent=11 // pred_fallthru
          _
        // Predicated region
        $region25: #{fcn16_forward.37} parent=11 // pred_check
          %p289 = pneg %p155
        $region26: #{fcn16_forward.37} parent=11 // pred_check_branch
          %291 = sbr.rel (%p289) target = $region28
        $region27: #{fcn16_forward.37} parent=11 // pred_region
          _
        $region28: #{fcn16_forward.37} parent=11 // pred_fallthru
          _
        // Predicated region
        $region29: #{fcn16_forward.37} parent=11 // pred_check
          %p292 = pneg %p176
        $region30: #{fcn16_forward.37} parent=11 // pred_check_branch
          %294 = sbr.rel (%p292) target = $region32
        $region31: #{fcn16_forward.37} parent=11 // pred_region
          _
        $region32: #{fcn16_forward.37} parent=11 // pred_fallthru
          _
        // Predicated region
        $region33: #{fcn16_forward.37} parent=11 // pred_check
          %p295 = pneg %p197
        $region34: #{fcn16_forward.37} parent=11 // pred_check_branch
          %297 = sbr.rel (%p295) target = $region36
        $region35: #{fcn16_forward.37} parent=11 // pred_region
          _
        $region36: #{fcn16_forward.37} parent=11 // pred_fallthru
          _
        // Predicated region
        $region37: #{fcn16_forward.37} parent=11 // pred_check
          %p298 = pneg %p218
        $region38: #{fcn16_forward.37} parent=11 // pred_check_branch
          %300 = sbr.rel (%p298) target = $region40
        $region39: #{fcn16_forward.37} parent=11 // pred_region
          _
        $region40: #{fcn16_forward.37} parent=11 // pred_fallthru
          _
        // Predicated region
        $region41: #{fcn16_forward.37} parent=11 // pred_check
          %p301 = pneg %p239
        $region42: #{fcn16_forward.37} parent=11 // pred_check_branch
          %303 = sbr.rel (%p301) target = $region44
        $region43: #{fcn16_forward.37} parent=11 // pred_region
          _
        $region44: #{fcn16_forward.37} parent=11 // pred_fallthru
          _
      $region12: #{fcn16_forward.37} parent=5 // pred_fallthru
        _
      %p304 = scmp.lt.s32.totalorder %s19, 2
      // Predicated region
      $region45: #{fcn16_forward.37} parent=5 // pred_check
        %p305 = pneg %p304
      $region46: #{fcn16_forward.37} parent=5 // pred_check_branch
        %307 = sbr.rel (%p305) target = $region48
      $region47: #{fcn16_forward.37} parent=5 // pred_region
        // Predicated region
        $region49: #{fcn16_forward.37} parent=47 // pred_check
          %p308 = pneg %p39
        $region50: #{fcn16_forward.37} parent=47 // pred_check_branch
          %310 = sbr.rel (%p308) target = $region52
        $region51: #{fcn16_forward.37} parent=47 // pred_region
          %p311 = scmp.lt.s32.totalorder %s19, 1
          %s312 = scalar_select %p311, %s19, 1
          %s313 = smul.addr %s312, 32
          %s314 = smul.addr %s313, 4
          %s315 = scalar_lea.vmem %s0, %s314
        $region52: #{fcn16_forward.37} parent=47 // pred_fallthru
          _
        // Predicated region
        $region53: #{fcn16_forward.37} parent=47 // pred_check
          %p316 = pneg %p65
        $region54: #{fcn16_forward.37} parent=47 // pred_check_branch
          %318 = sbr.rel (%p316) target = $region56
        $region55: #{fcn16_forward.37} parent=47 // pred_region
          %p319 = scmp.lt.s32.totalorder %s19, 1
          %s320 = scalar_select %p319, %s19, 1
          %s321 = smul.addr %s320, 64
          %s322 = smul.addr %s321, 4
          %s323 = scalar_lea.vmem %s1, %s322
        $region56: #{fcn16_forward.37} parent=47 // pred_fallthru
          _
      $region48: #{fcn16_forward.37} parent=5 // pred_fallthru
        _
      %p324 = scmp.le.s32.totalorder 1, %s19
      %p325 = scmp.lt.s32.totalorder %s19, 3
      %p326 = pnand %p324, %p325
      %p327 = pneg %p326
      // Predicated region
      $region57: #{fcn16_forward.37} parent=5 // pred_check
        _
      $region58: #{fcn16_forward.37} parent=5 // pred_check_branch
        %329 = sbr.rel (%p326) target = $region60
      $region59: #{fcn16_forward.37} parent=5 // pred_region
        %s330 = ssub.s32 %s19, 1
        %p331 = scmp.lt.s32.totalorder %s24, 1
        %s332 = scalar_select %p331, %s24, 1
        %s333 = smul.addr %s332, 32
        %s334 = smul.addr %s333, 4
        %s335 = scalar_lea.vmem %s0, %s334
        %p336 = pneg %p45
        %p337 = pneg %p42
        %p338 = scmp.lt.s32.totalorder %s24, 1
        %s339 = scalar_select %p338, %s24, 1
        %s340 = smul.addr %s339, 64
        %s341 = smul.addr %s340, 4
        %s342 = scalar_lea.vmem %s1, %s341
        %p343 = pneg %p71
        %p344 = pneg %p68
        %p345 = pneg %p92
        %p346 = pneg %p89
        %p347 = pneg %p113
        %p348 = pneg %p110
        %p349 = pneg %p134
        %p350 = pneg %p131
        %p351 = pneg %p155
        %p352 = pneg %p152
        %p353 = pneg %p176
        %p354 = pneg %p173
        %p355 = pneg %p197
        %p356 = pneg %p194
        %p357 = pneg %p218
        %p358 = pneg %p215
        %p359 = pneg %p239
        %p360 = pneg %p236
        %p361 = pneg %p265
        %p362 = pneg %p262
        %s363 = sand.u32 %s252, 1
        %s364 = scalar_lea.sflag [#allocation3], %s363
        %s365 = sand.u32 %s252, 1
        %s366 = smul.addr %s365, 256
        %s367 = scalar_lea.vmem [#allocation2], %s366
        %p368 = scmp.lt.s32.totalorder %s24, 1
        %s369 = scalar_select %p368, %s24, 1
        %s370 = smul.addr %s369, 32
        %s371 = smul.addr %s370, 4
        %s372 = scalar_lea.vmem %s0, %s371
        %p373 = scmp.lt.s32.totalorder %s24, 1
        %s374 = scalar_select %p373, %s24, 1
        %s375 = smul.addr %s374, 64
        %s376 = smul.addr %s375, 4
        %s377 = scalar_lea.vmem %s1, %s376
        %v379 = vld [vmem:[%s2] sm:$0xf]
        %v380 = vld [vmem:[%s372] sm:$0xf]
        %v381 = vld [vmem:[%s372 + $0x4] sm:$0xf]
        %v382 = vld [vmem:[%s372 + $0x8] sm:$0xf]
        %v383 = vld [vmem:[%s372 + $0xc] sm:$0xf]
        %v384 = vld [vmem:[%s372 + $0x10] sm:$0xf]
        %v385 = vld [vmem:[%s372 + $0x14] sm:$0xf]
        %v386 = vld [vmem:[%s372 + $0x18] sm:$0xf]
        %v387 = vld [vmem:[%s372 + $0x1c] sm:$0xf]
        %v388 = vld [vmem:[%s372 + $0x20] sm:$0xf]
        %v389 = vld [vmem:[%s372 + $0x24] sm:$0xf]
        %v390 = vld [vmem:[%s372 + $0x28] sm:$0xf]
        %v391 = vld [vmem:[%s372 + $0x2c] sm:$0xf]
        %v392 = vld [vmem:[%s372 + $0x30] sm:$0xf]
        %v393 = vld [vmem:[%s372 + $0x34] sm:$0xf]
        %v394 = vld [vmem:[%s372 + $0x38] sm:$0xf]
        %v395 = vld [vmem:[%s372 + $0x3c] sm:$0xf]
        %v396 = vld [vmem:[%s3] sm:$0xff]
        %398 = vset.pattern.permute.xlu0 0
        %399 = vperm.xlu0 %398, %v396
        %v400 = vpop.permute.xlu0 %399
        %v418 = vunpack.c.l.b16 %v380
        %v419 = vunpack.c.l.b16 %v381
        %v420 = vunpack.c.l.b16 %v382
        %v421 = vunpack.c.l.b16 %v383
        %v422 = vunpack.c.l.b16 %v384
        %v423 = vunpack.c.l.b16 %v385
        %v424 = vunpack.c.l.b16 %v386
        %v425 = vunpack.c.l.b16 %v387
        %v426 = vunpack.c.l.b16 %v388
        %v427 = vunpack.c.l.b16 %v389
        %v428 = vunpack.c.l.b16 %v390
        %v429 = vunpack.c.l.b16 %v391
        %v430 = vunpack.c.l.b16 %v392
        %v431 = vunpack.c.l.b16 %v393
        %v432 = vunpack.c.l.b16 %v394
        %v433 = vunpack.c.l.b16 %v395
        %v434 = vpack.c.b16 %v419, %v418
        %v435 = vpack.c.b16 %v421, %v420
        %v436 = vpack.c.b16 %v423, %v422
        %v437 = vpack.c.b16 %v425, %v424
        %v438 = vpack.c.b16 %v427, %v426
        %v439 = vpack.c.b16 %v429, %v428
        %v440 = vpack.c.b16 %v431, %v430
        %v441 = vpack.c.b16 %v433, %v432
        %450 = vmatprep.subr.bf16.mxu0 0
        %451 = vmatpush1.bf16.msra.mxu0 %v434
        %452 = vmatprep.subr.bf16.mxu0 0
        %453 = vmatpush1.bf16.msra.mxu0 %v435
        %454 = vmatprep.subr.bf16.mxu0 0
        %455 = vmatpush1.bf16.msra.mxu0 %v436
        %456 = vmatprep.subr.bf16.mxu0 0
        %457 = vmatpush1.bf16.msra.mxu0 %v437
        %458 = vmatprep.subr.bf16.mxu0 0
        %459 = vmatpush1.bf16.msra.mxu0 %v438
        %460 = vmatprep.subr.bf16.mxu0 0
        %461 = vmatpush1.bf16.msra.mxu0 %v439
        %462 = vmatprep.subr.bf16.mxu0 0
        %463 = vmatpush1.bf16.msra.mxu0 %v440
        %464 = vmatprep.subr.bf16.mxu0 0
        %465 = vmatpush1.bf16.msra.mxu0 %v441
        %466 = vmatprep.subr.bf16.mxu0 0
        %467 = vmatpush1.bf16.msra.mxu0 0
        %468 = vmatprep.subr.bf16.mxu0 0
        %469 = vmatpush1.bf16.msra.mxu0 0
        %470 = vmatprep.subr.bf16.mxu0 0
        %471 = vmatpush1.bf16.msra.mxu0 0
        %472 = vmatprep.subr.bf16.mxu0 0
        %473 = vmatpush1.bf16.msra.mxu0 0
        %474 = vmatprep.subr.bf16.mxu0 0
        %475 = vmatpush1.bf16.msra.mxu0 0
        %476 = vmatprep.subr.bf16.mxu0 0
        %477 = vmatpush1.bf16.msra.mxu0 0
        %478 = vmatprep.subr.bf16.mxu0 0
        %479 = vmatpush1.bf16.msra.mxu0 0
        %480 = vmatprep.subr.bf16.mxu0 0
        %481 = vmatpush1.bf16.msra.mxu0 0
        %482 = vmatprep.mubr.bf16.mxu0 0
        %483 = vmatmul.mubr.bf16.gmra.mrb[0].mxu0 %v379
        %v484 = vpop.f32.mrb[0].mxu0
        %v485 = vadd.f32 %v400, %v484
        %v486 = vpop.f32.mrb[0].mxu0
        %v487 = vpop.f32.mrb[0].mxu0
        %v488 = vpop.f32.mrb[0].mxu0
        %489 = vdwg.mxu0
        %v490 = vld [vmem:[%s7] sm:$0x3]
        %vm491 = vcmask 15360
        %v493 = vsel %vm491, %v485, 0
        %vm495 = vcmask 1041408
        %v497 = vsel %vm495, %v490, 0
        %499 = vmatprep.subr.mxu0 0.0
        %500 = vmatpush1.msra.mxu0 %v497
        %501 = vmatprep.subr.mxu0 0.0
        %502 = vmatpush1.msra.mxu0 0.0
        %503 = vmatprep.subr.mxu0 0.0
        %504 = vmatpush1.msra.mxu0 0.0
        %505 = vmatprep.subr.mxu0 0.0
        %506 = vmatpush1.msra.mxu0 0.0
        %507 = vmatprep.subr.mxu0 0.0
        %508 = vmatpush1.msra.mxu0 0.0
        %509 = vmatprep.subr.mxu0 0.0
        %510 = vmatpush1.msra.mxu0 0.0
        %511 = vmatprep.subr.mxu0 0.0
        %512 = vmatpush1.msra.mxu0 0.0
        %513 = vmatprep.subr.mxu0 0.0
        %514 = vmatpush1.msra.mxu0 0.0
        %515 = vmatprep.subr.mxu0 0.0
        %516 = vmatpush1.msra.mxu0 0.0
        %517 = vmatprep.subr.mxu0 0.0
        %518 = vmatpush1.msra.mxu0 0.0
        %519 = vmatprep.subr.mxu0 0.0
        %520 = vmatpush1.msra.mxu0 0.0
        %521 = vmatprep.subr.mxu0 0.0
        %522 = vmatpush1.msra.mxu0 0.0
        %523 = vmatprep.subr.mxu0 0.0
        %524 = vmatpush1.msra.mxu0 0.0
        %525 = vmatprep.subr.mxu0 0.0
        %526 = vmatpush1.msra.mxu0 0.0
        %527 = vmatprep.subr.mxu0 0.0
        %528 = vmatpush1.msra.mxu0 0.0
        %529 = vmatprep.subr.mxu0 0.0
        %530 = vmatpush1.msra.mxu0 0.0
        %531 = vmatprep.subr.mxu0 0.0
        %532 = vmatpush1.msra.mxu0 0.0
        %533 = vmatprep.subr.mxu0 0.0
        %534 = vmatpush1.msra.mxu0 0.0
        %535 = vmatprep.subr.mxu0 0.0
        %536 = vmatpush1.msra.mxu0 0.0
        %537 = vmatprep.subr.mxu0 0.0
        %538 = vmatpush1.msra.mxu0 0.0
        %539 = vmatprep.subr.mxu0 0.0
        %540 = vmatpush1.msra.mxu0 0.0
        %541 = vmatprep.subr.mxu0 0.0
        %542 = vmatpush1.msra.mxu0 0.0
        %543 = vmatprep.subr.mxu0 0.0
        %544 = vmatpush1.msra.mxu0 0.0
        %545 = vmatprep.subr.mxu0 0.0
        %546 = vmatpush1.msra.mxu0 0.0
        %547 = vmatprep.subr.mxu0 0.0
        %548 = vmatpush1.msra.mxu0 0.0
        %549 = vmatprep.subr.mxu0 0.0
        %550 = vmatpush1.msra.mxu0 0.0
        %551 = vmatprep.subr.mxu0 0.0
        %552 = vmatpush1.msra.mxu0 0.0
        %553 = vmatprep.subr.mxu0 0.0
        %554 = vmatpush1.msra.mxu0 0.0
        %555 = vmatprep.subr.mxu0 0.0
        %556 = vmatpush1.msra.mxu0 0.0
        %557 = vmatprep.subr.mxu0 0.0
        %558 = vmatpush1.msra.mxu0 0.0
        %559 = vmatprep.subr.mxu0 0.0
        %560 = vmatpush1.msra.mxu0 0.0
        %561 = vmatprep.subr.mxu0 0.0
        %562 = vmatpush1.msra.mxu0 0.0
        %563 = vmatprep.mubr.f32.mxu0 0.0
        %564 = vmatmul.mubr.f32.gmra.mrb[0].mxu0 %v493
        %v565 = vpop.f32.mrb[0].mxu0
        %v566 = vadd.f32 0.0, %v565
        %v567 = vpop.f32.mrb[0].mxu0
        %568 = vdwg.mxu0
        %s569 = scalar_lea.vmem %s372, 64
        %v570 = vld [vmem:[%s569] sm:$0xf]
        %v571 = vld [vmem:[%s569 + $0x4] sm:$0xf]
        %v572 = vld [vmem:[%s569 + $0x8] sm:$0xf]
        %v573 = vld [vmem:[%s569 + $0xc] sm:$0xf]
        %v574 = vld [vmem:[%s569 + $0x10] sm:$0xf]
        %v575 = vld [vmem:[%s569 + $0x14] sm:$0xf]
        %v576 = vld [vmem:[%s569 + $0x18] sm:$0xf]
        %v577 = vld [vmem:[%s569 + $0x1c] sm:$0xf]
        %v578 = vld [vmem:[%s569 + $0x20] sm:$0xf]
        %v579 = vld [vmem:[%s569 + $0x24] sm:$0xf]
        %v580 = vld [vmem:[%s569 + $0x28] sm:$0xf]
        %v581 = vld [vmem:[%s569 + $0x2c] sm:$0xf]
        %v582 = vld [vmem:[%s569 + $0x30] sm:$0xf]
        %v583 = vld [vmem:[%s569 + $0x34] sm:$0xf]
        %v584 = vld [vmem:[%s569 + $0x38] sm:$0xf]
        %v585 = vld [vmem:[%s569 + $0x3c] sm:$0xf]
        %v602 = vunpack.c.l.b16 %v570
        %v603 = vunpack.c.l.b16 %v571
        %v604 = vunpack.c.l.b16 %v572
        %v605 = vunpack.c.l.b16 %v573
        %v606 = vunpack.c.l.b16 %v574
        %v607 = vunpack.c.l.b16 %v575
        %v608 = vunpack.c.l.b16 %v576
        %v609 = vunpack.c.l.b16 %v577
        %v610 = vunpack.c.l.b16 %v578
        %v611 = vunpack.c.l.b16 %v579
        %v612 = vunpack.c.l.b16 %v580
        %v613 = vunpack.c.l.b16 %v581
        %v614 = vunpack.c.l.b16 %v582
        %v615 = vunpack.c.l.b16 %v583
        %v616 = vunpack.c.l.b16 %v584
        %v617 = vunpack.c.l.b16 %v585
        %v618 = vpack.c.b16 %v603, %v602
        %v619 = vpack.c.b16 %v605, %v604
        %v620 = vpack.c.b16 %v607, %v606
        %v621 = vpack.c.b16 %v609, %v608
        %v622 = vpack.c.b16 %v611, %v610
        %v623 = vpack.c.b16 %v613, %v612
        %v624 = vpack.c.b16 %v615, %v614
        %v625 = vpack.c.b16 %v617, %v616
        %634 = vmatprep.subr.bf16.mxu0 0
        %635 = vmatpush1.bf16.msra.mxu0 %v618
        %636 = vmatprep.subr.bf16.mxu0 0
        %637 = vmatpush1.bf16.msra.mxu0 %v619
        %638 = vmatprep.subr.bf16.mxu0 0
        %639 = vmatpush1.bf16.msra.mxu0 %v620
        %640 = vmatprep.subr.bf16.mxu0 0
        %641 = vmatpush1.bf16.msra.mxu0 %v621
        %642 = vmatprep.subr.bf16.mxu0 0
        %643 = vmatpush1.bf16.msra.mxu0 %v622
        %644 = vmatprep.subr.bf16.mxu0 0
        %645 = vmatpush1.bf16.msra.mxu0 %v623
        %646 = vmatprep.subr.bf16.mxu0 0
        %647 = vmatpush1.bf16.msra.mxu0 %v624
        %648 = vmatprep.subr.bf16.mxu0 0
        %649 = vmatpush1.bf16.msra.mxu0 %v625
        %650 = vmatprep.subr.bf16.mxu0 0
        %651 = vmatpush1.bf16.msra.mxu0 0
        %652 = vmatprep.subr.bf16.mxu0 0
        %653 = vmatpush1.bf16.msra.mxu0 0
        %654 = vmatprep.subr.bf16.mxu0 0
        %655 = vmatpush1.bf16.msra.mxu0 0
        %656 = vmatprep.subr.bf16.mxu0 0
        %657 = vmatpush1.bf16.msra.mxu0 0
        %658 = vmatprep.subr.bf16.mxu0 0
        %659 = vmatpush1.bf16.msra.mxu0 0
        %660 = vmatprep.subr.bf16.mxu0 0
        %661 = vmatpush1.bf16.msra.mxu0 0
        %662 = vmatprep.subr.bf16.mxu0 0
        %663 = vmatpush1.bf16.msra.mxu0 0
        %664 = vmatprep.subr.bf16.mxu0 0
        %665 = vmatpush1.bf16.msra.mxu0 0
        %666 = vmatprep.mubr.bf16.mxu0 0
        %667 = vmatmul.mubr.bf16.gmra.mrb[0].mxu0 %v379
        %v668 = vpop.f32.mrb[0].mxu0
        %v669 = vadd.f32 %v400, %v668
        %v670 = vpop.f32.mrb[0].mxu0
        %v671 = vpop.f32.mrb[0].mxu0
        %v672 = vpop.f32.mrb[0].mxu0
        %673 = vdwg.mxu0
        %v675 = vsel %vm491, %v669, 0
        %677 = vmatprep.subr.mxu0 0.0
        %678 = vmatpush1.msra.mxu0 %v497
        %679 = vmatprep.subr.mxu0 0.0
        %680 = vmatpush1.msra.mxu0 0.0
        %681 = vmatprep.subr.mxu0 0.0
        %682 = vmatpush1.msra.mxu0 0.0
        %683 = vmatprep.subr.mxu0 0.0
        %684 = vmatpush1.msra.mxu0 0.0
        %685 = vmatprep.subr.mxu0 0.0
        %686 = vmatpush1.msra.mxu0 0.0
        %687 = vmatprep.subr.mxu0 0.0
        %688 = vmatpush1.msra.mxu0 0.0
        %689 = vmatprep.subr.mxu0 0.0
        %690 = vmatpush1.msra.mxu0 0.0
        %691 = vmatprep.subr.mxu0 0.0
        %692 = vmatpush1.msra.mxu0 0.0
        %693 = vmatprep.subr.mxu0 0.0
        %694 = vmatpush1.msra.mxu0 0.0
        %695 = vmatprep.subr.mxu0 0.0
        %696 = vmatpush1.msra.mxu0 0.0
        %697 = vmatprep.subr.mxu0 0.0
        %698 = vmatpush1.msra.mxu0 0.0
        %699 = vmatprep.subr.mxu0 0.0
        %700 = vmatpush1.msra.mxu0 0.0
        %701 = vmatprep.subr.mxu0 0.0
        %702 = vmatpush1.msra.mxu0 0.0
        %703 = vmatprep.subr.mxu0 0.0
        %704 = vmatpush1.msra.mxu0 0.0
        %705 = vmatprep.subr.mxu0 0.0
        %706 = vmatpush1.msra.mxu0 0.0
        %707 = vmatprep.subr.mxu0 0.0
        %708 = vmatpush1.msra.mxu0 0.0
        %709 = vmatprep.subr.mxu0 0.0
        %710 = vmatpush1.msra.mxu0 0.0
        %711 = vmatprep.subr.mxu0 0.0
        %712 = vmatpush1.msra.mxu0 0.0
        %713 = vmatprep.subr.mxu0 0.0
        %714 = vmatpush1.msra.mxu0 0.0
        %715 = vmatprep.subr.mxu0 0.0
        %716 = vmatpush1.msra.mxu0 0.0
        %717 = vmatprep.subr.mxu0 0.0
        %718 = vmatpush1.msra.mxu0 0.0
        %719 = vmatprep.subr.mxu0 0.0
        %720 = vmatpush1.msra.mxu0 0.0
        %721 = vmatprep.subr.mxu0 0.0
        %722 = vmatpush1.msra.mxu0 0.0
        %723 = vmatprep.subr.mxu0 0.0
        %724 = vmatpush1.msra.mxu0 0.0
        %725 = vmatprep.subr.mxu0 0.0
        %726 = vmatpush1.msra.mxu0 0.0
        %727 = vmatprep.subr.mxu0 0.0
        %728 = vmatpush1.msra.mxu0 0.0
        %729 = vmatprep.subr.mxu0 0.0
        %730 = vmatpush1.msra.mxu0 0.0
        %731 = vmatprep.subr.mxu0 0.0
        %732 = vmatpush1.msra.mxu0 0.0
        %733 = vmatprep.subr.mxu0 0.0
        %734 = vmatpush1.msra.mxu0 0.0
        %735 = vmatprep.subr.mxu0 0.0
        %736 = vmatpush1.msra.mxu0 0.0
        %737 = vmatprep.subr.mxu0 0.0
        %738 = vmatpush1.msra.mxu0 0.0
        %739 = vmatprep.subr.mxu0 0.0
        %740 = vmatpush1.msra.mxu0 0.0
        %741 = vmatprep.mubr.f32.mxu0 0.0
        %742 = vmatmul.mubr.f32.gmra.mrb[0].mxu0 %v675
        %v743 = vpop.f32.mrb[0].mxu0
        %v744 = vadd.f32 0.0, %v743
        %v745 = vpop.f32.mrb[0].mxu0
        %746 = vdwg.mxu0
        %v747 = vld [vmem:[%s4] sm:$0xf]
        %v748 = vld [vmem:[%s377] sm:$0xf]
        %v749 = vld [vmem:[%s377 + $0x4] sm:$0xf]
        %v750 = vld [vmem:[%s377 + $0x8] sm:$0xf]
        %v751 = vld [vmem:[%s377 + $0xc] sm:$0xf]
        %v752 = vld [vmem:[%s377 + $0x10] sm:$0xf]
        %v753 = vld [vmem:[%s377 + $0x14] sm:$0xf]
        %v754 = vld [vmem:[%s377 + $0x18] sm:$0xf]
        %v755 = vld [vmem:[%s377 + $0x1c] sm:$0xf]
        %v756 = vld [vmem:[%s377 + $0x20] sm:$0xf]
        %v757 = vld [vmem:[%s377 + $0x24] sm:$0xf]
        %v758 = vld [vmem:[%s377 + $0x28] sm:$0xf]
        %v759 = vld [vmem:[%s377 + $0x2c] sm:$0xf]
        %v760 = vld [vmem:[%s377 + $0x30] sm:$0xf]
        %v761 = vld [vmem:[%s377 + $0x34] sm:$0xf]
        %v762 = vld [vmem:[%s377 + $0x38] sm:$0xf]
        %v763 = vld [vmem:[%s377 + $0x3c] sm:$0xf]
        %v764 = vld [vmem:[%s5] sm:$0xff]
        %766 = vset.pattern.permute.xlu0 0
        %767 = vperm.xlu0 %766, %v764
        %v768 = vpop.permute.xlu0 %767
        %v786 = vunpack.c.l.b16 %v748
        %v787 = vunpack.c.l.b16 %v749
        %v788 = vunpack.c.l.b16 %v750
        %v789 = vunpack.c.l.b16 %v751
        %v790 = vunpack.c.l.b16 %v752
        %v791 = vunpack.c.l.b16 %v753
        %v792 = vunpack.c.l.b16 %v754
        %v793 = vunpack.c.l.b16 %v755
        %v794 = vunpack.c.l.b16 %v756
        %v795 = vunpack.c.l.b16 %v757
        %v796 = vunpack.c.l.b16 %v758
        %v797 = vunpack.c.l.b16 %v759
        %v798 = vunpack.c.l.b16 %v760
        %v799 = vunpack.c.l.b16 %v761
        %v800 = vunpack.c.l.b16 %v762
        %v801 = vunpack.c.l.b16 %v763
        %v802 = vpack.c.b16 %v787, %v786
        %v803 = vpack.c.b16 %v789, %v788
        %v804 = vpack.c.b16 %v791, %v790
        %v805 = vpack.c.b16 %v793, %v792
        %v806 = vpack.c.b16 %v795, %v794
        %v807 = vpack.c.b16 %v797, %v796
        %v808 = vpack.c.b16 %v799, %v798
        %v809 = vpack.c.b16 %v801, %v800
        %818 = vmatprep.subr.bf16.mxu0 0
        %819 = vmatpush1.bf16.msra.mxu0 %v802
        %820 = vmatprep.subr.bf16.mxu0 0
        %821 = vmatpush1.bf16.msra.mxu0 %v803
        %822 = vmatprep.subr.bf16.mxu0 0
        %823 = vmatpush1.bf16.msra.mxu0 %v804
        %824 = vmatprep.subr.bf16.mxu0 0
        %825 = vmatpush1.bf16.msra.mxu0 %v805
        %826 = vmatprep.subr.bf16.mxu0 0
        %827 = vmatpush1.bf16.msra.mxu0 %v806
        %828 = vmatprep.subr.bf16.mxu0 0
        %829 = vmatpush1.bf16.msra.mxu0 %v807
        %830 = vmatprep.subr.bf16.mxu0 0
        %831 = vmatpush1.bf16.msra.mxu0 %v808
        %832 = vmatprep.subr.bf16.mxu0 0
        %833 = vmatpush1.bf16.msra.mxu0 %v809
        %834 = vmatprep.subr.bf16.mxu0 0
        %835 = vmatpush1.bf16.msra.mxu0 0
        %836 = vmatprep.subr.bf16.mxu0 0
        %837 = vmatpush1.bf16.msra.mxu0 0
        %838 = vmatprep.subr.bf16.mxu0 0
        %839 = vmatpush1.bf16.msra.mxu0 0
        %840 = vmatprep.subr.bf16.mxu0 0
        %841 = vmatpush1.bf16.msra.mxu0 0
        %842 = vmatprep.subr.bf16.mxu0 0
        %843 = vmatpush1.bf16.msra.mxu0 0
        %844 = vmatprep.subr.bf16.mxu0 0
        %845 = vmatpush1.bf16.msra.mxu0 0
        %846 = vmatprep.subr.bf16.mxu0 0
        %847 = vmatpush1.bf16.msra.mxu0 0
        %848 = vmatprep.subr.bf16.mxu0 0
        %849 = vmatpush1.bf16.msra.mxu0 0
        %850 = vmatprep.mubr.bf16.mxu0 0
        %851 = vmatmul.mubr.bf16.gmra.mrb[0].mxu0 %v747
        %v852 = vpop.f32.mrb[0].mxu0
        %v853 = vadd.f32 %v768, %v852
        %v854 = vpop.f32.mrb[0].mxu0
        %v855 = vpop.f32.mrb[0].mxu0
        %v856 = vpop.f32.mrb[0].mxu0
        %857 = vdwg.mxu0
        %v858 = vld [vmem:[%s9] sm:$0xf]
        %vm859 = vcmask 31744
        %v861 = vsel %vm859, %v853, 0
        %vm863 = vcmask 1043456
        %v865 = vsel %vm863, %v858, 0
        %867 = vmatprep.subr.mxu0 0.0
        %868 = vmatpush1.msra.mxu0 %v865
        %869 = vmatprep.subr.mxu0 0.0
        %870 = vmatpush1.msra.mxu0 0.0
        %871 = vmatprep.subr.mxu0 0.0
        %872 = vmatpush1.msra.mxu0 0.0
        %873 = vmatprep.subr.mxu0 0.0
        %874 = vmatpush1.msra.mxu0 0.0
        %875 = vmatprep.subr.mxu0 0.0
        %876 = vmatpush1.msra.mxu0 0.0
        %877 = vmatprep.subr.mxu0 0.0
        %878 = vmatpush1.msra.mxu0 0.0
        %879 = vmatprep.subr.mxu0 0.0
        %880 = vmatpush1.msra.mxu0 0.0
        %881 = vmatprep.subr.mxu0 0.0
        %882 = vmatpush1.msra.mxu0 0.0
        %883 = vmatprep.subr.mxu0 0.0
        %884 = vmatpush1.msra.mxu0 0.0
        %885 = vmatprep.subr.mxu0 0.0
        %886 = vmatpush1.msra.mxu0 0.0
        %887 = vmatprep.subr.mxu0 0.0
        %888 = vmatpush1.msra.mxu0 0.0
        %889 = vmatprep.subr.mxu0 0.0
        %890 = vmatpush1.msra.mxu0 0.0
        %891 = vmatprep.subr.mxu0 0.0
        %892 = vmatpush1.msra.mxu0 0.0
        %893 = vmatprep.subr.mxu0 0.0
        %894 = vmatpush1.msra.mxu0 0.0
        %895 = vmatprep.subr.mxu0 0.0
        %896 = vmatpush1.msra.mxu0 0.0
        %897 = vmatprep.subr.mxu0 0.0
        %898 = vmatpush1.msra.mxu0 0.0
        %899 = vmatprep.subr.mxu0 0.0
        %900 = vmatpush1.msra.mxu0 0.0
        %901 = vmatprep.subr.mxu0 0.0
        %902 = vmatpush1.msra.mxu0 0.0
        %903 = vmatprep.subr.mxu0 0.0
        %904 = vmatpush1.msra.mxu0 0.0
        %905 = vmatprep.subr.mxu0 0.0
        %906 = vmatpush1.msra.mxu0 0.0
        %907 = vmatprep.subr.mxu0 0.0
        %908 = vmatpush1.msra.mxu0 0.0
        %909 = vmatprep.subr.mxu0 0.0
        %910 = vmatpush1.msra.mxu0 0.0
        %911 = vmatprep.subr.mxu0 0.0
        %912 = vmatpush1.msra.mxu0 0.0
        %913 = vmatprep.subr.mxu0 0.0
        %914 = vmatpush1.msra.mxu0 0.0
        %915 = vmatprep.subr.mxu0 0.0
        %916 = vmatpush1.msra.mxu0 0.0
        %917 = vmatprep.subr.mxu0 0.0
        %918 = vmatpush1.msra.mxu0 0.0
        %919 = vmatprep.subr.mxu0 0.0
        %920 = vmatpush1.msra.mxu0 0.0
        %921 = vmatprep.subr.mxu0 0.0
        %922 = vmatpush1.msra.mxu0 0.0
        %923 = vmatprep.subr.mxu0 0.0
        %924 = vmatpush1.msra.mxu0 0.0
        %925 = vmatprep.subr.mxu0 0.0
        %926 = vmatpush1.msra.mxu0 0.0
        %927 = vmatprep.subr.mxu0 0.0
        %928 = vmatpush1.msra.mxu0 0.0
        %929 = vmatprep.subr.mxu0 0.0
        %930 = vmatpush1.msra.mxu0 0.0
        %931 = vmatprep.mubr.f32.mxu0 0.0
        %932 = vmatmul.mubr.f32.gmra.mrb[0].mxu0 %v861
        %v933 = vpop.f32.mrb[0].mxu0
        %v934 = vadd.f32 0.0, %v933
        %v935 = vpop.f32.mrb[0].mxu0
        %936 = vdwg.mxu0
        %s937 = scalar_lea.vmem %s377, 64
        %v938 = vld [vmem:[%s937] sm:$0xf]
        %v939 = vld [vmem:[%s937 + $0x4] sm:$0xf]
        %v940 = vld [vmem:[%s937 + $0x8] sm:$0xf]
        %v941 = vld [vmem:[%s937 + $0xc] sm:$0xf]
        %v942 = vld [vmem:[%s937 + $0x10] sm:$0xf]
        %v943 = vld [vmem:[%s937 + $0x14] sm:$0xf]
        %v944 = vld [vmem:[%s937 + $0x18] sm:$0xf]
        %v945 = vld [vmem:[%s937 + $0x1c] sm:$0xf]
        %v946 = vld [vmem:[%s937 + $0x20] sm:$0xf]
        %v947 = vld [vmem:[%s937 + $0x24] sm:$0xf]
        %v948 = vld [vmem:[%s937 + $0x28] sm:$0xf]
        %v949 = vld [vmem:[%s937 + $0x2c] sm:$0xf]
        %v950 = vld [vmem:[%s937 + $0x30] sm:$0xf]
        %v951 = vld [vmem:[%s937 + $0x34] sm:$0xf]
        %v952 = vld [vmem:[%s937 + $0x38] sm:$0xf]
        %v953 = vld [vmem:[%s937 + $0x3c] sm:$0xf]
        %v970 = vunpack.c.l.b16 %v938
        %v971 = vunpack.c.l.b16 %v939
        %v972 = vunpack.c.l.b16 %v940
        %v973 = vunpack.c.l.b16 %v941
        %v974 = vunpack.c.l.b16 %v942
        %v975 = vunpack.c.l.b16 %v943
        %v976 = vunpack.c.l.b16 %v944
        %v977 = vunpack.c.l.b16 %v945
        %v978 = vunpack.c.l.b16 %v946
        %v979 = vunpack.c.l.b16 %v947
        %v980 = vunpack.c.l.b16 %v948
        %v981 = vunpack.c.l.b16 %v949
        %v982 = vunpack.c.l.b16 %v950
        %v983 = vunpack.c.l.b16 %v951
        %v984 = vunpack.c.l.b16 %v952
        %v985 = vunpack.c.l.b16 %v953
        %v986 = vpack.c.b16 %v971, %v970
        %v987 = vpack.c.b16 %v973, %v972
        %v988 = vpack.c.b16 %v975, %v974
        %v989 = vpack.c.b16 %v977, %v976
        %v990 = vpack.c.b16 %v979, %v978
        %v991 = vpack.c.b16 %v981, %v980
        %v992 = vpack.c.b16 %v983, %v982
        %v993 = vpack.c.b16 %v985, %v984
        %1002 = vmatprep.subr.bf16.mxu0 0
        %1003 = vmatpush1.bf16.msra.mxu0 %v986
        %1004 = vmatprep.subr.bf16.mxu0 0
        %1005 = vmatpush1.bf16.msra.mxu0 %v987
        %1006 = vmatprep.subr.bf16.mxu0 0
        %1007 = vmatpush1.bf16.msra.mxu0 %v988
        %1008 = vmatprep.subr.bf16.mxu0 0
        %1009 = vmatpush1.bf16.msra.mxu0 %v989
        %1010 = vmatprep.subr.bf16.mxu0 0
        %1011 = vmatpush1.bf16.msra.mxu0 %v990
        %1012 = vmatprep.subr.bf16.mxu0 0
        %1013 = vmatpush1.bf16.msra.mxu0 %v991
        %1014 = vmatprep.subr.bf16.mxu0 0
        %1015 = vmatpush1.bf16.msra.mxu0 %v992
        %1016 = vmatprep.subr.bf16.mxu0 0
        %1017 = vmatpush1.bf16.msra.mxu0 %v993
        %1018 = vmatprep.subr.bf16.mxu0 0
        %1019 = vmatpush1.bf16.msra.mxu0 0
        %1020 = vmatprep.subr.bf16.mxu0 0
        %1021 = vmatpush1.bf16.msra.mxu0 0
        %1022 = vmatprep.subr.bf16.mxu0 0
        %1023 = vmatpush1.bf16.msra.mxu0 0
        %1024 = vmatprep.subr.bf16.mxu0 0
        %1025 = vmatpush1.bf16.msra.mxu0 0
        %1026 = vmatprep.subr.bf16.mxu0 0
        %1027 = vmatpush1.bf16.msra.mxu0 0
        %1028 = vmatprep.subr.bf16.mxu0 0
        %1029 = vmatpush1.bf16.msra.mxu0 0
        %1030 = vmatprep.subr.bf16.mxu0 0
        %1031 = vmatpush1.bf16.msra.mxu0 0
        %1032 = vmatprep.subr.bf16.mxu0 0
        %1033 = vmatpush1.bf16.msra.mxu0 0
        %1034 = vmatprep.mubr.bf16.mxu0 0
        %1035 = vmatmul.mubr.bf16.gmra.mrb[0].mxu0 %v747
        %v1036 = vpop.f32.mrb[0].mxu0
        %v1037 = vadd.f32 %v768, %v1036
        %v1038 = vpop.f32.mrb[0].mxu0
        %v1039 = vpop.f32.mrb[0].mxu0
        %v1040 = vpop.f32.mrb[0].mxu0
        %1041 = vdwg.mxu0
        %v1043 = vsel %vm859, %v1037, 0
        %1045 = vmatprep.subr.mxu0 0.0
        %1046 = vmatpush1.msra.mxu0 %v865
        %1047 = vmatprep.subr.mxu0 0.0
        %1048 = vmatpush1.msra.mxu0 0.0
        %1049 = vmatprep.subr.mxu0 0.0
        %1050 = vmatpush1.msra.mxu0 0.0
        %1051 = vmatprep.subr.mxu0 0.0
        %1052 = vmatpush1.msra.mxu0 0.0
        %1053 = vmatprep.subr.mxu0 0.0
        %1054 = vmatpush1.msra.mxu0 0.0
        %1055 = vmatprep.subr.mxu0 0.0
        %1056 = vmatpush1.msra.mxu0 0.0
        %1057 = vmatprep.subr.mxu0 0.0
        %1058 = vmatpush1.msra.mxu0 0.0
        %1059 = vmatprep.subr.mxu0 0.0
        %1060 = vmatpush1.msra.mxu0 0.0
        %1061 = vmatprep.subr.mxu0 0.0
        %1062 = vmatpush1.msra.mxu0 0.0
        %1063 = vmatprep.subr.mxu0 0.0
        %1064 = vmatpush1.msra.mxu0 0.0
        %1065 = vmatprep.subr.mxu0 0.0
        %1066 = vmatpush1.msra.mxu0 0.0
        %1067 = vmatprep.subr.mxu0 0.0
        %1068 = vmatpush1.msra.mxu0 0.0
        %1069 = vmatprep.subr.mxu0 0.0
        %1070 = vmatpush1.msra.mxu0 0.0
        %1071 = vmatprep.subr.mxu0 0.0
        %1072 = vmatpush1.msra.mxu0 0.0
        %1073 = vmatprep.subr.mxu0 0.0
        %1074 = vmatpush1.msra.mxu0 0.0
        %1075 = vmatprep.subr.mxu0 0.0
        %1076 = vmatpush1.msra.mxu0 0.0
        %1077 = vmatprep.subr.mxu0 0.0
        %1078 = vmatpush1.msra.mxu0 0.0
        %1079 = vmatprep.subr.mxu0 0.0
        %1080 = vmatpush1.msra.mxu0 0.0
        %1081 = vmatprep.subr.mxu0 0.0
        %1082 = vmatpush1.msra.mxu0 0.0
        %1083 = vmatprep.subr.mxu0 0.0
        %1084 = vmatpush1.msra.mxu0 0.0
        %1085 = vmatprep.subr.mxu0 0.0
        %1086 = vmatpush1.msra.mxu0 0.0
        %1087 = vmatprep.subr.mxu0 0.0
        %1088 = vmatpush1.msra.mxu0 0.0
        %1089 = vmatprep.subr.mxu0 0.0
        %1090 = vmatpush1.msra.mxu0 0.0
        %1091 = vmatprep.subr.mxu0 0.0
        %1092 = vmatpush1.msra.mxu0 0.0
        %1093 = vmatprep.subr.mxu0 0.0
        %1094 = vmatpush1.msra.mxu0 0.0
        %1095 = vmatprep.subr.mxu0 0.0
        %1096 = vmatpush1.msra.mxu0 0.0
        %1097 = vmatprep.subr.mxu0 0.0
        %1098 = vmatpush1.msra.mxu0 0.0
        %1099 = vmatprep.subr.mxu0 0.0
        %1100 = vmatpush1.msra.mxu0 0.0
        %1101 = vmatprep.subr.mxu0 0.0
        %1102 = vmatpush1.msra.mxu0 0.0
        %1103 = vmatprep.subr.mxu0 0.0
        %1104 = vmatpush1.msra.mxu0 0.0
        %1105 = vmatprep.subr.mxu0 0.0
        %1106 = vmatpush1.msra.mxu0 0.0
        %1107 = vmatprep.subr.mxu0 0.0
        %1108 = vmatpush1.msra.mxu0 0.0
        %1109 = vmatprep.mubr.f32.mxu0 0.0
        %1110 = vmatmul.mubr.f32.gmra.mrb[0].mxu0 %v1043
        %v1111 = vpop.f32.mrb[0].mxu0
        %v1112 = vadd.f32 0.0, %v1111
        %v1113 = vpop.f32.mrb[0].mxu0
        %1114 = vdwg.mxu0
        %s1115 = scalar_lea.vmem %s377, 128
        %v1116 = vld [vmem:[%s1115] sm:$0xf]
        %v1117 = vld [vmem:[%s1115 + $0x4] sm:$0xf]
        %v1118 = vld [vmem:[%s1115 + $0x8] sm:$0xf]
        %v1119 = vld [vmem:[%s1115 + $0xc] sm:$0xf]
        %v1120 = vld [vmem:[%s1115 + $0x10] sm:$0xf]
        %v1121 = vld [vmem:[%s1115 + $0x14] sm:$0xf]
        %v1122 = vld [vmem:[%s1115 + $0x18] sm:$0xf]
        %v1123 = vld [vmem:[%s1115 + $0x1c] sm:$0xf]
        %v1124 = vld [vmem:[%s1115 + $0x20] sm:$0xf]
        %v1125 = vld [vmem:[%s1115 + $0x24] sm:$0xf]
        %v1126 = vld [vmem:[%s1115 + $0x28] sm:$0xf]
        %v1127 = vld [vmem:[%s1115 + $0x2c] sm:$0xf]
        %v1128 = vld [vmem:[%s1115 + $0x30] sm:$0xf]
        %v1129 = vld [vmem:[%s1115 + $0x34] sm:$0xf]
        %v1130 = vld [vmem:[%s1115 + $0x38] sm:$0xf]
        %v1131 = vld [vmem:[%s1115 + $0x3c] sm:$0xf]
        %v1148 = vunpack.c.l.b16 %v1116
        %v1149 = vunpack.c.l.b16 %v1117
        %v1150 = vunpack.c.l.b16 %v1118
        %v1151 = vunpack.c.l.b16 %v1119
        %v1152 = vunpack.c.l.b16 %v1120
        %v1153 = vunpack.c.l.b16 %v1121
        %v1154 = vunpack.c.l.b16 %v1122
        %v1155 = vunpack.c.l.b16 %v1123
        %v1156 = vunpack.c.l.b16 %v1124
        %v1157 = vunpack.c.l.b16 %v1125
        %v1158 = vunpack.c.l.b16 %v1126
        %v1159 = vunpack.c.l.b16 %v1127
        %v1160 = vunpack.c.l.b16 %v1128
        %v1161 = vunpack.c.l.b16 %v1129
        %v1162 = vunpack.c.l.b16 %v1130
        %v1163 = vunpack.c.l.b16 %v1131
        %v1164 = vpack.c.b16 %v1149, %v1148
        %v1165 = vpack.c.b16 %v1151, %v1150
        %v1166 = vpack.c.b16 %v1153, %v1152
        %v1167 = vpack.c.b16 %v1155, %v1154
        %v1168 = vpack.c.b16 %v1157, %v1156
        %v1169 = vpack.c.b16 %v1159, %v1158
        %v1170 = vpack.c.b16 %v1161, %v1160
        %v1171 = vpack.c.b16 %v1163, %v1162
        %1180 = vmatprep.subr.bf16.mxu0 0
        %1181 = vmatpush1.bf16.msra.mxu0 %v1164
        %1182 = vmatprep.subr.bf16.mxu0 0
        %1183 = vmatpush1.bf16.msra.mxu0 %v1165
        %1184 = vmatprep.subr.bf16.mxu0 0
        %1185 = vmatpush1.bf16.msra.mxu0 %v1166
        %1186 = vmatprep.subr.bf16.mxu0 0
        %1187 = vmatpush1.bf16.msra.mxu0 %v1167
        %1188 = vmatprep.subr.bf16.mxu0 0
        %1189 = vmatpush1.bf16.msra.mxu0 %v1168
        %1190 = vmatprep.subr.bf16.mxu0 0
        %1191 = vmatpush1.bf16.msra.mxu0 %v1169
        %1192 = vmatprep.subr.bf16.mxu0 0
        %1193 = vmatpush1.bf16.msra.mxu0 %v1170
        %1194 = vmatprep.subr.bf16.mxu0 0
        %1195 = vmatpush1.bf16.msra.mxu0 %v1171
        %1196 = vmatprep.subr.bf16.mxu0 0
        %1197 = vmatpush1.bf16.msra.mxu0 0
        %1198 = vmatprep.subr.bf16.mxu0 0
        %1199 = vmatpush1.bf16.msra.mxu0 0
        %1200 = vmatprep.subr.bf16.mxu0 0
        %1201 = vmatpush1.bf16.msra.mxu0 0
        %1202 = vmatprep.subr.bf16.mxu0 0
        %1203 = vmatpush1.bf16.msra.mxu0 0
        %1204 = vmatprep.subr.bf16.mxu0 0
        %1205 = vmatpush1.bf16.msra.mxu0 0
        %1206 = vmatprep.subr.bf16.mxu0 0
        %1207 = vmatpush1.bf16.msra.mxu0 0
        %1208 = vmatprep.subr.bf16.mxu0 0
        %1209 = vmatpush1.bf16.msra.mxu0 0
        %1210 = vmatprep.subr.bf16.mxu0 0
        %1211 = vmatpush1.bf16.msra.mxu0 0
        %1212 = vmatprep.mubr.bf16.mxu0 0
        %1213 = vmatmul.mubr.bf16.gmra.mrb[0].mxu0 %v747
        %v1214 = vpop.f32.mrb[0].mxu0
        %v1215 = vadd.f32 %v768, %v1214
        %v1216 = vpop.f32.mrb[0].mxu0
        %v1217 = vpop.f32.mrb[0].mxu0
        %v1218 = vpop.f32.mrb[0].mxu0
        %1219 = vdwg.mxu0
        %v1221 = vsel %vm859, %v1215, 0
        %1223 = vmatprep.subr.mxu0 0.0
        %1224 = vmatpush1.msra.mxu0 %v865
        %1225 = vmatprep.subr.mxu0 0.0
        %1226 = vmatpush1.msra.mxu0 0.0
        %1227 = vmatprep.subr.mxu0 0.0
        %1228 = vmatpush1.msra.mxu0 0.0
        %1229 = vmatprep.subr.mxu0 0.0
        %1230 = vmatpush1.msra.mxu0 0.0
        %1231 = vmatprep.subr.mxu0 0.0
        %1232 = vmatpush1.msra.mxu0 0.0
        %1233 = vmatprep.subr.mxu0 0.0
        %1234 = vmatpush1.msra.mxu0 0.0
        %1235 = vmatprep.subr.mxu0 0.0
        %1236 = vmatpush1.msra.mxu0 0.0
        %1237 = vmatprep.subr.mxu0 0.0
        %1238 = vmatpush1.msra.mxu0 0.0
        %1239 = vmatprep.subr.mxu0 0.0
        %1240 = vmatpush1.msra.mxu0 0.0
        %1241 = vmatprep.subr.mxu0 0.0
        %1242 = vmatpush1.msra.mxu0 0.0
        %1243 = vmatprep.subr.mxu0 0.0
        %1244 = vmatpush1.msra.mxu0 0.0
        %1245 = vmatprep.subr.mxu0 0.0
        %1246 = vmatpush1.msra.mxu0 0.0
        %1247 = vmatprep.subr.mxu0 0.0
        %1248 = vmatpush1.msra.mxu0 0.0
        %1249 = vmatprep.subr.mxu0 0.0
        %1250 = vmatpush1.msra.mxu0 0.0
        %1251 = vmatprep.subr.mxu0 0.0
        %1252 = vmatpush1.msra.mxu0 0.0
        %1253 = vmatprep.subr.mxu0 0.0
        %1254 = vmatpush1.msra.mxu0 0.0
        %1255 = vmatprep.subr.mxu0 0.0
        %1256 = vmatpush1.msra.mxu0 0.0
        %1257 = vmatprep.subr.mxu0 0.0
        %1258 = vmatpush1.msra.mxu0 0.0
        %1259 = vmatprep.subr.mxu0 0.0
        %1260 = vmatpush1.msra.mxu0 0.0
        %1261 = vmatprep.subr.mxu0 0.0
        %1262 = vmatpush1.msra.mxu0 0.0
        %1263 = vmatprep.subr.mxu0 0.0
        %1264 = vmatpush1.msra.mxu0 0.0
        %1265 = vmatprep.subr.mxu0 0.0
        %1266 = vmatpush1.msra.mxu0 0.0
        %1267 = vmatprep.subr.mxu0 0.0
        %1268 = vmatpush1.msra.mxu0 0.0
        %1269 = vmatprep.subr.mxu0 0.0
        %1270 = vmatpush1.msra.mxu0 0.0
        %1271 = vmatprep.subr.mxu0 0.0
        %1272 = vmatpush1.msra.mxu0 0.0
        %1273 = vmatprep.subr.mxu0 0.0
        %1274 = vmatpush1.msra.mxu0 0.0
        %1275 = vmatprep.subr.mxu0 0.0
        %1276 = vmatpush1.msra.mxu0 0.0
        %1277 = vmatprep.subr.mxu0 0.0
        %1278 = vmatpush1.msra.mxu0 0.0
        %1279 = vmatprep.subr.mxu0 0.0
        %1280 = vmatpush1.msra.mxu0 0.0
        %1281 = vmatprep.subr.mxu0 0.0
        %1282 = vmatpush1.msra.mxu0 0.0
        %1283 = vmatprep.subr.mxu0 0.0
        %1284 = vmatpush1.msra.mxu0 0.0
        %1285 = vmatprep.subr.mxu0 0.0
        %1286 = vmatpush1.msra.mxu0 0.0
        %1287 = vmatprep.mubr.f32.mxu0 0.0
        %1288 = vmatmul.mubr.f32.gmra.mrb[0].mxu0 %v1221
        %v1289 = vpop.f32.mrb[0].mxu0
        %v1290 = vadd.f32 0.0, %v1289
        %v1291 = vpop.f32.mrb[0].mxu0
        %1292 = vdwg.mxu0
        %s1293 = scalar_lea.vmem %s377, 192
        %v1294 = vld [vmem:[%s1293] sm:$0xf]
        %v1295 = vld [vmem:[%s1293 + $0x4] sm:$0xf]
        %v1296 = vld [vmem:[%s1293 + $0x8] sm:$0xf]
        %v1297 = vld [vmem:[%s1293 + $0xc] sm:$0xf]
        %v1298 = vld [vmem:[%s1293 + $0x10] sm:$0xf]
        %v1299 = vld [vmem:[%s1293 + $0x14] sm:$0xf]
        %v1300 = vld [vmem:[%s1293 + $0x18] sm:$0xf]
        %v1301 = vld [vmem:[%s1293 + $0x1c] sm:$0xf]
        %v1302 = vld [vmem:[%s1293 + $0x20] sm:$0xf]
        %v1303 = vld [vmem:[%s1293 + $0x24] sm:$0xf]
        %v1304 = vld [vmem:[%s1293 + $0x28] sm:$0xf]
        %v1305 = vld [vmem:[%s1293 + $0x2c] sm:$0xf]
        %v1306 = vld [vmem:[%s1293 + $0x30] sm:$0xf]
        %v1307 = vld [vmem:[%s1293 + $0x34] sm:$0xf]
        %v1308 = vld [vmem:[%s1293 + $0x38] sm:$0xf]
        %v1309 = vld [vmem:[%s1293 + $0x3c] sm:$0xf]
        %v1326 = vunpack.c.l.b16 %v1294
        %v1327 = vunpack.c.l.b16 %v1295
        %v1328 = vunpack.c.l.b16 %v1296
        %v1329 = vunpack.c.l.b16 %v1297
        %v1330 = vunpack.c.l.b16 %v1298
        %v1331 = vunpack.c.l.b16 %v1299
        %v1332 = vunpack.c.l.b16 %v1300
        %v1333 = vunpack.c.l.b16 %v1301
        %v1334 = vunpack.c.l.b16 %v1302
        %v1335 = vunpack.c.l.b16 %v1303
        %v1336 = vunpack.c.l.b16 %v1304
        %v1337 = vunpack.c.l.b16 %v1305
        %v1338 = vunpack.c.l.b16 %v1306
        %v1339 = vunpack.c.l.b16 %v1307
        %v1340 = vunpack.c.l.b16 %v1308
        %v1341 = vunpack.c.l.b16 %v1309
        %v1342 = vpack.c.b16 %v1327, %v1326
        %v1343 = vpack.c.b16 %v1329, %v1328
        %v1344 = vpack.c.b16 %v1331, %v1330
        %v1345 = vpack.c.b16 %v1333, %v1332
        %v1346 = vpack.c.b16 %v1335, %v1334
        %v1347 = vpack.c.b16 %v1337, %v1336
        %v1348 = vpack.c.b16 %v1339, %v1338
        %v1349 = vpack.c.b16 %v1341, %v1340
        %1358 = vmatprep.subr.bf16.mxu0 0
        %1359 = vmatpush1.bf16.msra.mxu0 %v1342
        %1360 = vmatprep.subr.bf16.mxu0 0
        %1361 = vmatpush1.bf16.msra.mxu0 %v1343
        %1362 = vmatprep.subr.bf16.mxu0 0
        %1363 = vmatpush1.bf16.msra.mxu0 %v1344
        %1364 = vmatprep.subr.bf16.mxu0 0
        %1365 = vmatpush1.bf16.msra.mxu0 %v1345
        %1366 = vmatprep.subr.bf16.mxu0 0
        %1367 = vmatpush1.bf16.msra.mxu0 %v1346
        %1368 = vmatprep.subr.bf16.mxu0 0
        %1369 = vmatpush1.bf16.msra.mxu0 %v1347
        %1370 = vmatprep.subr.bf16.mxu0 0
        %1371 = vmatpush1.bf16.msra.mxu0 %v1348
        %1372 = vmatprep.subr.bf16.mxu0 0
        %1373 = vmatpush1.bf16.msra.mxu0 %v1349
        %1374 = vmatprep.subr.bf16.mxu0 0
        %1375 = vmatpush1.bf16.msra.mxu0 0
        %1376 = vmatprep.subr.bf16.mxu0 0
        %1377 = vmatpush1.bf16.msra.mxu0 0
        %1378 = vmatprep.subr.bf16.mxu0 0
        %1379 = vmatpush1.bf16.msra.mxu0 0
        %1380 = vmatprep.subr.bf16.mxu0 0
        %1381 = vmatpush1.bf16.msra.mxu0 0
        %1382 = vmatprep.subr.bf16.mxu0 0
        %1383 = vmatpush1.bf16.msra.mxu0 0
        %1384 = vmatprep.subr.bf16.mxu0 0
        %1385 = vmatpush1.bf16.msra.mxu0 0
        %1386 = vmatprep.subr.bf16.mxu0 0
        %1387 = vmatpush1.bf16.msra.mxu0 0
        %1388 = vmatprep.subr.bf16.mxu0 0
        %1389 = vmatpush1.bf16.msra.mxu0 0
        %1390 = vmatprep.mubr.bf16.mxu0 0
        %1391 = vmatmul.mubr.bf16.gmra.mrb[0].mxu0 %v747
        %v1392 = vpop.f32.mrb[0].mxu0
        %v1393 = vadd.f32 %v768, %v1392
        %v1394 = vpop.f32.mrb[0].mxu0
        %v1395 = vpop.f32.mrb[0].mxu0
        %v1396 = vpop.f32.mrb[0].mxu0
        %1397 = vdwg.mxu0
        %v1399 = vsel %vm859, %v1393, 0
        %1401 = vmatprep.subr.mxu0 0.0
        %1402 = vmatpush1.msra.mxu0 %v865
        %1403 = vmatprep.subr.mxu0 0.0
        %1404 = vmatpush1.msra.mxu0 0.0
        %1405 = vmatprep.subr.mxu0 0.0
        %1406 = vmatpush1.msra.mxu0 0.0
        %1407 = vmatprep.subr.mxu0 0.0
        %1408 = vmatpush1.msra.mxu0 0.0
        %1409 = vmatprep.subr.mxu0 0.0
        %1410 = vmatpush1.msra.mxu0 0.0
        %1411 = vmatprep.subr.mxu0 0.0
        %1412 = vmatpush1.msra.mxu0 0.0
        %1413 = vmatprep.subr.mxu0 0.0
        %1414 = vmatpush1.msra.mxu0 0.0
        %1415 = vmatprep.subr.mxu0 0.0
        %1416 = vmatpush1.msra.mxu0 0.0
        %1417 = vmatprep.subr.mxu0 0.0
        %1418 = vmatpush1.msra.mxu0 0.0
        %1419 = vmatprep.subr.mxu0 0.0
        %1420 = vmatpush1.msra.mxu0 0.0
        %1421 = vmatprep.subr.mxu0 0.0
        %1422 = vmatpush1.msra.mxu0 0.0
        %1423 = vmatprep.subr.mxu0 0.0
        %1424 = vmatpush1.msra.mxu0 0.0
        %1425 = vmatprep.subr.mxu0 0.0
        %1426 = vmatpush1.msra.mxu0 0.0
        %1427 = vmatprep.subr.mxu0 0.0
        %1428 = vmatpush1.msra.mxu0 0.0
        %1429 = vmatprep.subr.mxu0 0.0
        %1430 = vmatpush1.msra.mxu0 0.0
        %1431 = vmatprep.subr.mxu0 0.0
        %1432 = vmatpush1.msra.mxu0 0.0
        %1433 = vmatprep.subr.mxu0 0.0
        %1434 = vmatpush1.msra.mxu0 0.0
        %1435 = vmatprep.subr.mxu0 0.0
        %1436 = vmatpush1.msra.mxu0 0.0
        %1437 = vmatprep.subr.mxu0 0.0
        %1438 = vmatpush1.msra.mxu0 0.0
        %1439 = vmatprep.subr.mxu0 0.0
        %1440 = vmatpush1.msra.mxu0 0.0
        %1441 = vmatprep.subr.mxu0 0.0
        %1442 = vmatpush1.msra.mxu0 0.0
        %1443 = vmatprep.subr.mxu0 0.0
        %1444 = vmatpush1.msra.mxu0 0.0
        %1445 = vmatprep.subr.mxu0 0.0
        %1446 = vmatpush1.msra.mxu0 0.0
        %1447 = vmatprep.subr.mxu0 0.0
        %1448 = vmatpush1.msra.mxu0 0.0
        %1449 = vmatprep.subr.mxu0 0.0
        %1450 = vmatpush1.msra.mxu0 0.0
        %1451 = vmatprep.subr.mxu0 0.0
        %1452 = vmatpush1.msra.mxu0 0.0
        %1453 = vmatprep.subr.mxu0 0.0
        %1454 = vmatpush1.msra.mxu0 0.0
        %1455 = vmatprep.subr.mxu0 0.0
        %1456 = vmatpush1.msra.mxu0 0.0
        %1457 = vmatprep.subr.mxu0 0.0
        %1458 = vmatpush1.msra.mxu0 0.0
        %1459 = vmatprep.subr.mxu0 0.0
        %1460 = vmatpush1.msra.mxu0 0.0
        %1461 = vmatprep.subr.mxu0 0.0
        %1462 = vmatpush1.msra.mxu0 0.0
        %1463 = vmatprep.subr.mxu0 0.0
        %1464 = vmatpush1.msra.mxu0 0.0
        %1465 = vmatprep.mubr.f32.mxu0 0.0
        %1466 = vmatmul.mubr.f32.gmra.mrb[0].mxu0 %v1399
        %v1467 = vpop.f32.mrb[0].mxu0
        %v1468 = vadd.f32 0.0, %v1467
        %v1469 = vpop.f32.mrb[0].mxu0
        %1470 = vdwg.mxu0
        %v1471 = vld [vmem:[%s6] sm:$0xff]
        %v1472 = vld [vmem:[%s6 + $0x8] sm:$0xff]
        %v1473 = vld [vmem:[%s6 + $0x10] sm:$0xff]
        %v1474 = vld [vmem:[%s6 + $0x18] sm:$0xff]
        %v1475 = vld [vmem:[%s6 + $0x20] sm:$0xff]
        %v1476 = vld [vmem:[%s6 + $0x28] sm:$0xff]
        %v1477 = vld [vmem:[%s6 + $0x30] sm:$0xff]
        %v1478 = vld [vmem:[%s6 + $0x38] sm:$0xff]
        %v1479 = vld [vmem:[%s8] sm:$0xff]
        %v1480 = vld [vmem:[%s8 + $0x8] sm:$0xff]
        %v1481 = vld [vmem:[%s8 + $0x10] sm:$0xff]
        %v1482 = vld [vmem:[%s8 + $0x18] sm:$0xff]
        %v1483 = vld [vmem:[%s8 + $0x20] sm:$0xff]
        %v1484 = vld [vmem:[%s8 + $0x28] sm:$0xff]
        %v1485 = vld [vmem:[%s8 + $0x30] sm:$0xff]
        %v1486 = vld [vmem:[%s8 + $0x38] sm:$0xff]
        %v1488 = vrot.slane %v744, 7
        %vm1490 = vcmask 1040384
        %v1491 = vsel %vm1490, %v566, %v1488
        %v1493 = vrot.slane %v1112, 7
        %v1496 = vrot.slane %v1290, 6
        %v1499 = vrot.slane %v1468, 5
        %v1501 = vsel %vm1490, %v934, %v1493
        %v1502 = vsel %vm495, %v1501, %v1496
        %vm1503 = vcmask 1042432
        %v1504 = vsel %vm1503, %v1502, %v1499
        %v1506 = vsel %vm859, %v1479, 0
        %v1509 = vsel %vm859, %v1480, 0
        %v1512 = vsel %vm859, %v1481, 0
        %v1515 = vsel %vm859, %v1482, 0
        %v1518 = vsel %vm859, %v1483, 0
        %v1521 = vsel %vm859, %v1484, 0
        %v1524 = vsel %vm859, %v1485, 0
        %v1527 = vsel %vm859, %v1486, 0
        %v1530 = vsel %vm863, %v1504, 0
        %1532 = vmatprep.subr.mxu0 0.0
        %1533 = vmatpush1.msra.mxu0 %v1530
        %1534 = vmatprep.subr.mxu0 0.0
        %1535 = vmatpush1.msra.mxu0 0.0
        %1536 = vmatprep.subr.mxu0 0.0
        %1537 = vmatpush1.msra.mxu0 0.0
        %1538 = vmatprep.subr.mxu0 0.0
        %1539 = vmatpush1.msra.mxu0 0.0
        %1540 = vmatprep.subr.mxu0 0.0
        %1541 = vmatpush1.msra.mxu0 0.0
        %1542 = vmatprep.subr.mxu0 0.0
        %1543 = vmatpush1.msra.mxu0 0.0
        %1544 = vmatprep.subr.mxu0 0.0
        %1545 = vmatpush1.msra.mxu0 0.0
        %1546 = vmatprep.subr.mxu0 0.0
        %1547 = vmatpush1.msra.mxu0 0.0
        %1548 = vmatprep.subr.mxu0 0.0
        %1549 = vmatpush1.msra.mxu0 0.0
        %1550 = vmatprep.subr.mxu0 0.0
        %1551 = vmatpush1.msra.mxu0 0.0
        %1552 = vmatprep.subr.mxu0 0.0
        %1553 = vmatpush1.msra.mxu0 0.0
        %1554 = vmatprep.subr.mxu0 0.0
        %1555 = vmatpush1.msra.mxu0 0.0
        %1556 = vmatprep.subr.mxu0 0.0
        %1557 = vmatpush1.msra.mxu0 0.0
        %1558 = vmatprep.subr.mxu0 0.0
        %1559 = vmatpush1.msra.mxu0 0.0
        %1560 = vmatprep.subr.mxu0 0.0
        %1561 = vmatpush1.msra.mxu0 0.0
        %1562 = vmatprep.subr.mxu0 0.0
        %1563 = vmatpush1.msra.mxu0 0.0
        %1564 = vmatprep.subr.mxu0 0.0
        %1565 = vmatpush1.msra.mxu0 0.0
        %1566 = vmatprep.subr.mxu0 0.0
        %1567 = vmatpush1.msra.mxu0 0.0
        %1568 = vmatprep.subr.mxu0 0.0
        %1569 = vmatpush1.msra.mxu0 0.0
        %1570 = vmatprep.subr.mxu0 0.0
        %1571 = vmatpush1.msra.mxu0 0.0
        %1572 = vmatprep.subr.mxu0 0.0
        %1573 = vmatpush1.msra.mxu0 0.0
        %1574 = vmatprep.subr.mxu0 0.0
        %1575 = vmatpush1.msra.mxu0 0.0
        %1576 = vmatprep.subr.mxu0 0.0
        %1577 = vmatpush1.msra.mxu0 0.0
        %1578 = vmatprep.subr.mxu0 0.0
        %1579 = vmatpush1.msra.mxu0 0.0
        %1580 = vmatprep.subr.mxu0 0.0
        %1581 = vmatpush1.msra.mxu0 0.0
        %1582 = vmatprep.subr.mxu0 0.0
        %1583 = vmatpush1.msra.mxu0 0.0
        %1584 = vmatprep.subr.mxu0 0.0
        %1585 = vmatpush1.msra.mxu0 0.0
        %1586 = vmatprep.subr.mxu0 0.0
        %1587 = vmatpush1.msra.mxu0 0.0
        %1588 = vmatprep.subr.mxu0 0.0
        %1589 = vmatpush1.msra.mxu0 0.0
        %1590 = vmatprep.subr.mxu0 0.0
        %1591 = vmatpush1.msra.mxu0 0.0
        %1592 = vmatprep.subr.mxu0 0.0
        %1593 = vmatpush1.msra.mxu0 0.0
        %1594 = vmatprep.subr.mxu0 0.0
        %1595 = vmatpush1.msra.mxu0 0.0
        %1596 = vmatprep.mubr.f32.mxu0 0.0
        %1597 = vmatmul.mubr.f32.gmra.mrb[0].mxu0 %v1506
        %v1598 = vpop.f32.mrb[0].mxu0
        %v1599 = vadd.f32 0.0, %v1598
        %v1600 = vpop.f32.mrb[0].mxu0
        %1601 = vmatprep.mubr.f32.mxu0 0.0
        %1602 = vmatmul.mubr.f32.gmra.mrb[0].mxu0 %v1509
        %v1603 = vpop.f32.mrb[0].mxu0
        %v1604 = vadd.f32 0.0, %v1603
        %v1605 = vpop.f32.mrb[0].mxu0
        %1606 = vmatprep.mubr.f32.mxu0 0.0
        %1607 = vmatmul.mubr.f32.gmra.mrb[0].mxu0 %v1512
        %v1608 = vpop.f32.mrb[0].mxu0
        %v1609 = vadd.f32 0.0, %v1608
        %v1610 = vpop.f32.mrb[0].mxu0
        %1611 = vmatprep.mubr.f32.mxu0 0.0
        %1612 = vmatmul.mubr.f32.gmra.mrb[0].mxu0 %v1515
        %v1613 = vpop.f32.mrb[0].mxu0
        %v1614 = vadd.f32 0.0, %v1613
        %v1615 = vpop.f32.mrb[0].mxu0
        %1616 = vmatprep.mubr.f32.mxu0 0.0
        %1617 = vmatmul.mubr.f32.gmra.mrb[0].mxu0 %v1518
        %v1618 = vpop.f32.mrb[0].mxu0
        %v1619 = vadd.f32 0.0, %v1618
        %v1620 = vpop.f32.mrb[0].mxu0
        %1621 = vmatprep.mubr.f32.mxu0 0.0
        %1622 = vmatmul.mubr.f32.gmra.mrb[0].mxu0 %v1521
        %v1623 = vpop.f32.mrb[0].mxu0
        %v1624 = vadd.f32 0.0, %v1623
        %v1625 = vpop.f32.mrb[0].mxu0
        %1626 = vmatprep.mubr.f32.mxu0 0.0
        %1627 = vmatmul.mubr.f32.gmra.mrb[0].mxu0 %v1524
        %v1628 = vpop.f32.mrb[0].mxu0
        %v1629 = vadd.f32 0.0, %v1628
        %v1630 = vpop.f32.mrb[0].mxu0
        %1631 = vmatprep.mubr.f32.mxu0 0.0
        %1632 = vmatmul.mubr.f32.gmra.mrb[0].mxu0 %v1527
        %v1633 = vpop.f32.mrb[0].mxu0
        %v1634 = vadd.f32 0.0, %v1633
        %v1635 = vpop.f32.mrb[0].mxu0
        %1636 = vdwg.mxu0
        %v1638 = vsel %vm491, %v1471, 0
        %v1641 = vsel %vm491, %v1472, 0
        %v1644 = vsel %vm491, %v1473, 0
        %v1647 = vsel %vm491, %v1474, 0
        %v1650 = vsel %vm491, %v1475, 0
        %v1653 = vsel %vm491, %v1476, 0
        %v1656 = vsel %vm491, %v1477, 0
        %v1659 = vsel %vm491, %v1478, 0
        %v1662 = vsel %vm495, %v1491, 0
        %1664 = vmatprep.subr.mxu0 0.0
        %1665 = vmatpush1.msra.mxu0 %v1662
        %1666 = vmatprep.subr.mxu0 0.0
        %1667 = vmatpush1.msra.mxu0 0.0
        %1668 = vmatprep.subr.mxu0 0.0
        %1669 = vmatpush1.msra.mxu0 0.0
        %1670 = vmatprep.subr.mxu0 0.0
        %1671 = vmatpush1.msra.mxu0 0.0
        %1672 = vmatprep.subr.mxu0 0.0
        %1673 = vmatpush1.msra.mxu0 0.0
        %1674 = vmatprep.subr.mxu0 0.0
        %1675 = vmatpush1.msra.mxu0 0.0
        %1676 = vmatprep.subr.mxu0 0.0
        %1677 = vmatpush1.msra.mxu0 0.0
        %1678 = vmatprep.subr.mxu0 0.0
        %1679 = vmatpush1.msra.mxu0 0.0
        %1680 = vmatprep.subr.mxu0 0.0
        %1681 = vmatpush1.msra.mxu0 0.0
        %1682 = vmatprep.subr.mxu0 0.0
        %1683 = vmatpush1.msra.mxu0 0.0
        %1684 = vmatprep.subr.mxu0 0.0
        %1685 = vmatpush1.msra.mxu0 0.0
        %1686 = vmatprep.subr.mxu0 0.0
        %1687 = vmatpush1.msra.mxu0 0.0
        %1688 = vmatprep.subr.mxu0 0.0
        %1689 = vmatpush1.msra.mxu0 0.0
        %1690 = vmatprep.subr.mxu0 0.0
        %1691 = vmatpush1.msra.mxu0 0.0
        %1692 = vmatprep.subr.mxu0 0.0
        %1693 = vmatpush1.msra.mxu0 0.0
        %1694 = vmatprep.subr.mxu0 0.0
        %1695 = vmatpush1.msra.mxu0 0.0
        %1696 = vmatprep.subr.mxu0 0.0
        %1697 = vmatpush1.msra.mxu0 0.0
        %1698 = vmatprep.subr.mxu0 0.0
        %1699 = vmatpush1.msra.mxu0 0.0
        %1700 = vmatprep.subr.mxu0 0.0
        %1701 = vmatpush1.msra.mxu0 0.0
        %1702 = vmatprep.subr.mxu0 0.0
        %1703 = vmatpush1.msra.mxu0 0.0
        %1704 = vmatprep.subr.mxu0 0.0
        %1705 = vmatpush1.msra.mxu0 0.0
        %1706 = vmatprep.subr.mxu0 0.0
        %1707 = vmatpush1.msra.mxu0 0.0
        %1708 = vmatprep.subr.mxu0 0.0
        %1709 = vmatpush1.msra.mxu0 0.0
        %1710 = vmatprep.subr.mxu0 0.0
        %1711 = vmatpush1.msra.mxu0 0.0
        %1712 = vmatprep.subr.mxu0 0.0
        %1713 = vmatpush1.msra.mxu0 0.0
        %1714 = vmatprep.subr.mxu0 0.0
        %1715 = vmatpush1.msra.mxu0 0.0
        %1716 = vmatprep.subr.mxu0 0.0
        %1717 = vmatpush1.msra.mxu0 0.0
        %1718 = vmatprep.subr.mxu0 0.0
        %1719 = vmatpush1.msra.mxu0 0.0
        %1720 = vmatprep.subr.mxu0 0.0
        %1721 = vmatpush1.msra.mxu0 0.0
        %1722 = vmatprep.subr.mxu0 0.0
        %1723 = vmatpush1.msra.mxu0 0.0
        %1724 = vmatprep.subr.mxu0 0.0
        %1725 = vmatpush1.msra.mxu0 0.0
        %1726 = vmatprep.subr.mxu0 0.0
        %1727 = vmatpush1.msra.mxu0 0.0
        %1728 = vmatprep.mubr.f32.mxu0 0.0
        %1729 = vmatmul.mubr.f32.gmra.mrb[0].mxu0 %v1638
        %v1730 = vpop.f32.mrb[0].mxu0
        %v1731 = vadd.f32 %v1599, %v1730
        %v1732 = vpop.f32.mrb[0].mxu0
        %1733 = vmatprep.mubr.f32.mxu0 0.0
        %1734 = vmatmul.mubr.f32.gmra.mrb[0].mxu0 %v1641
        %v1735 = vpop.f32.mrb[0].mxu0
        %v1736 = vadd.f32 %v1604, %v1735
        %v1737 = vpop.f32.mrb[0].mxu0
        %1738 = vmatprep.mubr.f32.mxu0 0.0
        %1739 = vmatmul.mubr.f32.gmra.mrb[0].mxu0 %v1644
        %v1740 = vpop.f32.mrb[0].mxu0
        %v1741 = vadd.f32 %v1609, %v1740
        %v1742 = vpop.f32.mrb[0].mxu0
        %1743 = vmatprep.mubr.f32.mxu0 0.0
        %1744 = vmatmul.mubr.f32.gmra.mrb[0].mxu0 %v1647
        %v1745 = vpop.f32.mrb[0].mxu0
        %v1746 = vadd.f32 %v1614, %v1745
        %v1747 = vpop.f32.mrb[0].mxu0
        %1748 = vmatprep.mubr.f32.mxu0 0.0
        %1749 = vmatmul.mubr.f32.gmra.mrb[0].mxu0 %v1650
        %v1750 = vpop.f32.mrb[0].mxu0
        %v1751 = vadd.f32 %v1619, %v1750
        %v1752 = vpop.f32.mrb[0].mxu0
        %1753 = vmatprep.mubr.f32.mxu0 0.0
        %1754 = vmatmul.mubr.f32.gmra.mrb[0].mxu0 %v1653
        %v1755 = vpop.f32.mrb[0].mxu0
        %v1756 = vadd.f32 %v1624, %v1755
        %v1757 = vpop.f32.mrb[0].mxu0
        %1758 = vmatprep.mubr.f32.mxu0 0.0
        %1759 = vmatmul.mubr.f32.gmra.mrb[0].mxu0 %v1656
        %v1760 = vpop.f32.mrb[0].mxu0
        %v1761 = vadd.f32 %v1629, %v1760
        %v1762 = vpop.f32.mrb[0].mxu0
        %1763 = vmatprep.mubr.f32.mxu0 0.0
        %1764 = vmatmul.mubr.f32.gmra.mrb[0].mxu0 %v1659
        %v1765 = vpop.f32.mrb[0].mxu0
        %v1766 = vadd.f32 %v1634, %v1765
        %v1767 = vpop.f32.mrb[0].mxu0
        %1768 = vdwg.mxu0
        %vm1769 = vcmask 523264
        %1770 = vst.msk [vmem:[%s367] sm:$0xff] %vm1769, %v1731
        %1771 = vst.msk [vmem:[%s367 + $0x8] sm:$0xff] %vm1769, %v1736
        %1772 = vst.msk [vmem:[%s367 + $0x10] sm:$0xff] %vm1769, %v1741
        %1773 = vst.msk [vmem:[%s367 + $0x18] sm:$0xff] %vm1769, %v1746
        %1774 = vst.msk [vmem:[%s367 + $0x20] sm:$0xff] %vm1769, %v1751
        %1775 = vst.msk [vmem:[%s367 + $0x28] sm:$0xff] %vm1769, %v1756
        %1776 = vst.msk [vmem:[%s367 + $0x30] sm:$0xff] %vm1769, %v1761
        %1777 = vst.msk [vmem:[%s367 + $0x38] sm:$0xff] %vm1769, %v1766
        %v1779 = vrot.slane %v566, 1
        %v1781 = vsel %vm1490, %v1779, %v744
        %v1783 = vrot.slane %v934, 1
        %v1785 = vrot.slane %v1290, 7
        %v1787 = vrot.slane %v1468, 6
        %v1789 = vsel %vm1490, %v1783, %v1112
        %v1790 = vsel %vm495, %v1789, %v1785
        %v1791 = vsel %vm1503, %v1790, %v1787
        %v1793 = vsel %vm863, %v1791, 0
        %1795 = vmatprep.subr.mxu0 0.0
        %1796 = vmatpush1.msra.mxu0 %v1793
        %1797 = vmatprep.subr.mxu0 0.0
        %1798 = vmatpush1.msra.mxu0 0.0
        %1799 = vmatprep.subr.mxu0 0.0
        %1800 = vmatpush1.msra.mxu0 0.0
        %1801 = vmatprep.subr.mxu0 0.0
        %1802 = vmatpush1.msra.mxu0 0.0
        %1803 = vmatprep.subr.mxu0 0.0
        %1804 = vmatpush1.msra.mxu0 0.0
        %1805 = vmatprep.subr.mxu0 0.0
        %1806 = vmatpush1.msra.mxu0 0.0
        %1807 = vmatprep.subr.mxu0 0.0
        %1808 = vmatpush1.msra.mxu0 0.0
        %1809 = vmatprep.subr.mxu0 0.0
        %1810 = vmatpush1.msra.mxu0 0.0
        %1811 = vmatprep.subr.mxu0 0.0
        %1812 = vmatpush1.msra.mxu0 0.0
        %1813 = vmatprep.subr.mxu0 0.0
        %1814 = vmatpush1.msra.mxu0 0.0
        %1815 = vmatprep.subr.mxu0 0.0
        %1816 = vmatpush1.msra.mxu0 0.0
        %1817 = vmatprep.subr.mxu0 0.0
        %1818 = vmatpush1.msra.mxu0 0.0
        %1819 = vmatprep.subr.mxu0 0.0
        %1820 = vmatpush1.msra.mxu0 0.0
        %1821 = vmatprep.subr.mxu0 0.0
        %1822 = vmatpush1.msra.mxu0 0.0
        %1823 = vmatprep.subr.mxu0 0.0
        %1824 = vmatpush1.msra.mxu0 0.0
        %1825 = vmatprep.subr.mxu0 0.0
        %1826 = vmatpush1.msra.mxu0 0.0
        %1827 = vmatprep.subr.mxu0 0.0
        %1828 = vmatpush1.msra.mxu0 0.0
        %1829 = vmatprep.subr.mxu0 0.0
        %1830 = vmatpush1.msra.mxu0 0.0
        %1831 = vmatprep.subr.mxu0 0.0
        %1832 = vmatpush1.msra.mxu0 0.0
        %1833 = vmatprep.subr.mxu0 0.0
        %1834 = vmatpush1.msra.mxu0 0.0
        %1835 = vmatprep.subr.mxu0 0.0
        %1836 = vmatpush1.msra.mxu0 0.0
        %1837 = vmatprep.subr.mxu0 0.0
        %1838 = vmatpush1.msra.mxu0 0.0
        %1839 = vmatprep.subr.mxu0 0.0
        %1840 = vmatpush1.msra.mxu0 0.0
        %1841 = vmatprep.subr.mxu0 0.0
        %1842 = vmatpush1.msra.mxu0 0.0
        %1843 = vmatprep.subr.mxu0 0.0
        %1844 = vmatpush1.msra.mxu0 0.0
        %1845 = vmatprep.subr.mxu0 0.0
        %1846 = vmatpush1.msra.mxu0 0.0
        %1847 = vmatprep.subr.mxu0 0.0
        %1848 = vmatpush1.msra.mxu0 0.0
        %1849 = vmatprep.subr.mxu0 0.0
        %1850 = vmatpush1.msra.mxu0 0.0
        %1851 = vmatprep.subr.mxu0 0.0
        %1852 = vmatpush1.msra.mxu0 0.0
        %1853 = vmatprep.subr.mxu0 0.0
        %1854 = vmatpush1.msra.mxu0 0.0
        %1855 = vmatprep.subr.mxu0 0.0
        %1856 = vmatpush1.msra.mxu0 0.0
        %1857 = vmatprep.subr.mxu0 0.0
        %1858 = vmatpush1.msra.mxu0 0.0
        %1859 = vmatprep.mubr.f32.mxu0 0.0
        %1860 = vmatmul.mubr.f32.gmra.mrb[0].mxu0 %v1506
        %v1861 = vpop.f32.mrb[0].mxu0
        %v1862 = vadd.f32 0.0, %v1861
        %v1863 = vpop.f32.mrb[0].mxu0
        %1864 = vmatprep.mubr.f32.mxu0 0.0
        %1865 = vmatmul.mubr.f32.gmra.mrb[0].mxu0 %v1509
        %v1866 = vpop.f32.mrb[0].mxu0
        %v1867 = vadd.f32 0.0, %v1866
        %v1868 = vpop.f32.mrb[0].mxu0
        %1869 = vmatprep.mubr.f32.mxu0 0.0
        %1870 = vmatmul.mubr.f32.gmra.mrb[0].mxu0 %v1512
        %v1871 = vpop.f32.mrb[0].mxu0
        %v1872 = vadd.f32 0.0, %v1871
        %v1873 = vpop.f32.mrb[0].mxu0
        %1874 = vmatprep.mubr.f32.mxu0 0.0
        %1875 = vmatmul.mubr.f32.gmra.mrb[0].mxu0 %v1515
        %v1876 = vpop.f32.mrb[0].mxu0
        %v1877 = vadd.f32 0.0, %v1876
        %v1878 = vpop.f32.mrb[0].mxu0
        %1879 = vmatprep.mubr.f32.mxu0 0.0
        %1880 = vmatmul.mubr.f32.gmra.mrb[0].mxu0 %v1518
        %v1881 = vpop.f32.mrb[0].mxu0
        %v1882 = vadd.f32 0.0, %v1881
        %v1883 = vpop.f32.mrb[0].mxu0
        %1884 = vmatprep.mubr.f32.mxu0 0.0
        %1885 = vmatmul.mubr.f32.gmra.mrb[0].mxu0 %v1521
        %v1886 = vpop.f32.mrb[0].mxu0
        %v1887 = vadd.f32 0.0, %v1886
        %v1888 = vpop.f32.mrb[0].mxu0
        %1889 = vmatprep.mubr.f32.mxu0 0.0
        %1890 = vmatmul.mubr.f32.gmra.mrb[0].mxu0 %v1524
        %v1891 = vpop.f32.mrb[0].mxu0
        %v1892 = vadd.f32 0.0, %v1891
        %v1893 = vpop.f32.mrb[0].mxu0
        %1894 = vmatprep.mubr.f32.mxu0 0.0
        %1895 = vmatmul.mubr.f32.gmra.mrb[0].mxu0 %v1527
        %v1896 = vpop.f32.mrb[0].mxu0
        %v1897 = vadd.f32 0.0, %v1896
        %v1898 = vpop.f32.mrb[0].mxu0
        %1899 = vdwg.mxu0
        %v1901 = vsel %vm495, %v1781, 0
        %1903 = vmatprep.subr.mxu0 0.0
        %1904 = vmatpush1.msra.mxu0 %v1901
        %1905 = vmatprep.subr.mxu0 0.0
        %1906 = vmatpush1.msra.mxu0 0.0
        %1907 = vmatprep.subr.mxu0 0.0
        %1908 = vmatpush1.msra.mxu0 0.0
        %1909 = vmatprep.subr.mxu0 0.0
        %1910 = vmatpush1.msra.mxu0 0.0
        %1911 = vmatprep.subr.mxu0 0.0
        %1912 = vmatpush1.msra.mxu0 0.0
        %1913 = vmatprep.subr.mxu0 0.0
        %1914 = vmatpush1.msra.mxu0 0.0
        %1915 = vmatprep.subr.mxu0 0.0
        %1916 = vmatpush1.msra.mxu0 0.0
        %1917 = vmatprep.subr.mxu0 0.0
        %1918 = vmatpush1.msra.mxu0 0.0
        %1919 = vmatprep.subr.mxu0 0.0
        %1920 = vmatpush1.msra.mxu0 0.0
        %1921 = vmatprep.subr.mxu0 0.0
        %1922 = vmatpush1.msra.mxu0 0.0
        %1923 = vmatprep.subr.mxu0 0.0
        %1924 = vmatpush1.msra.mxu0 0.0
        %1925 = vmatprep.subr.mxu0 0.0
        %1926 = vmatpush1.msra.mxu0 0.0
        %1927 = vmatprep.subr.mxu0 0.0
        %1928 = vmatpush1.msra.mxu0 0.0
        %1929 = vmatprep.subr.mxu0 0.0
        %1930 = vmatpush1.msra.mxu0 0.0
        %1931 = vmatprep.subr.mxu0 0.0
        %1932 = vmatpush1.msra.mxu0 0.0
        %1933 = vmatprep.subr.mxu0 0.0
        %1934 = vmatpush1.msra.mxu0 0.0
        %1935 = vmatprep.subr.mxu0 0.0
        %1936 = vmatpush1.msra.mxu0 0.0
        %1937 = vmatprep.subr.mxu0 0.0
        %1938 = vmatpush1.msra.mxu0 0.0
        %1939 = vmatprep.subr.mxu0 0.0
        %1940 = vmatpush1.msra.mxu0 0.0
        %1941 = vmatprep.subr.mxu0 0.0
        %1942 = vmatpush1.msra.mxu0 0.0
        %1943 = vmatprep.subr.mxu0 0.0
        %1944 = vmatpush1.msra.mxu0 0.0
        %1945 = vmatprep.subr.mxu0 0.0
        %1946 = vmatpush1.msra.mxu0 0.0
        %1947 = vmatprep.subr.mxu0 0.0
        %1948 = vmatpush1.msra.mxu0 0.0
        %1949 = vmatprep.subr.mxu0 0.0
        %1950 = vmatpush1.msra.mxu0 0.0
        %1951 = vmatprep.subr.mxu0 0.0
        %1952 = vmatpush1.msra.mxu0 0.0
        %1953 = vmatprep.subr.mxu0 0.0
        %1954 = vmatpush1.msra.mxu0 0.0
        %1955 = vmatprep.subr.mxu0 0.0
        %1956 = vmatpush1.msra.mxu0 0.0
        %1957 = vmatprep.subr.mxu0 0.0
        %1958 = vmatpush1.msra.mxu0 0.0
        %1959 = vmatprep.subr.mxu0 0.0
        %1960 = vmatpush1.msra.mxu0 0.0
        %1961 = vmatprep.subr.mxu0 0.0
        %1962 = vmatpush1.msra.mxu0 0.0
        %1963 = vmatprep.subr.mxu0 0.0
        %1964 = vmatpush1.msra.mxu0 0.0
        %1965 = vmatprep.subr.mxu0 0.0
        %1966 = vmatpush1.msra.mxu0 0.0
        %1967 = vmatprep.mubr.f32.mxu0 0.0
        %1968 = vmatmul.mubr.f32.gmra.mrb[0].mxu0 %v1638
        %v1969 = vpop.f32.mrb[0].mxu0
        %v1970 = vadd.f32 %v1862, %v1969
        %v1971 = vpop.f32.mrb[0].mxu0
        %1972 = vmatprep.mubr.f32.mxu0 0.0
        %1973 = vmatmul.mubr.f32.gmra.mrb[0].mxu0 %v1641
        %v1974 = vpop.f32.mrb[0].mxu0
        %v1975 = vadd.f32 %v1867, %v1974
        %v1976 = vpop.f32.mrb[0].mxu0
        %1977 = vmatprep.mubr.f32.mxu0 0.0
        %1978 = vmatmul.mubr.f32.gmra.mrb[0].mxu0 %v1644
        %v1979 = vpop.f32.mrb[0].mxu0
        %v1980 = vadd.f32 %v1872, %v1979
        %v1981 = vpop.f32.mrb[0].mxu0
        %1982 = vmatprep.mubr.f32.mxu0 0.0
        %1983 = vmatmul.mubr.f32.gmra.mrb[0].mxu0 %v1647
        %v1984 = vpop.f32.mrb[0].mxu0
        %v1985 = vadd.f32 %v1877, %v1984
        %v1986 = vpop.f32.mrb[0].mxu0
        %1987 = vmatprep.mubr.f32.mxu0 0.0
        %1988 = vmatmul.mubr.f32.gmra.mrb[0].mxu0 %v1650
        %v1989 = vpop.f32.mrb[0].mxu0
        %v1990 = vadd.f32 %v1882, %v1989
        %v1991 = vpop.f32.mrb[0].mxu0
        %1992 = vmatprep.mubr.f32.mxu0 0.0
        %1993 = vmatmul.mubr.f32.gmra.mrb[0].mxu0 %v1653
        %v1994 = vpop.f32.mrb[0].mxu0
        %v1995 = vadd.f32 %v1887, %v1994
        %v1996 = vpop.f32.mrb[0].mxu0
        %1997 = vmatprep.mubr.f32.mxu0 0.0
        %1998 = vmatmul.mubr.f32.gmra.mrb[0].mxu0 %v1656
        %v1999 = vpop.f32.mrb[0].mxu0
        %v2000 = vadd.f32 %v1892, %v1999
        %v2001 = vpop.f32.mrb[0].mxu0
        %2002 = vmatprep.mubr.f32.mxu0 0.0
        %2003 = vmatmul.mubr.f32.gmra.mrb[0].mxu0 %v1659
        %v2004 = vpop.f32.mrb[0].mxu0
        %v2005 = vadd.f32 %v1897, %v2004
        %v2006 = vpop.f32.mrb[0].mxu0
        %2007 = vdwg.mxu0
        %s2008 = scalar_lea.vmem %s367, 64 [#allocation2]
        %2009 = vst.msk [vmem:[%s2008] sm:$0xff] %vm1769, %v1970
        %2010 = vst.msk [vmem:[%s2008 + $0x8] sm:$0xff] %vm1769, %v1975
        %2011 = vst.msk [vmem:[%s2008 + $0x10] sm:$0xff] %vm1769, %v1980
        %2012 = vst.msk [vmem:[%s2008 + $0x18] sm:$0xff] %vm1769, %v1985
        %2013 = vst.msk [vmem:[%s2008 + $0x20] sm:$0xff] %vm1769, %v1990
        %2014 = vst.msk [vmem:[%s2008 + $0x28] sm:$0xff] %vm1769, %v1995
        %2015 = vst.msk [vmem:[%s2008 + $0x30] sm:$0xff] %vm1769, %v2000
        %2016 = vst.msk [vmem:[%s2008 + $0x38] sm:$0xff] %vm1769, %v2005
        %v2017 = vrot.slane %v566, 2
        %v2019 = vrot.slane %v744, 1
        %v2021 = vsel %vm1490, %v2017, %v2019
        %v2022 = vrot.slane %v934, 2
        %v2024 = vrot.slane %v1112, 1
        %v2026 = vrot.slane %v1468, 7
        %v2028 = vsel %vm1490, %v2022, %v2024
        %v2029 = vsel %vm495, %v2028, %v1290
        %v2030 = vsel %vm1503, %v2029, %v2026
        %v2032 = vsel %vm863, %v2030, 0
        %2034 = vmatprep.subr.mxu0 0.0
        %2035 = vmatpush1.msra.mxu0 %v2032
        %2036 = vmatprep.subr.mxu0 0.0
        %2037 = vmatpush1.msra.mxu0 0.0
        %2038 = vmatprep.subr.mxu0 0.0
        %2039 = vmatpush1.msra.mxu0 0.0
        %2040 = vmatprep.subr.mxu0 0.0
        %2041 = vmatpush1.msra.mxu0 0.0
        %2042 = vmatprep.subr.mxu0 0.0
        %2043 = vmatpush1.msra.mxu0 0.0
        %2044 = vmatprep.subr.mxu0 0.0
        %2045 = vmatpush1.msra.mxu0 0.0
        %2046 = vmatprep.subr.mxu0 0.0
        %2047 = vmatpush1.msra.mxu0 0.0
        %2048 = vmatprep.subr.mxu0 0.0
        %2049 = vmatpush1.msra.mxu0 0.0
        %2050 = vmatprep.subr.mxu0 0.0
        %2051 = vmatpush1.msra.mxu0 0.0
        %2052 = vmatprep.subr.mxu0 0.0
        %2053 = vmatpush1.msra.mxu0 0.0
        %2054 = vmatprep.subr.mxu0 0.0
        %2055 = vmatpush1.msra.mxu0 0.0
        %2056 = vmatprep.subr.mxu0 0.0
        %2057 = vmatpush1.msra.mxu0 0.0
        %2058 = vmatprep.subr.mxu0 0.0
        %2059 = vmatpush1.msra.mxu0 0.0
        %2060 = vmatprep.subr.mxu0 0.0
        %2061 = vmatpush1.msra.mxu0 0.0
        %2062 = vmatprep.subr.mxu0 0.0
        %2063 = vmatpush1.msra.mxu0 0.0
        %2064 = vmatprep.subr.mxu0 0.0
        %2065 = vmatpush1.msra.mxu0 0.0
        %2066 = vmatprep.subr.mxu0 0.0
        %2067 = vmatpush1.msra.mxu0 0.0
        %2068 = vmatprep.subr.mxu0 0.0
        %2069 = vmatpush1.msra.mxu0 0.0
        %2070 = vmatprep.subr.mxu0 0.0
        %2071 = vmatpush1.msra.mxu0 0.0
        %2072 = vmatprep.subr.mxu0 0.0
        %2073 = vmatpush1.msra.mxu0 0.0
        %2074 = vmatprep.subr.mxu0 0.0
        %2075 = vmatpush1.msra.mxu0 0.0
        %2076 = vmatprep.subr.mxu0 0.0
        %2077 = vmatpush1.msra.mxu0 0.0
        %2078 = vmatprep.subr.mxu0 0.0
        %2079 = vmatpush1.msra.mxu0 0.0
        %2080 = vmatprep.subr.mxu0 0.0
        %2081 = vmatpush1.msra.mxu0 0.0
        %2082 = vmatprep.subr.mxu0 0.0
        %2083 = vmatpush1.msra.mxu0 0.0
        %2084 = vmatprep.subr.mxu0 0.0
        %2085 = vmatpush1.msra.mxu0 0.0
        %2086 = vmatprep.subr.mxu0 0.0
        %2087 = vmatpush1.msra.mxu0 0.0
        %2088 = vmatprep.subr.mxu0 0.0
        %2089 = vmatpush1.msra.mxu0 0.0
        %2090 = vmatprep.subr.mxu0 0.0
        %2091 = vmatpush1.msra.mxu0 0.0
        %2092 = vmatprep.subr.mxu0 0.0
        %2093 = vmatpush1.msra.mxu0 0.0
        %2094 = vmatprep.subr.mxu0 0.0
        %2095 = vmatpush1.msra.mxu0 0.0
        %2096 = vmatprep.subr.mxu0 0.0
        %2097 = vmatpush1.msra.mxu0 0.0
        %2098 = vmatprep.mubr.f32.mxu0 0.0
        %2099 = vmatmul.mubr.f32.gmra.mrb[0].mxu0 %v1506
        %v2100 = vpop.f32.mrb[0].mxu0
        %v2101 = vadd.f32 0.0, %v2100
        %v2102 = vpop.f32.mrb[0].mxu0
        %2103 = vmatprep.mubr.f32.mxu0 0.0
        %2104 = vmatmul.mubr.f32.gmra.mrb[0].mxu0 %v1509
        %v2105 = vpop.f32.mrb[0].mxu0
        %v2106 = vadd.f32 0.0, %v2105
        %v2107 = vpop.f32.mrb[0].mxu0
        %2108 = vmatprep.mubr.f32.mxu0 0.0
        %2109 = vmatmul.mubr.f32.gmra.mrb[0].mxu0 %v1512
        %v2110 = vpop.f32.mrb[0].mxu0
        %v2111 = vadd.f32 0.0, %v2110
        %v2112 = vpop.f32.mrb[0].mxu0
        %2113 = vmatprep.mubr.f32.mxu0 0.0
        %2114 = vmatmul.mubr.f32.gmra.mrb[0].mxu0 %v1515
        %v2115 = vpop.f32.mrb[0].mxu0
        %v2116 = vadd.f32 0.0, %v2115
        %v2117 = vpop.f32.mrb[0].mxu0
        %2118 = vmatprep.mubr.f32.mxu0 0.0
        %2119 = vmatmul.mubr.f32.gmra.mrb[0].mxu0 %v1518
        %v2120 = vpop.f32.mrb[0].mxu0
        %v2121 = vadd.f32 0.0, %v2120
        %v2122 = vpop.f32.mrb[0].mxu0
        %2123 = vmatprep.mubr.f32.mxu0 0.0
        %2124 = vmatmul.mubr.f32.gmra.mrb[0].mxu0 %v1521
        %v2125 = vpop.f32.mrb[0].mxu0
        %v2126 = vadd.f32 0.0, %v2125
        %v2127 = vpop.f32.mrb[0].mxu0
        %2128 = vmatprep.mubr.f32.mxu0 0.0
        %2129 = vmatmul.mubr.f32.gmra.mrb[0].mxu0 %v1524
        %v2130 = vpop.f32.mrb[0].mxu0
        %v2131 = vadd.f32 0.0, %v2130
        %v2132 = vpop.f32.mrb[0].mxu0
        %2133 = vmatprep.mubr.f32.mxu0 0.0
        %2134 = vmatmul.mubr.f32.gmra.mrb[0].mxu0 %v1527
        %v2135 = vpop.f32.mrb[0].mxu0
        %v2136 = vadd.f32 0.0, %v2135
        %v2137 = vpop.f32.mrb[0].mxu0
        %2138 = vdwg.mxu0
        %v2140 = vsel %vm495, %v2021, 0
        %2142 = vmatprep.subr.mxu0 0.0
        %2143 = vmatpush1.msra.mxu0 %v2140
        %2144 = vmatprep.subr.mxu0 0.0
        %2145 = vmatpush1.msra.mxu0 0.0
        %2146 = vmatprep.subr.mxu0 0.0
        %2147 = vmatpush1.msra.mxu0 0.0
        %2148 = vmatprep.subr.mxu0 0.0
        %2149 = vmatpush1.msra.mxu0 0.0
        %2150 = vmatprep.subr.mxu0 0.0
        %2151 = vmatpush1.msra.mxu0 0.0
        %2152 = vmatprep.subr.mxu0 0.0
        %2153 = vmatpush1.msra.mxu0 0.0
        %2154 = vmatprep.subr.mxu0 0.0
        %2155 = vmatpush1.msra.mxu0 0.0
        %2156 = vmatprep.subr.mxu0 0.0
        %2157 = vmatpush1.msra.mxu0 0.0
        %2158 = vmatprep.subr.mxu0 0.0
        %2159 = vmatpush1.msra.mxu0 0.0
        %2160 = vmatprep.subr.mxu0 0.0
        %2161 = vmatpush1.msra.mxu0 0.0
        %2162 = vmatprep.subr.mxu0 0.0
        %2163 = vmatpush1.msra.mxu0 0.0
        %2164 = vmatprep.subr.mxu0 0.0
        %2165 = vmatpush1.msra.mxu0 0.0
        %2166 = vmatprep.subr.mxu0 0.0
        %2167 = vmatpush1.msra.mxu0 0.0
        %2168 = vmatprep.subr.mxu0 0.0
        %2169 = vmatpush1.msra.mxu0 0.0
        %2170 = vmatprep.subr.mxu0 0.0
        %2171 = vmatpush1.msra.mxu0 0.0
        %2172 = vmatprep.subr.mxu0 0.0
        %2173 = vmatpush1.msra.mxu0 0.0
        %2174 = vmatprep.subr.mxu0 0.0
        %2175 = vmatpush1.msra.mxu0 0.0
        %2176 = vmatprep.subr.mxu0 0.0
        %2177 = vmatpush1.msra.mxu0 0.0
        %2178 = vmatprep.subr.mxu0 0.0
        %2179 = vmatpush1.msra.mxu0 0.0
        %2180 = vmatprep.subr.mxu0 0.0
        %2181 = vmatpush1.msra.mxu0 0.0
        %2182 = vmatprep.subr.mxu0 0.0
        %2183 = vmatpush1.msra.mxu0 0.0
        %2184 = vmatprep.subr.mxu0 0.0
        %2185 = vmatpush1.msra.mxu0 0.0
        %2186 = vmatprep.subr.mxu0 0.0
        %2187 = vmatpush1.msra.mxu0 0.0
        %2188 = vmatprep.subr.mxu0 0.0
        %2189 = vmatpush1.msra.mxu0 0.0
        %2190 = vmatprep.subr.mxu0 0.0
        %2191 = vmatpush1.msra.mxu0 0.0
        %2192 = vmatprep.subr.mxu0 0.0
        %2193 = vmatpush1.msra.mxu0 0.0
        %2194 = vmatprep.subr.mxu0 0.0
        %2195 = vmatpush1.msra.mxu0 0.0
        %2196 = vmatprep.subr.mxu0 0.0
        %2197 = vmatpush1.msra.mxu0 0.0
        %2198 = vmatprep.subr.mxu0 0.0
        %2199 = vmatpush1.msra.mxu0 0.0
        %2200 = vmatprep.subr.mxu0 0.0
        %2201 = vmatpush1.msra.mxu0 0.0
        %2202 = vmatprep.subr.mxu0 0.0
        %2203 = vmatpush1.msra.mxu0 0.0
        %2204 = vmatprep.subr.mxu0 0.0
        %2205 = vmatpush1.msra.mxu0 0.0
        %2206 = vmatprep.mubr.f32.mxu0 0.0
        %2207 = vmatmul.mubr.f32.gmra.mrb[0].mxu0 %v1638
        %v2208 = vpop.f32.mrb[0].mxu0
        %v2209 = vadd.f32 %v2101, %v2208
        %v2210 = vpop.f32.mrb[0].mxu0
        %2211 = vmatprep.mubr.f32.mxu0 0.0
        %2212 = vmatmul.mubr.f32.gmra.mrb[0].mxu0 %v1641
        %v2213 = vpop.f32.mrb[0].mxu0
        %v2214 = vadd.f32 %v2106, %v2213
        %v2215 = vpop.f32.mrb[0].mxu0
        %2216 = vmatprep.mubr.f32.mxu0 0.0
        %2217 = vmatmul.mubr.f32.gmra.mrb[0].mxu0 %v1644
        %v2218 = vpop.f32.mrb[0].mxu0
        %v2219 = vadd.f32 %v2111, %v2218
        %v2220 = vpop.f32.mrb[0].mxu0
        %2221 = vmatprep.mubr.f32.mxu0 0.0
        %2222 = vmatmul.mubr.f32.gmra.mrb[0].mxu0 %v1647
        %v2223 = vpop.f32.mrb[0].mxu0
        %v2224 = vadd.f32 %v2116, %v2223
        %v2225 = vpop.f32.mrb[0].mxu0
        %2226 = vmatprep.mubr.f32.mxu0 0.0
        %2227 = vmatmul.mubr.f32.gmra.mrb[0].mxu0 %v1650
        %v2228 = vpop.f32.mrb[0].mxu0
        %v2229 = vadd.f32 %v2121, %v2228
        %v2230 = vpop.f32.mrb[0].mxu0
        %2231 = vmatprep.mubr.f32.mxu0 0.0
        %2232 = vmatmul.mubr.f32.gmra.mrb[0].mxu0 %v1653
        %v2233 = vpop.f32.mrb[0].mxu0
        %v2234 = vadd.f32 %v2126, %v2233
        %v2235 = vpop.f32.mrb[0].mxu0
        %2236 = vmatprep.mubr.f32.mxu0 0.0
        %2237 = vmatmul.mubr.f32.gmra.mrb[0].mxu0 %v1656
        %v2238 = vpop.f32.mrb[0].mxu0
        %v2239 = vadd.f32 %v2131, %v2238
        %v2240 = vpop.f32.mrb[0].mxu0
        %2241 = vmatprep.mubr.f32.mxu0 0.0
        %2242 = vmatmul.mubr.f32.gmra.mrb[0].mxu0 %v1659
        %v2243 = vpop.f32.mrb[0].mxu0
        %v2244 = vadd.f32 %v2136, %v2243
        %v2245 = vpop.f32.mrb[0].mxu0
        %2246 = vdwg.mxu0
        %s2247 = scalar_lea.vmem %s367, 128 [#allocation2]
        %2248 = vst.msk [vmem:[%s2247] sm:$0xff] %vm1769, %v2209
        %2249 = vst.msk [vmem:[%s2247 + $0x8] sm:$0xff] %vm1769, %v2214
        %2250 = vst.msk [vmem:[%s2247 + $0x10] sm:$0xff] %vm1769, %v2219
        %2251 = vst.msk [vmem:[%s2247 + $0x18] sm:$0xff] %vm1769, %v2224
        %2252 = vst.msk [vmem:[%s2247 + $0x20] sm:$0xff] %vm1769, %v2229
        %2253 = vst.msk [vmem:[%s2247 + $0x28] sm:$0xff] %vm1769, %v2234
        %2254 = vst.msk [vmem:[%s2247 + $0x30] sm:$0xff] %vm1769, %v2239
        %2255 = vst.msk [vmem:[%s2247 + $0x38] sm:$0xff] %vm1769, %v2244
        %v2256 = vrot.slane %v566, 3
        %v2258 = vrot.slane %v744, 2
        %v2260 = vsel %vm1490, %v2256, %v2258
        %v2261 = vrot.slane %v934, 3
        %v2263 = vrot.slane %v1112, 2
        %v2265 = vrot.slane %v1290, 1
        %v2267 = vsel %vm1490, %v2261, %v2263
        %v2268 = vsel %vm495, %v2267, %v2265
        %v2269 = vsel %vm1503, %v2268, %v1468
        %v2271 = vsel %vm863, %v2269, 0
        %2273 = vmatprep.subr.mxu0 0.0
        %2274 = vmatpush1.msra.mxu0 %v2271
        %2275 = vmatprep.subr.mxu0 0.0
        %2276 = vmatpush1.msra.mxu0 0.0
        %2277 = vmatprep.subr.mxu0 0.0
        %2278 = vmatpush1.msra.mxu0 0.0
        %2279 = vmatprep.subr.mxu0 0.0
        %2280 = vmatpush1.msra.mxu0 0.0
        %2281 = vmatprep.subr.mxu0 0.0
        %2282 = vmatpush1.msra.mxu0 0.0
        %2283 = vmatprep.subr.mxu0 0.0
        %2284 = vmatpush1.msra.mxu0 0.0
        %2285 = vmatprep.subr.mxu0 0.0
        %2286 = vmatpush1.msra.mxu0 0.0
        %2287 = vmatprep.subr.mxu0 0.0
        %2288 = vmatpush1.msra.mxu0 0.0
        %2289 = vmatprep.subr.mxu0 0.0
        %2290 = vmatpush1.msra.mxu0 0.0
        %2291 = vmatprep.subr.mxu0 0.0
        %2292 = vmatpush1.msra.mxu0 0.0
        %2293 = vmatprep.subr.mxu0 0.0
        %2294 = vmatpush1.msra.mxu0 0.0
        %2295 = vmatprep.subr.mxu0 0.0
        %2296 = vmatpush1.msra.mxu0 0.0
        %2297 = vmatprep.subr.mxu0 0.0
        %2298 = vmatpush1.msra.mxu0 0.0
        %2299 = vmatprep.subr.mxu0 0.0
        %2300 = vmatpush1.msra.mxu0 0.0
        %2301 = vmatprep.subr.mxu0 0.0
        %2302 = vmatpush1.msra.mxu0 0.0
        %2303 = vmatprep.subr.mxu0 0.0
        %2304 = vmatpush1.msra.mxu0 0.0
        %2305 = vmatprep.subr.mxu0 0.0
        %2306 = vmatpush1.msra.mxu0 0.0
        %2307 = vmatprep.subr.mxu0 0.0
        %2308 = vmatpush1.msra.mxu0 0.0
        %2309 = vmatprep.subr.mxu0 0.0
        %2310 = vmatpush1.msra.mxu0 0.0
        %2311 = vmatprep.subr.mxu0 0.0
        %2312 = vmatpush1.msra.mxu0 0.0
        %2313 = vmatprep.subr.mxu0 0.0
        %2314 = vmatpush1.msra.mxu0 0.0
        %2315 = vmatprep.subr.mxu0 0.0
        %2316 = vmatpush1.msra.mxu0 0.0
        %2317 = vmatprep.subr.mxu0 0.0
        %2318 = vmatpush1.msra.mxu0 0.0
        %2319 = vmatprep.subr.mxu0 0.0
        %2320 = vmatpush1.msra.mxu0 0.0
        %2321 = vmatprep.subr.mxu0 0.0
        %2322 = vmatpush1.msra.mxu0 0.0
        %2323 = vmatprep.subr.mxu0 0.0
        %2324 = vmatpush1.msra.mxu0 0.0
        %2325 = vmatprep.subr.mxu0 0.0
        %2326 = vmatpush1.msra.mxu0 0.0
        %2327 = vmatprep.subr.mxu0 0.0
        %2328 = vmatpush1.msra.mxu0 0.0
        %2329 = vmatprep.subr.mxu0 0.0
        %2330 = vmatpush1.msra.mxu0 0.0
        %2331 = vmatprep.subr.mxu0 0.0
        %2332 = vmatpush1.msra.mxu0 0.0
        %2333 = vmatprep.subr.mxu0 0.0
        %2334 = vmatpush1.msra.mxu0 0.0
        %2335 = vmatprep.subr.mxu0 0.0
        %2336 = vmatpush1.msra.mxu0 0.0
        %2337 = vmatprep.mubr.f32.mxu0 0.0
        %2338 = vmatmul.mubr.f32.gmra.mrb[0].mxu0 %v1506
        %v2339 = vpop.f32.mrb[0].mxu0
        %v2340 = vadd.f32 0.0, %v2339
        %v2341 = vpop.f32.mrb[0].mxu0
        %2342 = vmatprep.mubr.f32.mxu0 0.0
        %2343 = vmatmul.mubr.f32.gmra.mrb[0].mxu0 %v1509
        %v2344 = vpop.f32.mrb[0].mxu0
        %v2345 = vadd.f32 0.0, %v2344
        %v2346 = vpop.f32.mrb[0].mxu0
        %2347 = vmatprep.mubr.f32.mxu0 0.0
        %2348 = vmatmul.mubr.f32.gmra.mrb[0].mxu0 %v1512
        %v2349 = vpop.f32.mrb[0].mxu0
        %v2350 = vadd.f32 0.0, %v2349
        %v2351 = vpop.f32.mrb[0].mxu0
        %2352 = vmatprep.mubr.f32.mxu0 0.0
        %2353 = vmatmul.mubr.f32.gmra.mrb[0].mxu0 %v1515
        %v2354 = vpop.f32.mrb[0].mxu0
        %v2355 = vadd.f32 0.0, %v2354
        %v2356 = vpop.f32.mrb[0].mxu0
        %2357 = vmatprep.mubr.f32.mxu0 0.0
        %2358 = vmatmul.mubr.f32.gmra.mrb[0].mxu0 %v1518
        %v2359 = vpop.f32.mrb[0].mxu0
        %v2360 = vadd.f32 0.0, %v2359
        %v2361 = vpop.f32.mrb[0].mxu0
        %2362 = vmatprep.mubr.f32.mxu0 0.0
        %2363 = vmatmul.mubr.f32.gmra.mrb[0].mxu0 %v1521
        %v2364 = vpop.f32.mrb[0].mxu0
        %v2365 = vadd.f32 0.0, %v2364
        %v2366 = vpop.f32.mrb[0].mxu0
        %2367 = vmatprep.mubr.f32.mxu0 0.0
        %2368 = vmatmul.mubr.f32.gmra.mrb[0].mxu0 %v1524
        %v2369 = vpop.f32.mrb[0].mxu0
        %v2370 = vadd.f32 0.0, %v2369
        %v2371 = vpop.f32.mrb[0].mxu0
        %2372 = vmatprep.mubr.f32.mxu0 0.0
        %2373 = vmatmul.mubr.f32.gmra.mrb[0].mxu0 %v1527
        %v2374 = vpop.f32.mrb[0].mxu0
        %v2375 = vadd.f32 0.0, %v2374
        %v2376 = vpop.f32.mrb[0].mxu0
        %2377 = vdwg.mxu0
        %v2379 = vsel %vm495, %v2260, 0
        %2381 = vmatprep.subr.mxu0 0.0
        %2382 = vmatpush1.msra.mxu0 %v2379
        %2383 = vmatprep.subr.mxu0 0.0
        %2384 = vmatpush1.msra.mxu0 0.0
        %2385 = vmatprep.subr.mxu0 0.0
        %2386 = vmatpush1.msra.mxu0 0.0
        %2387 = vmatprep.subr.mxu0 0.0
        %2388 = vmatpush1.msra.mxu0 0.0
        %2389 = vmatprep.subr.mxu0 0.0
        %2390 = vmatpush1.msra.mxu0 0.0
        %2391 = vmatprep.subr.mxu0 0.0
        %2392 = vmatpush1.msra.mxu0 0.0
        %2393 = vmatprep.subr.mxu0 0.0
        %2394 = vmatpush1.msra.mxu0 0.0
        %2395 = vmatprep.subr.mxu0 0.0
        %2396 = vmatpush1.msra.mxu0 0.0
        %2397 = vmatprep.subr.mxu0 0.0
        %2398 = vmatpush1.msra.mxu0 0.0
        %2399 = vmatprep.subr.mxu0 0.0
        %2400 = vmatpush1.msra.mxu0 0.0
        %2401 = vmatprep.subr.mxu0 0.0
        %2402 = vmatpush1.msra.mxu0 0.0
        %2403 = vmatprep.subr.mxu0 0.0
        %2404 = vmatpush1.msra.mxu0 0.0
        %2405 = vmatprep.subr.mxu0 0.0
        %2406 = vmatpush1.msra.mxu0 0.0
        %2407 = vmatprep.subr.mxu0 0.0
        %2408 = vmatpush1.msra.mxu0 0.0
        %2409 = vmatprep.subr.mxu0 0.0
        %2410 = vmatpush1.msra.mxu0 0.0
        %2411 = vmatprep.subr.mxu0 0.0
        %2412 = vmatpush1.msra.mxu0 0.0
        %2413 = vmatprep.subr.mxu0 0.0
        %2414 = vmatpush1.msra.mxu0 0.0
        %2415 = vmatprep.subr.mxu0 0.0
        %2416 = vmatpush1.msra.mxu0 0.0
        %2417 = vmatprep.subr.mxu0 0.0
        %2418 = vmatpush1.msra.mxu0 0.0
        %2419 = vmatprep.subr.mxu0 0.0
        %2420 = vmatpush1.msra.mxu0 0.0
        %2421 = vmatprep.subr.mxu0 0.0
        %2422 = vmatpush1.msra.mxu0 0.0
        %2423 = vmatprep.subr.mxu0 0.0
        %2424 = vmatpush1.msra.mxu0 0.0
        %2425 = vmatprep.subr.mxu0 0.0
        %2426 = vmatpush1.msra.mxu0 0.0
        %2427 = vmatprep.subr.mxu0 0.0
        %2428 = vmatpush1.msra.mxu0 0.0
        %2429 = vmatprep.subr.mxu0 0.0
        %2430 = vmatpush1.msra.mxu0 0.0
        %2431 = vmatprep.subr.mxu0 0.0
        %2432 = vmatpush1.msra.mxu0 0.0
        %2433 = vmatprep.subr.mxu0 0.0
        %2434 = vmatpush1.msra.mxu0 0.0
        %2435 = vmatprep.subr.mxu0 0.0
        %2436 = vmatpush1.msra.mxu0 0.0
        %2437 = vmatprep.subr.mxu0 0.0
        %2438 = vmatpush1.msra.mxu0 0.0
        %2439 = vmatprep.subr.mxu0 0.0
        %2440 = vmatpush1.msra.mxu0 0.0
        %2441 = vmatprep.subr.mxu0 0.0
        %2442 = vmatpush1.msra.mxu0 0.0
        %2443 = vmatprep.subr.mxu0 0.0
        %2444 = vmatpush1.msra.mxu0 0.0
        %2445 = vmatprep.mubr.f32.mxu0 0.0
        %2446 = vmatmul.mubr.f32.gmra.mrb[0].mxu0 %v1638
        %v2447 = vpop.f32.mrb[0].mxu0
        %v2448 = vadd.f32 %v2340, %v2447
        %v2449 = vpop.f32.mrb[0].mxu0
        %2450 = vmatprep.mubr.f32.mxu0 0.0
        %2451 = vmatmul.mubr.f32.gmra.mrb[0].mxu0 %v1641
        %v2452 = vpop.f32.mrb[0].mxu0
        %v2453 = vadd.f32 %v2345, %v2452
        %v2454 = vpop.f32.mrb[0].mxu0
        %2455 = vmatprep.mubr.f32.mxu0 0.0
        %2456 = vmatmul.mubr.f32.gmra.mrb[0].mxu0 %v1644
        %v2457 = vpop.f32.mrb[0].mxu0
        %v2458 = vadd.f32 %v2350, %v2457
        %v2459 = vpop.f32.mrb[0].mxu0
        %2460 = vmatprep.mubr.f32.mxu0 0.0
        %2461 = vmatmul.mubr.f32.gmra.mrb[0].mxu0 %v1647
        %v2462 = vpop.f32.mrb[0].mxu0
        %v2463 = vadd.f32 %v2355, %v2462
        %v2464 = vpop.f32.mrb[0].mxu0
        %2465 = vmatprep.mubr.f32.mxu0 0.0
        %2466 = vmatmul.mubr.f32.gmra.mrb[0].mxu0 %v1650
        %v2467 = vpop.f32.mrb[0].mxu0
        %v2468 = vadd.f32 %v2360, %v2467
        %v2469 = vpop.f32.mrb[0].mxu0
        %2470 = vmatprep.mubr.f32.mxu0 0.0
        %2471 = vmatmul.mubr.f32.gmra.mrb[0].mxu0 %v1653
        %v2472 = vpop.f32.mrb[0].mxu0
        %v2473 = vadd.f32 %v2365, %v2472
        %v2474 = vpop.f32.mrb[0].mxu0
        %2475 = vmatprep.mubr.f32.mxu0 0.0
        %2476 = vmatmul.mubr.f32.gmra.mrb[0].mxu0 %v1656
        %v2477 = vpop.f32.mrb[0].mxu0
        %v2478 = vadd.f32 %v2370, %v2477
        %v2479 = vpop.f32.mrb[0].mxu0
        %2480 = vmatprep.mubr.f32.mxu0 0.0
        %2481 = vmatmul.mubr.f32.gmra.mrb[0].mxu0 %v1659
        %v2482 = vpop.f32.mrb[0].mxu0
        %v2483 = vadd.f32 %v2375, %v2482
        %v2484 = vpop.f32.mrb[0].mxu0
        %2485 = vdwg.mxu0
        %s2486 = scalar_lea.vmem %s367, 192 [#allocation2]
        %2487 = vst.msk [vmem:[%s2486] sm:$0xff] %vm1769, %v2448
        %2488 = vst.msk [vmem:[%s2486 + $0x8] sm:$0xff] %vm1769, %v2453
        %2489 = vst.msk [vmem:[%s2486 + $0x10] sm:$0xff] %vm1769, %v2458
        %2490 = vst.msk [vmem:[%s2486 + $0x18] sm:$0xff] %vm1769, %v2463
        %2491 = vst.msk [vmem:[%s2486 + $0x20] sm:$0xff] %vm1769, %v2468
        %2492 = vst.msk [vmem:[%s2486 + $0x28] sm:$0xff] %vm1769, %v2473
        %2493 = vst.msk [vmem:[%s2486 + $0x30] sm:$0xff] %vm1769, %v2478
        %2494 = vst.msk [vmem:[%s2486 + $0x38] sm:$0xff] %vm1769, %v2483
        %s2495 = sand.u32 %s252, 1
        %s2496 = scalar_lea.sflag [#allocation3], %s2495
        %s2497 = sand.u32 %s252, 1
        %s2498 = smul.addr %s2497, 256
        %s2499 = scalar_lea.vmem [#allocation2], %s2498
        // Predicated region
        $region61: #{fcn16_forward.37} parent=59 // pred_check
          %p2500 = pneg %p262
        $region62: #{fcn16_forward.37} parent=59 // pred_check_branch
          %2502 = sbr.rel (%p2500) target = $region64
        $region63: #{fcn16_forward.37} parent=59 // pred_region
          %s2504 = ssub.s32 4096, 4096
          %2505 = vsyncadd %s2496, %s2504
          %s2506 = smul.addr %s24, 32
          %s2507 = smul.addr %s2506, 128
          %s2508 = scalar_lea.hbm %s10, %s2507
          %s2509 = sshll.u32 %s2499, 4
          %s2510 = int_to_ptr.vmem [resolvable:$true] %s2509
          %2515 = dma.vmem_to_hbm [thread:$0]  %s2510, 4096, %s2508, %s2496, 128, 128, 8
        $region64: #{fcn16_forward.37} parent=59 // pred_fallthru
          _
      $region60: #{fcn16_forward.37} parent=5 // pred_fallthru
        _
      %p2516 = scmp.le.s32.totalorder 2, %s19
      // Predicated region
      $region65: #{fcn16_forward.37} parent=5 // pred_check
        %p2517 = pneg %p2516
      $region66: #{fcn16_forward.37} parent=5 // pred_check_branch
        %2519 = sbr.rel (%p2517) target = $region68
      $region67: #{fcn16_forward.37} parent=5 // pred_region
        %s2520 = ssub.s32 %s19, 2
        // Predicated region
        $region69: #{fcn16_forward.37} parent=67 // pred_check
          %p2521 = pneg %p268
        $region70: #{fcn16_forward.37} parent=67 // pred_check_branch
          %2523 = sbr.rel (%p2521) target = $region72
        $region71: #{fcn16_forward.37} parent=67 // pred_region
          %s2524 = sand.u32 %s253, 1
          %s2525 = scalar_lea.sflag [#allocation3], %s2524
          %s2526 = sand.u32 %s253, 1
          %s2527 = smul.addr %s2526, 256
          %s2528 = scalar_lea.vmem [#allocation2], %s2527
          %2529 = dma.done %s2525, 4096
        $region72: #{fcn16_forward.37} parent=67 // pred_fallthru
          _
      $region68: #{fcn16_forward.37} parent=5 // pred_fallthru
        _
    $region6: #{fcn16_forward.37} parent=1 // loop_footer
      %s23 = sadd.s32 1, %s19
    $region7: #{fcn16_forward.37} parent=1 // loop_footer_branch
      %18 = sbr.rel target = $region3
    $region8: #{fcn16_forward.37} parent=1 // loop_exit
      _
    %2530 = vsyncpa [#allocation3], 1
    %s2531 = scalar_lea.sflag [#allocation3], 1
    %2532 = vsyncpa %s2531, 1

</llo_original>
